<compile_context>
chip_gen: v7x
topology: tpu7x:2x2x1
jax: 0.10.0
libtpu: 0.0.40
codegen_flags: <defaults>
</compile_context>

<pallas_src>
import functools

import jax
import jax.numpy as jnp
import numpy as np
from jax import lax
from jax.experimental import pallas as pl
from jax.experimental.pallas import tpu as pltpu


def _convlstm_kernel(x_ref, h_ref, c_ref, w_ref, b_ref,
                     h_out_ref, c_out_ref,
                     comb_ref, patch_ref,
                     *, H, W, Cin, Chid, kh, kw, Cpad, m_chunk):
    # x_ref     : (H, W, Cin)                 f32  input block
    # h_ref     : (H, W, Chid)                f32  previous hidden state
    # c_ref     : (H*W, Chid)                 f32  previous cell state (flat)
    # w_ref     : (kh*kw*Cpad, 4*Chid)        bf16 lane-aligned im2col weights
    # b_ref     : (1, 4*Chid)                 f32  (g-gate columns pre-scaled by 2)
    # h_out_ref : (H*W, Chid)                 f32
    # c_out_ref : (H*W, Chid)                 f32
    # comb_ref  : VMEM (H+kh-1, W+kw-1, Cpad) bf16 zero-padded concat([h, x])
    # patch_ref : VMEM (H*W, kh*kw*Cpad)      bf16 im2col patch matrix
    ph, pw = kh // 2, kw // 2
    Ctot = Cin + Chid
    HW = H * W

    # In-kernel "concat + same-pad".  Zeroing covers the conv halo border AND
    # the channel-padding lanes [Ctot, Cpad); done every grid step so
    # correctness does not depend on how the parallel batch axis is split
    # across cores.
    # TODO(synk): for large H/W zero only the (kh-1)/(kw-1) halo border.
    comb_ref[...] = jnp.zeros_like(comb_ref)
    # Channel order [h, x]: the wide 32-channel h write starts lane-0 aligned
    # (weight rows are permuted to match in the wrapper).  Single f32->bf16
    # cast here; everything downstream of the matmul stays f32.
    comb_ref[ph:ph + H, pw:pw + W, 0:Chid] = h_ref[...].astype(comb_ref.dtype)
    comb_ref[ph:ph + H, pw:pw + W, Chid:Ctot] = x_ref[...].astype(comb_ref.dtype)

    # im2col: one shifted (H, W, Cpad) window per conv tap.  Column blocks are
    # Cpad wide (a multiple of 128), so every store below is a full-lane,
    # 128-aligned vst -- no lane-rotated masked stores per tap.
    for t in range(kh * kw):
        dy, dx = t // kw, t % kw
        patch_ref[:, t * Cpad:(t + 1) * Cpad] = (
            comb_ref[dy:dy + H, dx:dx + W, :].reshape(HW, Cpad))

    # Loop invariants hoisted out of the chunk loop (JAX does not CSE these).
    b_row = b_ref[...]                                     # (1, 4*Chid) f32

    n_chunks = HW // m_chunk
    # Statically unrolled chunk loop (n_chunks is tiny): full scheduler
    # visibility, so the MXU matmul of chunk m+1 overlaps gate math of chunk m.
    for m in range(n_chunks):
        r0 = m * m_chunk
        # One big-K bf16 MXU matmul per 128-row chunk, f32 accumulation.
        acc = jnp.dot(patch_ref[r0:r0 + m_chunk, :], w_ref[...],
                      preferred_element_type=jnp.float32)  # (m_chunk, 4*Chid)

        # Single full-lane sigmoid pass on the EUP.  The g-gate pre-activation
        # was scaled by 2 in the wrapper, so tanh(g) = 2*sigmoid(2g) - 1.
        sig = jax.nn.sigmoid(acc + b_row)
        i_g = sig[:, 0 * Chid:1 * Chid]                    # sigmoid(i)
        f_g = sig[:, 1 * Chid:2 * Chid]                    # sigmoid(f)
        o_g = sig[:, 2 * Chid:3 * Chid]                    # sigmoid(o)
        g_g = 2.0 * sig[:, 3 * Chid:4 * Chid] - 1.0        # tanh(g)

        c_cur = c_ref[r0:r0 + m_chunk, :]                  # (m_chunk, Chid) f32
        c_nxt = f_g * c_cur + i_g * g_g
        h_nxt = o_g * jnp.tanh(c_nxt)

        # TODO(synk): pack 128//Chid spatial rows into 128 output lanes for
        # full-lane stores once the (m, Chid)->(m/pack, pack*Chid) Mosaic
        # relayout is guaranteed to lower; these stores are lane-masked
        # (Chid=32 of 128 lanes) but the HBM writeback DMA is already dense.
        c_out_ref[r0:r0 + m_chunk, :] = c_nxt.astype(c_out_ref.dtype)
        h_out_ref[r0:r0 + m_chunk, :] = h_nxt.astype(h_out_ref.dtype)


def convlstm_cell_forward(x, h_cur, c_cur, weight_hwio, bias):
    """ConvLSTMCell forward.

    x            : (B, H, W, Cin)               float32
    h_cur, c_cur : (B, H, W, Chid)              float32
    weight_hwio  : (kh, kw, Cin+Chid, 4*Chid)   float32
    bias         : (4*Chid,)                    float32
    Returns (h_next, c_next), each (B, H, W, Chid) float32.
    """
    B, H, W, Cin = x.shape
    Chid = h_cur.shape[-1]
    kh, kw, Ctot, Cout = weight_hwio.shape
    assert Ctot == Cin + Chid and Cout == 4 * Chid
    # PyTorch padding=k//2 gives "same" output only for odd kernels.
    assert kh % 2 == 1 and kw % 2 == 1, "odd kernel sizes only"
    Hp, Wp = H + kh - 1, W + kw - 1
    HW = H * W
    # Pad the per-tap channel block up to a multiple of 128 so im2col column
    # writes are lane-aligned; the extra zero-K rows on the MXU are free here.
    Cpad = ((Ctot + 127) // 128) * 128
    K = kh * kw * Cpad

    # Chunk the matmul M dimension: prefer 128 (fills the 256-wide v6e/v7x
    # MXU better than 64 while keeping the f32 accumulator at 16 vregs).
    m_chunk = HW
    for cand in (128, 64, 32, 16, 8):
        if HW % cand == 0:
            m_chunk = cand
            break

    # Weight prep (do this once per rollout in a multi-timestep loop):
    #   * permute input channels to [h, x] to match the in-kernel concat order
    #   * zero-pad channels up to Cpad (lane-aligned im2col columns)
    #   * fold the factor 2 into the g-gate columns/bias so the kernel needs a
    #     single sigmoid pass (tanh(g) = 2*sigmoid(2g) - 1); *2 is exact in
    #     bf16 so numerics match scaling after rounding.
    w_perm = jnp.concatenate([weight_hwio[:, :, Cin:, :],
                              weight_hwio[:, :, :Cin, :]], axis=2)
    w_pad = jnp.zeros((kh, kw, Cpad, Cout), jnp.float32)
    w_pad = w_pad.at[:, :, :Ctot, :].set(w_perm)
    gate_scale = jnp.concatenate([jnp.ones((3 * Chid,), jnp.float32),
                                  jnp.full((Chid,), 2.0, jnp.float32)])
    w_mat = (w_pad * gate_scale).reshape(K, Cout).astype(jnp.bfloat16)
    bias2d = (bias.astype(jnp.float32) * gate_scale).reshape(1, Cout)

    c_flat = c_cur.reshape(B, HW, Chid)

    kernel = functools.partial(
        _convlstm_kernel, H=H, W=W, Cin=Cin, Chid=Chid, kh=kh, kw=kw,
        Cpad=Cpad, m_chunk=m_chunk)

    grid_spec = pltpu.PrefetchScalarGridSpec(
        num_scalar_prefetch=0,
        grid=(B,),
        in_specs=[
            pl.BlockSpec((None, H, W, Cin), lambda b: (b, 0, 0, 0)),
            pl.BlockSpec((None, H, W, Chid), lambda b: (b, 0, 0, 0)),
            pl.BlockSpec((None, HW, Chid), lambda b: (b, 0, 0)),
            # Constant block index -> Pallas does not re-DMA across grid steps.
            pl.BlockSpec((K, Cout), lambda b: (0, 0)),
            pl.BlockSpec((1, Cout), lambda b: (0, 0)),
        ],
        out_specs=[
            pl.BlockSpec((None, HW, Chid), lambda b: (b, 0, 0)),
            pl.BlockSpec((None, HW, Chid), lambda b: (b, 0, 0)),
        ],
        scratch_shapes=[
            pltpu.VMEM((Hp, Wp, Cpad), jnp.bfloat16),   # padded concat [h, x]
            pltpu.VMEM((HW, K), jnp.bfloat16),          # im2col patches
        ],
    )

    h_flat, c_next_flat = pl.pallas_call(
        kernel,
        out_shape=(
            jax.ShapeDtypeStruct((B, HW, Chid), jnp.float32),
            jax.ShapeDtypeStruct((B, HW, Chid), jnp.float32),
        ),
        grid_spec=grid_spec,
        compiler_params=pltpu.CompilerParams(
            dimension_semantics=("parallel",)),
    )(x, h_cur, c_flat, w_mat, bias2d)

    # TODO(synk): for B=1 on v7x (2 TensorCores) add a parallel H-row grid
    # axis with a (kh-1) halo so both cores get work; for very large H/W the
    # im2col patch should be built per m_chunk row block instead of whole-image.
    return (h_flat.reshape(B, H, W, Chid),
            c_next_flat.reshape(B, H, W, Chid))


def _reference_forward(x, h_cur, c_cur, weight_hwio, bias):
    """Pure-JAX f32 reference matching PyTorch ConvLSTMCell.forward."""
    combined = jnp.concatenate([x, h_cur], axis=-1)
    conv = lax.conv_general_dilated(
        combined, weight_hwio,
        window_strides=(1, 1), padding="SAME",
        dimension_numbers=("NHWC", "HWIO", "NHWC"),
        precision=lax.Precision.HIGHEST,
    ) + bias[None, None, None, :]
    cc_i, cc_f, cc_o, cc_g = jnp.split(conv, 4, axis=-1)
    i = jax.nn.sigmoid(cc_i)
    f = jax.nn.sigmoid(cc_f)
    o = jax.nn.sigmoid(cc_o)
    g = jnp.tanh(cc_g)
    c_next = f * c_cur + i * g
    h_next = o * jnp.tanh(c_next)
    return h_next, c_next


if __name__ == "__main__":
    B, Cin, H, W = 2, 4, 16, 16
    Chid = 32
    kh, kw = 3, 3
    Ctot = Cin + Chid
    Cout = 4 * Chid

    key = jax.random.PRNGKey(0)
    kx, kh_, kc, kw_, kb = jax.random.split(key, 5)

    x = jax.random.normal(kx, (B, H, W, Cin), jnp.float32)
    h_cur = jax.random.normal(kh_, (B, H, W, Chid), jnp.float32)
    c_cur = jax.random.normal(kc, (B, H, W, Chid), jnp.float32)

    fan_in = Ctot * kh * kw
    bound = 1.0 / np.sqrt(fan_in)
    weight_hwio = jax.random.uniform(kw_, (kh, kw, Ctot, Cout), jnp.float32,
                                     minval=-bound, maxval=bound)
    bias = jax.random.uniform(kb, (Cout,), jnp.float32,
                              minval=-bound, maxval=bound)

    h_next, c_next = convlstm_cell_forward(x, h_cur, c_cur, weight_hwio, bias)
    jax.block_until_ready((h_next, c_next))

    # 1) Kernel-accuracy check: f32 reference on bf16-rounded matmul operands
    #    (exactly what the kernel computes, up to accumulation order).
    def _rb(a):
        return a.astype(jnp.bfloat16).astype(jnp.float32)

    h_bf, c_bf = _reference_forward(_rb(x), _rb(h_cur), c_cur,
                                    _rb(weight_hwio), bias)
    np.testing.assert_allclose(np.asarray(h_next), np.asarray(h_bf),
                               rtol=2e-3, atol=2e-3)
    np.testing.assert_allclose(np.asarray(c_next), np.asarray(c_bf),
                               rtol=2e-3, atol=2e-3)

    # 2) Module-semantics check against the full-f32 reference.  Tolerance is
    #    loose because the conv operands (x, h, W) are bf16 on the MXU; in a
    #    multi-timestep rollout the per-step bf16 rounding of h can drift
    #    slightly, while c (the critical accumulation path) stays f32.
    h_ref, c_ref = _reference_forward(x, h_cur, c_cur, weight_hwio, bias)
    np.testing.assert_allclose(np.asarray(h_next), np.asarray(h_ref),
                               rtol=5e-2, atol=5e-2)
    np.testing.assert_allclose(np.asarray(c_next), np.asarray(c_ref),
                               rtol=5e-2, atol=5e-2)
    print("KERNEL_OK")
</pallas_src>

<mosaic_0001>
module attributes {stable_mosaic.version = 11 : i64} {
  func.func @_convlstm_kernel(%arg0: i32, %arg1: memref<1x16x16x4xf32, #tpu.memory_space<vmem>>, %arg2: memref<1x16x16x32xf32, #tpu.memory_space<vmem>>, %arg3: memref<1x256x32xf32, #tpu.memory_space<vmem>>, %arg4: memref<1152x128xbf16, #tpu.memory_space<vmem>>, %arg5: memref<1x128xf32, #tpu.memory_space<vmem>>, %arg6: memref<1x256x32xf32, #tpu.memory_space<vmem>>, %arg7: memref<1x256x32xf32, #tpu.memory_space<vmem>>, %arg8: memref<18x18x128xbf16, #tpu.memory_space<vmem>>, %arg9: memref<256x1152xbf16, #tpu.memory_space<vmem>>) attributes {dimension_semantics = [#tpu.dimension_semantics<parallel>], iteration_bounds = array<i64: 2>, scalar_prefetch = 0 : i64, scratch_operands = 2 : i64, tpu.core_type = #tpu.core_type<tc>, window_params = [{transform_indices = @transform_0, window_bounds = array<i64: 1, 16, 16, 4>}, {transform_indices = @transform_1, window_bounds = array<i64: 1, 16, 16, 32>}, {transform_indices = @transform_2, window_bounds = array<i64: 1, 256, 32>}, {pipeline_mode = #tpu.pipeline_mode<synchronous>, transform_indices = @transform_3, window_bounds = array<i64: 1152, 128>}, {pipeline_mode = #tpu.pipeline_mode<synchronous>, transform_indices = @transform_4, window_bounds = array<i64: 1, 128>}, {transform_indices = @transform_5, window_bounds = array<i64: 1, 256, 32>}, {transform_indices = @transform_6, window_bounds = array<i64: 1, 256, 32>}]} {
    %cst = arith.constant 0.000000e+00 : bf16
    %0 = vector.broadcast %cst : bf16 to vector<18x18x128xbf16>
    %c0 = arith.constant 0 : index
    %c0_0 = arith.constant 0 : index
    %c0_1 = arith.constant 0 : index
    %1 = vector.load %arg8[%c0, %c0_0, %c0_1] : memref<18x18x128xbf16, #tpu.memory_space<vmem>>, vector<18x18x128xbf16>
    tpu.vector_store %arg8[%c0, %c0_0, %c0_1], %0 {strides = array<i32>} : memref<18x18x128xbf16, #tpu.memory_space<vmem>>, vector<18x18x128xbf16>,
    %c0_2 = arith.constant 0 : index
    %c0_3 = arith.constant 0 : index
    %c0_4 = arith.constant 0 : index
    %c0_5 = arith.constant 0 : index
    %2 = vector.load %arg2[%c0_2, %c0_3, %c0_4, %c0_5] : memref<1x16x16x32xf32, #tpu.memory_space<vmem>>, vector<1x16x16x32xf32>
    %3 = vector.shape_cast %2 : vector<1x16x16x32xf32> to vector<16x16x32xf32>
    %4 = arith.truncf %3 : vector<16x16x32xf32> to vector<16x16x32xbf16>
    %c1 = arith.constant 1 : index
    %c1_6 = arith.constant 1 : index
    %c0_7 = arith.constant 0 : index
    %5 = vector.load %arg8[%c1, %c1_6, %c0_7] : memref<18x18x128xbf16, #tpu.memory_space<vmem>>, vector<16x16x32xbf16>
    tpu.vector_store %arg8[%c1, %c1_6, %c0_7], %4 {strides = array<i32>} : memref<18x18x128xbf16, #tpu.memory_space<vmem>>, vector<16x16x32xbf16>,
    %c0_8 = arith.constant 0 : index
    %c0_9 = arith.constant 0 : index
    %c0_10 = arith.constant 0 : index
    %c0_11 = arith.constant 0 : index
    %6 = vector.load %arg1[%c0_8, %c0_9, %c0_10, %c0_11] : memref<1x16x16x4xf32, #tpu.memory_space<vmem>>, vector<1x16x16x4xf32>
    %7 = vector.shape_cast %6 : vector<1x16x16x4xf32> to vector<16x16x4xf32>
    %8 = arith.truncf %7 : vector<16x16x4xf32> to vector<16x16x4xbf16>
    %c1_12 = arith.constant 1 : index
    %c1_13 = arith.constant 1 : index
    %c32 = arith.constant 32 : index
    %9 = vector.load %arg8[%c1_12, %c1_13, %c32] : memref<18x18x128xbf16, #tpu.memory_space<vmem>>, vector<16x16x4xbf16>
    tpu.vector_store %arg8[%c1_12, %c1_13, %c32], %8 {strides = array<i32>} : memref<18x18x128xbf16, #tpu.memory_space<vmem>>, vector<16x16x4xbf16>,
    %c0_14 = arith.constant 0 : index
    %c0_15 = arith.constant 0 : index
    %c0_16 = arith.constant 0 : index
    %10 = vector.load %arg8[%c0_14, %c0_15, %c0_16] : memref<18x18x128xbf16, #tpu.memory_space<vmem>>, vector<16x16x128xbf16>
    %11 = vector.shape_cast %10 : vector<16x16x128xbf16> to vector<256x128xbf16>
    %c0_17 = arith.constant 0 : index
    %c0_18 = arith.constant 0 : index
    %12 = vector.load %arg9[%c0_17, %c0_18] : memref<256x1152xbf16, #tpu.memory_space<vmem>>, vector<256x128xbf16>
    tpu.vector_store %arg9[%c0_17, %c0_18], %11 {strides = array<i32>} : memref<256x1152xbf16, #tpu.memory_space<vmem>>, vector<256x128xbf16>,
    %c0_19 = arith.constant 0 : index
    %c1_20 = arith.constant 1 : index
    %c0_21 = arith.constant 0 : index
    %13 = vector.load %arg8[%c0_19, %c1_20, %c0_21] : memref<18x18x128xbf16, #tpu.memory_space<vmem>>, vector<16x16x128xbf16>
    %14 = vector.shape_cast %13 : vector<16x16x128xbf16> to vector<256x128xbf16>
    %c0_22 = arith.constant 0 : index
    %c128 = arith.constant 128 : index
    %15 = vector.load %arg9[%c0_22, %c128] : memref<256x1152xbf16, #tpu.memory_space<vmem>>, vector<256x128xbf16>
    tpu.vector_store %arg9[%c0_22, %c128], %14 {strides = array<i32>} : memref<256x1152xbf16, #tpu.memory_space<vmem>>, vector<256x128xbf16>,
    %c0_23 = arith.constant 0 : index
    %c2 = arith.constant 2 : index
    %c0_24 = arith.constant 0 : index
    %16 = vector.load %arg8[%c0_23, %c2, %c0_24] : memref<18x18x128xbf16, #tpu.memory_space<vmem>>, vector<16x16x128xbf16>
    %17 = vector.shape_cast %16 : vector<16x16x128xbf16> to vector<256x128xbf16>
    %c0_25 = arith.constant 0 : index
    %c256 = arith.constant 256 : index
    %18 = vector.load %arg9[%c0_25, %c256] : memref<256x1152xbf16, #tpu.memory_space<vmem>>, vector<256x128xbf16>
    tpu.vector_store %arg9[%c0_25, %c256], %17 {strides = array<i32>} : memref<256x1152xbf16, #tpu.memory_space<vmem>>, vector<256x128xbf16>,
    %c1_26 = arith.constant 1 : index
    %c0_27 = arith.constant 0 : index
    %c0_28 = arith.constant 0 : index
    %19 = vector.load %arg8[%c1_26, %c0_27, %c0_28] : memref<18x18x128xbf16, #tpu.memory_space<vmem>>, vector<16x16x128xbf16>
    %20 = vector.shape_cast %19 : vector<16x16x128xbf16> to vector<256x128xbf16>
    %c0_29 = arith.constant 0 : index
    %c384 = arith.constant 384 : index
    %21 = vector.load %arg9[%c0_29, %c384] : memref<256x1152xbf16, #tpu.memory_space<vmem>>, vector<256x128xbf16>
    tpu.vector_store %arg9[%c0_29, %c384], %20 {strides = array<i32>} : memref<256x1152xbf16, #tpu.memory_space<vmem>>, vector<256x128xbf16>,
    %c1_30 = arith.constant 1 : index
    %c1_31 = arith.constant 1 : index
    %c0_32 = arith.constant 0 : index
    %22 = vector.load %arg8[%c1_30, %c1_31, %c0_32] : memref<18x18x128xbf16, #tpu.memory_space<vmem>>, vector<16x16x128xbf16>
    %23 = vector.shape_cast %22 : vector<16x16x128xbf16> to vector<256x128xbf16>
    %c0_33 = arith.constant 0 : index
    %c512 = arith.constant 512 : index
    %24 = vector.load %arg9[%c0_33, %c512] : memref<256x1152xbf16, #tpu.memory_space<vmem>>, vector<256x128xbf16>
    tpu.vector_store %arg9[%c0_33, %c512], %23 {strides = array<i32>} : memref<256x1152xbf16, #tpu.memory_space<vmem>>, vector<256x128xbf16>,
    %c1_34 = arith.constant 1 : index
    %c2_35 = arith.constant 2 : index
    %c0_36 = arith.constant 0 : index
    %25 = vector.load %arg8[%c1_34, %c2_35, %c0_36] : memref<18x18x128xbf16, #tpu.memory_space<vmem>>, vector<16x16x128xbf16>
    %26 = vector.shape_cast %25 : vector<16x16x128xbf16> to vector<256x128xbf16>
    %c0_37 = arith.constant 0 : index
    %c640 = arith.constant 640 : index
    %27 = vector.load %arg9[%c0_37, %c640] : memref<256x1152xbf16, #tpu.memory_space<vmem>>, vector<256x128xbf16>
    tpu.vector_store %arg9[%c0_37, %c640], %26 {strides = array<i32>} : memref<256x1152xbf16, #tpu.memory_space<vmem>>, vector<256x128xbf16>,
    %c2_38 = arith.constant 2 : index
    %c0_39 = arith.constant 0 : index
    %c0_40 = arith.constant 0 : index
    %28 = vector.load %arg8[%c2_38, %c0_39, %c0_40] : memref<18x18x128xbf16, #tpu.memory_space<vmem>>, vector<16x16x128xbf16>
    %29 = vector.shape_cast %28 : vector<16x16x128xbf16> to vector<256x128xbf16>
    %c0_41 = arith.constant 0 : index
    %c768 = arith.constant 768 : index
    %30 = vector.load %arg9[%c0_41, %c768] : memref<256x1152xbf16, #tpu.memory_space<vmem>>, vector<256x128xbf16>
    tpu.vector_store %arg9[%c0_41, %c768], %29 {strides = array<i32>} : memref<256x1152xbf16, #tpu.memory_space<vmem>>, vector<256x128xbf16>,
    %c2_42 = arith.constant 2 : index
    %c1_43 = arith.constant 1 : index
    %c0_44 = arith.constant 0 : index
    %31 = vector.load %arg8[%c2_42, %c1_43, %c0_44] : memref<18x18x128xbf16, #tpu.memory_space<vmem>>, vector<16x16x128xbf16>
    %32 = vector.shape_cast %31 : vector<16x16x128xbf16> to vector<256x128xbf16>
    %c0_45 = arith.constant 0 : index
    %c896 = arith.constant 896 : index
    %33 = vector.load %arg9[%c0_45, %c896] : memref<256x1152xbf16, #tpu.memory_space<vmem>>, vector<256x128xbf16>
    tpu.vector_store %arg9[%c0_45, %c896], %32 {strides = array<i32>} : memref<256x1152xbf16, #tpu.memory_space<vmem>>, vector<256x128xbf16>,
    %c2_46 = arith.constant 2 : index
    %c2_47 = arith.constant 2 : index
    %c0_48 = arith.constant 0 : index
    %34 = vector.load %arg8[%c2_46, %c2_47, %c0_48] : memref<18x18x128xbf16, #tpu.memory_space<vmem>>, vector<16x16x128xbf16>
    %35 = vector.shape_cast %34 : vector<16x16x128xbf16> to vector<256x128xbf16>
    %c0_49 = arith.constant 0 : index
    %c1024 = arith.constant 1024 : index
    %36 = vector.load %arg9[%c0_49, %c1024] : memref<256x1152xbf16, #tpu.memory_space<vmem>>, vector<256x128xbf16>
    tpu.vector_store %arg9[%c0_49, %c1024], %35 {strides = array<i32>} : memref<256x1152xbf16, #tpu.memory_space<vmem>>, vector<256x128xbf16>,
    %c0_50 = arith.constant 0 : index
    %c0_51 = arith.constant 0 : index
    %37 = vector.load %arg5[%c0_50, %c0_51] : memref<1x128xf32, #tpu.memory_space<vmem>>, vector<1x128xf32>
    %c0_52 = arith.constant 0 : index
    %c0_53 = arith.constant 0 : index
    %38 = vector.load %arg9[%c0_52, %c0_53] : memref<256x1152xbf16, #tpu.memory_space<vmem>>, vector<128x1152xbf16>
    %c0_54 = arith.constant 0 : index
    %c0_55 = arith.constant 0 : index
    %39 = vector.load %arg4[%c0_54, %c0_55] : memref<1152x128xbf16, #tpu.memory_space<vmem>>, vector<1152x128xbf16>
    %cst_56 = arith.constant dense<0.000000e+00> : vector<128x128xf32>
    %40 = tpu.matmul %38, %39, %cst_56 {dimension_numbers = #tpu.dot_dimension_numbers<[1], [0], [0], [1], [0, 0, 1, 1], [], []>} : vector<128x1152xbf16>, vector<1152x128xbf16>, vector<128x128xf32> -> vector<128x128xf32>
    %41 = vector.broadcast %37 : vector<1x128xf32> to vector<128x128xf32>
    %42 = arith.addf %40, %41 : vector<128x128xf32>
    %43 = arith.negf %42 : vector<128x128xf32>
    %44 = math.exp %43 : vector<128x128xf32>
    %cst_57 = arith.constant 1.000000e+00 : f32
    %45 = vector.broadcast %cst_57 : f32 to vector<128x128xf32>
    %46 = arith.addf %45, %44 : vector<128x128xf32>
    %47 = arith.divf %45, %46 : vector<128x128xf32>
    %48 = vector.extract_strided_slice %47 {offsets = [0, 0], sizes = [128, 32], strides = [1, 1]} : vector<128x128xf32> to vector<128x32xf32>
    %49 = vector.extract_strided_slice %47 {offsets = [0, 32], sizes = [128, 32], strides = [1, 1]} : vector<128x128xf32> to vector<128x32xf32>
    %50 = vector.extract_strided_slice %47 {offsets = [0, 64], sizes = [128, 32], strides = [1, 1]} : vector<128x128xf32> to vector<128x32xf32>
    %51 = vector.extract_strided_slice %47 {offsets = [0, 96], sizes = [128, 32], strides = [1, 1]} : vector<128x128xf32> to vector<128x32xf32>
    %cst_58 = arith.constant 2.000000e+00 : f32
    %52 = vector.broadcast %cst_58 : f32 to vector<128x32xf32>
    %53 = arith.mulf %52, %51 : vector<128x32xf32>
    %cst_59 = arith.constant 1.000000e+00 : f32
    %54 = vector.broadcast %cst_59 : f32 to vector<128x32xf32>
    %55 = arith.subf %53, %54 : vector<128x32xf32>
    %c0_60 = arith.constant 0 : index
    %c0_61 = arith.constant 0 : index
    %c0_62 = arith.constant 0 : index
    %56 = vector.load %arg3[%c0_60, %c0_61, %c0_62] : memref<1x256x32xf32, #tpu.memory_space<vmem>>, vector<1x128x32xf32>
    %57 = vector.shape_cast %56 : vector<1x128x32xf32> to vector<128x32xf32>
    %58 = arith.mulf %49, %57 : vector<128x32xf32>
    %59 = arith.mulf %48, %55 : vector<128x32xf32>
    %60 = arith.addf %58, %59 : vector<128x32xf32>
    %61 = math.tanh %60 : vector<128x32xf32>
    %62 = arith.mulf %50, %61 : vector<128x32xf32>
    %c0_63 = arith.constant 0 : index
    %c0_64 = arith.constant 0 : index
    %c0_65 = arith.constant 0 : index
    %63 = vector.load %arg7[%c0_63, %c0_64, %c0_65] : memref<1x256x32xf32, #tpu.memory_space<vmem>>, vector<1x128x32xf32>
    %64 = vector.shape_cast %63 : vector<1x128x32xf32> to vector<128x32xf32>
    %65 = vector.shape_cast %60 : vector<128x32xf32> to vector<1x128x32xf32>
    tpu.vector_store %arg7[%c0_63, %c0_64, %c0_65], %65 {strides = array<i32>} : memref<1x256x32xf32, #tpu.memory_space<vmem>>, vector<1x128x32xf32>,
    %c0_66 = arith.constant 0 : index
    %c0_67 = arith.constant 0 : index
    %c0_68 = arith.constant 0 : index
    %66 = vector.load %arg6[%c0_66, %c0_67, %c0_68] : memref<1x256x32xf32, #tpu.memory_space<vmem>>, vector<1x128x32xf32>
    %67 = vector.shape_cast %66 : vector<1x128x32xf32> to vector<128x32xf32>
    %68 = vector.shape_cast %62 : vector<128x32xf32> to vector<1x128x32xf32>
    tpu.vector_store %arg6[%c0_66, %c0_67, %c0_68], %68 {strides = array<i32>} : memref<1x256x32xf32, #tpu.memory_space<vmem>>, vector<1x128x32xf32>,
    %c128_69 = arith.constant 128 : index
    %c0_70 = arith.constant 0 : index
    %69 = vector.load %arg9[%c128_69, %c0_70] : memref<256x1152xbf16, #tpu.memory_space<vmem>>, vector<128x1152xbf16>
    %c0_71 = arith.constant 0 : index
    %c0_72 = arith.constant 0 : index
    %70 = vector.load %arg4[%c0_71, %c0_72] : memref<1152x128xbf16, #tpu.memory_space<vmem>>, vector<1152x128xbf16>
    %cst_73 = arith.constant dense<0.000000e+00> : vector<128x128xf32>
    %71 = tpu.matmul %69, %70, %cst_73 {dimension_numbers = #tpu.dot_dimension_numbers<[1], [0], [0], [1], [0, 0, 1, 1], [], []>} : vector<128x1152xbf16>, vector<1152x128xbf16>, vector<128x128xf32> -> vector<128x128xf32>
    %72 = vector.broadcast %37 : vector<1x128xf32> to vector<128x128xf32>
    %73 = arith.addf %71, %72 : vector<128x128xf32>
    %74 = arith.negf %73 : vector<128x128xf32>
    %75 = math.exp %74 : vector<128x128xf32>
    %cst_74 = arith.constant 1.000000e+00 : f32
    %76 = vector.broadcast %cst_74 : f32 to vector<128x128xf32>
    %77 = arith.addf %76, %75 : vector<128x128xf32>
    %78 = arith.divf %76, %77 : vector<128x128xf32>
    %79 = vector.extract_strided_slice %78 {offsets = [0, 0], sizes = [128, 32], strides = [1, 1]} : vector<128x128xf32> to vector<128x32xf32>
    %80 = vector.extract_strided_slice %78 {offsets = [0, 32], sizes = [128, 32], strides = [1, 1]} : vector<128x128xf32> to vector<128x32xf32>
    %81 = vector.extract_strided_slice %78 {offsets = [0, 64], sizes = [128, 32], strides = [1, 1]} : vector<128x128xf32> to vector<128x32xf32>
    %82 = vector.extract_strided_slice %78 {offsets = [0, 96], sizes = [128, 32], strides = [1, 1]} : vector<128x128xf32> to vector<128x32xf32>
    %cst_75 = arith.constant 2.000000e+00 : f32
    %83 = vector.broadcast %cst_75 : f32 to vector<128x32xf32>
    %84 = arith.mulf %83, %82 : vector<128x32xf32>
    %cst_76 = arith.constant 1.000000e+00 : f32
    %85 = vector.broadcast %cst_76 : f32 to vector<128x32xf32>
    %86 = arith.subf %84, %85 : vector<128x32xf32>
    %c0_77 = arith.constant 0 : index
    %c128_78 = arith.constant 128 : index
    %c0_79 = arith.constant 0 : index
    %87 = vector.load %arg3[%c0_77, %c128_78, %c0_79] : memref<1x256x32xf32, #tpu.memory_space<vmem>>, vector<1x128x32xf32>
    %88 = vector.shape_cast %87 : vector<1x128x32xf32> to vector<128x32xf32>
    %89 = arith.mulf %80, %88 : vector<128x32xf32>
    %90 = arith.mulf %79, %86 : vector<128x32xf32>
    %91 = arith.addf %89, %90 : vector<128x32xf32>
    %92 = math.tanh %91 : vector<128x32xf32>
    %93 = arith.mulf %81, %92 : vector<128x32xf32>
    %c0_80 = arith.constant 0 : index
    %c128_81 = arith.constant 128 : index
    %c0_82 = arith.constant 0 : index
    %94 = vector.load %arg7[%c0_80, %c128_81, %c0_82] : memref<1x256x32xf32, #tpu.memory_space<vmem>>, vector<1x128x32xf32>
    %95 = vector.shape_cast %94 : vector<1x128x32xf32> to vector<128x32xf32>
    %96 = vector.shape_cast %91 : vector<128x32xf32> to vector<1x128x32xf32>
    tpu.vector_store %arg7[%c0_80, %c128_81, %c0_82], %96 {strides = array<i32>} : memref<1x256x32xf32, #tpu.memory_space<vmem>>, vector<1x128x32xf32>,
    %c0_83 = arith.constant 0 : index
    %c128_84 = arith.constant 128 : index
    %c0_85 = arith.constant 0 : index
    %97 = vector.load %arg6[%c0_83, %c128_84, %c0_85] : memref<1x256x32xf32, #tpu.memory_space<vmem>>, vector<1x128x32xf32>
    %98 = vector.shape_cast %97 : vector<1x128x32xf32> to vector<128x32xf32>
    %99 = vector.shape_cast %93 : vector<128x32xf32> to vector<1x128x32xf32>
    tpu.vector_store %arg6[%c0_83, %c128_84, %c0_85], %99 {strides = array<i32>} : memref<1x256x32xf32, #tpu.memory_space<vmem>>, vector<1x128x32xf32>,
    return
  }
  func.func @transform_0(%arg0: i32) -> (i32, i32, i32, i32) {
    %c0_i32 = arith.constant 0 : i32
    %c0_i32_0 = arith.constant 0 : i32
    %c0_i32_1 = arith.constant 0 : i32
    %c0_i32_2 = arith.constant 0 : i32
    return %arg0, %c0_i32, %c0_i32_0, %c0_i32_1 : i32, i32, i32, i32
  }
  func.func @transform_1(%arg0: i32) -> (i32, i32, i32, i32) {
    %c0_i32 = arith.constant 0 : i32
    %c0_i32_0 = arith.constant 0 : i32
    %c0_i32_1 = arith.constant 0 : i32
    %c0_i32_2 = arith.constant 0 : i32
    return %arg0, %c0_i32, %c0_i32_0, %c0_i32_1 : i32, i32, i32, i32
  }
  func.func @transform_2(%arg0: i32) -> (i32, i32, i32) {
    %c0_i32 = arith.constant 0 : i32
    %c0_i32_0 = arith.constant 0 : i32
    %c0_i32_1 = arith.constant 0 : i32
    return %arg0, %c0_i32, %c0_i32_0 : i32, i32, i32
  }
  func.func @transform_3(%arg0: i32) -> (i32, i32) {
    %c0_i32 = arith.constant 0 : i32
    %c0_i32_0 = arith.constant 0 : i32
    %c0_i32_1 = arith.constant 0 : i32
    return %c0_i32, %c0_i32_0 : i32, i32
  }
  func.func @transform_4(%arg0: i32) -> (i32, i32) {
    %c0_i32 = arith.constant 0 : i32
    %c0_i32_0 = arith.constant 0 : i32
    %c0_i32_1 = arith.constant 0 : i32
    return %c0_i32, %c0_i32_0 : i32, i32
  }
  func.func @transform_5(%arg0: i32) -> (i32, i32, i32) {
    %c0_i32 = arith.constant 0 : i32
    %c0_i32_0 = arith.constant 0 : i32
    %c0_i32_1 = arith.constant 0 : i32
    return %arg0, %c0_i32, %c0_i32_0 : i32, i32, i32
  }
  func.func @transform_6(%arg0: i32) -> (i32, i32, i32) {
    %c0_i32 = arith.constant 0 : i32
    %c0_i32_0 = arith.constant 0 : i32
    %c0_i32_1 = arith.constant 0 : i32
    return %arg0, %c0_i32, %c0_i32_0 : i32, i32, i32
  }
}

</mosaic_0001>

<llo_original>
// kernel: tpu_custom_call.1
$region0: #{tpu_custom_call.1}
  #allocation0 [shape = 'u32[]', space=smem, size = 0x4, offset = 0x4, fixed_abs, tag = 'smem constant byte address 0x4 - core index']
  #allocation1 [shape = 'u32[144,128]{1,0:T(1,128)}', space=vmem, size = 0x12000, scoped, tag = 'internal scratch']
  #allocation2 [shape = 'bf16[18,18,128]{2,1,0:T(8,128)(2,1)}', space=vmem, size = 0x1b000, scoped, tag = 'scratch operand']
  #allocation3 [shape = 'bf16[256,1152]{1,0:T(16,128)(2,1)}', space=vmem, size = 0x90000, scoped, tag = 'scratch operand']
  %s0 = inlined_call_operand.vmem [shape: f32[2,16,16,4], index: 0, kind: input, shape index: {}]
  %s1 = inlined_call_operand.vmem [shape: f32[2,16,16,32], index: 1, kind: input, shape index: {}]
  %s2 = inlined_call_operand.vmem [shape: f32[2,256,32], index: 2, kind: input, shape index: {}]
  %s3 = inlined_call_operand.vmem [shape: bf16[1152,128], index: 3, kind: input, shape index: {}]
  %s4 = inlined_call_operand.vmem [shape: f32[1,128], index: 4, kind: input, shape index: {}]
  %s5 = inlined_call_operand.vmem [shape: f32[2,256,32], index: 5, kind: output, shape index: {0}]
  %s6 = inlined_call_operand.vmem [shape: f32[2,256,32], index: 6, kind: output, shape index: {1}]
  %7 = xla_tuple %s5, %s6
  %s8 = sld [smem:[#allocation0]]
  $region61: #{tpu_custom_call.1} parent=0
    _
  %s10 = ssub.s32 1, %s8
  %s11 = scalar_select 0, %s10, %s8
  loop: start=0, step=1, limit=4
  $region2: #{tpu_custom_call.1} parent=0 // loop_pre_header
    _
  $region3: #{tpu_custom_call.1} parent=0 // loop_header
    %s13 = sphi 0, %s17
    %p14 = scmp.ge.s32.totalorder %s13, 4
    %s23 = sphi 0, %s25
    %s26 = sphi 0, %s23
    %s27 = sphi 0, %s26
    %s43 = sphi 0, %s27
    %s49 = sphi 0, %s51
    %s52 = sphi 0, %s49
    %s53 = sphi 0, %s52
    %s69 = sphi 0, %s53
    %s75 = sphi 0, %s77
    %s78 = sphi 0, %s75
    %s79 = sphi 0, %s78
    %s95 = sphi 0, %s79
    %s99 = sphi 0, %s99
    %s101 = sphi 0, %s99
    %s102 = sphi 0, %s101
    %s116 = sphi 0, %s102
    %s120 = sphi 0, %s120
    %s122 = sphi 0, %s120
    %s123 = sphi 0, %s122
    %s137 = sphi 0, %s123
    %s143 = sphi 0, %s145
    %s146 = sphi 0, %s143
    %s147 = sphi 0, %s146
    %s163 = sphi 0, %s147
    %s169 = sphi 0, %s171
    %s172 = sphi 0, %s169
    %s173 = sphi 0, %s172
    %s189 = sphi 0, %s173
  $region4: #{tpu_custom_call.1} parent=0 // loop_header_branch
    %16 = sbr.rel (%p14) target = $region8
  $region5: #{tpu_custom_call.1} parent=0 // loop_body
    %s18 = ssub.s32 %s13, 1
    %s19 = ssub.s32 %s13, 2
    %s20 = sadd.s32 %s13, 1
    %s21 = ssub.s32 %s13, %s20
    %p22 = scmp.eq.s32.totalorder %s21, 0
    %s24 = sadd.s32 %s23, 1
    %s25 = scalar_select %p22, %s23, %s24
    %p28 = pneg %p22
    %p29 = scmp.eq.s32.totalorder %s13, 1
    %p30 = por %p28, %p29
    %p31 = scmp.ne.s32.totalorder %s23, %s26
    %p32 = scmp.eq.s32.totalorder %s13, 0
    %p33 = por %p31, %p32
    %p34 = scmp.ne.s32.totalorder %s23, %s26
    %p35 = scmp.eq.s32.totalorder %s18, 1
    %p36 = por %p34, %p35
    %p37 = scmp.ne.s32.totalorder %s26, %s27
    %p38 = scmp.eq.s32.totalorder %s18, 0
    %p39 = por %p37, %p38
    %p40 = scmp.ne.s32.totalorder %s26, %s27
    %p41 = scmp.eq.s32.totalorder %s19, 1
    %p42 = por %p40, %p41
    %p44 = scmp.ne.s32.totalorder %s27, %s43
    %p45 = scmp.eq.s32.totalorder %s19, 0
    %p46 = por %p44, %p45
    %s47 = ssub.s32 %s13, %s20
    %p48 = scmp.eq.s32.totalorder %s47, 0
    %s50 = sadd.s32 %s49, 1
    %s51 = scalar_select %p48, %s49, %s50
    %p54 = pneg %p48
    %p55 = scmp.eq.s32.totalorder %s13, 1
    %p56 = por %p54, %p55
    %p57 = scmp.ne.s32.totalorder %s49, %s52
    %p58 = scmp.eq.s32.totalorder %s13, 0
    %p59 = por %p57, %p58
    %p60 = scmp.ne.s32.totalorder %s49, %s52
    %p61 = scmp.eq.s32.totalorder %s18, 1
    %p62 = por %p60, %p61
    %p63 = scmp.ne.s32.totalorder %s52, %s53
    %p64 = scmp.eq.s32.totalorder %s18, 0
    %p65 = por %p63, %p64
    %p66 = scmp.ne.s32.totalorder %s52, %s53
    %p67 = scmp.eq.s32.totalorder %s19, 1
    %p68 = por %p66, %p67
    %p70 = scmp.ne.s32.totalorder %s53, %s69
    %p71 = scmp.eq.s32.totalorder %s19, 0
    %p72 = por %p70, %p71
    %s73 = ssub.s32 %s13, %s20
    %p74 = scmp.eq.s32.totalorder %s73, 0
    %s76 = sadd.s32 %s75, 1
    %s77 = scalar_select %p74, %s75, %s76
    %p80 = pneg %p74
    %p81 = scmp.eq.s32.totalorder %s13, 1
    %p82 = por %p80, %p81
    %p83 = scmp.ne.s32.totalorder %s75, %s78
    %p84 = scmp.eq.s32.totalorder %s13, 0
    %p85 = por %p83, %p84
    %p86 = scmp.ne.s32.totalorder %s75, %s78
    %p87 = scmp.eq.s32.totalorder %s18, 1
    %p88 = por %p86, %p87
    %p89 = scmp.ne.s32.totalorder %s78, %s79
    %p90 = scmp.eq.s32.totalorder %s18, 0
    %p91 = por %p89, %p90
    %p92 = scmp.ne.s32.totalorder %s78, %s79
    %p93 = scmp.eq.s32.totalorder %s19, 1
    %p94 = por %p92, %p93
    %p96 = scmp.ne.s32.totalorder %s79, %s95
    %p97 = scmp.eq.s32.totalorder %s19, 0
    %p98 = por %p96, %p97
    %s100 = sadd.s32 %s99, 1
    %p103 = scmp.eq.s32.totalorder %s13, 1
    %p104 = scmp.ne.s32.totalorder %s99, %s101
    %p105 = scmp.eq.s32.totalorder %s13, 0
    %p106 = por %p104, %p105
    %p107 = scmp.ne.s32.totalorder %s99, %s101
    %p108 = scmp.eq.s32.totalorder %s18, 1
    %p109 = por %p107, %p108
    %p110 = scmp.ne.s32.totalorder %s101, %s102
    %p111 = scmp.eq.s32.totalorder %s18, 0
    %p112 = por %p110, %p111
    %p113 = scmp.ne.s32.totalorder %s101, %s102
    %p114 = scmp.eq.s32.totalorder %s19, 1
    %p115 = por %p113, %p114
    %p117 = scmp.ne.s32.totalorder %s102, %s116
    %p118 = scmp.eq.s32.totalorder %s19, 0
    %p119 = por %p117, %p118
    %s121 = sadd.s32 %s120, 1
    %p124 = scmp.eq.s32.totalorder %s13, 1
    %p125 = scmp.ne.s32.totalorder %s120, %s122
    %p126 = scmp.eq.s32.totalorder %s13, 0
    %p127 = por %p125, %p126
    %p128 = scmp.ne.s32.totalorder %s120, %s122
    %p129 = scmp.eq.s32.totalorder %s18, 1
    %p130 = por %p128, %p129
    %p131 = scmp.ne.s32.totalorder %s122, %s123
    %p132 = scmp.eq.s32.totalorder %s18, 0
    %p133 = por %p131, %p132
    %p134 = scmp.ne.s32.totalorder %s122, %s123
    %p135 = scmp.eq.s32.totalorder %s19, 1
    %p136 = por %p134, %p135
    %p138 = scmp.ne.s32.totalorder %s123, %s137
    %p139 = scmp.eq.s32.totalorder %s19, 0
    %p140 = por %p138, %p139
    %s141 = ssub.s32 %s13, %s20
    %p142 = scmp.eq.s32.totalorder %s141, 0
    %s144 = sadd.s32 %s143, 1
    %s145 = scalar_select %p142, %s143, %s144
    %p148 = pneg %p142
    %p149 = scmp.eq.s32.totalorder %s13, 1
    %p150 = por %p148, %p149
    %p151 = scmp.ne.s32.totalorder %s143, %s146
    %p152 = scmp.eq.s32.totalorder %s13, 0
    %p153 = por %p151, %p152
    %p154 = scmp.ne.s32.totalorder %s143, %s146
    %p155 = scmp.eq.s32.totalorder %s18, 1
    %p156 = por %p154, %p155
    %p157 = scmp.ne.s32.totalorder %s146, %s147
    %p158 = scmp.eq.s32.totalorder %s18, 0
    %p159 = por %p157, %p158
    %p160 = scmp.ne.s32.totalorder %s146, %s147
    %p161 = scmp.eq.s32.totalorder %s19, 1
    %p162 = por %p160, %p161
    %p164 = scmp.ne.s32.totalorder %s147, %s163
    %p165 = scmp.eq.s32.totalorder %s19, 0
    %p166 = por %p164, %p165
    %s167 = ssub.s32 %s13, %s20
    %p168 = scmp.eq.s32.totalorder %s167, 0
    %s170 = sadd.s32 %s169, 1
    %s171 = scalar_select %p168, %s169, %s170
    %p174 = pneg %p168
    %p175 = scmp.eq.s32.totalorder %s13, 1
    %p176 = por %p174, %p175
    %p177 = scmp.ne.s32.totalorder %s169, %s172
    %p178 = scmp.eq.s32.totalorder %s13, 0
    %p179 = por %p177, %p178
    %p180 = scmp.ne.s32.totalorder %s169, %s172
    %p181 = scmp.eq.s32.totalorder %s18, 1
    %p182 = por %p180, %p181
    %p183 = scmp.ne.s32.totalorder %s172, %s173
    %p184 = scmp.eq.s32.totalorder %s18, 0
    %p185 = por %p183, %p184
    %p186 = scmp.ne.s32.totalorder %s172, %s173
    %p187 = scmp.eq.s32.totalorder %s19, 1
    %p188 = por %p186, %p187
    %p190 = scmp.ne.s32.totalorder %s173, %s189
    %p191 = scmp.eq.s32.totalorder %s19, 0
    %p192 = por %p190, %p191
    %p193 = scmp.le.s32.totalorder 1, %s13
    %p194 = scmp.lt.s32.totalorder %s13, 3
    %p195 = pnand %p193, %p194
    %p196 = pneg %p195
    // Predicated region
    $region9: #{tpu_custom_call.1} parent=5 // pred_check
      _
    $region10: #{tpu_custom_call.1} parent=5 // pred_check_branch
      %198 = sbr.rel (%p195) target = $region12
    $region11: #{tpu_custom_call.1} parent=5 // pred_region
      %s199 = ssub.s32 %s13, 1
      // Predicated region
      $region13: #{tpu_custom_call.1} parent=11 // pred_check
        %p200 = pneg %p112
      $region14: #{tpu_custom_call.1} parent=11 // pred_check_branch
        %202 = sbr.rel (%p200) target = $region16
      $region15: #{tpu_custom_call.1} parent=11 // pred_region
        _
      $region16: #{tpu_custom_call.1} parent=11 // pred_fallthru
        _
      // Predicated region
      $region17: #{tpu_custom_call.1} parent=11 // pred_check
        %p203 = pneg %p133
      $region18: #{tpu_custom_call.1} parent=11 // pred_check_branch
        %205 = sbr.rel (%p203) target = $region20
      $region19: #{tpu_custom_call.1} parent=11 // pred_region
        _
      $region20: #{tpu_custom_call.1} parent=11 // pred_fallthru
        _
    $region12: #{tpu_custom_call.1} parent=5 // pred_fallthru
      _
    %p206 = scmp.lt.s32.totalorder %s13, 2
    // Predicated region
    $region21: #{tpu_custom_call.1} parent=5 // pred_check
      %p207 = pneg %p206
    $region22: #{tpu_custom_call.1} parent=5 // pred_check_branch
      %209 = sbr.rel (%p207) target = $region24
    $region23: #{tpu_custom_call.1} parent=5 // pred_region
      // Predicated region
      $region25: #{tpu_custom_call.1} parent=23 // pred_check
        %p210 = pneg %p33
      $region26: #{tpu_custom_call.1} parent=23 // pred_check_branch
        %212 = sbr.rel (%p210) target = $region28
      $region27: #{tpu_custom_call.1} parent=23 // pred_region
        %p213 = scmp.lt.s32.totalorder %s13, 1
        %s214 = scalar_select %p213, %s13, 1
        %s215 = smul.addr %s214, 32
        %s216 = smul.addr %s215, 8
        %s217 = scalar_lea.vmem %s0, %s216
      $region28: #{tpu_custom_call.1} parent=23 // pred_fallthru
        _
      // Predicated region
      $region29: #{tpu_custom_call.1} parent=23 // pred_check
        %p218 = pneg %p59
      $region30: #{tpu_custom_call.1} parent=23 // pred_check_branch
        %220 = sbr.rel (%p218) target = $region32
      $region31: #{tpu_custom_call.1} parent=23 // pred_region
        %p221 = scmp.lt.s32.totalorder %s13, 1
        %s222 = scalar_select %p221, %s13, 1
        %s223 = smul.addr %s222, 32
        %s224 = smul.addr %s223, 8
        %s225 = scalar_lea.vmem %s1, %s224
      $region32: #{tpu_custom_call.1} parent=23 // pred_fallthru
        _
      // Predicated region
      $region33: #{tpu_custom_call.1} parent=23 // pred_check
        %p226 = pneg %p85
      $region34: #{tpu_custom_call.1} parent=23 // pred_check_branch
        %228 = sbr.rel (%p226) target = $region36
      $region35: #{tpu_custom_call.1} parent=23 // pred_region
        %p229 = scmp.lt.s32.totalorder %s13, 1
        %s230 = scalar_select %p229, %s13, 1
        %s231 = smul.addr %s230, 32
        %s232 = smul.addr %s231, 8
        %s233 = scalar_lea.vmem %s2, %s232
      $region36: #{tpu_custom_call.1} parent=23 // pred_fallthru
        _
    $region24: #{tpu_custom_call.1} parent=5 // pred_fallthru
      _
    %p234 = scmp.le.s32.totalorder 1, %s13
    %p235 = scmp.lt.s32.totalorder %s13, 3
    %p236 = pnand %p234, %p235
    %p237 = pneg %p236
    // Predicated region
    $region37: #{tpu_custom_call.1} parent=5 // pred_check
      _
    $region38: #{tpu_custom_call.1} parent=5 // pred_check_branch
      %239 = sbr.rel (%p236) target = $region40
    $region39: #{tpu_custom_call.1} parent=5 // pred_region
      %s240 = ssub.s32 %s13, 1
      %p241 = scmp.lt.s32.totalorder %s18, 1
      %s242 = scalar_select %p241, %s18, 1
      %s243 = smul.addr %s242, 32
      %s244 = smul.addr %s243, 8
      %s245 = scalar_lea.vmem %s0, %s244
      %p246 = pneg %p39
      %p247 = pneg %p36
      %p248 = scmp.lt.s32.totalorder %s18, 1
      %s249 = scalar_select %p248, %s18, 1
      %s250 = smul.addr %s249, 32
      %s251 = smul.addr %s250, 8
      %s252 = scalar_lea.vmem %s1, %s251
      %p253 = pneg %p65
      %p254 = pneg %p62
      %p255 = scmp.lt.s32.totalorder %s18, 1
      %s256 = scalar_select %p255, %s18, 1
      %s257 = smul.addr %s256, 32
      %s258 = smul.addr %s257, 8
      %s259 = scalar_lea.vmem %s2, %s258
      %p260 = pneg %p91
      %p261 = pneg %p88
      %p262 = pneg %p112
      %p263 = pneg %p109
      %p264 = pneg %p133
      %p265 = pneg %p130
      %p266 = pneg %p159
      %p267 = pneg %p156
      %p268 = scmp.lt.s32.totalorder %s18, 1
      %s269 = scalar_select %p268, %s18, 1
      %s270 = smul.addr %s269, 32
      %s271 = smul.addr %s270, 8
      %s272 = scalar_lea.vmem %s5, %s271
      %p273 = pneg %p185
      %p274 = pneg %p182
      %p275 = scmp.lt.s32.totalorder %s18, 1
      %s276 = scalar_select %p275, %s18, 1
      %s277 = smul.addr %s276, 32
      %s278 = smul.addr %s277, 8
      %s279 = scalar_lea.vmem %s6, %s278
      %p280 = scmp.lt.s32.totalorder %s18, 1
      %s281 = scalar_select %p280, %s18, 1
      %s282 = smul.addr %s281, 32
      %s283 = smul.addr %s282, 8
      %s284 = scalar_lea.vmem %s0, %s283
      %p285 = scmp.lt.s32.totalorder %s18, 1
      %s286 = scalar_select %p285, %s18, 1
      %s287 = smul.addr %s286, 32
      %s288 = smul.addr %s287, 8
      %s289 = scalar_lea.vmem %s1, %s288
      %p290 = scmp.lt.s32.totalorder %s18, 1
      %s291 = scalar_select %p290, %s18, 1
      %s292 = smul.addr %s291, 32
      %s293 = smul.addr %s292, 8
      %s294 = scalar_lea.vmem %s2, %s293
      %p295 = scmp.lt.s32.totalorder %s18, 1
      %s296 = scalar_select %p295, %s18, 1
      %s297 = smul.addr %s296, 32
      %s298 = smul.addr %s297, 8
      %s299 = scalar_lea.vmem %s5, %s298
      %p300 = scmp.lt.s32.totalorder %s18, 1
      %s301 = scalar_select %p300, %s18, 1
      %s302 = smul.addr %s301, 32
      %s303 = smul.addr %s302, 8
      %s304 = scalar_lea.vmem %s6, %s303
      %306 = vst [vmem:[#allocation2] sm:$0xf] 0
      %307 = vst [vmem:[#allocation2 + $0x4] sm:$0xf] 0
      %308 = vst [vmem:[#allocation2 + $0x8] sm:$0x1] 0
      %309 = vst [vmem:[#allocation2 + $0xc] sm:$0xf] 0
      %310 = vst [vmem:[#allocation2 + $0x10] sm:$0xf] 0
      %311 = vst [vmem:[#allocation2 + $0x14] sm:$0x1] 0
      %312 = vst [vmem:[#allocation2 + $0x18] sm:$0xf] 0
      %313 = vst [vmem:[#allocation2 + $0x1c] sm:$0xf] 0
      %314 = vst [vmem:[#allocation2 + $0x20] sm:$0x1] 0
      %315 = vst [vmem:[#allocation2 + $0x24] sm:$0xf] 0
      %316 = vst [vmem:[#allocation2 + $0x28] sm:$0xf] 0
      %317 = vst [vmem:[#allocation2 + $0x2c] sm:$0x1] 0
      %318 = vst [vmem:[#allocation2 + $0x30] sm:$0xf] 0
      %319 = vst [vmem:[#allocation2 + $0x34] sm:$0xf] 0
      %320 = vst [vmem:[#allocation2 + $0x38] sm:$0x1] 0
      %321 = vst [vmem:[#allocation2 + $0x3c] sm:$0xf] 0
      %322 = vst [vmem:[#allocation2 + $0x40] sm:$0xf] 0
      %323 = vst [vmem:[#allocation2 + $0x44] sm:$0x1] 0
      %324 = vst [vmem:[#allocation2 + $0x48] sm:$0xf] 0
      %325 = vst [vmem:[#allocation2 + $0x4c] sm:$0xf] 0
      %326 = vst [vmem:[#allocation2 + $0x50] sm:$0x1] 0
      %327 = vst [vmem:[#allocation2 + $0x54] sm:$0xf] 0
      %328 = vst [vmem:[#allocation2 + $0x58] sm:$0xf] 0
      %329 = vst [vmem:[#allocation2 + $0x5c] sm:$0x1] 0
      %330 = vst [vmem:[#allocation2 + $0x60] sm:$0xf] 0
      %331 = vst [vmem:[#allocation2 + $0x64] sm:$0xf] 0
      %332 = vst [vmem:[#allocation2 + $0x68] sm:$0x1] 0
      %333 = vst [vmem:[#allocation2 + $0x6c] sm:$0xf] 0
      %334 = vst [vmem:[#allocation2 + $0x70] sm:$0xf] 0
      %335 = vst [vmem:[#allocation2 + $0x74] sm:$0x1] 0
      %336 = vst [vmem:[#allocation2 + $0x78] sm:$0xf] 0
      %337 = vst [vmem:[#allocation2 + $0x7c] sm:$0xf] 0
      %338 = vst [vmem:[#allocation2 + $0x80] sm:$0x1] 0
      %339 = vst [vmem:[#allocation2 + $0x84] sm:$0xf] 0
      %340 = vst [vmem:[#allocation2 + $0x88] sm:$0xf] 0
      %341 = vst [vmem:[#allocation2 + $0x8c] sm:$0x1] 0
      %342 = vst [vmem:[#allocation2 + $0x90] sm:$0xf] 0
      %343 = vst [vmem:[#allocation2 + $0x94] sm:$0xf] 0
      %344 = vst [vmem:[#allocation2 + $0x98] sm:$0x1] 0
      %345 = vst [vmem:[#allocation2 + $0x9c] sm:$0xf] 0
      %346 = vst [vmem:[#allocation2 + $0xa0] sm:$0xf] 0
      %347 = vst [vmem:[#allocation2 + $0xa4] sm:$0x1] 0
      %348 = vst [vmem:[#allocation2 + $0xa8] sm:$0xf] 0
      %349 = vst [vmem:[#allocation2 + $0xac] sm:$0xf] 0
      %350 = vst [vmem:[#allocation2 + $0xb0] sm:$0x1] 0
      %351 = vst [vmem:[#allocation2 + $0xb4] sm:$0xf] 0
      %352 = vst [vmem:[#allocation2 + $0xb8] sm:$0xf] 0
      %353 = vst [vmem:[#allocation2 + $0xbc] sm:$0x1] 0
      %354 = vst [vmem:[#allocation2 + $0xc0] sm:$0xf] 0
      %355 = vst [vmem:[#allocation2 + $0xc4] sm:$0xf] 0
      %356 = vst [vmem:[#allocation2 + $0xc8] sm:$0x1] 0
      %357 = vst [vmem:[#allocation2 + $0xcc] sm:$0xf] 0
      %358 = vst [vmem:[#allocation2 + $0xd0] sm:$0xf] 0
      %359 = vst [vmem:[#allocation2 + $0xd4] sm:$0x1] 0
      %v360 = vld [vmem:[%s289] sm:$0xff]
      %v361 = vld [vmem:[%s289 + $0x8] sm:$0xff]
      %v362 = vld [vmem:[%s289 + $0x10] sm:$0xff]
      %v363 = vld [vmem:[%s289 + $0x18] sm:$0xff]
      %v364 = vld [vmem:[%s289 + $0x20] sm:$0xff]
      %v365 = vld [vmem:[%s289 + $0x28] sm:$0xff]
      %v366 = vld [vmem:[%s289 + $0x30] sm:$0xff]
      %v367 = vld [vmem:[%s289 + $0x38] sm:$0xff]
      %v368 = vld [vmem:[%s289 + $0x40] sm:$0xff]
      %v369 = vld [vmem:[%s289 + $0x48] sm:$0xff]
      %v370 = vld [vmem:[%s289 + $0x50] sm:$0xff]
      %v371 = vld [vmem:[%s289 + $0x58] sm:$0xff]
      %v372 = vld [vmem:[%s289 + $0x60] sm:$0xff]
      %v373 = vld [vmem:[%s289 + $0x68] sm:$0xff]
      %v374 = vld [vmem:[%s289 + $0x70] sm:$0xff]
      %v375 = vld [vmem:[%s289 + $0x78] sm:$0xff]
      %v376 = vld [vmem:[%s289 + $0x80] sm:$0xff]
      %v377 = vld [vmem:[%s289 + $0x88] sm:$0xff]
      %v378 = vld [vmem:[%s289 + $0x90] sm:$0xff]
      %v379 = vld [vmem:[%s289 + $0x98] sm:$0xff]
      %v380 = vld [vmem:[%s289 + $0xa0] sm:$0xff]
      %v381 = vld [vmem:[%s289 + $0xa8] sm:$0xff]
      %v382 = vld [vmem:[%s289 + $0xb0] sm:$0xff]
      %v383 = vld [vmem:[%s289 + $0xb8] sm:$0xff]
      %v384 = vld [vmem:[%s289 + $0xc0] sm:$0xff]
      %v385 = vld [vmem:[%s289 + $0xc8] sm:$0xff]
      %v386 = vld [vmem:[%s289 + $0xd0] sm:$0xff]
      %v387 = vld [vmem:[%s289 + $0xd8] sm:$0xff]
      %v388 = vld [vmem:[%s289 + $0xe0] sm:$0xff]
      %v389 = vld [vmem:[%s289 + $0xe8] sm:$0xff]
      %v390 = vld [vmem:[%s289 + $0xf0] sm:$0xff]
      %v391 = vld [vmem:[%s289 + $0xf8] sm:$0xff]
      %v392 = vpack.c.bf16 %v361, %v360
      %v393 = vpack.c.bf16 %v363, %v362
      %v394 = vpack.c.bf16 %v365, %v364
      %v395 = vpack.c.bf16 %v367, %v366
      %v396 = vpack.c.bf16 %v369, %v368
      %v397 = vpack.c.bf16 %v371, %v370
      %v398 = vpack.c.bf16 %v373, %v372
      %v399 = vpack.c.bf16 %v375, %v374
      %v400 = vpack.c.bf16 %v377, %v376
      %v401 = vpack.c.bf16 %v379, %v378
      %v402 = vpack.c.bf16 %v381, %v380
      %v403 = vpack.c.bf16 %v383, %v382
      %v404 = vpack.c.bf16 %v385, %v384
      %v405 = vpack.c.bf16 %v387, %v386
      %v406 = vpack.c.bf16 %v389, %v388
      %v407 = vpack.c.bf16 %v391, %v390
      %v424 = vunpack.c.l.b16 %v392
      %v425 = vunpack.c.h.b16 %v392
      %v426 = vunpack.c.l.b16 %v393
      %v427 = vunpack.c.h.b16 %v393
      %v428 = vunpack.c.l.b16 %v394
      %v429 = vunpack.c.h.b16 %v394
      %v430 = vunpack.c.l.b16 %v395
      %v431 = vunpack.c.h.b16 %v395
      %v432 = vunpack.c.l.b16 %v396
      %v433 = vunpack.c.h.b16 %v396
      %v434 = vunpack.c.l.b16 %v397
      %v435 = vunpack.c.h.b16 %v397
      %v436 = vunpack.c.l.b16 %v398
      %v437 = vunpack.c.h.b16 %v398
      %v438 = vunpack.c.l.b16 %v399
      %v439 = vunpack.c.h.b16 %v399
      %v440 = vunpack.c.l.b16 %v400
      %v441 = vunpack.c.h.b16 %v400
      %v442 = vunpack.c.l.b16 %v401
      %v443 = vunpack.c.h.b16 %v401
      %v444 = vunpack.c.l.b16 %v402
      %v445 = vunpack.c.h.b16 %v402
      %v446 = vunpack.c.l.b16 %v403
      %v447 = vunpack.c.h.b16 %v403
      %v448 = vunpack.c.l.b16 %v404
      %v449 = vunpack.c.h.b16 %v404
      %v450 = vunpack.c.l.b16 %v405
      %v451 = vunpack.c.h.b16 %v405
      %v452 = vunpack.c.l.b16 %v406
      %v453 = vunpack.c.h.b16 %v406
      %v454 = vunpack.c.l.b16 %v407
      %v455 = vunpack.c.h.b16 %v407
      %v456 = vpack.c.b16 %v424, %v424
      %v457 = vpack.c.b16 %v425, %v425
      %v458 = vpack.c.b16 %v426, %v426
      %v459 = vpack.c.b16 %v427, %v427
      %v460 = vpack.c.b16 %v428, %v428
      %v461 = vpack.c.b16 %v429, %v429
      %v462 = vpack.c.b16 %v430, %v430
      %v463 = vpack.c.b16 %v431, %v431
      %v464 = vpack.c.b16 %v432, %v432
      %v465 = vpack.c.b16 %v433, %v433
      %v466 = vpack.c.b16 %v434, %v434
      %v467 = vpack.c.b16 %v435, %v435
      %v468 = vpack.c.b16 %v436, %v436
      %v469 = vpack.c.b16 %v437, %v437
      %v470 = vpack.c.b16 %v438, %v438
      %v471 = vpack.c.b16 %v439, %v439
      %v472 = vpack.c.b16 %v440, %v440
      %v473 = vpack.c.b16 %v441, %v441
      %v474 = vpack.c.b16 %v442, %v442
      %v475 = vpack.c.b16 %v443, %v443
      %v476 = vpack.c.b16 %v444, %v444
      %v477 = vpack.c.b16 %v445, %v445
      %v478 = vpack.c.b16 %v446, %v446
      %v479 = vpack.c.b16 %v447, %v447
      %v480 = vpack.c.b16 %v448, %v448
      %v481 = vpack.c.b16 %v449, %v449
      %v482 = vpack.c.b16 %v450, %v450
      %v483 = vpack.c.b16 %v451, %v451
      %v484 = vpack.c.b16 %v452, %v452
      %v485 = vpack.c.b16 %v453, %v453
      %v486 = vpack.c.b16 %v454, %v454
      %v487 = vpack.c.b16 %v455, %v455
      %vm488 = vsmask.f32 256
      %vm489 = vsmask.f32 4368
      %vm490 = vmor %vm488, %vm489
      %v492 = vshrl.u32 %v456, 16
      %v494 = vrot.slane %v492, 7
      %v495 = vshll.u32 %v456, 16
      %v497 = vor.u32 %v494, %v495
      %v498 = vrot.slane %v494, 4
      %v500 = vshrl.u32 %v457, 16
      %v502 = vrot.slane %v500, 7
      %v503 = vshll.u32 %v457, 16
      %v505 = vor.u32 %v502, %v503
      %v506 = vsel %vm490, %v498, %v505
      %v507 = vrot.slane %v502, 4
      %v509 = vshrl.u32 %v458, 16
      %v511 = vrot.slane %v509, 7
      %v512 = vshll.u32 %v458, 16
      %v514 = vor.u32 %v511, %v512
      %v515 = vrot.slane %v511, 4
      %v517 = vshrl.u32 %v459, 16
      %v519 = vrot.slane %v517, 7
      %v520 = vshll.u32 %v459, 16
      %v522 = vor.u32 %v519, %v520
      %v523 = vsel %vm490, %v515, %v522
      %v524 = vrot.slane %v519, 4
      %v526 = vshrl.u32 %v460, 16
      %v528 = vrot.slane %v526, 7
      %v529 = vshll.u32 %v460, 16
      %v531 = vor.u32 %v528, %v529
      %v532 = vrot.slane %v528, 4
      %v534 = vshrl.u32 %v461, 16
      %v536 = vrot.slane %v534, 7
      %v537 = vshll.u32 %v461, 16
      %v539 = vor.u32 %v536, %v537
      %v540 = vsel %vm490, %v532, %v539
      %v541 = vrot.slane %v536, 4
      %v543 = vshrl.u32 %v462, 16
      %v545 = vrot.slane %v543, 7
      %v546 = vshll.u32 %v462, 16
      %v548 = vor.u32 %v545, %v546
      %v549 = vrot.slane %v545, 4
      %v551 = vshrl.u32 %v463, 16
      %v553 = vrot.slane %v551, 7
      %v554 = vshll.u32 %v463, 16
      %v556 = vor.u32 %v553, %v554
      %v557 = vsel %vm490, %v549, %v556
      %v558 = vrot.slane %v553, 4
      %v560 = vshrl.u32 %v464, 16
      %v562 = vrot.slane %v560, 7
      %v563 = vshll.u32 %v464, 16
      %v565 = vor.u32 %v562, %v563
      %v566 = vrot.slane %v562, 4
      %v568 = vshrl.u32 %v465, 16
      %v570 = vrot.slane %v568, 7
      %v571 = vshll.u32 %v465, 16
      %v573 = vor.u32 %v570, %v571
      %v574 = vsel %vm490, %v566, %v573
      %v575 = vrot.slane %v570, 4
      %v577 = vshrl.u32 %v466, 16
      %v579 = vrot.slane %v577, 7
      %v580 = vshll.u32 %v466, 16
      %v582 = vor.u32 %v579, %v580
      %v583 = vrot.slane %v579, 4
      %v585 = vshrl.u32 %v467, 16
      %v587 = vrot.slane %v585, 7
      %v588 = vshll.u32 %v467, 16
      %v590 = vor.u32 %v587, %v588
      %v591 = vsel %vm490, %v583, %v590
      %v592 = vrot.slane %v587, 4
      %v594 = vshrl.u32 %v468, 16
      %v596 = vrot.slane %v594, 7
      %v597 = vshll.u32 %v468, 16
      %v599 = vor.u32 %v596, %v597
      %v600 = vrot.slane %v596, 4
      %v602 = vshrl.u32 %v469, 16
      %v604 = vrot.slane %v602, 7
      %v605 = vshll.u32 %v469, 16
      %v607 = vor.u32 %v604, %v605
      %v608 = vsel %vm490, %v600, %v607
      %v609 = vrot.slane %v604, 4
      %v611 = vshrl.u32 %v470, 16
      %v613 = vrot.slane %v611, 7
      %v614 = vshll.u32 %v470, 16
      %v616 = vor.u32 %v613, %v614
      %v617 = vrot.slane %v613, 4
      %v619 = vshrl.u32 %v471, 16
      %v621 = vrot.slane %v619, 7
      %v622 = vshll.u32 %v471, 16
      %v624 = vor.u32 %v621, %v622
      %v625 = vsel %vm490, %v617, %v624
      %v626 = vrot.slane %v621, 4
      %v628 = vshrl.u32 %v472, 16
      %v630 = vrot.slane %v628, 7
      %v631 = vshll.u32 %v472, 16
      %v633 = vor.u32 %v630, %v631
      %v634 = vrot.slane %v630, 4
      %v636 = vshrl.u32 %v473, 16
      %v638 = vrot.slane %v636, 7
      %v639 = vshll.u32 %v473, 16
      %v641 = vor.u32 %v638, %v639
      %v642 = vsel %vm490, %v634, %v641
      %v643 = vrot.slane %v638, 4
      %v645 = vshrl.u32 %v474, 16
      %v647 = vrot.slane %v645, 7
      %v648 = vshll.u32 %v474, 16
      %v650 = vor.u32 %v647, %v648
      %v651 = vrot.slane %v647, 4
      %v653 = vshrl.u32 %v475, 16
      %v655 = vrot.slane %v653, 7
      %v656 = vshll.u32 %v475, 16
      %v658 = vor.u32 %v655, %v656
      %v659 = vsel %vm490, %v651, %v658
      %v660 = vrot.slane %v655, 4
      %v662 = vshrl.u32 %v476, 16
      %v664 = vrot.slane %v662, 7
      %v665 = vshll.u32 %v476, 16
      %v667 = vor.u32 %v664, %v665
      %v668 = vrot.slane %v664, 4
      %v670 = vshrl.u32 %v477, 16
      %v672 = vrot.slane %v670, 7
      %v673 = vshll.u32 %v477, 16
      %v675 = vor.u32 %v672, %v673
      %v676 = vsel %vm490, %v668, %v675
      %v677 = vrot.slane %v672, 4
      %v679 = vshrl.u32 %v478, 16
      %v681 = vrot.slane %v679, 7
      %v682 = vshll.u32 %v478, 16
      %v684 = vor.u32 %v681, %v682
      %v685 = vrot.slane %v681, 4
      %v687 = vshrl.u32 %v479, 16
      %v689 = vrot.slane %v687, 7
      %v690 = vshll.u32 %v479, 16
      %v692 = vor.u32 %v689, %v690
      %v693 = vsel %vm490, %v685, %v692
      %v694 = vrot.slane %v689, 4
      %v696 = vshrl.u32 %v480, 16
      %v698 = vrot.slane %v696, 7
      %v699 = vshll.u32 %v480, 16
      %v701 = vor.u32 %v698, %v699
      %v702 = vrot.slane %v698, 4
      %v704 = vshrl.u32 %v481, 16
      %v706 = vrot.slane %v704, 7
      %v707 = vshll.u32 %v481, 16
      %v709 = vor.u32 %v706, %v707
      %v710 = vsel %vm490, %v702, %v709
      %v711 = vrot.slane %v706, 4
      %v713 = vshrl.u32 %v482, 16
      %v715 = vrot.slane %v713, 7
      %v716 = vshll.u32 %v482, 16
      %v718 = vor.u32 %v715, %v716
      %v719 = vrot.slane %v715, 4
      %v721 = vshrl.u32 %v483, 16
      %v723 = vrot.slane %v721, 7
      %v724 = vshll.u32 %v483, 16
      %v726 = vor.u32 %v723, %v724
      %v727 = vsel %vm490, %v719, %v726
      %v728 = vrot.slane %v723, 4
      %v730 = vshrl.u32 %v484, 16
      %v732 = vrot.slane %v730, 7
      %v733 = vshll.u32 %v484, 16
      %v735 = vor.u32 %v732, %v733
      %v736 = vrot.slane %v732, 4
      %v738 = vshrl.u32 %v485, 16
      %v740 = vrot.slane %v738, 7
      %v741 = vshll.u32 %v485, 16
      %v743 = vor.u32 %v740, %v741
      %v744 = vsel %vm490, %v736, %v743
      %v745 = vrot.slane %v740, 4
      %v747 = vshrl.u32 %v486, 16
      %v749 = vrot.slane %v747, 7
      %v750 = vshll.u32 %v486, 16
      %v752 = vor.u32 %v749, %v750
      %v753 = vrot.slane %v749, 4
      %v755 = vshrl.u32 %v487, 16
      %v757 = vrot.slane %v755, 7
      %v758 = vshll.u32 %v487, 16
      %v760 = vor.u32 %v757, %v758
      %v761 = vsel %vm490, %v753, %v760
      %v762 = vrot.slane %v757, 4
      %s811 = scalar_lea.vmem [#allocation2], 12
      %vm812 = vcmask 257024
      %vm813 = vsmask.f32 7938
      %vm814 = vmand %vm812, %vm813
      %v815 = vld [vmem:[%s811] sm:$0xf]
      %v816 = vsel %vm814, %v497, %v815
      %817 = vst [vmem:[%s811] sm:$0xf] %v816
      %vm818 = vcmask 257024
      %819 = vst.msk [vmem:[%s811 + $0x4] sm:$0xf] %vm818, %v506
      %vm820 = vcmask 253952
      %vm821 = vmand %vm820, %vm488
      %v822 = vld [vmem:[%s811 + $0x8] sm:$0x1]
      %v823 = vsel %vm821, %v507, %v822
      %824 = vst [vmem:[%s811 + $0x8] sm:$0x1] %v823
      %v825 = vld [vmem:[%s811 + $0xc] sm:$0xf]
      %v826 = vsel %vm814, %v514, %v825
      %827 = vst [vmem:[%s811 + $0xc] sm:$0xf] %v826
      %828 = vst.msk [vmem:[%s811 + $0x10] sm:$0xf] %vm818, %v523
      %v829 = vld [vmem:[%s811 + $0x14] sm:$0x1]
      %v830 = vsel %vm821, %v524, %v829
      %831 = vst [vmem:[%s811 + $0x14] sm:$0x1] %v830
      %v832 = vld [vmem:[%s811 + $0x18] sm:$0xf]
      %v833 = vsel %vm814, %v531, %v832
      %834 = vst [vmem:[%s811 + $0x18] sm:$0xf] %v833
      %835 = vst.msk [vmem:[%s811 + $0x1c] sm:$0xf] %vm818, %v540
      %v836 = vld [vmem:[%s811 + $0x20] sm:$0x1]
      %v837 = vsel %vm821, %v541, %v836
      %838 = vst [vmem:[%s811 + $0x20] sm:$0x1] %v837
      %v839 = vld [vmem:[%s811 + $0x24] sm:$0xf]
      %v840 = vsel %vm814, %v548, %v839
      %841 = vst [vmem:[%s811 + $0x24] sm:$0xf] %v840
      %842 = vst.msk [vmem:[%s811 + $0x28] sm:$0xf] %vm818, %v557
      %v843 = vld [vmem:[%s811 + $0x2c] sm:$0x1]
      %v844 = vsel %vm821, %v558, %v843
      %845 = vst [vmem:[%s811 + $0x2c] sm:$0x1] %v844
      %v846 = vld [vmem:[%s811 + $0x30] sm:$0xf]
      %v847 = vsel %vm814, %v565, %v846
      %848 = vst [vmem:[%s811 + $0x30] sm:$0xf] %v847
      %849 = vst.msk [vmem:[%s811 + $0x34] sm:$0xf] %vm818, %v574
      %v850 = vld [vmem:[%s811 + $0x38] sm:$0x1]
      %v851 = vsel %vm821, %v575, %v850
      %852 = vst [vmem:[%s811 + $0x38] sm:$0x1] %v851
      %v853 = vld [vmem:[%s811 + $0x3c] sm:$0xf]
      %v854 = vsel %vm814, %v582, %v853
      %855 = vst [vmem:[%s811 + $0x3c] sm:$0xf] %v854
      %856 = vst.msk [vmem:[%s811 + $0x40] sm:$0xf] %vm818, %v591
      %v857 = vld [vmem:[%s811 + $0x44] sm:$0x1]
      %v858 = vsel %vm821, %v592, %v857
      %859 = vst [vmem:[%s811 + $0x44] sm:$0x1] %v858
      %v860 = vld [vmem:[%s811 + $0x48] sm:$0xf]
      %v861 = vsel %vm814, %v599, %v860
      %862 = vst [vmem:[%s811 + $0x48] sm:$0xf] %v861
      %863 = vst.msk [vmem:[%s811 + $0x4c] sm:$0xf] %vm818, %v608
      %v864 = vld [vmem:[%s811 + $0x50] sm:$0x1]
      %v865 = vsel %vm821, %v609, %v864
      %866 = vst [vmem:[%s811 + $0x50] sm:$0x1] %v865
      %v867 = vld [vmem:[%s811 + $0x54] sm:$0xf]
      %v868 = vsel %vm814, %v616, %v867
      %869 = vst [vmem:[%s811 + $0x54] sm:$0xf] %v868
      %870 = vst.msk [vmem:[%s811 + $0x58] sm:$0xf] %vm818, %v625
      %v871 = vld [vmem:[%s811 + $0x5c] sm:$0x1]
      %v872 = vsel %vm821, %v626, %v871
      %873 = vst [vmem:[%s811 + $0x5c] sm:$0x1] %v872
      %v874 = vld [vmem:[%s811 + $0x60] sm:$0xf]
      %v875 = vsel %vm814, %v633, %v874
      %876 = vst [vmem:[%s811 + $0x60] sm:$0xf] %v875
      %877 = vst.msk [vmem:[%s811 + $0x64] sm:$0xf] %vm818, %v642
      %v878 = vld [vmem:[%s811 + $0x68] sm:$0x1]
      %v879 = vsel %vm821, %v643, %v878
      %880 = vst [vmem:[%s811 + $0x68] sm:$0x1] %v879
      %v881 = vld [vmem:[%s811 + $0x6c] sm:$0xf]
      %v882 = vsel %vm814, %v650, %v881
      %883 = vst [vmem:[%s811 + $0x6c] sm:$0xf] %v882
      %884 = vst.msk [vmem:[%s811 + $0x70] sm:$0xf] %vm818, %v659
      %v885 = vld [vmem:[%s811 + $0x74] sm:$0x1]
      %v886 = vsel %vm821, %v660, %v885
      %887 = vst [vmem:[%s811 + $0x74] sm:$0x1] %v886
      %v888 = vld [vmem:[%s811 + $0x78] sm:$0xf]
      %v889 = vsel %vm814, %v667, %v888
      %890 = vst [vmem:[%s811 + $0x78] sm:$0xf] %v889
      %891 = vst.msk [vmem:[%s811 + $0x7c] sm:$0xf] %vm818, %v676
      %v892 = vld [vmem:[%s811 + $0x80] sm:$0x1]
      %v893 = vsel %vm821, %v677, %v892
      %894 = vst [vmem:[%s811 + $0x80] sm:$0x1] %v893
      %v895 = vld [vmem:[%s811 + $0x84] sm:$0xf]
      %v896 = vsel %vm814, %v684, %v895
      %897 = vst [vmem:[%s811 + $0x84] sm:$0xf] %v896
      %898 = vst.msk [vmem:[%s811 + $0x88] sm:$0xf] %vm818, %v693
      %v899 = vld [vmem:[%s811 + $0x8c] sm:$0x1]
      %v900 = vsel %vm821, %v694, %v899
      %901 = vst [vmem:[%s811 + $0x8c] sm:$0x1] %v900
      %v902 = vld [vmem:[%s811 + $0x90] sm:$0xf]
      %v903 = vsel %vm814, %v701, %v902
      %904 = vst [vmem:[%s811 + $0x90] sm:$0xf] %v903
      %905 = vst.msk [vmem:[%s811 + $0x94] sm:$0xf] %vm818, %v710
      %v906 = vld [vmem:[%s811 + $0x98] sm:$0x1]
      %v907 = vsel %vm821, %v711, %v906
      %908 = vst [vmem:[%s811 + $0x98] sm:$0x1] %v907
      %v909 = vld [vmem:[%s811 + $0x9c] sm:$0xf]
      %v910 = vsel %vm814, %v718, %v909
      %911 = vst [vmem:[%s811 + $0x9c] sm:$0xf] %v910
      %912 = vst.msk [vmem:[%s811 + $0xa0] sm:$0xf] %vm818, %v727
      %v913 = vld [vmem:[%s811 + $0xa4] sm:$0x1]
      %v914 = vsel %vm821, %v728, %v913
      %915 = vst [vmem:[%s811 + $0xa4] sm:$0x1] %v914
      %v916 = vld [vmem:[%s811 + $0xa8] sm:$0xf]
      %v917 = vsel %vm814, %v735, %v916
      %918 = vst [vmem:[%s811 + $0xa8] sm:$0xf] %v917
      %919 = vst.msk [vmem:[%s811 + $0xac] sm:$0xf] %vm818, %v744
      %v920 = vld [vmem:[%s811 + $0xb0] sm:$0x1]
      %v921 = vsel %vm821, %v745, %v920
      %922 = vst [vmem:[%s811 + $0xb0] sm:$0x1] %v921
      %v923 = vld [vmem:[%s811 + $0xb4] sm:$0xf]
      %v924 = vsel %vm814, %v752, %v923
      %925 = vst [vmem:[%s811 + $0xb4] sm:$0xf] %v924
      %926 = vst.msk [vmem:[%s811 + $0xb8] sm:$0xf] %vm818, %v761
      %v927 = vld [vmem:[%s811 + $0xbc] sm:$0x1]
      %v928 = vsel %vm821, %v762, %v927
      %929 = vst [vmem:[%s811 + $0xbc] sm:$0x1] %v928
      %v930 = vld [vmem:[%s284] sm:$0xff]
      %v931 = vld [vmem:[%s284 + $0x8] sm:$0xff]
      %v932 = vld [vmem:[%s284 + $0x10] sm:$0xff]
      %v933 = vld [vmem:[%s284 + $0x18] sm:$0xff]
      %v934 = vld [vmem:[%s284 + $0x20] sm:$0xff]
      %v935 = vld [vmem:[%s284 + $0x28] sm:$0xff]
      %v936 = vld [vmem:[%s284 + $0x30] sm:$0xff]
      %v937 = vld [vmem:[%s284 + $0x38] sm:$0xff]
      %v938 = vld [vmem:[%s284 + $0x40] sm:$0xff]
      %v939 = vld [vmem:[%s284 + $0x48] sm:$0xff]
      %v940 = vld [vmem:[%s284 + $0x50] sm:$0xff]
      %v941 = vld [vmem:[%s284 + $0x58] sm:$0xff]
      %v942 = vld [vmem:[%s284 + $0x60] sm:$0xff]
      %v943 = vld [vmem:[%s284 + $0x68] sm:$0xff]
      %v944 = vld [vmem:[%s284 + $0x70] sm:$0xff]
      %v945 = vld [vmem:[%s284 + $0x78] sm:$0xff]
      %v946 = vld [vmem:[%s284 + $0x80] sm:$0xff]
      %v947 = vld [vmem:[%s284 + $0x88] sm:$0xff]
      %v948 = vld [vmem:[%s284 + $0x90] sm:$0xff]
      %v949 = vld [vmem:[%s284 + $0x98] sm:$0xff]
      %v950 = vld [vmem:[%s284 + $0xa0] sm:$0xff]
      %v951 = vld [vmem:[%s284 + $0xa8] sm:$0xff]
      %v952 = vld [vmem:[%s284 + $0xb0] sm:$0xff]
      %v953 = vld [vmem:[%s284 + $0xb8] sm:$0xff]
      %v954 = vld [vmem:[%s284 + $0xc0] sm:$0xff]
      %v955 = vld [vmem:[%s284 + $0xc8] sm:$0xff]
      %v956 = vld [vmem:[%s284 + $0xd0] sm:$0xff]
      %v957 = vld [vmem:[%s284 + $0xd8] sm:$0xff]
      %v958 = vld [vmem:[%s284 + $0xe0] sm:$0xff]
      %v959 = vld [vmem:[%s284 + $0xe8] sm:$0xff]
      %v960 = vld [vmem:[%s284 + $0xf0] sm:$0xff]
      %v961 = vld [vmem:[%s284 + $0xf8] sm:$0xff]
      %v962 = vpack.c.bf16 %v931, %v930
      %v963 = vpack.c.bf16 %v933, %v932
      %v964 = vpack.c.bf16 %v935, %v934
      %v965 = vpack.c.bf16 %v937, %v936
      %v966 = vpack.c.bf16 %v939, %v938
      %v967 = vpack.c.bf16 %v941, %v940
      %v968 = vpack.c.bf16 %v943, %v942
      %v969 = vpack.c.bf16 %v945, %v944
      %v970 = vpack.c.bf16 %v947, %v946
      %v971 = vpack.c.bf16 %v949, %v948
      %v972 = vpack.c.bf16 %v951, %v950
      %v973 = vpack.c.bf16 %v953, %v952
      %v974 = vpack.c.bf16 %v955, %v954
      %v975 = vpack.c.bf16 %v957, %v956
      %v976 = vpack.c.bf16 %v959, %v958
      %v977 = vpack.c.bf16 %v961, %v960
      %v994 = vunpack.c.l.b16 %v962
      %v995 = vunpack.c.h.b16 %v962
      %v996 = vunpack.c.l.b16 %v963
      %v997 = vunpack.c.h.b16 %v963
      %v998 = vunpack.c.l.b16 %v964
      %v999 = vunpack.c.h.b16 %v964
      %v1000 = vunpack.c.l.b16 %v965
      %v1001 = vunpack.c.h.b16 %v965
      %v1002 = vunpack.c.l.b16 %v966
      %v1003 = vunpack.c.h.b16 %v966
      %v1004 = vunpack.c.l.b16 %v967
      %v1005 = vunpack.c.h.b16 %v967
      %v1006 = vunpack.c.l.b16 %v968
      %v1007 = vunpack.c.h.b16 %v968
      %v1008 = vunpack.c.l.b16 %v969
      %v1009 = vunpack.c.h.b16 %v969
      %v1010 = vunpack.c.l.b16 %v970
      %v1011 = vunpack.c.h.b16 %v970
      %v1012 = vunpack.c.l.b16 %v971
      %v1013 = vunpack.c.h.b16 %v971
      %v1014 = vunpack.c.l.b16 %v972
      %v1015 = vunpack.c.h.b16 %v972
      %v1016 = vunpack.c.l.b16 %v973
      %v1017 = vunpack.c.h.b16 %v973
      %v1018 = vunpack.c.l.b16 %v974
      %v1019 = vunpack.c.h.b16 %v974
      %v1020 = vunpack.c.l.b16 %v975
      %v1021 = vunpack.c.h.b16 %v975
      %v1022 = vunpack.c.l.b16 %v976
      %v1023 = vunpack.c.h.b16 %v976
      %v1024 = vunpack.c.l.b16 %v977
      %v1025 = vunpack.c.h.b16 %v977
      %v1026 = vpack.c.b16 %v994, %v994
      %v1027 = vpack.c.b16 %v995, %v995
      %v1028 = vpack.c.b16 %v996, %v996
      %v1029 = vpack.c.b16 %v997, %v997
      %v1030 = vpack.c.b16 %v998, %v998
      %v1031 = vpack.c.b16 %v999, %v999
      %v1032 = vpack.c.b16 %v1000, %v1000
      %v1033 = vpack.c.b16 %v1001, %v1001
      %v1034 = vpack.c.b16 %v1002, %v1002
      %v1035 = vpack.c.b16 %v1003, %v1003
      %v1036 = vpack.c.b16 %v1004, %v1004
      %v1037 = vpack.c.b16 %v1005, %v1005
      %v1038 = vpack.c.b16 %v1006, %v1006
      %v1039 = vpack.c.b16 %v1007, %v1007
      %v1040 = vpack.c.b16 %v1008, %v1008
      %v1041 = vpack.c.b16 %v1009, %v1009
      %v1042 = vpack.c.b16 %v1010, %v1010
      %v1043 = vpack.c.b16 %v1011, %v1011
      %v1044 = vpack.c.b16 %v1012, %v1012
      %v1045 = vpack.c.b16 %v1013, %v1013
      %v1046 = vpack.c.b16 %v1014, %v1014
      %v1047 = vpack.c.b16 %v1015, %v1015
      %v1048 = vpack.c.b16 %v1016, %v1016
      %v1049 = vpack.c.b16 %v1017, %v1017
      %v1050 = vpack.c.b16 %v1018, %v1018
      %v1051 = vpack.c.b16 %v1019, %v1019
      %v1052 = vpack.c.b16 %v1020, %v1020
      %v1053 = vpack.c.b16 %v1021, %v1021
      %v1054 = vpack.c.b16 %v1022, %v1022
      %v1055 = vpack.c.b16 %v1023, %v1023
      %v1056 = vpack.c.b16 %v1024, %v1024
      %v1057 = vpack.c.b16 %v1025, %v1025
      %v1059 = vshrl.u32 %v1026, 16
      %v1061 = vrot.slane %v1059, 7
      %v1062 = vshll.u32 %v1026, 16
      %v1064 = vor.u32 %v1061, %v1062
      %v1065 = vrot.slane %v1061, 4
      %v1067 = vshrl.u32 %v1027, 16
      %v1069 = vrot.slane %v1067, 7
      %v1070 = vshll.u32 %v1027, 16
      %v1072 = vor.u32 %v1069, %v1070
      %v1073 = vsel %vm490, %v1065, %v1072
      %v1074 = vrot.slane %v1069, 4
      %v1076 = vshrl.u32 %v1028, 16
      %v1078 = vrot.slane %v1076, 7
      %v1079 = vshll.u32 %v1028, 16
      %v1081 = vor.u32 %v1078, %v1079
      %v1082 = vrot.slane %v1078, 4
      %v1084 = vshrl.u32 %v1029, 16
      %v1086 = vrot.slane %v1084, 7
      %v1087 = vshll.u32 %v1029, 16
      %v1089 = vor.u32 %v1086, %v1087
      %v1090 = vsel %vm490, %v1082, %v1089
      %v1091 = vrot.slane %v1086, 4
      %v1093 = vshrl.u32 %v1030, 16
      %v1095 = vrot.slane %v1093, 7
      %v1096 = vshll.u32 %v1030, 16
      %v1098 = vor.u32 %v1095, %v1096
      %v1099 = vrot.slane %v1095, 4
      %v1101 = vshrl.u32 %v1031, 16
      %v1103 = vrot.slane %v1101, 7
      %v1104 = vshll.u32 %v1031, 16
      %v1106 = vor.u32 %v1103, %v1104
      %v1107 = vsel %vm490, %v1099, %v1106
      %v1108 = vrot.slane %v1103, 4
      %v1110 = vshrl.u32 %v1032, 16
      %v1112 = vrot.slane %v1110, 7
      %v1113 = vshll.u32 %v1032, 16
      %v1115 = vor.u32 %v1112, %v1113
      %v1116 = vrot.slane %v1112, 4
      %v1118 = vshrl.u32 %v1033, 16
      %v1120 = vrot.slane %v1118, 7
      %v1121 = vshll.u32 %v1033, 16
      %v1123 = vor.u32 %v1120, %v1121
      %v1124 = vsel %vm490, %v1116, %v1123
      %v1125 = vrot.slane %v1120, 4
      %v1127 = vshrl.u32 %v1034, 16
      %v1129 = vrot.slane %v1127, 7
      %v1130 = vshll.u32 %v1034, 16
      %v1132 = vor.u32 %v1129, %v1130
      %v1133 = vrot.slane %v1129, 4
      %v1135 = vshrl.u32 %v1035, 16
      %v1137 = vrot.slane %v1135, 7
      %v1138 = vshll.u32 %v1035, 16
      %v1140 = vor.u32 %v1137, %v1138
      %v1141 = vsel %vm490, %v1133, %v1140
      %v1142 = vrot.slane %v1137, 4
      %v1144 = vshrl.u32 %v1036, 16
      %v1146 = vrot.slane %v1144, 7
      %v1147 = vshll.u32 %v1036, 16
      %v1149 = vor.u32 %v1146, %v1147
      %v1150 = vrot.slane %v1146, 4
      %v1152 = vshrl.u32 %v1037, 16
      %v1154 = vrot.slane %v1152, 7
      %v1155 = vshll.u32 %v1037, 16
      %v1157 = vor.u32 %v1154, %v1155
      %v1158 = vsel %vm490, %v1150, %v1157
      %v1159 = vrot.slane %v1154, 4
      %v1161 = vshrl.u32 %v1038, 16
      %v1163 = vrot.slane %v1161, 7
      %v1164 = vshll.u32 %v1038, 16
      %v1166 = vor.u32 %v1163, %v1164
      %v1167 = vrot.slane %v1163, 4
      %v1169 = vshrl.u32 %v1039, 16
      %v1171 = vrot.slane %v1169, 7
      %v1172 = vshll.u32 %v1039, 16
      %v1174 = vor.u32 %v1171, %v1172
      %v1175 = vsel %vm490, %v1167, %v1174
      %v1176 = vrot.slane %v1171, 4
      %v1178 = vshrl.u32 %v1040, 16
      %v1180 = vrot.slane %v1178, 7
      %v1181 = vshll.u32 %v1040, 16
      %v1183 = vor.u32 %v1180, %v1181
      %v1184 = vrot.slane %v1180, 4
      %v1186 = vshrl.u32 %v1041, 16
      %v1188 = vrot.slane %v1186, 7
      %v1189 = vshll.u32 %v1041, 16
      %v1191 = vor.u32 %v1188, %v1189
      %v1192 = vsel %vm490, %v1184, %v1191
      %v1193 = vrot.slane %v1188, 4
      %v1195 = vshrl.u32 %v1042, 16
      %v1197 = vrot.slane %v1195, 7
      %v1198 = vshll.u32 %v1042, 16
      %v1200 = vor.u32 %v1197, %v1198
      %v1201 = vrot.slane %v1197, 4
      %v1203 = vshrl.u32 %v1043, 16
      %v1205 = vrot.slane %v1203, 7
      %v1206 = vshll.u32 %v1043, 16
      %v1208 = vor.u32 %v1205, %v1206
      %v1209 = vsel %vm490, %v1201, %v1208
      %v1210 = vrot.slane %v1205, 4
      %v1212 = vshrl.u32 %v1044, 16
      %v1214 = vrot.slane %v1212, 7
      %v1215 = vshll.u32 %v1044, 16
      %v1217 = vor.u32 %v1214, %v1215
      %v1218 = vrot.slane %v1214, 4
      %v1220 = vshrl.u32 %v1045, 16
      %v1222 = vrot.slane %v1220, 7
      %v1223 = vshll.u32 %v1045, 16
      %v1225 = vor.u32 %v1222, %v1223
      %v1226 = vsel %vm490, %v1218, %v1225
      %v1227 = vrot.slane %v1222, 4
      %v1229 = vshrl.u32 %v1046, 16
      %v1231 = vrot.slane %v1229, 7
      %v1232 = vshll.u32 %v1046, 16
      %v1234 = vor.u32 %v1231, %v1232
      %v1235 = vrot.slane %v1231, 4
      %v1237 = vshrl.u32 %v1047, 16
      %v1239 = vrot.slane %v1237, 7
      %v1240 = vshll.u32 %v1047, 16
      %v1242 = vor.u32 %v1239, %v1240
      %v1243 = vsel %vm490, %v1235, %v1242
      %v1244 = vrot.slane %v1239, 4
      %v1246 = vshrl.u32 %v1048, 16
      %v1248 = vrot.slane %v1246, 7
      %v1249 = vshll.u32 %v1048, 16
      %v1251 = vor.u32 %v1248, %v1249
      %v1252 = vrot.slane %v1248, 4
      %v1254 = vshrl.u32 %v1049, 16
      %v1256 = vrot.slane %v1254, 7
      %v1257 = vshll.u32 %v1049, 16
      %v1259 = vor.u32 %v1256, %v1257
      %v1260 = vsel %vm490, %v1252, %v1259
      %v1261 = vrot.slane %v1256, 4
      %v1263 = vshrl.u32 %v1050, 16
      %v1265 = vrot.slane %v1263, 7
      %v1266 = vshll.u32 %v1050, 16
      %v1268 = vor.u32 %v1265, %v1266
      %v1269 = vrot.slane %v1265, 4
      %v1271 = vshrl.u32 %v1051, 16
      %v1273 = vrot.slane %v1271, 7
      %v1274 = vshll.u32 %v1051, 16
      %v1276 = vor.u32 %v1273, %v1274
      %v1277 = vsel %vm490, %v1269, %v1276
      %v1278 = vrot.slane %v1273, 4
      %v1280 = vshrl.u32 %v1052, 16
      %v1282 = vrot.slane %v1280, 7
      %v1283 = vshll.u32 %v1052, 16
      %v1285 = vor.u32 %v1282, %v1283
      %v1286 = vrot.slane %v1282, 4
      %v1288 = vshrl.u32 %v1053, 16
      %v1290 = vrot.slane %v1288, 7
      %v1291 = vshll.u32 %v1053, 16
      %v1293 = vor.u32 %v1290, %v1291
      %v1294 = vsel %vm490, %v1286, %v1293
      %v1295 = vrot.slane %v1290, 4
      %v1297 = vshrl.u32 %v1054, 16
      %v1299 = vrot.slane %v1297, 7
      %v1300 = vshll.u32 %v1054, 16
      %v1302 = vor.u32 %v1299, %v1300
      %v1303 = vrot.slane %v1299, 4
      %v1305 = vshrl.u32 %v1055, 16
      %v1307 = vrot.slane %v1305, 7
      %v1308 = vshll.u32 %v1055, 16
      %v1310 = vor.u32 %v1307, %v1308
      %v1311 = vsel %vm490, %v1303, %v1310
      %v1312 = vrot.slane %v1307, 4
      %v1314 = vshrl.u32 %v1056, 16
      %v1316 = vrot.slane %v1314, 7
      %v1317 = vshll.u32 %v1056, 16
      %v1319 = vor.u32 %v1316, %v1317
      %v1320 = vrot.slane %v1316, 4
      %v1322 = vshrl.u32 %v1057, 16
      %v1324 = vrot.slane %v1322, 7
      %v1325 = vshll.u32 %v1057, 16
      %v1327 = vor.u32 %v1324, %v1325
      %v1328 = vsel %vm490, %v1320, %v1327
      %v1329 = vrot.slane %v1324, 4
      %1330 = vrot.lane.b32.xlu0 %v1064, 32
      %v1331 = vpop.permute.xlu0 %1330
      %1332 = vrot.lane.b32.xlu0 %v1073, 32
      %v1333 = vpop.permute.xlu0 %1332
      %1334 = vrot.lane.b32.xlu0 %v1074, 32
      %v1335 = vpop.permute.xlu0 %1334
      %1336 = vrot.lane.b32.xlu0 %v1081, 32
      %v1337 = vpop.permute.xlu0 %1336
      %1338 = vrot.lane.b32.xlu0 %v1090, 32
      %v1339 = vpop.permute.xlu0 %1338
      %1340 = vrot.lane.b32.xlu0 %v1091, 32
      %v1341 = vpop.permute.xlu0 %1340
      %1342 = vrot.lane.b32.xlu0 %v1098, 32
      %v1343 = vpop.permute.xlu0 %1342
      %1344 = vrot.lane.b32.xlu0 %v1107, 32
      %v1345 = vpop.permute.xlu0 %1344
      %1346 = vrot.lane.b32.xlu0 %v1108, 32
      %v1347 = vpop.permute.xlu0 %1346
      %1348 = vrot.lane.b32.xlu0 %v1115, 32
      %v1349 = vpop.permute.xlu0 %1348
      %1350 = vrot.lane.b32.xlu0 %v1124, 32
      %v1351 = vpop.permute.xlu0 %1350
      %1352 = vrot.lane.b32.xlu0 %v1125, 32
      %v1353 = vpop.permute.xlu0 %1352
      %1354 = vrot.lane.b32.xlu0 %v1132, 32
      %v1355 = vpop.permute.xlu0 %1354
      %1356 = vrot.lane.b32.xlu0 %v1141, 32
      %v1357 = vpop.permute.xlu0 %1356
      %1358 = vrot.lane.b32.xlu0 %v1142, 32
      %v1359 = vpop.permute.xlu0 %1358
      %1360 = vrot.lane.b32.xlu0 %v1149, 32
      %v1361 = vpop.permute.xlu0 %1360
      %1362 = vrot.lane.b32.xlu0 %v1158, 32
      %v1363 = vpop.permute.xlu0 %1362
      %1364 = vrot.lane.b32.xlu0 %v1159, 32
      %v1365 = vpop.permute.xlu0 %1364
      %1366 = vrot.lane.b32.xlu0 %v1166, 32
      %v1367 = vpop.permute.xlu0 %1366
      %1368 = vrot.lane.b32.xlu0 %v1175, 32
      %v1369 = vpop.permute.xlu0 %1368
      %1370 = vrot.lane.b32.xlu0 %v1176, 32
      %v1371 = vpop.permute.xlu0 %1370
      %1372 = vrot.lane.b32.xlu0 %v1183, 32
      %v1373 = vpop.permute.xlu0 %1372
      %1374 = vrot.lane.b32.xlu0 %v1192, 32
      %v1375 = vpop.permute.xlu0 %1374
      %1376 = vrot.lane.b32.xlu0 %v1193, 32
      %v1377 = vpop.permute.xlu0 %1376
      %1378 = vrot.lane.b32.xlu0 %v1200, 32
      %v1379 = vpop.permute.xlu0 %1378
      %1380 = vrot.lane.b32.xlu0 %v1209, 32
      %v1381 = vpop.permute.xlu0 %1380
      %1382 = vrot.lane.b32.xlu0 %v1210, 32
      %v1383 = vpop.permute.xlu0 %1382
      %1384 = vrot.lane.b32.xlu0 %v1217, 32
      %v1385 = vpop.permute.xlu0 %1384
      %1386 = vrot.lane.b32.xlu0 %v1226, 32
      %v1387 = vpop.permute.xlu0 %1386
      %1388 = vrot.lane.b32.xlu0 %v1227, 32
      %v1389 = vpop.permute.xlu0 %1388
      %1390 = vrot.lane.b32.xlu0 %v1234, 32
      %v1391 = vpop.permute.xlu0 %1390
      %1392 = vrot.lane.b32.xlu0 %v1243, 32
      %v1393 = vpop.permute.xlu0 %1392
      %1394 = vrot.lane.b32.xlu0 %v1244, 32
      %v1395 = vpop.permute.xlu0 %1394
      %1396 = vrot.lane.b32.xlu0 %v1251, 32
      %v1397 = vpop.permute.xlu0 %1396
      %1398 = vrot.lane.b32.xlu0 %v1260, 32
      %v1399 = vpop.permute.xlu0 %1398
      %1400 = vrot.lane.b32.xlu0 %v1261, 32
      %v1401 = vpop.permute.xlu0 %1400
      %1402 = vrot.lane.b32.xlu0 %v1268, 32
      %v1403 = vpop.permute.xlu0 %1402
      %1404 = vrot.lane.b32.xlu0 %v1277, 32
      %v1405 = vpop.permute.xlu0 %1404
      %1406 = vrot.lane.b32.xlu0 %v1278, 32
      %v1407 = vpop.permute.xlu0 %1406
      %1408 = vrot.lane.b32.xlu0 %v1285, 32
      %v1409 = vpop.permute.xlu0 %1408
      %1410 = vrot.lane.b32.xlu0 %v1294, 32
      %v1411 = vpop.permute.xlu0 %1410
      %1412 = vrot.lane.b32.xlu0 %v1295, 32
      %v1413 = vpop.permute.xlu0 %1412
      %1414 = vrot.lane.b32.xlu0 %v1302, 32
      %v1415 = vpop.permute.xlu0 %1414
      %1416 = vrot.lane.b32.xlu0 %v1311, 32
      %v1417 = vpop.permute.xlu0 %1416
      %1418 = vrot.lane.b32.xlu0 %v1312, 32
      %v1419 = vpop.permute.xlu0 %1418
      %1420 = vrot.lane.b32.xlu0 %v1319, 32
      %v1421 = vpop.permute.xlu0 %1420
      %1422 = vrot.lane.b32.xlu0 %v1328, 32
      %v1423 = vpop.permute.xlu0 %1422
      %1424 = vrot.lane.b32.xlu0 %v1329, 32
      %v1425 = vpop.permute.xlu0 %1424
      %vm1474 = vcmask 290048
      %vm1475 = vmand %vm1474, %vm813
      %v1476 = vld [vmem:[%s811] sm:$0xf]
      %v1477 = vsel %vm1475, %v1331, %v1476
      %1478 = vst [vmem:[%s811] sm:$0xf] %v1477
      %vm1479 = vcmask 290048
      %1480 = vst.msk [vmem:[%s811 + $0x4] sm:$0xf] %vm1479, %v1333
      %vm1481 = vcmask 286976
      %vm1482 = vmand %vm1481, %vm488
      %v1483 = vld [vmem:[%s811 + $0x8] sm:$0x1]
      %v1484 = vsel %vm1482, %v1335, %v1483
      %1485 = vst [vmem:[%s811 + $0x8] sm:$0x1] %v1484
      %v1486 = vld [vmem:[%s811 + $0xc] sm:$0xf]
      %v1487 = vsel %vm1475, %v1337, %v1486
      %1488 = vst [vmem:[%s811 + $0xc] sm:$0xf] %v1487
      %1489 = vst.msk [vmem:[%s811 + $0x10] sm:$0xf] %vm1479, %v1339
      %v1490 = vld [vmem:[%s811 + $0x14] sm:$0x1]
      %v1491 = vsel %vm1482, %v1341, %v1490
      %1492 = vst [vmem:[%s811 + $0x14] sm:$0x1] %v1491
      %v1493 = vld [vmem:[%s811 + $0x18] sm:$0xf]
      %v1494 = vsel %vm1475, %v1343, %v1493
      %1495 = vst [vmem:[%s811 + $0x18] sm:$0xf] %v1494
      %1496 = vst.msk [vmem:[%s811 + $0x1c] sm:$0xf] %vm1479, %v1345
      %v1497 = vld [vmem:[%s811 + $0x20] sm:$0x1]
      %v1498 = vsel %vm1482, %v1347, %v1497
      %1499 = vst [vmem:[%s811 + $0x20] sm:$0x1] %v1498
      %v1500 = vld [vmem:[%s811 + $0x24] sm:$0xf]
      %v1501 = vsel %vm1475, %v1349, %v1500
      %1502 = vst [vmem:[%s811 + $0x24] sm:$0xf] %v1501
      %1503 = vst.msk [vmem:[%s811 + $0x28] sm:$0xf] %vm1479, %v1351
      %v1504 = vld [vmem:[%s811 + $0x2c] sm:$0x1]
      %v1505 = vsel %vm1482, %v1353, %v1504
      %1506 = vst [vmem:[%s811 + $0x2c] sm:$0x1] %v1505
      %v1507 = vld [vmem:[%s811 + $0x30] sm:$0xf]
      %v1508 = vsel %vm1475, %v1355, %v1507
      %1509 = vst [vmem:[%s811 + $0x30] sm:$0xf] %v1508
      %1510 = vst.msk [vmem:[%s811 + $0x34] sm:$0xf] %vm1479, %v1357
      %v1511 = vld [vmem:[%s811 + $0x38] sm:$0x1]
      %v1512 = vsel %vm1482, %v1359, %v1511
      %1513 = vst [vmem:[%s811 + $0x38] sm:$0x1] %v1512
      %v1514 = vld [vmem:[%s811 + $0x3c] sm:$0xf]
      %v1515 = vsel %vm1475, %v1361, %v1514
      %1516 = vst [vmem:[%s811 + $0x3c] sm:$0xf] %v1515
      %1517 = vst.msk [vmem:[%s811 + $0x40] sm:$0xf] %vm1479, %v1363
      %v1518 = vld [vmem:[%s811 + $0x44] sm:$0x1]
      %v1519 = vsel %vm1482, %v1365, %v1518
      %1520 = vst [vmem:[%s811 + $0x44] sm:$0x1] %v1519
      %v1521 = vld [vmem:[%s811 + $0x48] sm:$0xf]
      %v1522 = vsel %vm1475, %v1367, %v1521
      %1523 = vst [vmem:[%s811 + $0x48] sm:$0xf] %v1522
      %1524 = vst.msk [vmem:[%s811 + $0x4c] sm:$0xf] %vm1479, %v1369
      %v1525 = vld [vmem:[%s811 + $0x50] sm:$0x1]
      %v1526 = vsel %vm1482, %v1371, %v1525
      %1527 = vst [vmem:[%s811 + $0x50] sm:$0x1] %v1526
      %v1528 = vld [vmem:[%s811 + $0x54] sm:$0xf]
      %v1529 = vsel %vm1475, %v1373, %v1528
      %1530 = vst [vmem:[%s811 + $0x54] sm:$0xf] %v1529
      %1531 = vst.msk [vmem:[%s811 + $0x58] sm:$0xf] %vm1479, %v1375
      %v1532 = vld [vmem:[%s811 + $0x5c] sm:$0x1]
      %v1533 = vsel %vm1482, %v1377, %v1532
      %1534 = vst [vmem:[%s811 + $0x5c] sm:$0x1] %v1533
      %v1535 = vld [vmem:[%s811 + $0x60] sm:$0xf]
      %v1536 = vsel %vm1475, %v1379, %v1535
      %1537 = vst [vmem:[%s811 + $0x60] sm:$0xf] %v1536
      %1538 = vst.msk [vmem:[%s811 + $0x64] sm:$0xf] %vm1479, %v1381
      %v1539 = vld [vmem:[%s811 + $0x68] sm:$0x1]
      %v1540 = vsel %vm1482, %v1383, %v1539
      %1541 = vst [vmem:[%s811 + $0x68] sm:$0x1] %v1540
      %v1542 = vld [vmem:[%s811 + $0x6c] sm:$0xf]
      %v1543 = vsel %vm1475, %v1385, %v1542
      %1544 = vst [vmem:[%s811 + $0x6c] sm:$0xf] %v1543
      %1545 = vst.msk [vmem:[%s811 + $0x70] sm:$0xf] %vm1479, %v1387
      %v1546 = vld [vmem:[%s811 + $0x74] sm:$0x1]
      %v1547 = vsel %vm1482, %v1389, %v1546
      %1548 = vst [vmem:[%s811 + $0x74] sm:$0x1] %v1547
      %v1549 = vld [vmem:[%s811 + $0x78] sm:$0xf]
      %v1550 = vsel %vm1475, %v1391, %v1549
      %1551 = vst [vmem:[%s811 + $0x78] sm:$0xf] %v1550
      %1552 = vst.msk [vmem:[%s811 + $0x7c] sm:$0xf] %vm1479, %v1393
      %v1553 = vld [vmem:[%s811 + $0x80] sm:$0x1]
      %v1554 = vsel %vm1482, %v1395, %v1553
      %1555 = vst [vmem:[%s811 + $0x80] sm:$0x1] %v1554
      %v1556 = vld [vmem:[%s811 + $0x84] sm:$0xf]
      %v1557 = vsel %vm1475, %v1397, %v1556
      %1558 = vst [vmem:[%s811 + $0x84] sm:$0xf] %v1557
      %1559 = vst.msk [vmem:[%s811 + $0x88] sm:$0xf] %vm1479, %v1399
      %v1560 = vld [vmem:[%s811 + $0x8c] sm:$0x1]
      %v1561 = vsel %vm1482, %v1401, %v1560
      %1562 = vst [vmem:[%s811 + $0x8c] sm:$0x1] %v1561
      %v1563 = vld [vmem:[%s811 + $0x90] sm:$0xf]
      %v1564 = vsel %vm1475, %v1403, %v1563
      %1565 = vst [vmem:[%s811 + $0x90] sm:$0xf] %v1564
      %1566 = vst.msk [vmem:[%s811 + $0x94] sm:$0xf] %vm1479, %v1405
      %v1567 = vld [vmem:[%s811 + $0x98] sm:$0x1]
      %v1568 = vsel %vm1482, %v1407, %v1567
      %1569 = vst [vmem:[%s811 + $0x98] sm:$0x1] %v1568
      %v1570 = vld [vmem:[%s811 + $0x9c] sm:$0xf]
      %v1571 = vsel %vm1475, %v1409, %v1570
      %1572 = vst [vmem:[%s811 + $0x9c] sm:$0xf] %v1571
      %1573 = vst.msk [vmem:[%s811 + $0xa0] sm:$0xf] %vm1479, %v1411
      %v1574 = vld [vmem:[%s811 + $0xa4] sm:$0x1]
      %v1575 = vsel %vm1482, %v1413, %v1574
      %1576 = vst [vmem:[%s811 + $0xa4] sm:$0x1] %v1575
      %v1577 = vld [vmem:[%s811 + $0xa8] sm:$0xf]
      %v1578 = vsel %vm1475, %v1415, %v1577
      %1579 = vst [vmem:[%s811 + $0xa8] sm:$0xf] %v1578
      %1580 = vst.msk [vmem:[%s811 + $0xac] sm:$0xf] %vm1479, %v1417
      %v1581 = vld [vmem:[%s811 + $0xb0] sm:$0x1]
      %v1582 = vsel %vm1482, %v1419, %v1581
      %1583 = vst [vmem:[%s811 + $0xb0] sm:$0x1] %v1582
      %v1584 = vld [vmem:[%s811 + $0xb4] sm:$0xf]
      %v1585 = vsel %vm1475, %v1421, %v1584
      %1586 = vst [vmem:[%s811 + $0xb4] sm:$0xf] %v1585
      %1587 = vst.msk [vmem:[%s811 + $0xb8] sm:$0xf] %vm1479, %v1423
      %v1588 = vld [vmem:[%s811 + $0xbc] sm:$0x1]
      %v1589 = vsel %vm1482, %v1425, %v1588
      %1590 = vst [vmem:[%s811 + $0xbc] sm:$0x1] %v1589
      %v1591 = vld [vmem:[#allocation2] sm:$0xf]
      %v1592 = vld [vmem:[#allocation2 + $0x4] sm:$0xf]
      %v1593 = vld [vmem:[#allocation2 + $0xc] sm:$0xf]
      %v1594 = vld [vmem:[#allocation2 + $0x10] sm:$0xf]
      %v1595 = vld [vmem:[#allocation2 + $0x18] sm:$0xf]
      %v1596 = vld [vmem:[#allocation2 + $0x1c] sm:$0xf]
      %v1597 = vld [vmem:[#allocation2 + $0x24] sm:$0xf]
      %v1598 = vld [vmem:[#allocation2 + $0x28] sm:$0xf]
      %v1599 = vld [vmem:[#allocation2 + $0x30] sm:$0xf]
      %v1600 = vld [vmem:[#allocation2 + $0x34] sm:$0xf]
      %v1601 = vld [vmem:[#allocation2 + $0x3c] sm:$0xf]
      %v1602 = vld [vmem:[#allocation2 + $0x40] sm:$0xf]
      %v1603 = vld [vmem:[#allocation2 + $0x48] sm:$0xf]
      %v1604 = vld [vmem:[#allocation2 + $0x4c] sm:$0xf]
      %v1605 = vld [vmem:[#allocation2 + $0x54] sm:$0xf]
      %v1606 = vld [vmem:[#allocation2 + $0x58] sm:$0xf]
      %v1607 = vld [vmem:[#allocation2 + $0x60] sm:$0xf]
      %v1608 = vld [vmem:[#allocation2 + $0x64] sm:$0xf]
      %v1609 = vld [vmem:[#allocation2 + $0x6c] sm:$0xf]
      %v1610 = vld [vmem:[#allocation2 + $0x70] sm:$0xf]
      %v1611 = vld [vmem:[#allocation2 + $0x78] sm:$0xf]
      %v1612 = vld [vmem:[#allocation2 + $0x7c] sm:$0xf]
      %v1613 = vld [vmem:[#allocation2 + $0x84] sm:$0xf]
      %v1614 = vld [vmem:[#allocation2 + $0x88] sm:$0xf]
      %v1615 = vld [vmem:[#allocation2 + $0x90] sm:$0xf]
      %v1616 = vld [vmem:[#allocation2 + $0x94] sm:$0xf]
      %v1617 = vld [vmem:[#allocation2 + $0x9c] sm:$0xf]
      %v1618 = vld [vmem:[#allocation2 + $0xa0] sm:$0xf]
      %v1619 = vld [vmem:[#allocation2 + $0xa8] sm:$0xf]
      %v1620 = vld [vmem:[#allocation2 + $0xac] sm:$0xf]
      %v1621 = vld [vmem:[#allocation2 + $0xb4] sm:$0xf]
      %v1622 = vld [vmem:[#allocation2 + $0xb8] sm:$0xf]
      %v1655 = vunpack.c.l.b16 %v1591
      %v1656 = vunpack.c.l.b16 %v1592
      %v1657 = vunpack.c.l.b16 %v1593
      %v1658 = vunpack.c.l.b16 %v1594
      %v1659 = vunpack.c.l.b16 %v1595
      %v1660 = vunpack.c.l.b16 %v1596
      %v1661 = vunpack.c.l.b16 %v1597
      %v1662 = vunpack.c.l.b16 %v1598
      %v1663 = vunpack.c.l.b16 %v1599
      %v1664 = vunpack.c.l.b16 %v1600
      %v1665 = vunpack.c.l.b16 %v1601
      %v1666 = vunpack.c.l.b16 %v1602
      %v1667 = vunpack.c.l.b16 %v1603
      %v1668 = vunpack.c.l.b16 %v1604
      %v1669 = vunpack.c.l.b16 %v1605
      %v1670 = vunpack.c.l.b16 %v1606
      %v1671 = vunpack.c.l.b16 %v1607
      %v1672 = vunpack.c.l.b16 %v1608
      %v1673 = vunpack.c.l.b16 %v1609
      %v1674 = vunpack.c.l.b16 %v1610
      %v1675 = vunpack.c.l.b16 %v1611
      %v1676 = vunpack.c.l.b16 %v1612
      %v1677 = vunpack.c.l.b16 %v1613
      %v1678 = vunpack.c.l.b16 %v1614
      %v1679 = vunpack.c.l.b16 %v1615
      %v1680 = vunpack.c.l.b16 %v1616
      %v1681 = vunpack.c.l.b16 %v1617
      %v1682 = vunpack.c.l.b16 %v1618
      %v1683 = vunpack.c.l.b16 %v1619
      %v1684 = vunpack.c.l.b16 %v1620
      %v1685 = vunpack.c.l.b16 %v1621
      %v1686 = vunpack.c.l.b16 %v1622
      %v1687 = vpack.c.b16 %v1656, %v1655
      %v1688 = vpack.c.b16 %v1658, %v1657
      %v1689 = vpack.c.b16 %v1660, %v1659
      %v1690 = vpack.c.b16 %v1662, %v1661
      %v1691 = vpack.c.b16 %v1664, %v1663
      %v1692 = vpack.c.b16 %v1666, %v1665
      %v1693 = vpack.c.b16 %v1668, %v1667
      %v1694 = vpack.c.b16 %v1670, %v1669
      %v1695 = vpack.c.b16 %v1672, %v1671
      %v1696 = vpack.c.b16 %v1674, %v1673
      %v1697 = vpack.c.b16 %v1676, %v1675
      %v1698 = vpack.c.b16 %v1678, %v1677
      %v1699 = vpack.c.b16 %v1680, %v1679
      %v1700 = vpack.c.b16 %v1682, %v1681
      %v1701 = vpack.c.b16 %v1684, %v1683
      %v1702 = vpack.c.b16 %v1686, %v1685
      %1719 = vst [vmem:[#allocation3] sm:$0xff] %v1687
      %1720 = vst [vmem:[#allocation3 + $0x48] sm:$0xff] %v1688
      %1721 = vst [vmem:[#allocation3 + $0x90] sm:$0xff] %v1689
      %1722 = vst [vmem:[#allocation3 + $0xd8] sm:$0xff] %v1690
      %1723 = vst [vmem:[#allocation3 + $0x120] sm:$0xff] %v1691
      %1724 = vst [vmem:[#allocation3 + $0x168] sm:$0xff] %v1692
      %1725 = vst [vmem:[#allocation3 + $0x1b0] sm:$0xff] %v1693
      %1726 = vst [vmem:[#allocation3 + $0x1f8] sm:$0xff] %v1694
      %1727 = vst [vmem:[#allocation3 + $0x240] sm:$0xff] %v1695
      %1728 = vst [vmem:[#allocation3 + $0x288] sm:$0xff] %v1696
      %1729 = vst [vmem:[#allocation3 + $0x2d0] sm:$0xff] %v1697
      %1730 = vst [vmem:[#allocation3 + $0x318] sm:$0xff] %v1698
      %1731 = vst [vmem:[#allocation3 + $0x360] sm:$0xff] %v1699
      %1732 = vst [vmem:[#allocation3 + $0x3a8] sm:$0xff] %v1700
      %1733 = vst [vmem:[#allocation3 + $0x3f0] sm:$0xff] %v1701
      %1734 = vst [vmem:[#allocation3 + $0x438] sm:$0xff] %v1702
      %v1735 = vld [vmem:[#allocation2] sm:$0xf]
      %v1736 = vld [vmem:[#allocation2 + $0x4] sm:$0xf]
      %v1737 = vld [vmem:[#allocation2 + $0x8] sm:$0x1]
      %v1738 = vld [vmem:[#allocation2 + $0xc] sm:$0xf]
      %v1739 = vld [vmem:[#allocation2 + $0x10] sm:$0xf]
      %v1740 = vld [vmem:[#allocation2 + $0x14] sm:$0x1]
      %v1741 = vld [vmem:[#allocation2 + $0x18] sm:$0xf]
      %v1742 = vld [vmem:[#allocation2 + $0x1c] sm:$0xf]
      %v1743 = vld [vmem:[#allocation2 + $0x20] sm:$0x1]
      %v1744 = vld [vmem:[#allocation2 + $0x24] sm:$0xf]
      %v1745 = vld [vmem:[#allocation2 + $0x28] sm:$0xf]
      %v1746 = vld [vmem:[#allocation2 + $0x2c] sm:$0x1]
      %v1747 = vld [vmem:[#allocation2 + $0x30] sm:$0xf]
      %v1748 = vld [vmem:[#allocation2 + $0x34] sm:$0xf]
      %v1749 = vld [vmem:[#allocation2 + $0x38] sm:$0x1]
      %v1750 = vld [vmem:[#allocation2 + $0x3c] sm:$0xf]
      %v1751 = vld [vmem:[#allocation2 + $0x40] sm:$0xf]
      %v1752 = vld [vmem:[#allocation2 + $0x44] sm:$0x1]
      %v1753 = vld [vmem:[#allocation2 + $0x48] sm:$0xf]
      %v1754 = vld [vmem:[#allocation2 + $0x4c] sm:$0xf]
      %v1755 = vld [vmem:[#allocation2 + $0x50] sm:$0x1]
      %v1756 = vld [vmem:[#allocation2 + $0x54] sm:$0xf]
      %v1757 = vld [vmem:[#allocation2 + $0x58] sm:$0xf]
      %v1758 = vld [vmem:[#allocation2 + $0x5c] sm:$0x1]
      %v1759 = vld [vmem:[#allocation2 + $0x60] sm:$0xf]
      %v1760 = vld [vmem:[#allocation2 + $0x64] sm:$0xf]
      %v1761 = vld [vmem:[#allocation2 + $0x68] sm:$0x1]
      %v1762 = vld [vmem:[#allocation2 + $0x6c] sm:$0xf]
      %v1763 = vld [vmem:[#allocation2 + $0x70] sm:$0xf]
      %v1764 = vld [vmem:[#allocation2 + $0x74] sm:$0x1]
      %v1765 = vld [vmem:[#allocation2 + $0x78] sm:$0xf]
      %v1766 = vld [vmem:[#allocation2 + $0x7c] sm:$0xf]
      %v1767 = vld [vmem:[#allocation2 + $0x80] sm:$0x1]
      %v1768 = vld [vmem:[#allocation2 + $0x84] sm:$0xf]
      %v1769 = vld [vmem:[#allocation2 + $0x88] sm:$0xf]
      %v1770 = vld [vmem:[#allocation2 + $0x8c] sm:$0x1]
      %v1771 = vld [vmem:[#allocation2 + $0x90] sm:$0xf]
      %v1772 = vld [vmem:[#allocation2 + $0x94] sm:$0xf]
      %v1773 = vld [vmem:[#allocation2 + $0x98] sm:$0x1]
      %v1774 = vld [vmem:[#allocation2 + $0x9c] sm:$0xf]
      %v1775 = vld [vmem:[#allocation2 + $0xa0] sm:$0xf]
      %v1776 = vld [vmem:[#allocation2 + $0xa4] sm:$0x1]
      %v1777 = vld [vmem:[#allocation2 + $0xa8] sm:$0xf]
      %v1778 = vld [vmem:[#allocation2 + $0xac] sm:$0xf]
      %v1779 = vld [vmem:[#allocation2 + $0xb0] sm:$0x1]
      %v1780 = vld [vmem:[#allocation2 + $0xb4] sm:$0xf]
      %v1781 = vld [vmem:[#allocation2 + $0xb8] sm:$0xf]
      %v1782 = vld [vmem:[#allocation2 + $0xbc] sm:$0x1]
      %vm1783 = vsmask.f32 3328
      %vm1784 = vsmask.f32 7440
      %vm1785 = vmor %vm1783, %vm1784
      %v1787 = vshrl.u32 %v1735, 16
      %v1789 = vrot.slane %v1787, 4
      %v1790 = vshll.u32 %v1735, 16
      %v1792 = vrot.slane %v1790, 5
      %v1793 = vor.u32 %v1789, %v1792
      %v1794 = vrot.slane %v1793, 4
      %v1796 = vshll.u32 %v1736, 16
      %v1798 = vrot.slane %v1796, 5
      %v1799 = vsel %vm1785, %v1794, %v1798
      %v1800 = vshrl.u32 %v1736, 16
      %v1802 = vrot.slane %v1800, 4
      %v1803 = vor.u32 %v1802, %v1798
      %v1804 = vrot.slane %v1803, 4
      %v1806 = vshll.u32 %v1737, 16
      %v1808 = vrot.slane %v1806, 5
      %v1809 = vsel %vm1785, %v1804, %v1808
      %v1811 = vshrl.u32 %v1738, 16
      %v1813 = vrot.slane %v1811, 4
      %v1814 = vshll.u32 %v1738, 16
      %v1816 = vrot.slane %v1814, 5
      %v1817 = vor.u32 %v1813, %v1816
      %v1818 = vrot.slane %v1817, 4
      %v1820 = vshll.u32 %v1739, 16
      %v1822 = vrot.slane %v1820, 5
      %v1823 = vsel %vm1785, %v1818, %v1822
      %v1824 = vshrl.u32 %v1739, 16
      %v1826 = vrot.slane %v1824, 4
      %v1827 = vor.u32 %v1826, %v1822
      %v1828 = vrot.slane %v1827, 4
      %v1830 = vshll.u32 %v1740, 16
      %v1832 = vrot.slane %v1830, 5
      %v1833 = vsel %vm1785, %v1828, %v1832
      %v1835 = vshrl.u32 %v1741, 16
      %v1837 = vrot.slane %v1835, 4
      %v1838 = vshll.u32 %v1741, 16
      %v1840 = vrot.slane %v1838, 5
      %v1841 = vor.u32 %v1837, %v1840
      %v1842 = vrot.slane %v1841, 4
      %v1844 = vshll.u32 %v1742, 16
      %v1846 = vrot.slane %v1844, 5
      %v1847 = vsel %vm1785, %v1842, %v1846
      %v1848 = vshrl.u32 %v1742, 16
      %v1850 = vrot.slane %v1848, 4
      %v1851 = vor.u32 %v1850, %v1846
      %v1852 = vrot.slane %v1851, 4
      %v1854 = vshll.u32 %v1743, 16
      %v1856 = vrot.slane %v1854, 5
      %v1857 = vsel %vm1785, %v1852, %v1856
      %v1859 = vshrl.u32 %v1744, 16
      %v1861 = vrot.slane %v1859, 4
      %v1862 = vshll.u32 %v1744, 16
      %v1864 = vrot.slane %v1862, 5
      %v1865 = vor.u32 %v1861, %v1864
      %v1866 = vrot.slane %v1865, 4
      %v1868 = vshll.u32 %v1745, 16
      %v1870 = vrot.slane %v1868, 5
      %v1871 = vsel %vm1785, %v1866, %v1870
      %v1872 = vshrl.u32 %v1745, 16
      %v1874 = vrot.slane %v1872, 4
      %v1875 = vor.u32 %v1874, %v1870
      %v1876 = vrot.slane %v1875, 4
      %v1878 = vshll.u32 %v1746, 16
      %v1880 = vrot.slane %v1878, 5
      %v1881 = vsel %vm1785, %v1876, %v1880
      %v1883 = vshrl.u32 %v1747, 16
      %v1885 = vrot.slane %v1883, 4
      %v1886 = vshll.u32 %v1747, 16
      %v1888 = vrot.slane %v1886, 5
      %v1889 = vor.u32 %v1885, %v1888
      %v1890 = vrot.slane %v1889, 4
      %v1892 = vshll.u32 %v1748, 16
      %v1894 = vrot.slane %v1892, 5
      %v1895 = vsel %vm1785, %v1890, %v1894
      %v1896 = vshrl.u32 %v1748, 16
      %v1898 = vrot.slane %v1896, 4
      %v1899 = vor.u32 %v1898, %v1894
      %v1900 = vrot.slane %v1899, 4
      %v1902 = vshll.u32 %v1749, 16
      %v1904 = vrot.slane %v1902, 5
      %v1905 = vsel %vm1785, %v1900, %v1904
      %v1907 = vshrl.u32 %v1750, 16
      %v1909 = vrot.slane %v1907, 4
      %v1910 = vshll.u32 %v1750, 16
      %v1912 = vrot.slane %v1910, 5
      %v1913 = vor.u32 %v1909, %v1912
      %v1914 = vrot.slane %v1913, 4
      %v1916 = vshll.u32 %v1751, 16
      %v1918 = vrot.slane %v1916, 5
      %v1919 = vsel %vm1785, %v1914, %v1918
      %v1920 = vshrl.u32 %v1751, 16
      %v1922 = vrot.slane %v1920, 4
      %v1923 = vor.u32 %v1922, %v1918
      %v1924 = vrot.slane %v1923, 4
      %v1926 = vshll.u32 %v1752, 16
      %v1928 = vrot.slane %v1926, 5
      %v1929 = vsel %vm1785, %v1924, %v1928
      %v1931 = vshrl.u32 %v1753, 16
      %v1933 = vrot.slane %v1931, 4
      %v1934 = vshll.u32 %v1753, 16
      %v1936 = vrot.slane %v1934, 5
      %v1937 = vor.u32 %v1933, %v1936
      %v1938 = vrot.slane %v1937, 4
      %v1940 = vshll.u32 %v1754, 16
      %v1942 = vrot.slane %v1940, 5
      %v1943 = vsel %vm1785, %v1938, %v1942
      %v1944 = vshrl.u32 %v1754, 16
      %v1946 = vrot.slane %v1944, 4
      %v1947 = vor.u32 %v1946, %v1942
      %v1948 = vrot.slane %v1947, 4
      %v1950 = vshll.u32 %v1755, 16
      %v1952 = vrot.slane %v1950, 5
      %v1953 = vsel %vm1785, %v1948, %v1952
      %v1955 = vshrl.u32 %v1756, 16
      %v1957 = vrot.slane %v1955, 4
      %v1958 = vshll.u32 %v1756, 16
      %v1960 = vrot.slane %v1958, 5
      %v1961 = vor.u32 %v1957, %v1960
      %v1962 = vrot.slane %v1961, 4
      %v1964 = vshll.u32 %v1757, 16
      %v1966 = vrot.slane %v1964, 5
      %v1967 = vsel %vm1785, %v1962, %v1966
      %v1968 = vshrl.u32 %v1757, 16
      %v1970 = vrot.slane %v1968, 4
      %v1971 = vor.u32 %v1970, %v1966
      %v1972 = vrot.slane %v1971, 4
      %v1974 = vshll.u32 %v1758, 16
      %v1976 = vrot.slane %v1974, 5
      %v1977 = vsel %vm1785, %v1972, %v1976
      %v1979 = vshrl.u32 %v1759, 16
      %v1981 = vrot.slane %v1979, 4
      %v1982 = vshll.u32 %v1759, 16
      %v1984 = vrot.slane %v1982, 5
      %v1985 = vor.u32 %v1981, %v1984
      %v1986 = vrot.slane %v1985, 4
      %v1988 = vshll.u32 %v1760, 16
      %v1990 = vrot.slane %v1988, 5
      %v1991 = vsel %vm1785, %v1986, %v1990
      %v1992 = vshrl.u32 %v1760, 16
      %v1994 = vrot.slane %v1992, 4
      %v1995 = vor.u32 %v1994, %v1990
      %v1996 = vrot.slane %v1995, 4
      %v1998 = vshll.u32 %v1761, 16
      %v2000 = vrot.slane %v1998, 5
      %v2001 = vsel %vm1785, %v1996, %v2000
      %v2003 = vshrl.u32 %v1762, 16
      %v2005 = vrot.slane %v2003, 4
      %v2006 = vshll.u32 %v1762, 16
      %v2008 = vrot.slane %v2006, 5
      %v2009 = vor.u32 %v2005, %v2008
      %v2010 = vrot.slane %v2009, 4
      %v2012 = vshll.u32 %v1763, 16
      %v2014 = vrot.slane %v2012, 5
      %v2015 = vsel %vm1785, %v2010, %v2014
      %v2016 = vshrl.u32 %v1763, 16
      %v2018 = vrot.slane %v2016, 4
      %v2019 = vor.u32 %v2018, %v2014
      %v2020 = vrot.slane %v2019, 4
      %v2022 = vshll.u32 %v1764, 16
      %v2024 = vrot.slane %v2022, 5
      %v2025 = vsel %vm1785, %v2020, %v2024
      %v2027 = vshrl.u32 %v1765, 16
      %v2029 = vrot.slane %v2027, 4
      %v2030 = vshll.u32 %v1765, 16
      %v2032 = vrot.slane %v2030, 5
      %v2033 = vor.u32 %v2029, %v2032
      %v2034 = vrot.slane %v2033, 4
      %v2036 = vshll.u32 %v1766, 16
      %v2038 = vrot.slane %v2036, 5
      %v2039 = vsel %vm1785, %v2034, %v2038
      %v2040 = vshrl.u32 %v1766, 16
      %v2042 = vrot.slane %v2040, 4
      %v2043 = vor.u32 %v2042, %v2038
      %v2044 = vrot.slane %v2043, 4
      %v2046 = vshll.u32 %v1767, 16
      %v2048 = vrot.slane %v2046, 5
      %v2049 = vsel %vm1785, %v2044, %v2048
      %v2051 = vshrl.u32 %v1768, 16
      %v2053 = vrot.slane %v2051, 4
      %v2054 = vshll.u32 %v1768, 16
      %v2056 = vrot.slane %v2054, 5
      %v2057 = vor.u32 %v2053, %v2056
      %v2058 = vrot.slane %v2057, 4
      %v2060 = vshll.u32 %v1769, 16
      %v2062 = vrot.slane %v2060, 5
      %v2063 = vsel %vm1785, %v2058, %v2062
      %v2064 = vshrl.u32 %v1769, 16
      %v2066 = vrot.slane %v2064, 4
      %v2067 = vor.u32 %v2066, %v2062
      %v2068 = vrot.slane %v2067, 4
      %v2070 = vshll.u32 %v1770, 16
      %v2072 = vrot.slane %v2070, 5
      %v2073 = vsel %vm1785, %v2068, %v2072
      %v2075 = vshrl.u32 %v1771, 16
      %v2077 = vrot.slane %v2075, 4
      %v2078 = vshll.u32 %v1771, 16
      %v2080 = vrot.slane %v2078, 5
      %v2081 = vor.u32 %v2077, %v2080
      %v2082 = vrot.slane %v2081, 4
      %v2084 = vshll.u32 %v1772, 16
      %v2086 = vrot.slane %v2084, 5
      %v2087 = vsel %vm1785, %v2082, %v2086
      %v2088 = vshrl.u32 %v1772, 16
      %v2090 = vrot.slane %v2088, 4
      %v2091 = vor.u32 %v2090, %v2086
      %v2092 = vrot.slane %v2091, 4
      %v2094 = vshll.u32 %v1773, 16
      %v2096 = vrot.slane %v2094, 5
      %v2097 = vsel %vm1785, %v2092, %v2096
      %v2099 = vshrl.u32 %v1774, 16
      %v2101 = vrot.slane %v2099, 4
      %v2102 = vshll.u32 %v1774, 16
      %v2104 = vrot.slane %v2102, 5
      %v2105 = vor.u32 %v2101, %v2104
      %v2106 = vrot.slane %v2105, 4
      %v2108 = vshll.u32 %v1775, 16
      %v2110 = vrot.slane %v2108, 5
      %v2111 = vsel %vm1785, %v2106, %v2110
      %v2112 = vshrl.u32 %v1775, 16
      %v2114 = vrot.slane %v2112, 4
      %v2115 = vor.u32 %v2114, %v2110
      %v2116 = vrot.slane %v2115, 4
      %v2118 = vshll.u32 %v1776, 16
      %v2120 = vrot.slane %v2118, 5
      %v2121 = vsel %vm1785, %v2116, %v2120
      %v2123 = vshrl.u32 %v1777, 16
      %v2125 = vrot.slane %v2123, 4
      %v2126 = vshll.u32 %v1777, 16
      %v2128 = vrot.slane %v2126, 5
      %v2129 = vor.u32 %v2125, %v2128
      %v2130 = vrot.slane %v2129, 4
      %v2132 = vshll.u32 %v1778, 16
      %v2134 = vrot.slane %v2132, 5
      %v2135 = vsel %vm1785, %v2130, %v2134
      %v2136 = vshrl.u32 %v1778, 16
      %v2138 = vrot.slane %v2136, 4
      %v2139 = vor.u32 %v2138, %v2134
      %v2140 = vrot.slane %v2139, 4
      %v2142 = vshll.u32 %v1779, 16
      %v2144 = vrot.slane %v2142, 5
      %v2145 = vsel %vm1785, %v2140, %v2144
      %v2147 = vshrl.u32 %v1780, 16
      %v2149 = vrot.slane %v2147, 4
      %v2150 = vshll.u32 %v1780, 16
      %v2152 = vrot.slane %v2150, 5
      %v2153 = vor.u32 %v2149, %v2152
      %v2154 = vrot.slane %v2153, 4
      %v2156 = vshll.u32 %v1781, 16
      %v2158 = vrot.slane %v2156, 5
      %v2159 = vsel %vm1785, %v2154, %v2158
      %v2160 = vshrl.u32 %v1781, 16
      %v2162 = vrot.slane %v2160, 4
      %v2163 = vor.u32 %v2162, %v2158
      %v2164 = vrot.slane %v2163, 4
      %v2166 = vshll.u32 %v1782, 16
      %v2168 = vrot.slane %v2166, 5
      %v2169 = vsel %vm1785, %v2164, %v2168
      %v2170 = vunpack.c.l.b16 %v1799
      %v2171 = vunpack.c.l.b16 %v1809
      %v2172 = vunpack.c.l.b16 %v1823
      %v2173 = vunpack.c.l.b16 %v1833
      %v2174 = vunpack.c.l.b16 %v1847
      %v2175 = vunpack.c.l.b16 %v1857
      %v2176 = vunpack.c.l.b16 %v1871
      %v2177 = vunpack.c.l.b16 %v1881
      %v2178 = vunpack.c.l.b16 %v1895
      %v2179 = vunpack.c.l.b16 %v1905
      %v2180 = vunpack.c.l.b16 %v1919
      %v2181 = vunpack.c.l.b16 %v1929
      %v2182 = vunpack.c.l.b16 %v1943
      %v2183 = vunpack.c.l.b16 %v1953
      %v2184 = vunpack.c.l.b16 %v1967
      %v2185 = vunpack.c.l.b16 %v1977
      %v2186 = vunpack.c.l.b16 %v1991
      %v2187 = vunpack.c.l.b16 %v2001
      %v2188 = vunpack.c.l.b16 %v2015
      %v2189 = vunpack.c.l.b16 %v2025
      %v2190 = vunpack.c.l.b16 %v2039
      %v2191 = vunpack.c.l.b16 %v2049
      %v2192 = vunpack.c.l.b16 %v2063
      %v2193 = vunpack.c.l.b16 %v2073
      %v2194 = vunpack.c.l.b16 %v2087
      %v2195 = vunpack.c.l.b16 %v2097
      %v2196 = vunpack.c.l.b16 %v2111
      %v2197 = vunpack.c.l.b16 %v2121
      %v2198 = vunpack.c.l.b16 %v2135
      %v2199 = vunpack.c.l.b16 %v2145
      %v2200 = vunpack.c.l.b16 %v2159
      %v2201 = vunpack.c.l.b16 %v2169
      %v2202 = vpack.c.b16 %v2171, %v2170
      %v2203 = vpack.c.b16 %v2173, %v2172
      %v2204 = vpack.c.b16 %v2175, %v2174
      %v2205 = vpack.c.b16 %v2177, %v2176
      %v2206 = vpack.c.b16 %v2179, %v2178
      %v2207 = vpack.c.b16 %v2181, %v2180
      %v2208 = vpack.c.b16 %v2183, %v2182
      %v2209 = vpack.c.b16 %v2185, %v2184
      %v2210 = vpack.c.b16 %v2187, %v2186
      %v2211 = vpack.c.b16 %v2189, %v2188
      %v2212 = vpack.c.b16 %v2191, %v2190
      %v2213 = vpack.c.b16 %v2193, %v2192
      %v2214 = vpack.c.b16 %v2195, %v2194
      %v2215 = vpack.c.b16 %v2197, %v2196
      %v2216 = vpack.c.b16 %v2199, %v2198
      %v2217 = vpack.c.b16 %v2201, %v2200
      %2234 = vst [vmem:[#allocation3 + $0x8] sm:$0xff] %v2202
      %2235 = vst [vmem:[#allocation3 + $0x50] sm:$0xff] %v2203
      %2236 = vst [vmem:[#allocation3 + $0x98] sm:$0xff] %v2204
      %2237 = vst [vmem:[#allocation3 + $0xe0] sm:$0xff] %v2205
      %2238 = vst [vmem:[#allocation3 + $0x128] sm:$0xff] %v2206
      %2239 = vst [vmem:[#allocation3 + $0x170] sm:$0xff] %v2207
      %2240 = vst [vmem:[#allocation3 + $0x1b8] sm:$0xff] %v2208
      %2241 = vst [vmem:[#allocation3 + $0x200] sm:$0xff] %v2209
      %2242 = vst [vmem:[#allocation3 + $0x248] sm:$0xff] %v2210
      %2243 = vst [vmem:[#allocation3 + $0x290] sm:$0xff] %v2211
      %2244 = vst [vmem:[#allocation3 + $0x2d8] sm:$0xff] %v2212
      %2245 = vst [vmem:[#allocation3 + $0x320] sm:$0xff] %v2213
      %2246 = vst [vmem:[#allocation3 + $0x368] sm:$0xff] %v2214
      %2247 = vst [vmem:[#allocation3 + $0x3b0] sm:$0xff] %v2215
      %2248 = vst [vmem:[#allocation3 + $0x3f8] sm:$0xff] %v2216
      %2249 = vst [vmem:[#allocation3 + $0x440] sm:$0xff] %v2217
      %v2250 = vld [vmem:[#allocation2] sm:$0xe]
      %v2251 = vld [vmem:[#allocation2 + $0x4] sm:$0xf]
      %v2252 = vld [vmem:[#allocation2 + $0x8] sm:$0x1]
      %v2253 = vld [vmem:[#allocation2 + $0xc] sm:$0xe]
      %v2254 = vld [vmem:[#allocation2 + $0x10] sm:$0xf]
      %v2255 = vld [vmem:[#allocation2 + $0x14] sm:$0x1]
      %v2256 = vld [vmem:[#allocation2 + $0x18] sm:$0xe]
      %v2257 = vld [vmem:[#allocation2 + $0x1c] sm:$0xf]
      %v2258 = vld [vmem:[#allocation2 + $0x20] sm:$0x1]
      %v2259 = vld [vmem:[#allocation2 + $0x24] sm:$0xe]
      %v2260 = vld [vmem:[#allocation2 + $0x28] sm:$0xf]
      %v2261 = vld [vmem:[#allocation2 + $0x2c] sm:$0x1]
      %v2262 = vld [vmem:[#allocation2 + $0x30] sm:$0xe]
      %v2263 = vld [vmem:[#allocation2 + $0x34] sm:$0xf]
      %v2264 = vld [vmem:[#allocation2 + $0x38] sm:$0x1]
      %v2265 = vld [vmem:[#allocation2 + $0x3c] sm:$0xe]
      %v2266 = vld [vmem:[#allocation2 + $0x40] sm:$0xf]
      %v2267 = vld [vmem:[#allocation2 + $0x44] sm:$0x1]
      %v2268 = vld [vmem:[#allocation2 + $0x48] sm:$0xe]
      %v2269 = vld [vmem:[#allocation2 + $0x4c] sm:$0xf]
      %v2270 = vld [vmem:[#allocation2 + $0x50] sm:$0x1]
      %v2271 = vld [vmem:[#allocation2 + $0x54] sm:$0xe]
      %v2272 = vld [vmem:[#allocation2 + $0x58] sm:$0xf]
      %v2273 = vld [vmem:[#allocation2 + $0x5c] sm:$0x1]
      %v2274 = vld [vmem:[#allocation2 + $0x60] sm:$0xe]
      %v2275 = vld [vmem:[#allocation2 + $0x64] sm:$0xf]
      %v2276 = vld [vmem:[#allocation2 + $0x68] sm:$0x1]
      %v2277 = vld [vmem:[#allocation2 + $0x6c] sm:$0xe]
      %v2278 = vld [vmem:[#allocation2 + $0x70] sm:$0xf]
      %v2279 = vld [vmem:[#allocation2 + $0x74] sm:$0x1]
      %v2280 = vld [vmem:[#allocation2 + $0x78] sm:$0xe]
      %v2281 = vld [vmem:[#allocation2 + $0x7c] sm:$0xf]
      %v2282 = vld [vmem:[#allocation2 + $0x80] sm:$0x1]
      %v2283 = vld [vmem:[#allocation2 + $0x84] sm:$0xe]
      %v2284 = vld [vmem:[#allocation2 + $0x88] sm:$0xf]
      %v2285 = vld [vmem:[#allocation2 + $0x8c] sm:$0x1]
      %v2286 = vld [vmem:[#allocation2 + $0x90] sm:$0xe]
      %v2287 = vld [vmem:[#allocation2 + $0x94] sm:$0xf]
      %v2288 = vld [vmem:[#allocation2 + $0x98] sm:$0x1]
      %v2289 = vld [vmem:[#allocation2 + $0x9c] sm:$0xe]
      %v2290 = vld [vmem:[#allocation2 + $0xa0] sm:$0xf]
      %v2291 = vld [vmem:[#allocation2 + $0xa4] sm:$0x1]
      %v2292 = vld [vmem:[#allocation2 + $0xa8] sm:$0xe]
      %v2293 = vld [vmem:[#allocation2 + $0xac] sm:$0xf]
      %v2294 = vld [vmem:[#allocation2 + $0xb0] sm:$0x1]
      %v2295 = vld [vmem:[#allocation2 + $0xb4] sm:$0xe]
      %v2296 = vld [vmem:[#allocation2 + $0xb8] sm:$0xf]
      %v2297 = vld [vmem:[#allocation2 + $0xbc] sm:$0x1]
      %vm2346 = vcmask 1042432
      %vm2347 = vcmask 1046532
      %vm2348 = vmor %vm2346, %vm2347
      %v2349 = vrot.slane %v2250, 5
      %v2350 = vrot.slane %v2349, 4
      %v2351 = vrot.slane %v2251, 5
      %v2352 = vsel %vm2348, %v2350, %v2351
      %v2353 = vrot.slane %v2351, 4
      %v2354 = vrot.slane %v2252, 5
      %v2355 = vsel %vm2348, %v2353, %v2354
      %v2356 = vrot.slane %v2253, 5
      %v2357 = vrot.slane %v2356, 4
      %v2358 = vrot.slane %v2254, 5
      %v2359 = vsel %vm2348, %v2357, %v2358
      %v2360 = vrot.slane %v2358, 4
      %v2361 = vrot.slane %v2255, 5
      %v2362 = vsel %vm2348, %v2360, %v2361
      %v2363 = vrot.slane %v2256, 5
      %v2364 = vrot.slane %v2363, 4
      %v2365 = vrot.slane %v2257, 5
      %v2366 = vsel %vm2348, %v2364, %v2365
      %v2367 = vrot.slane %v2365, 4
      %v2368 = vrot.slane %v2258, 5
      %v2369 = vsel %vm2348, %v2367, %v2368
      %v2370 = vrot.slane %v2259, 5
      %v2371 = vrot.slane %v2370, 4
      %v2372 = vrot.slane %v2260, 5
      %v2373 = vsel %vm2348, %v2371, %v2372
      %v2374 = vrot.slane %v2372, 4
      %v2375 = vrot.slane %v2261, 5
      %v2376 = vsel %vm2348, %v2374, %v2375
      %v2377 = vrot.slane %v2262, 5
      %v2378 = vrot.slane %v2377, 4
      %v2379 = vrot.slane %v2263, 5
      %v2380 = vsel %vm2348, %v2378, %v2379
      %v2381 = vrot.slane %v2379, 4
      %v2382 = vrot.slane %v2264, 5
      %v2383 = vsel %vm2348, %v2381, %v2382
      %v2384 = vrot.slane %v2265, 5
      %v2385 = vrot.slane %v2384, 4
      %v2386 = vrot.slane %v2266, 5
      %v2387 = vsel %vm2348, %v2385, %v2386
      %v2388 = vrot.slane %v2386, 4
      %v2389 = vrot.slane %v2267, 5
      %v2390 = vsel %vm2348, %v2388, %v2389
      %v2391 = vrot.slane %v2268, 5
      %v2392 = vrot.slane %v2391, 4
      %v2393 = vrot.slane %v2269, 5
      %v2394 = vsel %vm2348, %v2392, %v2393
      %v2395 = vrot.slane %v2393, 4
      %v2396 = vrot.slane %v2270, 5
      %v2397 = vsel %vm2348, %v2395, %v2396
      %v2398 = vrot.slane %v2271, 5
      %v2399 = vrot.slane %v2398, 4
      %v2400 = vrot.slane %v2272, 5
      %v2401 = vsel %vm2348, %v2399, %v2400
      %v2402 = vrot.slane %v2400, 4
      %v2403 = vrot.slane %v2273, 5
      %v2404 = vsel %vm2348, %v2402, %v2403
      %v2405 = vrot.slane %v2274, 5
      %v2406 = vrot.slane %v2405, 4
      %v2407 = vrot.slane %v2275, 5
      %v2408 = vsel %vm2348, %v2406, %v2407
      %v2409 = vrot.slane %v2407, 4
      %v2410 = vrot.slane %v2276, 5
      %v2411 = vsel %vm2348, %v2409, %v2410
      %v2412 = vrot.slane %v2277, 5
      %v2413 = vrot.slane %v2412, 4
      %v2414 = vrot.slane %v2278, 5
      %v2415 = vsel %vm2348, %v2413, %v2414
      %v2416 = vrot.slane %v2414, 4
      %v2417 = vrot.slane %v2279, 5
      %v2418 = vsel %vm2348, %v2416, %v2417
      %v2419 = vrot.slane %v2280, 5
      %v2420 = vrot.slane %v2419, 4
      %v2421 = vrot.slane %v2281, 5
      %v2422 = vsel %vm2348, %v2420, %v2421
      %v2423 = vrot.slane %v2421, 4
      %v2424 = vrot.slane %v2282, 5
      %v2425 = vsel %vm2348, %v2423, %v2424
      %v2426 = vrot.slane %v2283, 5
      %v2427 = vrot.slane %v2426, 4
      %v2428 = vrot.slane %v2284, 5
      %v2429 = vsel %vm2348, %v2427, %v2428
      %v2430 = vrot.slane %v2428, 4
      %v2431 = vrot.slane %v2285, 5
      %v2432 = vsel %vm2348, %v2430, %v2431
      %v2433 = vrot.slane %v2286, 5
      %v2434 = vrot.slane %v2433, 4
      %v2435 = vrot.slane %v2287, 5
      %v2436 = vsel %vm2348, %v2434, %v2435
      %v2437 = vrot.slane %v2435, 4
      %v2438 = vrot.slane %v2288, 5
      %v2439 = vsel %vm2348, %v2437, %v2438
      %v2440 = vrot.slane %v2289, 5
      %v2441 = vrot.slane %v2440, 4
      %v2442 = vrot.slane %v2290, 5
      %v2443 = vsel %vm2348, %v2441, %v2442
      %v2444 = vrot.slane %v2442, 4
      %v2445 = vrot.slane %v2291, 5
      %v2446 = vsel %vm2348, %v2444, %v2445
      %v2447 = vrot.slane %v2292, 5
      %v2448 = vrot.slane %v2447, 4
      %v2449 = vrot.slane %v2293, 5
      %v2450 = vsel %vm2348, %v2448, %v2449
      %v2451 = vrot.slane %v2449, 4
      %v2452 = vrot.slane %v2294, 5
      %v2453 = vsel %vm2348, %v2451, %v2452
      %v2454 = vrot.slane %v2295, 5
      %v2455 = vrot.slane %v2454, 4
      %v2456 = vrot.slane %v2296, 5
      %v2457 = vsel %vm2348, %v2455, %v2456
      %v2458 = vrot.slane %v2456, 4
      %v2459 = vrot.slane %v2297, 5
      %v2460 = vsel %vm2348, %v2458, %v2459
      %v2461 = vunpack.c.l.b16 %v2352
      %v2462 = vunpack.c.l.b16 %v2355
      %v2463 = vunpack.c.l.b16 %v2359
      %v2464 = vunpack.c.l.b16 %v2362
      %v2465 = vunpack.c.l.b16 %v2366
      %v2466 = vunpack.c.l.b16 %v2369
      %v2467 = vunpack.c.l.b16 %v2373
      %v2468 = vunpack.c.l.b16 %v2376
      %v2469 = vunpack.c.l.b16 %v2380
      %v2470 = vunpack.c.l.b16 %v2383
      %v2471 = vunpack.c.l.b16 %v2387
      %v2472 = vunpack.c.l.b16 %v2390
      %v2473 = vunpack.c.l.b16 %v2394
      %v2474 = vunpack.c.l.b16 %v2397
      %v2475 = vunpack.c.l.b16 %v2401
      %v2476 = vunpack.c.l.b16 %v2404
      %v2477 = vunpack.c.l.b16 %v2408
      %v2478 = vunpack.c.l.b16 %v2411
      %v2479 = vunpack.c.l.b16 %v2415
      %v2480 = vunpack.c.l.b16 %v2418
      %v2481 = vunpack.c.l.b16 %v2422
      %v2482 = vunpack.c.l.b16 %v2425
      %v2483 = vunpack.c.l.b16 %v2429
      %v2484 = vunpack.c.l.b16 %v2432
      %v2485 = vunpack.c.l.b16 %v2436
      %v2486 = vunpack.c.l.b16 %v2439
      %v2487 = vunpack.c.l.b16 %v2443
      %v2488 = vunpack.c.l.b16 %v2446
      %v2489 = vunpack.c.l.b16 %v2450
      %v2490 = vunpack.c.l.b16 %v2453
      %v2491 = vunpack.c.l.b16 %v2457
      %v2492 = vunpack.c.l.b16 %v2460
      %v2493 = vpack.c.b16 %v2462, %v2461
      %v2494 = vpack.c.b16 %v2464, %v2463
      %v2495 = vpack.c.b16 %v2466, %v2465
      %v2496 = vpack.c.b16 %v2468, %v2467
      %v2497 = vpack.c.b16 %v2470, %v2469
      %v2498 = vpack.c.b16 %v2472, %v2471
      %v2499 = vpack.c.b16 %v2474, %v2473
      %v2500 = vpack.c.b16 %v2476, %v2475
      %v2501 = vpack.c.b16 %v2478, %v2477
      %v2502 = vpack.c.b16 %v2480, %v2479
      %v2503 = vpack.c.b16 %v2482, %v2481
      %v2504 = vpack.c.b16 %v2484, %v2483
      %v2505 = vpack.c.b16 %v2486, %v2485
      %v2506 = vpack.c.b16 %v2488, %v2487
      %v2507 = vpack.c.b16 %v2490, %v2489
      %v2508 = vpack.c.b16 %v2492, %v2491
      %2525 = vst [vmem:[#allocation3 + $0x10] sm:$0xff] %v2493
      %2526 = vst [vmem:[#allocation3 + $0x58] sm:$0xff] %v2494
      %2527 = vst [vmem:[#allocation3 + $0xa0] sm:$0xff] %v2495
      %2528 = vst [vmem:[#allocation3 + $0xe8] sm:$0xff] %v2496
      %2529 = vst [vmem:[#allocation3 + $0x130] sm:$0xff] %v2497
      %2530 = vst [vmem:[#allocation3 + $0x178] sm:$0xff] %v2498
      %2531 = vst [vmem:[#allocation3 + $0x1c0] sm:$0xff] %v2499
      %2532 = vst [vmem:[#allocation3 + $0x208] sm:$0xff] %v2500
      %2533 = vst [vmem:[#allocation3 + $0x250] sm:$0xff] %v2501
      %2534 = vst [vmem:[#allocation3 + $0x298] sm:$0xff] %v2502
      %2535 = vst [vmem:[#allocation3 + $0x2e0] sm:$0xff] %v2503
      %2536 = vst [vmem:[#allocation3 + $0x328] sm:$0xff] %v2504
      %2537 = vst [vmem:[#allocation3 + $0x370] sm:$0xff] %v2505
      %2538 = vst [vmem:[#allocation3 + $0x3b8] sm:$0xff] %v2506
      %2539 = vst [vmem:[#allocation3 + $0x400] sm:$0xff] %v2507
      %2540 = vst [vmem:[#allocation3 + $0x448] sm:$0xff] %v2508
      %v2541 = vld [vmem:[%s811] sm:$0xf]
      %v2542 = vld [vmem:[%s811 + $0x4] sm:$0xf]
      %v2543 = vld [vmem:[%s811 + $0xc] sm:$0xf]
      %v2544 = vld [vmem:[%s811 + $0x10] sm:$0xf]
      %v2545 = vld [vmem:[%s811 + $0x18] sm:$0xf]
      %v2546 = vld [vmem:[%s811 + $0x1c] sm:$0xf]
      %v2547 = vld [vmem:[%s811 + $0x24] sm:$0xf]
      %v2548 = vld [vmem:[%s811 + $0x28] sm:$0xf]
      %v2549 = vld [vmem:[%s811 + $0x30] sm:$0xf]
      %v2550 = vld [vmem:[%s811 + $0x34] sm:$0xf]
      %v2551 = vld [vmem:[%s811 + $0x3c] sm:$0xf]
      %v2552 = vld [vmem:[%s811 + $0x40] sm:$0xf]
      %v2553 = vld [vmem:[%s811 + $0x48] sm:$0xf]
      %v2554 = vld [vmem:[%s811 + $0x4c] sm:$0xf]
      %v2555 = vld [vmem:[%s811 + $0x54] sm:$0xf]
      %v2556 = vld [vmem:[%s811 + $0x58] sm:$0xf]
      %v2557 = vld [vmem:[%s811 + $0x60] sm:$0xf]
      %v2558 = vld [vmem:[%s811 + $0x64] sm:$0xf]
      %v2559 = vld [vmem:[%s811 + $0x6c] sm:$0xf]
      %v2560 = vld [vmem:[%s811 + $0x70] sm:$0xf]
      %v2561 = vld [vmem:[%s811 + $0x78] sm:$0xf]
      %v2562 = vld [vmem:[%s811 + $0x7c] sm:$0xf]
      %v2563 = vld [vmem:[%s811 + $0x84] sm:$0xf]
      %v2564 = vld [vmem:[%s811 + $0x88] sm:$0xf]
      %v2565 = vld [vmem:[%s811 + $0x90] sm:$0xf]
      %v2566 = vld [vmem:[%s811 + $0x94] sm:$0xf]
      %v2567 = vld [vmem:[%s811 + $0x9c] sm:$0xf]
      %v2568 = vld [vmem:[%s811 + $0xa0] sm:$0xf]
      %v2569 = vld [vmem:[%s811 + $0xa8] sm:$0xf]
      %v2570 = vld [vmem:[%s811 + $0xac] sm:$0xf]
      %v2571 = vld [vmem:[%s811 + $0xb4] sm:$0xf]
      %v2572 = vld [vmem:[%s811 + $0xb8] sm:$0xf]
      %v2605 = vunpack.c.l.b16 %v2541
      %v2606 = vunpack.c.l.b16 %v2542
      %v2607 = vunpack.c.l.b16 %v2543
      %v2608 = vunpack.c.l.b16 %v2544
      %v2609 = vunpack.c.l.b16 %v2545
      %v2610 = vunpack.c.l.b16 %v2546
      %v2611 = vunpack.c.l.b16 %v2547
      %v2612 = vunpack.c.l.b16 %v2548
      %v2613 = vunpack.c.l.b16 %v2549
      %v2614 = vunpack.c.l.b16 %v2550
      %v2615 = vunpack.c.l.b16 %v2551
      %v2616 = vunpack.c.l.b16 %v2552
      %v2617 = vunpack.c.l.b16 %v2553
      %v2618 = vunpack.c.l.b16 %v2554
      %v2619 = vunpack.c.l.b16 %v2555
      %v2620 = vunpack.c.l.b16 %v2556
      %v2621 = vunpack.c.l.b16 %v2557
      %v2622 = vunpack.c.l.b16 %v2558
      %v2623 = vunpack.c.l.b16 %v2559
      %v2624 = vunpack.c.l.b16 %v2560
      %v2625 = vunpack.c.l.b16 %v2561
      %v2626 = vunpack.c.l.b16 %v2562
      %v2627 = vunpack.c.l.b16 %v2563
      %v2628 = vunpack.c.l.b16 %v2564
      %v2629 = vunpack.c.l.b16 %v2565
      %v2630 = vunpack.c.l.b16 %v2566
      %v2631 = vunpack.c.l.b16 %v2567
      %v2632 = vunpack.c.l.b16 %v2568
      %v2633 = vunpack.c.l.b16 %v2569
      %v2634 = vunpack.c.l.b16 %v2570
      %v2635 = vunpack.c.l.b16 %v2571
      %v2636 = vunpack.c.l.b16 %v2572
      %v2637 = vpack.c.b16 %v2606, %v2605
      %v2638 = vpack.c.b16 %v2608, %v2607
      %v2639 = vpack.c.b16 %v2610, %v2609
      %v2640 = vpack.c.b16 %v2612, %v2611
      %v2641 = vpack.c.b16 %v2614, %v2613
      %v2642 = vpack.c.b16 %v2616, %v2615
      %v2643 = vpack.c.b16 %v2618, %v2617
      %v2644 = vpack.c.b16 %v2620, %v2619
      %v2645 = vpack.c.b16 %v2622, %v2621
      %v2646 = vpack.c.b16 %v2624, %v2623
      %v2647 = vpack.c.b16 %v2626, %v2625
      %v2648 = vpack.c.b16 %v2628, %v2627
      %v2649 = vpack.c.b16 %v2630, %v2629
      %v2650 = vpack.c.b16 %v2632, %v2631
      %v2651 = vpack.c.b16 %v2634, %v2633
      %v2652 = vpack.c.b16 %v2636, %v2635
      %2669 = vst [vmem:[#allocation3 + $0x18] sm:$0xff] %v2637
      %2670 = vst [vmem:[#allocation3 + $0x60] sm:$0xff] %v2638
      %2671 = vst [vmem:[#allocation3 + $0xa8] sm:$0xff] %v2639
      %2672 = vst [vmem:[#allocation3 + $0xf0] sm:$0xff] %v2640
      %2673 = vst [vmem:[#allocation3 + $0x138] sm:$0xff] %v2641
      %2674 = vst [vmem:[#allocation3 + $0x180] sm:$0xff] %v2642
      %2675 = vst [vmem:[#allocation3 + $0x1c8] sm:$0xff] %v2643
      %2676 = vst [vmem:[#allocation3 + $0x210] sm:$0xff] %v2644
      %2677 = vst [vmem:[#allocation3 + $0x258] sm:$0xff] %v2645
      %2678 = vst [vmem:[#allocation3 + $0x2a0] sm:$0xff] %v2646
      %2679 = vst [vmem:[#allocation3 + $0x2e8] sm:$0xff] %v2647
      %2680 = vst [vmem:[#allocation3 + $0x330] sm:$0xff] %v2648
      %2681 = vst [vmem:[#allocation3 + $0x378] sm:$0xff] %v2649
      %2682 = vst [vmem:[#allocation3 + $0x3c0] sm:$0xff] %v2650
      %2683 = vst [vmem:[#allocation3 + $0x408] sm:$0xff] %v2651
      %2684 = vst [vmem:[#allocation3 + $0x450] sm:$0xff] %v2652
      %v2685 = vld [vmem:[%s811] sm:$0xf]
      %v2686 = vld [vmem:[%s811 + $0x4] sm:$0xf]
      %v2687 = vld [vmem:[%s811 + $0x8] sm:$0x1]
      %v2688 = vld [vmem:[%s811 + $0xc] sm:$0xf]
      %v2689 = vld [vmem:[%s811 + $0x10] sm:$0xf]
      %v2690 = vld [vmem:[%s811 + $0x14] sm:$0x1]
      %v2691 = vld [vmem:[%s811 + $0x18] sm:$0xf]
      %v2692 = vld [vmem:[%s811 + $0x1c] sm:$0xf]
      %v2693 = vld [vmem:[%s811 + $0x20] sm:$0x1]
      %v2694 = vld [vmem:[%s811 + $0x24] sm:$0xf]
      %v2695 = vld [vmem:[%s811 + $0x28] sm:$0xf]
      %v2696 = vld [vmem:[%s811 + $0x2c] sm:$0x1]
      %v2697 = vld [vmem:[%s811 + $0x30] sm:$0xf]
      %v2698 = vld [vmem:[%s811 + $0x34] sm:$0xf]
      %v2699 = vld [vmem:[%s811 + $0x38] sm:$0x1]
      %v2700 = vld [vmem:[%s811 + $0x3c] sm:$0xf]
      %v2701 = vld [vmem:[%s811 + $0x40] sm:$0xf]
      %v2702 = vld [vmem:[%s811 + $0x44] sm:$0x1]
      %v2703 = vld [vmem:[%s811 + $0x48] sm:$0xf]
      %v2704 = vld [vmem:[%s811 + $0x4c] sm:$0xf]
      %v2705 = vld [vmem:[%s811 + $0x50] sm:$0x1]
      %v2706 = vld [vmem:[%s811 + $0x54] sm:$0xf]
      %v2707 = vld [vmem:[%s811 + $0x58] sm:$0xf]
      %v2708 = vld [vmem:[%s811 + $0x5c] sm:$0x1]
      %v2709 = vld [vmem:[%s811 + $0x60] sm:$0xf]
      %v2710 = vld [vmem:[%s811 + $0x64] sm:$0xf]
      %v2711 = vld [vmem:[%s811 + $0x68] sm:$0x1]
      %v2712 = vld [vmem:[%s811 + $0x6c] sm:$0xf]
      %v2713 = vld [vmem:[%s811 + $0x70] sm:$0xf]
      %v2714 = vld [vmem:[%s811 + $0x74] sm:$0x1]
      %v2715 = vld [vmem:[%s811 + $0x78] sm:$0xf]
      %v2716 = vld [vmem:[%s811 + $0x7c] sm:$0xf]
      %v2717 = vld [vmem:[%s811 + $0x80] sm:$0x1]
      %v2718 = vld [vmem:[%s811 + $0x84] sm:$0xf]
      %v2719 = vld [vmem:[%s811 + $0x88] sm:$0xf]
      %v2720 = vld [vmem:[%s811 + $0x8c] sm:$0x1]
      %v2721 = vld [vmem:[%s811 + $0x90] sm:$0xf]
      %v2722 = vld [vmem:[%s811 + $0x94] sm:$0xf]
      %v2723 = vld [vmem:[%s811 + $0x98] sm:$0x1]
      %v2724 = vld [vmem:[%s811 + $0x9c] sm:$0xf]
      %v2725 = vld [vmem:[%s811 + $0xa0] sm:$0xf]
      %v2726 = vld [vmem:[%s811 + $0xa4] sm:$0x1]
      %v2727 = vld [vmem:[%s811 + $0xa8] sm:$0xf]
      %v2728 = vld [vmem:[%s811 + $0xac] sm:$0xf]
      %v2729 = vld [vmem:[%s811 + $0xb0] sm:$0x1]
      %v2730 = vld [vmem:[%s811 + $0xb4] sm:$0xf]
      %v2731 = vld [vmem:[%s811 + $0xb8] sm:$0xf]
      %v2732 = vld [vmem:[%s811 + $0xbc] sm:$0x1]
      %v2734 = vshrl.u32 %v2685, 16
      %v2736 = vrot.slane %v2734, 4
      %v2737 = vshll.u32 %v2685, 16
      %v2739 = vrot.slane %v2737, 5
      %v2740 = vor.u32 %v2736, %v2739
      %v2741 = vrot.slane %v2740, 4
      %v2743 = vshll.u32 %v2686, 16
      %v2745 = vrot.slane %v2743, 5
      %v2746 = vsel %vm1785, %v2741, %v2745
      %v2747 = vshrl.u32 %v2686, 16
      %v2749 = vrot.slane %v2747, 4
      %v2750 = vor.u32 %v2749, %v2745
      %v2751 = vrot.slane %v2750, 4
      %v2753 = vshll.u32 %v2687, 16
      %v2755 = vrot.slane %v2753, 5
      %v2756 = vsel %vm1785, %v2751, %v2755
      %v2758 = vshrl.u32 %v2688, 16
      %v2760 = vrot.slane %v2758, 4
      %v2761 = vshll.u32 %v2688, 16
      %v2763 = vrot.slane %v2761, 5
      %v2764 = vor.u32 %v2760, %v2763
      %v2765 = vrot.slane %v2764, 4
      %v2767 = vshll.u32 %v2689, 16
      %v2769 = vrot.slane %v2767, 5
      %v2770 = vsel %vm1785, %v2765, %v2769
      %v2771 = vshrl.u32 %v2689, 16
      %v2773 = vrot.slane %v2771, 4
      %v2774 = vor.u32 %v2773, %v2769
      %v2775 = vrot.slane %v2774, 4
      %v2777 = vshll.u32 %v2690, 16
      %v2779 = vrot.slane %v2777, 5
      %v2780 = vsel %vm1785, %v2775, %v2779
      %v2782 = vshrl.u32 %v2691, 16
      %v2784 = vrot.slane %v2782, 4
      %v2785 = vshll.u32 %v2691, 16
      %v2787 = vrot.slane %v2785, 5
      %v2788 = vor.u32 %v2784, %v2787
      %v2789 = vrot.slane %v2788, 4
      %v2791 = vshll.u32 %v2692, 16
      %v2793 = vrot.slane %v2791, 5
      %v2794 = vsel %vm1785, %v2789, %v2793
      %v2795 = vshrl.u32 %v2692, 16
      %v2797 = vrot.slane %v2795, 4
      %v2798 = vor.u32 %v2797, %v2793
      %v2799 = vrot.slane %v2798, 4
      %v2801 = vshll.u32 %v2693, 16
      %v2803 = vrot.slane %v2801, 5
      %v2804 = vsel %vm1785, %v2799, %v2803
      %v2806 = vshrl.u32 %v2694, 16
      %v2808 = vrot.slane %v2806, 4
      %v2809 = vshll.u32 %v2694, 16
      %v2811 = vrot.slane %v2809, 5
      %v2812 = vor.u32 %v2808, %v2811
      %v2813 = vrot.slane %v2812, 4
      %v2815 = vshll.u32 %v2695, 16
      %v2817 = vrot.slane %v2815, 5
      %v2818 = vsel %vm1785, %v2813, %v2817
      %v2819 = vshrl.u32 %v2695, 16
      %v2821 = vrot.slane %v2819, 4
      %v2822 = vor.u32 %v2821, %v2817
      %v2823 = vrot.slane %v2822, 4
      %v2825 = vshll.u32 %v2696, 16
      %v2827 = vrot.slane %v2825, 5
      %v2828 = vsel %vm1785, %v2823, %v2827
      %v2830 = vshrl.u32 %v2697, 16
      %v2832 = vrot.slane %v2830, 4
      %v2833 = vshll.u32 %v2697, 16
      %v2835 = vrot.slane %v2833, 5
      %v2836 = vor.u32 %v2832, %v2835
      %v2837 = vrot.slane %v2836, 4
      %v2839 = vshll.u32 %v2698, 16
      %v2841 = vrot.slane %v2839, 5
      %v2842 = vsel %vm1785, %v2837, %v2841
      %v2843 = vshrl.u32 %v2698, 16
      %v2845 = vrot.slane %v2843, 4
      %v2846 = vor.u32 %v2845, %v2841
      %v2847 = vrot.slane %v2846, 4
      %v2849 = vshll.u32 %v2699, 16
      %v2851 = vrot.slane %v2849, 5
      %v2852 = vsel %vm1785, %v2847, %v2851
      %v2854 = vshrl.u32 %v2700, 16
      %v2856 = vrot.slane %v2854, 4
      %v2857 = vshll.u32 %v2700, 16
      %v2859 = vrot.slane %v2857, 5
      %v2860 = vor.u32 %v2856, %v2859
      %v2861 = vrot.slane %v2860, 4
      %v2863 = vshll.u32 %v2701, 16
      %v2865 = vrot.slane %v2863, 5
      %v2866 = vsel %vm1785, %v2861, %v2865
      %v2867 = vshrl.u32 %v2701, 16
      %v2869 = vrot.slane %v2867, 4
      %v2870 = vor.u32 %v2869, %v2865
      %v2871 = vrot.slane %v2870, 4
      %v2873 = vshll.u32 %v2702, 16
      %v2875 = vrot.slane %v2873, 5
      %v2876 = vsel %vm1785, %v2871, %v2875
      %v2878 = vshrl.u32 %v2703, 16
      %v2880 = vrot.slane %v2878, 4
      %v2881 = vshll.u32 %v2703, 16
      %v2883 = vrot.slane %v2881, 5
      %v2884 = vor.u32 %v2880, %v2883
      %v2885 = vrot.slane %v2884, 4
      %v2887 = vshll.u32 %v2704, 16
      %v2889 = vrot.slane %v2887, 5
      %v2890 = vsel %vm1785, %v2885, %v2889
      %v2891 = vshrl.u32 %v2704, 16
      %v2893 = vrot.slane %v2891, 4
      %v2894 = vor.u32 %v2893, %v2889
      %v2895 = vrot.slane %v2894, 4
      %v2897 = vshll.u32 %v2705, 16
      %v2899 = vrot.slane %v2897, 5
      %v2900 = vsel %vm1785, %v2895, %v2899
      %v2902 = vshrl.u32 %v2706, 16
      %v2904 = vrot.slane %v2902, 4
      %v2905 = vshll.u32 %v2706, 16
      %v2907 = vrot.slane %v2905, 5
      %v2908 = vor.u32 %v2904, %v2907
      %v2909 = vrot.slane %v2908, 4
      %v2911 = vshll.u32 %v2707, 16
      %v2913 = vrot.slane %v2911, 5
      %v2914 = vsel %vm1785, %v2909, %v2913
      %v2915 = vshrl.u32 %v2707, 16
      %v2917 = vrot.slane %v2915, 4
      %v2918 = vor.u32 %v2917, %v2913
      %v2919 = vrot.slane %v2918, 4
      %v2921 = vshll.u32 %v2708, 16
      %v2923 = vrot.slane %v2921, 5
      %v2924 = vsel %vm1785, %v2919, %v2923
      %v2926 = vshrl.u32 %v2709, 16
      %v2928 = vrot.slane %v2926, 4
      %v2929 = vshll.u32 %v2709, 16
      %v2931 = vrot.slane %v2929, 5
      %v2932 = vor.u32 %v2928, %v2931
      %v2933 = vrot.slane %v2932, 4
      %v2935 = vshll.u32 %v2710, 16
      %v2937 = vrot.slane %v2935, 5
      %v2938 = vsel %vm1785, %v2933, %v2937
      %v2939 = vshrl.u32 %v2710, 16
      %v2941 = vrot.slane %v2939, 4
      %v2942 = vor.u32 %v2941, %v2937
      %v2943 = vrot.slane %v2942, 4
      %v2945 = vshll.u32 %v2711, 16
      %v2947 = vrot.slane %v2945, 5
      %v2948 = vsel %vm1785, %v2943, %v2947
      %v2950 = vshrl.u32 %v2712, 16
      %v2952 = vrot.slane %v2950, 4
      %v2953 = vshll.u32 %v2712, 16
      %v2955 = vrot.slane %v2953, 5
      %v2956 = vor.u32 %v2952, %v2955
      %v2957 = vrot.slane %v2956, 4
      %v2959 = vshll.u32 %v2713, 16
      %v2961 = vrot.slane %v2959, 5
      %v2962 = vsel %vm1785, %v2957, %v2961
      %v2963 = vshrl.u32 %v2713, 16
      %v2965 = vrot.slane %v2963, 4
      %v2966 = vor.u32 %v2965, %v2961
      %v2967 = vrot.slane %v2966, 4
      %v2969 = vshll.u32 %v2714, 16
      %v2971 = vrot.slane %v2969, 5
      %v2972 = vsel %vm1785, %v2967, %v2971
      %v2974 = vshrl.u32 %v2715, 16
      %v2976 = vrot.slane %v2974, 4
      %v2977 = vshll.u32 %v2715, 16
      %v2979 = vrot.slane %v2977, 5
      %v2980 = vor.u32 %v2976, %v2979
      %v2981 = vrot.slane %v2980, 4
      %v2983 = vshll.u32 %v2716, 16
      %v2985 = vrot.slane %v2983, 5
      %v2986 = vsel %vm1785, %v2981, %v2985
      %v2987 = vshrl.u32 %v2716, 16
      %v2989 = vrot.slane %v2987, 4
      %v2990 = vor.u32 %v2989, %v2985
      %v2991 = vrot.slane %v2990, 4
      %v2993 = vshll.u32 %v2717, 16
      %v2995 = vrot.slane %v2993, 5
      %v2996 = vsel %vm1785, %v2991, %v2995
      %v2998 = vshrl.u32 %v2718, 16
      %v3000 = vrot.slane %v2998, 4
      %v3001 = vshll.u32 %v2718, 16
      %v3003 = vrot.slane %v3001, 5
      %v3004 = vor.u32 %v3000, %v3003
      %v3005 = vrot.slane %v3004, 4
      %v3007 = vshll.u32 %v2719, 16
      %v3009 = vrot.slane %v3007, 5
      %v3010 = vsel %vm1785, %v3005, %v3009
      %v3011 = vshrl.u32 %v2719, 16
      %v3013 = vrot.slane %v3011, 4
      %v3014 = vor.u32 %v3013, %v3009
      %v3015 = vrot.slane %v3014, 4
      %v3017 = vshll.u32 %v2720, 16
      %v3019 = vrot.slane %v3017, 5
      %v3020 = vsel %vm1785, %v3015, %v3019
      %v3022 = vshrl.u32 %v2721, 16
      %v3024 = vrot.slane %v3022, 4
      %v3025 = vshll.u32 %v2721, 16
      %v3027 = vrot.slane %v3025, 5
      %v3028 = vor.u32 %v3024, %v3027
      %v3029 = vrot.slane %v3028, 4
      %v3031 = vshll.u32 %v2722, 16
      %v3033 = vrot.slane %v3031, 5
      %v3034 = vsel %vm1785, %v3029, %v3033
      %v3035 = vshrl.u32 %v2722, 16
      %v3037 = vrot.slane %v3035, 4
      %v3038 = vor.u32 %v3037, %v3033
      %v3039 = vrot.slane %v3038, 4
      %v3041 = vshll.u32 %v2723, 16
      %v3043 = vrot.slane %v3041, 5
      %v3044 = vsel %vm1785, %v3039, %v3043
      %v3046 = vshrl.u32 %v2724, 16
      %v3048 = vrot.slane %v3046, 4
      %v3049 = vshll.u32 %v2724, 16
      %v3051 = vrot.slane %v3049, 5
      %v3052 = vor.u32 %v3048, %v3051
      %v3053 = vrot.slane %v3052, 4
      %v3055 = vshll.u32 %v2725, 16
      %v3057 = vrot.slane %v3055, 5
      %v3058 = vsel %vm1785, %v3053, %v3057
      %v3059 = vshrl.u32 %v2725, 16
      %v3061 = vrot.slane %v3059, 4
      %v3062 = vor.u32 %v3061, %v3057
      %v3063 = vrot.slane %v3062, 4
      %v3065 = vshll.u32 %v2726, 16
      %v3067 = vrot.slane %v3065, 5
      %v3068 = vsel %vm1785, %v3063, %v3067
      %v3070 = vshrl.u32 %v2727, 16
      %v3072 = vrot.slane %v3070, 4
      %v3073 = vshll.u32 %v2727, 16
      %v3075 = vrot.slane %v3073, 5
      %v3076 = vor.u32 %v3072, %v3075
      %v3077 = vrot.slane %v3076, 4
      %v3079 = vshll.u32 %v2728, 16
      %v3081 = vrot.slane %v3079, 5
      %v3082 = vsel %vm1785, %v3077, %v3081
      %v3083 = vshrl.u32 %v2728, 16
      %v3085 = vrot.slane %v3083, 4
      %v3086 = vor.u32 %v3085, %v3081
      %v3087 = vrot.slane %v3086, 4
      %v3089 = vshll.u32 %v2729, 16
      %v3091 = vrot.slane %v3089, 5
      %v3092 = vsel %vm1785, %v3087, %v3091
      %v3094 = vshrl.u32 %v2730, 16
      %v3096 = vrot.slane %v3094, 4
      %v3097 = vshll.u32 %v2730, 16
      %v3099 = vrot.slane %v3097, 5
      %v3100 = vor.u32 %v3096, %v3099
      %v3101 = vrot.slane %v3100, 4
      %v3103 = vshll.u32 %v2731, 16
      %v3105 = vrot.slane %v3103, 5
      %v3106 = vsel %vm1785, %v3101, %v3105
      %v3107 = vshrl.u32 %v2731, 16
      %v3109 = vrot.slane %v3107, 4
      %v3110 = vor.u32 %v3109, %v3105
      %v3111 = vrot.slane %v3110, 4
      %v3113 = vshll.u32 %v2732, 16
      %v3115 = vrot.slane %v3113, 5
      %v3116 = vsel %vm1785, %v3111, %v3115
      %v3117 = vunpack.c.l.b16 %v2746
      %v3118 = vunpack.c.l.b16 %v2756
      %v3119 = vunpack.c.l.b16 %v2770
      %v3120 = vunpack.c.l.b16 %v2780
      %v3121 = vunpack.c.l.b16 %v2794
      %v3122 = vunpack.c.l.b16 %v2804
      %v3123 = vunpack.c.l.b16 %v2818
      %v3124 = vunpack.c.l.b16 %v2828
      %v3125 = vunpack.c.l.b16 %v2842
      %v3126 = vunpack.c.l.b16 %v2852
      %v3127 = vunpack.c.l.b16 %v2866
      %v3128 = vunpack.c.l.b16 %v2876
      %v3129 = vunpack.c.l.b16 %v2890
      %v3130 = vunpack.c.l.b16 %v2900
      %v3131 = vunpack.c.l.b16 %v2914
      %v3132 = vunpack.c.l.b16 %v2924
      %v3133 = vunpack.c.l.b16 %v2938
      %v3134 = vunpack.c.l.b16 %v2948
      %v3135 = vunpack.c.l.b16 %v2962
      %v3136 = vunpack.c.l.b16 %v2972
      %v3137 = vunpack.c.l.b16 %v2986
      %v3138 = vunpack.c.l.b16 %v2996
      %v3139 = vunpack.c.l.b16 %v3010
      %v3140 = vunpack.c.l.b16 %v3020
      %v3141 = vunpack.c.l.b16 %v3034
      %v3142 = vunpack.c.l.b16 %v3044
      %v3143 = vunpack.c.l.b16 %v3058
      %v3144 = vunpack.c.l.b16 %v3068
      %v3145 = vunpack.c.l.b16 %v3082
      %v3146 = vunpack.c.l.b16 %v3092
      %v3147 = vunpack.c.l.b16 %v3106
      %v3148 = vunpack.c.l.b16 %v3116
      %v3149 = vpack.c.b16 %v3118, %v3117
      %v3150 = vpack.c.b16 %v3120, %v3119
      %v3151 = vpack.c.b16 %v3122, %v3121
      %v3152 = vpack.c.b16 %v3124, %v3123
      %v3153 = vpack.c.b16 %v3126, %v3125
      %v3154 = vpack.c.b16 %v3128, %v3127
      %v3155 = vpack.c.b16 %v3130, %v3129
      %v3156 = vpack.c.b16 %v3132, %v3131
      %v3157 = vpack.c.b16 %v3134, %v3133
      %v3158 = vpack.c.b16 %v3136, %v3135
      %v3159 = vpack.c.b16 %v3138, %v3137
      %v3160 = vpack.c.b16 %v3140, %v3139
      %v3161 = vpack.c.b16 %v3142, %v3141
      %v3162 = vpack.c.b16 %v3144, %v3143
      %v3163 = vpack.c.b16 %v3146, %v3145
      %v3164 = vpack.c.b16 %v3148, %v3147
      %3181 = vst [vmem:[#allocation3 + $0x20] sm:$0xff] %v3149
      %3182 = vst [vmem:[#allocation3 + $0x68] sm:$0xff] %v3150
      %3183 = vst [vmem:[#allocation3 + $0xb0] sm:$0xff] %v3151
      %3184 = vst [vmem:[#allocation3 + $0xf8] sm:$0xff] %v3152
      %3185 = vst [vmem:[#allocation3 + $0x140] sm:$0xff] %v3153
      %3186 = vst [vmem:[#allocation3 + $0x188] sm:$0xff] %v3154
      %3187 = vst [vmem:[#allocation3 + $0x1d0] sm:$0xff] %v3155
      %3188 = vst [vmem:[#allocation3 + $0x218] sm:$0xff] %v3156
      %3189 = vst [vmem:[#allocation3 + $0x260] sm:$0xff] %v3157
      %3190 = vst [vmem:[#allocation3 + $0x2a8] sm:$0xff] %v3158
      %3191 = vst [vmem:[#allocation3 + $0x2f0] sm:$0xff] %v3159
      %3192 = vst [vmem:[#allocation3 + $0x338] sm:$0xff] %v3160
      %3193 = vst [vmem:[#allocation3 + $0x380] sm:$0xff] %v3161
      %3194 = vst [vmem:[#allocation3 + $0x3c8] sm:$0xff] %v3162
      %3195 = vst [vmem:[#allocation3 + $0x410] sm:$0xff] %v3163
      %3196 = vst [vmem:[#allocation3 + $0x458] sm:$0xff] %v3164
      %v3197 = vld [vmem:[%s811] sm:$0xe]
      %v3198 = vld [vmem:[%s811 + $0x4] sm:$0xf]
      %v3199 = vld [vmem:[%s811 + $0x8] sm:$0x1]
      %v3200 = vld [vmem:[%s811 + $0xc] sm:$0xe]
      %v3201 = vld [vmem:[%s811 + $0x10] sm:$0xf]
      %v3202 = vld [vmem:[%s811 + $0x14] sm:$0x1]
      %v3203 = vld [vmem:[%s811 + $0x18] sm:$0xe]
      %v3204 = vld [vmem:[%s811 + $0x1c] sm:$0xf]
      %v3205 = vld [vmem:[%s811 + $0x20] sm:$0x1]
      %v3206 = vld [vmem:[%s811 + $0x24] sm:$0xe]
      %v3207 = vld [vmem:[%s811 + $0x28] sm:$0xf]
      %v3208 = vld [vmem:[%s811 + $0x2c] sm:$0x1]
      %v3209 = vld [vmem:[%s811 + $0x30] sm:$0xe]
      %v3210 = vld [vmem:[%s811 + $0x34] sm:$0xf]
      %v3211 = vld [vmem:[%s811 + $0x38] sm:$0x1]
      %v3212 = vld [vmem:[%s811 + $0x3c] sm:$0xe]
      %v3213 = vld [vmem:[%s811 + $0x40] sm:$0xf]
      %v3214 = vld [vmem:[%s811 + $0x44] sm:$0x1]
      %v3215 = vld [vmem:[%s811 + $0x48] sm:$0xe]
      %v3216 = vld [vmem:[%s811 + $0x4c] sm:$0xf]
      %v3217 = vld [vmem:[%s811 + $0x50] sm:$0x1]
      %v3218 = vld [vmem:[%s811 + $0x54] sm:$0xe]
      %v3219 = vld [vmem:[%s811 + $0x58] sm:$0xf]
      %v3220 = vld [vmem:[%s811 + $0x5c] sm:$0x1]
      %v3221 = vld [vmem:[%s811 + $0x60] sm:$0xe]
      %v3222 = vld [vmem:[%s811 + $0x64] sm:$0xf]
      %v3223 = vld [vmem:[%s811 + $0x68] sm:$0x1]
      %v3224 = vld [vmem:[%s811 + $0x6c] sm:$0xe]
      %v3225 = vld [vmem:[%s811 + $0x70] sm:$0xf]
      %v3226 = vld [vmem:[%s811 + $0x74] sm:$0x1]
      %v3227 = vld [vmem:[%s811 + $0x78] sm:$0xe]
      %v3228 = vld [vmem:[%s811 + $0x7c] sm:$0xf]
      %v3229 = vld [vmem:[%s811 + $0x80] sm:$0x1]
      %v3230 = vld [vmem:[%s811 + $0x84] sm:$0xe]
      %v3231 = vld [vmem:[%s811 + $0x88] sm:$0xf]
      %v3232 = vld [vmem:[%s811 + $0x8c] sm:$0x1]
      %v3233 = vld [vmem:[%s811 + $0x90] sm:$0xe]
      %v3234 = vld [vmem:[%s811 + $0x94] sm:$0xf]
      %v3235 = vld [vmem:[%s811 + $0x98] sm:$0x1]
      %v3236 = vld [vmem:[%s811 + $0x9c] sm:$0xe]
      %v3237 = vld [vmem:[%s811 + $0xa0] sm:$0xf]
      %v3238 = vld [vmem:[%s811 + $0xa4] sm:$0x1]
      %v3239 = vld [vmem:[%s811 + $0xa8] sm:$0xe]
      %v3240 = vld [vmem:[%s811 + $0xac] sm:$0xf]
      %v3241 = vld [vmem:[%s811 + $0xb0] sm:$0x1]
      %v3242 = vld [vmem:[%s811 + $0xb4] sm:$0xe]
      %v3243 = vld [vmem:[%s811 + $0xb8] sm:$0xf]
      %v3244 = vld [vmem:[%s811 + $0xbc] sm:$0x1]
      %v3293 = vrot.slane %v3197, 5
      %v3294 = vrot.slane %v3293, 4
      %v3295 = vrot.slane %v3198, 5
      %v3296 = vsel %vm2348, %v3294, %v3295
      %v3297 = vrot.slane %v3295, 4
      %v3298 = vrot.slane %v3199, 5
      %v3299 = vsel %vm2348, %v3297, %v3298
      %v3300 = vrot.slane %v3200, 5
      %v3301 = vrot.slane %v3300, 4
      %v3302 = vrot.slane %v3201, 5
      %v3303 = vsel %vm2348, %v3301, %v3302
      %v3304 = vrot.slane %v3302, 4
      %v3305 = vrot.slane %v3202, 5
      %v3306 = vsel %vm2348, %v3304, %v3305
      %v3307 = vrot.slane %v3203, 5
      %v3308 = vrot.slane %v3307, 4
      %v3309 = vrot.slane %v3204, 5
      %v3310 = vsel %vm2348, %v3308, %v3309
      %v3311 = vrot.slane %v3309, 4
      %v3312 = vrot.slane %v3205, 5
      %v3313 = vsel %vm2348, %v3311, %v3312
      %v3314 = vrot.slane %v3206, 5
      %v3315 = vrot.slane %v3314, 4
      %v3316 = vrot.slane %v3207, 5
      %v3317 = vsel %vm2348, %v3315, %v3316
      %v3318 = vrot.slane %v3316, 4
      %v3319 = vrot.slane %v3208, 5
      %v3320 = vsel %vm2348, %v3318, %v3319
      %v3321 = vrot.slane %v3209, 5
      %v3322 = vrot.slane %v3321, 4
      %v3323 = vrot.slane %v3210, 5
      %v3324 = vsel %vm2348, %v3322, %v3323
      %v3325 = vrot.slane %v3323, 4
      %v3326 = vrot.slane %v3211, 5
      %v3327 = vsel %vm2348, %v3325, %v3326
      %v3328 = vrot.slane %v3212, 5
      %v3329 = vrot.slane %v3328, 4
      %v3330 = vrot.slane %v3213, 5
      %v3331 = vsel %vm2348, %v3329, %v3330
      %v3332 = vrot.slane %v3330, 4
      %v3333 = vrot.slane %v3214, 5
      %v3334 = vsel %vm2348, %v3332, %v3333
      %v3335 = vrot.slane %v3215, 5
      %v3336 = vrot.slane %v3335, 4
      %v3337 = vrot.slane %v3216, 5
      %v3338 = vsel %vm2348, %v3336, %v3337
      %v3339 = vrot.slane %v3337, 4
      %v3340 = vrot.slane %v3217, 5
      %v3341 = vsel %vm2348, %v3339, %v3340
      %v3342 = vrot.slane %v3218, 5
      %v3343 = vrot.slane %v3342, 4
      %v3344 = vrot.slane %v3219, 5
      %v3345 = vsel %vm2348, %v3343, %v3344
      %v3346 = vrot.slane %v3344, 4
      %v3347 = vrot.slane %v3220, 5
      %v3348 = vsel %vm2348, %v3346, %v3347
      %v3349 = vrot.slane %v3221, 5
      %v3350 = vrot.slane %v3349, 4
      %v3351 = vrot.slane %v3222, 5
      %v3352 = vsel %vm2348, %v3350, %v3351
      %v3353 = vrot.slane %v3351, 4
      %v3354 = vrot.slane %v3223, 5
      %v3355 = vsel %vm2348, %v3353, %v3354
      %v3356 = vrot.slane %v3224, 5
      %v3357 = vrot.slane %v3356, 4
      %v3358 = vrot.slane %v3225, 5
      %v3359 = vsel %vm2348, %v3357, %v3358
      %v3360 = vrot.slane %v3358, 4
      %v3361 = vrot.slane %v3226, 5
      %v3362 = vsel %vm2348, %v3360, %v3361
      %v3363 = vrot.slane %v3227, 5
      %v3364 = vrot.slane %v3363, 4
      %v3365 = vrot.slane %v3228, 5
      %v3366 = vsel %vm2348, %v3364, %v3365
      %v3367 = vrot.slane %v3365, 4
      %v3368 = vrot.slane %v3229, 5
      %v3369 = vsel %vm2348, %v3367, %v3368
      %v3370 = vrot.slane %v3230, 5
      %v3371 = vrot.slane %v3370, 4
      %v3372 = vrot.slane %v3231, 5
      %v3373 = vsel %vm2348, %v3371, %v3372
      %v3374 = vrot.slane %v3372, 4
      %v3375 = vrot.slane %v3232, 5
      %v3376 = vsel %vm2348, %v3374, %v3375
      %v3377 = vrot.slane %v3233, 5
      %v3378 = vrot.slane %v3377, 4
      %v3379 = vrot.slane %v3234, 5
      %v3380 = vsel %vm2348, %v3378, %v3379
      %v3381 = vrot.slane %v3379, 4
      %v3382 = vrot.slane %v3235, 5
      %v3383 = vsel %vm2348, %v3381, %v3382
      %v3384 = vrot.slane %v3236, 5
      %v3385 = vrot.slane %v3384, 4
      %v3386 = vrot.slane %v3237, 5
      %v3387 = vsel %vm2348, %v3385, %v3386
      %v3388 = vrot.slane %v3386, 4
      %v3389 = vrot.slane %v3238, 5
      %v3390 = vsel %vm2348, %v3388, %v3389
      %v3391 = vrot.slane %v3239, 5
      %v3392 = vrot.slane %v3391, 4
      %v3393 = vrot.slane %v3240, 5
      %v3394 = vsel %vm2348, %v3392, %v3393
      %v3395 = vrot.slane %v3393, 4
      %v3396 = vrot.slane %v3241, 5
      %v3397 = vsel %vm2348, %v3395, %v3396
      %v3398 = vrot.slane %v3242, 5
      %v3399 = vrot.slane %v3398, 4
      %v3400 = vrot.slane %v3243, 5
      %v3401 = vsel %vm2348, %v3399, %v3400
      %v3402 = vrot.slane %v3400, 4
      %v3403 = vrot.slane %v3244, 5
      %v3404 = vsel %vm2348, %v3402, %v3403
      %v3405 = vunpack.c.l.b16 %v3296
      %v3406 = vunpack.c.l.b16 %v3299
      %v3407 = vunpack.c.l.b16 %v3303
      %v3408 = vunpack.c.l.b16 %v3306
      %v3409 = vunpack.c.l.b16 %v3310
      %v3410 = vunpack.c.l.b16 %v3313
      %v3411 = vunpack.c.l.b16 %v3317
      %v3412 = vunpack.c.l.b16 %v3320
      %v3413 = vunpack.c.l.b16 %v3324
      %v3414 = vunpack.c.l.b16 %v3327
      %v3415 = vunpack.c.l.b16 %v3331
      %v3416 = vunpack.c.l.b16 %v3334
      %v3417 = vunpack.c.l.b16 %v3338
      %v3418 = vunpack.c.l.b16 %v3341
      %v3419 = vunpack.c.l.b16 %v3345
      %v3420 = vunpack.c.l.b16 %v3348
      %v3421 = vunpack.c.l.b16 %v3352
      %v3422 = vunpack.c.l.b16 %v3355
      %v3423 = vunpack.c.l.b16 %v3359
      %v3424 = vunpack.c.l.b16 %v3362
      %v3425 = vunpack.c.l.b16 %v3366
      %v3426 = vunpack.c.l.b16 %v3369
      %v3427 = vunpack.c.l.b16 %v3373
      %v3428 = vunpack.c.l.b16 %v3376
      %v3429 = vunpack.c.l.b16 %v3380
      %v3430 = vunpack.c.l.b16 %v3383
      %v3431 = vunpack.c.l.b16 %v3387
      %v3432 = vunpack.c.l.b16 %v3390
      %v3433 = vunpack.c.l.b16 %v3394
      %v3434 = vunpack.c.l.b16 %v3397
      %v3435 = vunpack.c.l.b16 %v3401
      %v3436 = vunpack.c.l.b16 %v3404
      %v3437 = vpack.c.b16 %v3406, %v3405
      %v3438 = vpack.c.b16 %v3408, %v3407
      %v3439 = vpack.c.b16 %v3410, %v3409
      %v3440 = vpack.c.b16 %v3412, %v3411
      %v3441 = vpack.c.b16 %v3414, %v3413
      %v3442 = vpack.c.b16 %v3416, %v3415
      %v3443 = vpack.c.b16 %v3418, %v3417
      %v3444 = vpack.c.b16 %v3420, %v3419
      %v3445 = vpack.c.b16 %v3422, %v3421
      %v3446 = vpack.c.b16 %v3424, %v3423
      %v3447 = vpack.c.b16 %v3426, %v3425
      %v3448 = vpack.c.b16 %v3428, %v3427
      %v3449 = vpack.c.b16 %v3430, %v3429
      %v3450 = vpack.c.b16 %v3432, %v3431
      %v3451 = vpack.c.b16 %v3434, %v3433
      %v3452 = vpack.c.b16 %v3436, %v3435
      %3469 = vst [vmem:[#allocation3 + $0x28] sm:$0xff] %v3437
      %3470 = vst [vmem:[#allocation3 + $0x70] sm:$0xff] %v3438
      %3471 = vst [vmem:[#allocation3 + $0xb8] sm:$0xff] %v3439
      %3472 = vst [vmem:[#allocation3 + $0x100] sm:$0xff] %v3440
      %3473 = vst [vmem:[#allocation3 + $0x148] sm:$0xff] %v3441
      %3474 = vst [vmem:[#allocation3 + $0x190] sm:$0xff] %v3442
      %3475 = vst [vmem:[#allocation3 + $0x1d8] sm:$0xff] %v3443
      %3476 = vst [vmem:[#allocation3 + $0x220] sm:$0xff] %v3444
      %3477 = vst [vmem:[#allocation3 + $0x268] sm:$0xff] %v3445
      %3478 = vst [vmem:[#allocation3 + $0x2b0] sm:$0xff] %v3446
      %3479 = vst [vmem:[#allocation3 + $0x2f8] sm:$0xff] %v3447
      %3480 = vst [vmem:[#allocation3 + $0x340] sm:$0xff] %v3448
      %3481 = vst [vmem:[#allocation3 + $0x388] sm:$0xff] %v3449
      %3482 = vst [vmem:[#allocation3 + $0x3d0] sm:$0xff] %v3450
      %3483 = vst [vmem:[#allocation3 + $0x418] sm:$0xff] %v3451
      %3484 = vst [vmem:[#allocation3 + $0x460] sm:$0xff] %v3452
      %s3485 = scalar_lea.vmem [#allocation2], 24
      %v3486 = vld [vmem:[%s3485] sm:$0xf]
      %v3487 = vld [vmem:[%s3485 + $0x4] sm:$0xf]
      %v3488 = vld [vmem:[%s3485 + $0xc] sm:$0xf]
      %v3489 = vld [vmem:[%s3485 + $0x10] sm:$0xf]
      %v3490 = vld [vmem:[%s3485 + $0x18] sm:$0xf]
      %v3491 = vld [vmem:[%s3485 + $0x1c] sm:$0xf]
      %v3492 = vld [vmem:[%s3485 + $0x24] sm:$0xf]
      %v3493 = vld [vmem:[%s3485 + $0x28] sm:$0xf]
      %v3494 = vld [vmem:[%s3485 + $0x30] sm:$0xf]
      %v3495 = vld [vmem:[%s3485 + $0x34] sm:$0xf]
      %v3496 = vld [vmem:[%s3485 + $0x3c] sm:$0xf]
      %v3497 = vld [vmem:[%s3485 + $0x40] sm:$0xf]
      %v3498 = vld [vmem:[%s3485 + $0x48] sm:$0xf]
      %v3499 = vld [vmem:[%s3485 + $0x4c] sm:$0xf]
      %v3500 = vld [vmem:[%s3485 + $0x54] sm:$0xf]
      %v3501 = vld [vmem:[%s3485 + $0x58] sm:$0xf]
      %v3502 = vld [vmem:[%s3485 + $0x60] sm:$0xf]
      %v3503 = vld [vmem:[%s3485 + $0x64] sm:$0xf]
      %v3504 = vld [vmem:[%s3485 + $0x6c] sm:$0xf]
      %v3505 = vld [vmem:[%s3485 + $0x70] sm:$0xf]
      %v3506 = vld [vmem:[%s3485 + $0x78] sm:$0xf]
      %v3507 = vld [vmem:[%s3485 + $0x7c] sm:$0xf]
      %v3508 = vld [vmem:[%s3485 + $0x84] sm:$0xf]
      %v3509 = vld [vmem:[%s3485 + $0x88] sm:$0xf]
      %v3510 = vld [vmem:[%s3485 + $0x90] sm:$0xf]
      %v3511 = vld [vmem:[%s3485 + $0x94] sm:$0xf]
      %v3512 = vld [vmem:[%s3485 + $0x9c] sm:$0xf]
      %v3513 = vld [vmem:[%s3485 + $0xa0] sm:$0xf]
      %v3514 = vld [vmem:[%s3485 + $0xa8] sm:$0xf]
      %v3515 = vld [vmem:[%s3485 + $0xac] sm:$0xf]
      %v3516 = vld [vmem:[%s3485 + $0xb4] sm:$0xf]
      %v3517 = vld [vmem:[%s3485 + $0xb8] sm:$0xf]
      %v3550 = vunpack.c.l.b16 %v3486
      %v3551 = vunpack.c.l.b16 %v3487
      %v3552 = vunpack.c.l.b16 %v3488
      %v3553 = vunpack.c.l.b16 %v3489
      %v3554 = vunpack.c.l.b16 %v3490
      %v3555 = vunpack.c.l.b16 %v3491
      %v3556 = vunpack.c.l.b16 %v3492
      %v3557 = vunpack.c.l.b16 %v3493
      %v3558 = vunpack.c.l.b16 %v3494
      %v3559 = vunpack.c.l.b16 %v3495
      %v3560 = vunpack.c.l.b16 %v3496
      %v3561 = vunpack.c.l.b16 %v3497
      %v3562 = vunpack.c.l.b16 %v3498
      %v3563 = vunpack.c.l.b16 %v3499
      %v3564 = vunpack.c.l.b16 %v3500
      %v3565 = vunpack.c.l.b16 %v3501
      %v3566 = vunpack.c.l.b16 %v3502
      %v3567 = vunpack.c.l.b16 %v3503
      %v3568 = vunpack.c.l.b16 %v3504
      %v3569 = vunpack.c.l.b16 %v3505
      %v3570 = vunpack.c.l.b16 %v3506
      %v3571 = vunpack.c.l.b16 %v3507
      %v3572 = vunpack.c.l.b16 %v3508
      %v3573 = vunpack.c.l.b16 %v3509
      %v3574 = vunpack.c.l.b16 %v3510
      %v3575 = vunpack.c.l.b16 %v3511
      %v3576 = vunpack.c.l.b16 %v3512
      %v3577 = vunpack.c.l.b16 %v3513
      %v3578 = vunpack.c.l.b16 %v3514
      %v3579 = vunpack.c.l.b16 %v3515
      %v3580 = vunpack.c.l.b16 %v3516
      %v3581 = vunpack.c.l.b16 %v3517
      %v3582 = vpack.c.b16 %v3551, %v3550
      %v3583 = vpack.c.b16 %v3553, %v3552
      %v3584 = vpack.c.b16 %v3555, %v3554
      %v3585 = vpack.c.b16 %v3557, %v3556
      %v3586 = vpack.c.b16 %v3559, %v3558
      %v3587 = vpack.c.b16 %v3561, %v3560
      %v3588 = vpack.c.b16 %v3563, %v3562
      %v3589 = vpack.c.b16 %v3565, %v3564
      %v3590 = vpack.c.b16 %v3567, %v3566
      %v3591 = vpack.c.b16 %v3569, %v3568
      %v3592 = vpack.c.b16 %v3571, %v3570
      %v3593 = vpack.c.b16 %v3573, %v3572
      %v3594 = vpack.c.b16 %v3575, %v3574
      %v3595 = vpack.c.b16 %v3577, %v3576
      %v3596 = vpack.c.b16 %v3579, %v3578
      %v3597 = vpack.c.b16 %v3581, %v3580
      %3614 = vst [vmem:[#allocation3 + $0x30] sm:$0xff] %v3582
      %3615 = vst [vmem:[#allocation3 + $0x78] sm:$0xff] %v3583
      %3616 = vst [vmem:[#allocation3 + $0xc0] sm:$0xff] %v3584
      %3617 = vst [vmem:[#allocation3 + $0x108] sm:$0xff] %v3585
      %3618 = vst [vmem:[#allocation3 + $0x150] sm:$0xff] %v3586
      %3619 = vst [vmem:[#allocation3 + $0x198] sm:$0xff] %v3587
      %3620 = vst [vmem:[#allocation3 + $0x1e0] sm:$0xff] %v3588
      %3621 = vst [vmem:[#allocation3 + $0x228] sm:$0xff] %v3589
      %3622 = vst [vmem:[#allocation3 + $0x270] sm:$0xff] %v3590
      %3623 = vst [vmem:[#allocation3 + $0x2b8] sm:$0xff] %v3591
      %3624 = vst [vmem:[#allocation3 + $0x300] sm:$0xff] %v3592
      %3625 = vst [vmem:[#allocation3 + $0x348] sm:$0xff] %v3593
      %3626 = vst [vmem:[#allocation3 + $0x390] sm:$0xff] %v3594
      %3627 = vst [vmem:[#allocation3 + $0x3d8] sm:$0xff] %v3595
      %3628 = vst [vmem:[#allocation3 + $0x420] sm:$0xff] %v3596
      %3629 = vst [vmem:[#allocation3 + $0x468] sm:$0xff] %v3597
      %v3630 = vld [vmem:[%s3485] sm:$0xf]
      %v3631 = vld [vmem:[%s3485 + $0x4] sm:$0xf]
      %v3632 = vld [vmem:[%s3485 + $0x8] sm:$0x1]
      %v3633 = vld [vmem:[%s3485 + $0xc] sm:$0xf]
      %v3634 = vld [vmem:[%s3485 + $0x10] sm:$0xf]
      %v3635 = vld [vmem:[%s3485 + $0x14] sm:$0x1]
      %v3636 = vld [vmem:[%s3485 + $0x18] sm:$0xf]
      %v3637 = vld [vmem:[%s3485 + $0x1c] sm:$0xf]
      %v3638 = vld [vmem:[%s3485 + $0x20] sm:$0x1]
      %v3639 = vld [vmem:[%s3485 + $0x24] sm:$0xf]
      %v3640 = vld [vmem:[%s3485 + $0x28] sm:$0xf]
      %v3641 = vld [vmem:[%s3485 + $0x2c] sm:$0x1]
      %v3642 = vld [vmem:[%s3485 + $0x30] sm:$0xf]
      %v3643 = vld [vmem:[%s3485 + $0x34] sm:$0xf]
      %v3644 = vld [vmem:[%s3485 + $0x38] sm:$0x1]
      %v3645 = vld [vmem:[%s3485 + $0x3c] sm:$0xf]
      %v3646 = vld [vmem:[%s3485 + $0x40] sm:$0xf]
      %v3647 = vld [vmem:[%s3485 + $0x44] sm:$0x1]
      %v3648 = vld [vmem:[%s3485 + $0x48] sm:$0xf]
      %v3649 = vld [vmem:[%s3485 + $0x4c] sm:$0xf]
      %v3650 = vld [vmem:[%s3485 + $0x50] sm:$0x1]
      %v3651 = vld [vmem:[%s3485 + $0x54] sm:$0xf]
      %v3652 = vld [vmem:[%s3485 + $0x58] sm:$0xf]
      %v3653 = vld [vmem:[%s3485 + $0x5c] sm:$0x1]
      %v3654 = vld [vmem:[%s3485 + $0x60] sm:$0xf]
      %v3655 = vld [vmem:[%s3485 + $0x64] sm:$0xf]
      %v3656 = vld [vmem:[%s3485 + $0x68] sm:$0x1]
      %v3657 = vld [vmem:[%s3485 + $0x6c] sm:$0xf]
      %v3658 = vld [vmem:[%s3485 + $0x70] sm:$0xf]
      %v3659 = vld [vmem:[%s3485 + $0x74] sm:$0x1]
      %v3660 = vld [vmem:[%s3485 + $0x78] sm:$0xf]
      %v3661 = vld [vmem:[%s3485 + $0x7c] sm:$0xf]
      %v3662 = vld [vmem:[%s3485 + $0x80] sm:$0x1]
      %v3663 = vld [vmem:[%s3485 + $0x84] sm:$0xf]
      %v3664 = vld [vmem:[%s3485 + $0x88] sm:$0xf]
      %v3665 = vld [vmem:[%s3485 + $0x8c] sm:$0x1]
      %v3666 = vld [vmem:[%s3485 + $0x90] sm:$0xf]
      %v3667 = vld [vmem:[%s3485 + $0x94] sm:$0xf]
      %v3668 = vld [vmem:[%s3485 + $0x98] sm:$0x1]
      %v3669 = vld [vmem:[%s3485 + $0x9c] sm:$0xf]
      %v3670 = vld [vmem:[%s3485 + $0xa0] sm:$0xf]
      %v3671 = vld [vmem:[%s3485 + $0xa4] sm:$0x1]
      %v3672 = vld [vmem:[%s3485 + $0xa8] sm:$0xf]
      %v3673 = vld [vmem:[%s3485 + $0xac] sm:$0xf]
      %v3674 = vld [vmem:[%s3485 + $0xb0] sm:$0x1]
      %v3675 = vld [vmem:[%s3485 + $0xb4] sm:$0xf]
      %v3676 = vld [vmem:[%s3485 + $0xb8] sm:$0xf]
      %v3677 = vld [vmem:[%s3485 + $0xbc] sm:$0x1]
      %v3679 = vshrl.u32 %v3630, 16
      %v3681 = vrot.slane %v3679, 4
      %v3682 = vshll.u32 %v3630, 16
      %v3684 = vrot.slane %v3682, 5
      %v3685 = vor.u32 %v3681, %v3684
      %v3686 = vrot.slane %v3685, 4
      %v3688 = vshll.u32 %v3631, 16
      %v3690 = vrot.slane %v3688, 5
      %v3691 = vsel %vm1785, %v3686, %v3690
      %v3692 = vshrl.u32 %v3631, 16
      %v3694 = vrot.slane %v3692, 4
      %v3695 = vor.u32 %v3694, %v3690
      %v3696 = vrot.slane %v3695, 4
      %v3698 = vshll.u32 %v3632, 16
      %v3700 = vrot.slane %v3698, 5
      %v3701 = vsel %vm1785, %v3696, %v3700
      %v3703 = vshrl.u32 %v3633, 16
      %v3705 = vrot.slane %v3703, 4
      %v3706 = vshll.u32 %v3633, 16
      %v3708 = vrot.slane %v3706, 5
      %v3709 = vor.u32 %v3705, %v3708
      %v3710 = vrot.slane %v3709, 4
      %v3712 = vshll.u32 %v3634, 16
      %v3714 = vrot.slane %v3712, 5
      %v3715 = vsel %vm1785, %v3710, %v3714
      %v3716 = vshrl.u32 %v3634, 16
      %v3718 = vrot.slane %v3716, 4
      %v3719 = vor.u32 %v3718, %v3714
      %v3720 = vrot.slane %v3719, 4
      %v3722 = vshll.u32 %v3635, 16
      %v3724 = vrot.slane %v3722, 5
      %v3725 = vsel %vm1785, %v3720, %v3724
      %v3727 = vshrl.u32 %v3636, 16
      %v3729 = vrot.slane %v3727, 4
      %v3730 = vshll.u32 %v3636, 16
      %v3732 = vrot.slane %v3730, 5
      %v3733 = vor.u32 %v3729, %v3732
      %v3734 = vrot.slane %v3733, 4
      %v3736 = vshll.u32 %v3637, 16
      %v3738 = vrot.slane %v3736, 5
      %v3739 = vsel %vm1785, %v3734, %v3738
      %v3740 = vshrl.u32 %v3637, 16
      %v3742 = vrot.slane %v3740, 4
      %v3743 = vor.u32 %v3742, %v3738
      %v3744 = vrot.slane %v3743, 4
      %v3746 = vshll.u32 %v3638, 16
      %v3748 = vrot.slane %v3746, 5
      %v3749 = vsel %vm1785, %v3744, %v3748
      %v3751 = vshrl.u32 %v3639, 16
      %v3753 = vrot.slane %v3751, 4
      %v3754 = vshll.u32 %v3639, 16
      %v3756 = vrot.slane %v3754, 5
      %v3757 = vor.u32 %v3753, %v3756
      %v3758 = vrot.slane %v3757, 4
      %v3760 = vshll.u32 %v3640, 16
      %v3762 = vrot.slane %v3760, 5
      %v3763 = vsel %vm1785, %v3758, %v3762
      %v3764 = vshrl.u32 %v3640, 16
      %v3766 = vrot.slane %v3764, 4
      %v3767 = vor.u32 %v3766, %v3762
      %v3768 = vrot.slane %v3767, 4
      %v3770 = vshll.u32 %v3641, 16
      %v3772 = vrot.slane %v3770, 5
      %v3773 = vsel %vm1785, %v3768, %v3772
      %v3775 = vshrl.u32 %v3642, 16
      %v3777 = vrot.slane %v3775, 4
      %v3778 = vshll.u32 %v3642, 16
      %v3780 = vrot.slane %v3778, 5
      %v3781 = vor.u32 %v3777, %v3780
      %v3782 = vrot.slane %v3781, 4
      %v3784 = vshll.u32 %v3643, 16
      %v3786 = vrot.slane %v3784, 5
      %v3787 = vsel %vm1785, %v3782, %v3786
      %v3788 = vshrl.u32 %v3643, 16
      %v3790 = vrot.slane %v3788, 4
      %v3791 = vor.u32 %v3790, %v3786
      %v3792 = vrot.slane %v3791, 4
      %v3794 = vshll.u32 %v3644, 16
      %v3796 = vrot.slane %v3794, 5
      %v3797 = vsel %vm1785, %v3792, %v3796
      %v3799 = vshrl.u32 %v3645, 16
      %v3801 = vrot.slane %v3799, 4
      %v3802 = vshll.u32 %v3645, 16
      %v3804 = vrot.slane %v3802, 5
      %v3805 = vor.u32 %v3801, %v3804
      %v3806 = vrot.slane %v3805, 4
      %v3808 = vshll.u32 %v3646, 16
      %v3810 = vrot.slane %v3808, 5
      %v3811 = vsel %vm1785, %v3806, %v3810
      %v3812 = vshrl.u32 %v3646, 16
      %v3814 = vrot.slane %v3812, 4
      %v3815 = vor.u32 %v3814, %v3810
      %v3816 = vrot.slane %v3815, 4
      %v3818 = vshll.u32 %v3647, 16
      %v3820 = vrot.slane %v3818, 5
      %v3821 = vsel %vm1785, %v3816, %v3820
      %v3823 = vshrl.u32 %v3648, 16
      %v3825 = vrot.slane %v3823, 4
      %v3826 = vshll.u32 %v3648, 16
      %v3828 = vrot.slane %v3826, 5
      %v3829 = vor.u32 %v3825, %v3828
      %v3830 = vrot.slane %v3829, 4
      %v3832 = vshll.u32 %v3649, 16
      %v3834 = vrot.slane %v3832, 5
      %v3835 = vsel %vm1785, %v3830, %v3834
      %v3836 = vshrl.u32 %v3649, 16
      %v3838 = vrot.slane %v3836, 4
      %v3839 = vor.u32 %v3838, %v3834
      %v3840 = vrot.slane %v3839, 4
      %v3842 = vshll.u32 %v3650, 16
      %v3844 = vrot.slane %v3842, 5
      %v3845 = vsel %vm1785, %v3840, %v3844
      %v3847 = vshrl.u32 %v3651, 16
      %v3849 = vrot.slane %v3847, 4
      %v3850 = vshll.u32 %v3651, 16
      %v3852 = vrot.slane %v3850, 5
      %v3853 = vor.u32 %v3849, %v3852
      %v3854 = vrot.slane %v3853, 4
      %v3856 = vshll.u32 %v3652, 16
      %v3858 = vrot.slane %v3856, 5
      %v3859 = vsel %vm1785, %v3854, %v3858
      %v3860 = vshrl.u32 %v3652, 16
      %v3862 = vrot.slane %v3860, 4
      %v3863 = vor.u32 %v3862, %v3858
      %v3864 = vrot.slane %v3863, 4
      %v3866 = vshll.u32 %v3653, 16
      %v3868 = vrot.slane %v3866, 5
      %v3869 = vsel %vm1785, %v3864, %v3868
      %v3871 = vshrl.u32 %v3654, 16
      %v3873 = vrot.slane %v3871, 4
      %v3874 = vshll.u32 %v3654, 16
      %v3876 = vrot.slane %v3874, 5
      %v3877 = vor.u32 %v3873, %v3876
      %v3878 = vrot.slane %v3877, 4
      %v3880 = vshll.u32 %v3655, 16
      %v3882 = vrot.slane %v3880, 5
      %v3883 = vsel %vm1785, %v3878, %v3882
      %v3884 = vshrl.u32 %v3655, 16
      %v3886 = vrot.slane %v3884, 4
      %v3887 = vor.u32 %v3886, %v3882
      %v3888 = vrot.slane %v3887, 4
      %v3890 = vshll.u32 %v3656, 16
      %v3892 = vrot.slane %v3890, 5
      %v3893 = vsel %vm1785, %v3888, %v3892
      %v3895 = vshrl.u32 %v3657, 16
      %v3897 = vrot.slane %v3895, 4
      %v3898 = vshll.u32 %v3657, 16
      %v3900 = vrot.slane %v3898, 5
      %v3901 = vor.u32 %v3897, %v3900
      %v3902 = vrot.slane %v3901, 4
      %v3904 = vshll.u32 %v3658, 16
      %v3906 = vrot.slane %v3904, 5
      %v3907 = vsel %vm1785, %v3902, %v3906
      %v3908 = vshrl.u32 %v3658, 16
      %v3910 = vrot.slane %v3908, 4
      %v3911 = vor.u32 %v3910, %v3906
      %v3912 = vrot.slane %v3911, 4
      %v3914 = vshll.u32 %v3659, 16
      %v3916 = vrot.slane %v3914, 5
      %v3917 = vsel %vm1785, %v3912, %v3916
      %v3919 = vshrl.u32 %v3660, 16
      %v3921 = vrot.slane %v3919, 4
      %v3922 = vshll.u32 %v3660, 16
      %v3924 = vrot.slane %v3922, 5
      %v3925 = vor.u32 %v3921, %v3924
      %v3926 = vrot.slane %v3925, 4
      %v3928 = vshll.u32 %v3661, 16
      %v3930 = vrot.slane %v3928, 5
      %v3931 = vsel %vm1785, %v3926, %v3930
      %v3932 = vshrl.u32 %v3661, 16
      %v3934 = vrot.slane %v3932, 4
      %v3935 = vor.u32 %v3934, %v3930
      %v3936 = vrot.slane %v3935, 4
      %v3938 = vshll.u32 %v3662, 16
      %v3940 = vrot.slane %v3938, 5
      %v3941 = vsel %vm1785, %v3936, %v3940
      %v3943 = vshrl.u32 %v3663, 16
      %v3945 = vrot.slane %v3943, 4
      %v3946 = vshll.u32 %v3663, 16
      %v3948 = vrot.slane %v3946, 5
      %v3949 = vor.u32 %v3945, %v3948
      %v3950 = vrot.slane %v3949, 4
      %v3952 = vshll.u32 %v3664, 16
      %v3954 = vrot.slane %v3952, 5
      %v3955 = vsel %vm1785, %v3950, %v3954
      %v3956 = vshrl.u32 %v3664, 16
      %v3958 = vrot.slane %v3956, 4
      %v3959 = vor.u32 %v3958, %v3954
      %v3960 = vrot.slane %v3959, 4
      %v3962 = vshll.u32 %v3665, 16
      %v3964 = vrot.slane %v3962, 5
      %v3965 = vsel %vm1785, %v3960, %v3964
      %v3967 = vshrl.u32 %v3666, 16
      %v3969 = vrot.slane %v3967, 4
      %v3970 = vshll.u32 %v3666, 16
      %v3972 = vrot.slane %v3970, 5
      %v3973 = vor.u32 %v3969, %v3972
      %v3974 = vrot.slane %v3973, 4
      %v3976 = vshll.u32 %v3667, 16
      %v3978 = vrot.slane %v3976, 5
      %v3979 = vsel %vm1785, %v3974, %v3978
      %v3980 = vshrl.u32 %v3667, 16
      %v3982 = vrot.slane %v3980, 4
      %v3983 = vor.u32 %v3982, %v3978
      %v3984 = vrot.slane %v3983, 4
      %v3986 = vshll.u32 %v3668, 16
      %v3988 = vrot.slane %v3986, 5
      %v3989 = vsel %vm1785, %v3984, %v3988
      %v3991 = vshrl.u32 %v3669, 16
      %v3993 = vrot.slane %v3991, 4
      %v3994 = vshll.u32 %v3669, 16
      %v3996 = vrot.slane %v3994, 5
      %v3997 = vor.u32 %v3993, %v3996
      %v3998 = vrot.slane %v3997, 4
      %v4000 = vshll.u32 %v3670, 16
      %v4002 = vrot.slane %v4000, 5
      %v4003 = vsel %vm1785, %v3998, %v4002
      %v4004 = vshrl.u32 %v3670, 16
      %v4006 = vrot.slane %v4004, 4
      %v4007 = vor.u32 %v4006, %v4002
      %v4008 = vrot.slane %v4007, 4
      %v4010 = vshll.u32 %v3671, 16
      %v4012 = vrot.slane %v4010, 5
      %v4013 = vsel %vm1785, %v4008, %v4012
      %v4015 = vshrl.u32 %v3672, 16
      %v4017 = vrot.slane %v4015, 4
      %v4018 = vshll.u32 %v3672, 16
      %v4020 = vrot.slane %v4018, 5
      %v4021 = vor.u32 %v4017, %v4020
      %v4022 = vrot.slane %v4021, 4
      %v4024 = vshll.u32 %v3673, 16
      %v4026 = vrot.slane %v4024, 5
      %v4027 = vsel %vm1785, %v4022, %v4026
      %v4028 = vshrl.u32 %v3673, 16
      %v4030 = vrot.slane %v4028, 4
      %v4031 = vor.u32 %v4030, %v4026
      %v4032 = vrot.slane %v4031, 4
      %v4034 = vshll.u32 %v3674, 16
      %v4036 = vrot.slane %v4034, 5
      %v4037 = vsel %vm1785, %v4032, %v4036
      %v4039 = vshrl.u32 %v3675, 16
      %v4041 = vrot.slane %v4039, 4
      %v4042 = vshll.u32 %v3675, 16
      %v4044 = vrot.slane %v4042, 5
      %v4045 = vor.u32 %v4041, %v4044
      %v4046 = vrot.slane %v4045, 4
      %v4048 = vshll.u32 %v3676, 16
      %v4050 = vrot.slane %v4048, 5
      %v4051 = vsel %vm1785, %v4046, %v4050
      %v4052 = vshrl.u32 %v3676, 16
      %v4054 = vrot.slane %v4052, 4
      %v4055 = vor.u32 %v4054, %v4050
      %v4056 = vrot.slane %v4055, 4
      %v4058 = vshll.u32 %v3677, 16
      %v4060 = vrot.slane %v4058, 5
      %v4061 = vsel %vm1785, %v4056, %v4060
      %v4062 = vunpack.c.l.b16 %v3691
      %v4063 = vunpack.c.l.b16 %v3701
      %v4064 = vunpack.c.l.b16 %v3715
      %v4065 = vunpack.c.l.b16 %v3725
      %v4066 = vunpack.c.l.b16 %v3739
      %v4067 = vunpack.c.l.b16 %v3749
      %v4068 = vunpack.c.l.b16 %v3763
      %v4069 = vunpack.c.l.b16 %v3773
      %v4070 = vunpack.c.l.b16 %v3787
      %v4071 = vunpack.c.l.b16 %v3797
      %v4072 = vunpack.c.l.b16 %v3811
      %v4073 = vunpack.c.l.b16 %v3821
      %v4074 = vunpack.c.l.b16 %v3835
      %v4075 = vunpack.c.l.b16 %v3845
      %v4076 = vunpack.c.l.b16 %v3859
      %v4077 = vunpack.c.l.b16 %v3869
      %v4078 = vunpack.c.l.b16 %v3883
      %v4079 = vunpack.c.l.b16 %v3893
      %v4080 = vunpack.c.l.b16 %v3907
      %v4081 = vunpack.c.l.b16 %v3917
      %v4082 = vunpack.c.l.b16 %v3931
      %v4083 = vunpack.c.l.b16 %v3941
      %v4084 = vunpack.c.l.b16 %v3955
      %v4085 = vunpack.c.l.b16 %v3965
      %v4086 = vunpack.c.l.b16 %v3979
      %v4087 = vunpack.c.l.b16 %v3989
      %v4088 = vunpack.c.l.b16 %v4003
      %v4089 = vunpack.c.l.b16 %v4013
      %v4090 = vunpack.c.l.b16 %v4027
      %v4091 = vunpack.c.l.b16 %v4037
      %v4092 = vunpack.c.l.b16 %v4051
      %v4093 = vunpack.c.l.b16 %v4061
      %v4094 = vpack.c.b16 %v4063, %v4062
      %v4095 = vpack.c.b16 %v4065, %v4064
      %v4096 = vpack.c.b16 %v4067, %v4066
      %v4097 = vpack.c.b16 %v4069, %v4068
      %v4098 = vpack.c.b16 %v4071, %v4070
      %v4099 = vpack.c.b16 %v4073, %v4072
      %v4100 = vpack.c.b16 %v4075, %v4074
      %v4101 = vpack.c.b16 %v4077, %v4076
      %v4102 = vpack.c.b16 %v4079, %v4078
      %v4103 = vpack.c.b16 %v4081, %v4080
      %v4104 = vpack.c.b16 %v4083, %v4082
      %v4105 = vpack.c.b16 %v4085, %v4084
      %v4106 = vpack.c.b16 %v4087, %v4086
      %v4107 = vpack.c.b16 %v4089, %v4088
      %v4108 = vpack.c.b16 %v4091, %v4090
      %v4109 = vpack.c.b16 %v4093, %v4092
      %4126 = vst [vmem:[#allocation3 + $0x38] sm:$0xff] %v4094
      %4127 = vst [vmem:[#allocation3 + $0x80] sm:$0xff] %v4095
      %4128 = vst [vmem:[#allocation3 + $0xc8] sm:$0xff] %v4096
      %4129 = vst [vmem:[#allocation3 + $0x110] sm:$0xff] %v4097
      %4130 = vst [vmem:[#allocation3 + $0x158] sm:$0xff] %v4098
      %4131 = vst [vmem:[#allocation3 + $0x1a0] sm:$0xff] %v4099
      %4132 = vst [vmem:[#allocation3 + $0x1e8] sm:$0xff] %v4100
      %4133 = vst [vmem:[#allocation3 + $0x230] sm:$0xff] %v4101
      %4134 = vst [vmem:[#allocation3 + $0x278] sm:$0xff] %v4102
      %4135 = vst [vmem:[#allocation3 + $0x2c0] sm:$0xff] %v4103
      %4136 = vst [vmem:[#allocation3 + $0x308] sm:$0xff] %v4104
      %4137 = vst [vmem:[#allocation3 + $0x350] sm:$0xff] %v4105
      %4138 = vst [vmem:[#allocation3 + $0x398] sm:$0xff] %v4106
      %4139 = vst [vmem:[#allocation3 + $0x3e0] sm:$0xff] %v4107
      %4140 = vst [vmem:[#allocation3 + $0x428] sm:$0xff] %v4108
      %4141 = vst [vmem:[#allocation3 + $0x470] sm:$0xff] %v4109
      %v4142 = vld [vmem:[%s3485] sm:$0xe]
      %v4143 = vld [vmem:[%s3485 + $0x4] sm:$0xf]
      %v4144 = vld [vmem:[%s3485 + $0x8] sm:$0x1]
      %v4145 = vld [vmem:[%s3485 + $0xc] sm:$0xe]
      %v4146 = vld [vmem:[%s3485 + $0x10] sm:$0xf]
      %v4147 = vld [vmem:[%s3485 + $0x14] sm:$0x1]
      %v4148 = vld [vmem:[%s3485 + $0x18] sm:$0xe]
      %v4149 = vld [vmem:[%s3485 + $0x1c] sm:$0xf]
      %v4150 = vld [vmem:[%s3485 + $0x20] sm:$0x1]
      %v4151 = vld [vmem:[%s3485 + $0x24] sm:$0xe]
      %v4152 = vld [vmem:[%s3485 + $0x28] sm:$0xf]
      %v4153 = vld [vmem:[%s3485 + $0x2c] sm:$0x1]
      %v4154 = vld [vmem:[%s3485 + $0x30] sm:$0xe]
      %v4155 = vld [vmem:[%s3485 + $0x34] sm:$0xf]
      %v4156 = vld [vmem:[%s3485 + $0x38] sm:$0x1]
      %v4157 = vld [vmem:[%s3485 + $0x3c] sm:$0xe]
      %v4158 = vld [vmem:[%s3485 + $0x40] sm:$0xf]
      %v4159 = vld [vmem:[%s3485 + $0x44] sm:$0x1]
      %v4160 = vld [vmem:[%s3485 + $0x48] sm:$0xe]
      %v4161 = vld [vmem:[%s3485 + $0x4c] sm:$0xf]
      %v4162 = vld [vmem:[%s3485 + $0x50] sm:$0x1]
      %v4163 = vld [vmem:[%s3485 + $0x54] sm:$0xe]
      %v4164 = vld [vmem:[%s3485 + $0x58] sm:$0xf]
      %v4165 = vld [vmem:[%s3485 + $0x5c] sm:$0x1]
      %v4166 = vld [vmem:[%s3485 + $0x60] sm:$0xe]
      %v4167 = vld [vmem:[%s3485 + $0x64] sm:$0xf]
      %v4168 = vld [vmem:[%s3485 + $0x68] sm:$0x1]
      %v4169 = vld [vmem:[%s3485 + $0x6c] sm:$0xe]
      %v4170 = vld [vmem:[%s3485 + $0x70] sm:$0xf]
      %v4171 = vld [vmem:[%s3485 + $0x74] sm:$0x1]
      %v4172 = vld [vmem:[%s3485 + $0x78] sm:$0xe]
      %v4173 = vld [vmem:[%s3485 + $0x7c] sm:$0xf]
      %v4174 = vld [vmem:[%s3485 + $0x80] sm:$0x1]
      %v4175 = vld [vmem:[%s3485 + $0x84] sm:$0xe]
      %v4176 = vld [vmem:[%s3485 + $0x88] sm:$0xf]
      %v4177 = vld [vmem:[%s3485 + $0x8c] sm:$0x1]
      %v4178 = vld [vmem:[%s3485 + $0x90] sm:$0xe]
      %v4179 = vld [vmem:[%s3485 + $0x94] sm:$0xf]
      %v4180 = vld [vmem:[%s3485 + $0x98] sm:$0x1]
      %v4181 = vld [vmem:[%s3485 + $0x9c] sm:$0xe]
      %v4182 = vld [vmem:[%s3485 + $0xa0] sm:$0xf]
      %v4183 = vld [vmem:[%s3485 + $0xa4] sm:$0x1]
      %v4184 = vld [vmem:[%s3485 + $0xa8] sm:$0xe]
      %v4185 = vld [vmem:[%s3485 + $0xac] sm:$0xf]
      %v4186 = vld [vmem:[%s3485 + $0xb0] sm:$0x1]
      %v4187 = vld [vmem:[%s3485 + $0xb4] sm:$0xe]
      %v4188 = vld [vmem:[%s3485 + $0xb8] sm:$0xf]
      %v4189 = vld [vmem:[%s3485 + $0xbc] sm:$0x1]
      %v4238 = vrot.slane %v4142, 5
      %v4239 = vrot.slane %v4238, 4
      %v4240 = vrot.slane %v4143, 5
      %v4241 = vsel %vm2348, %v4239, %v4240
      %v4242 = vrot.slane %v4240, 4
      %v4243 = vrot.slane %v4144, 5
      %v4244 = vsel %vm2348, %v4242, %v4243
      %v4245 = vrot.slane %v4145, 5
      %v4246 = vrot.slane %v4245, 4
      %v4247 = vrot.slane %v4146, 5
      %v4248 = vsel %vm2348, %v4246, %v4247
      %v4249 = vrot.slane %v4247, 4
      %v4250 = vrot.slane %v4147, 5
      %v4251 = vsel %vm2348, %v4249, %v4250
      %v4252 = vrot.slane %v4148, 5
      %v4253 = vrot.slane %v4252, 4
      %v4254 = vrot.slane %v4149, 5
      %v4255 = vsel %vm2348, %v4253, %v4254
      %v4256 = vrot.slane %v4254, 4
      %v4257 = vrot.slane %v4150, 5
      %v4258 = vsel %vm2348, %v4256, %v4257
      %v4259 = vrot.slane %v4151, 5
      %v4260 = vrot.slane %v4259, 4
      %v4261 = vrot.slane %v4152, 5
      %v4262 = vsel %vm2348, %v4260, %v4261
      %v4263 = vrot.slane %v4261, 4
      %v4264 = vrot.slane %v4153, 5
      %v4265 = vsel %vm2348, %v4263, %v4264
      %v4266 = vrot.slane %v4154, 5
      %v4267 = vrot.slane %v4266, 4
      %v4268 = vrot.slane %v4155, 5
      %v4269 = vsel %vm2348, %v4267, %v4268
      %v4270 = vrot.slane %v4268, 4
      %v4271 = vrot.slane %v4156, 5
      %v4272 = vsel %vm2348, %v4270, %v4271
      %v4273 = vrot.slane %v4157, 5
      %v4274 = vrot.slane %v4273, 4
      %v4275 = vrot.slane %v4158, 5
      %v4276 = vsel %vm2348, %v4274, %v4275
      %v4277 = vrot.slane %v4275, 4
      %v4278 = vrot.slane %v4159, 5
      %v4279 = vsel %vm2348, %v4277, %v4278
      %v4280 = vrot.slane %v4160, 5
      %v4281 = vrot.slane %v4280, 4
      %v4282 = vrot.slane %v4161, 5
      %v4283 = vsel %vm2348, %v4281, %v4282
      %v4284 = vrot.slane %v4282, 4
      %v4285 = vrot.slane %v4162, 5
      %v4286 = vsel %vm2348, %v4284, %v4285
      %v4287 = vrot.slane %v4163, 5
      %v4288 = vrot.slane %v4287, 4
      %v4289 = vrot.slane %v4164, 5
      %v4290 = vsel %vm2348, %v4288, %v4289
      %v4291 = vrot.slane %v4289, 4
      %v4292 = vrot.slane %v4165, 5
      %v4293 = vsel %vm2348, %v4291, %v4292
      %v4294 = vrot.slane %v4166, 5
      %v4295 = vrot.slane %v4294, 4
      %v4296 = vrot.slane %v4167, 5
      %v4297 = vsel %vm2348, %v4295, %v4296
      %v4298 = vrot.slane %v4296, 4
      %v4299 = vrot.slane %v4168, 5
      %v4300 = vsel %vm2348, %v4298, %v4299
      %v4301 = vrot.slane %v4169, 5
      %v4302 = vrot.slane %v4301, 4
      %v4303 = vrot.slane %v4170, 5
      %v4304 = vsel %vm2348, %v4302, %v4303
      %v4305 = vrot.slane %v4303, 4
      %v4306 = vrot.slane %v4171, 5
      %v4307 = vsel %vm2348, %v4305, %v4306
      %v4308 = vrot.slane %v4172, 5
      %v4309 = vrot.slane %v4308, 4
      %v4310 = vrot.slane %v4173, 5
      %v4311 = vsel %vm2348, %v4309, %v4310
      %v4312 = vrot.slane %v4310, 4
      %v4313 = vrot.slane %v4174, 5
      %v4314 = vsel %vm2348, %v4312, %v4313
      %v4315 = vrot.slane %v4175, 5
      %v4316 = vrot.slane %v4315, 4
      %v4317 = vrot.slane %v4176, 5
      %v4318 = vsel %vm2348, %v4316, %v4317
      %v4319 = vrot.slane %v4317, 4
      %v4320 = vrot.slane %v4177, 5
      %v4321 = vsel %vm2348, %v4319, %v4320
      %v4322 = vrot.slane %v4178, 5
      %v4323 = vrot.slane %v4322, 4
      %v4324 = vrot.slane %v4179, 5
      %v4325 = vsel %vm2348, %v4323, %v4324
      %v4326 = vrot.slane %v4324, 4
      %v4327 = vrot.slane %v4180, 5
      %v4328 = vsel %vm2348, %v4326, %v4327
      %v4329 = vrot.slane %v4181, 5
      %v4330 = vrot.slane %v4329, 4
      %v4331 = vrot.slane %v4182, 5
      %v4332 = vsel %vm2348, %v4330, %v4331
      %v4333 = vrot.slane %v4331, 4
      %v4334 = vrot.slane %v4183, 5
      %v4335 = vsel %vm2348, %v4333, %v4334
      %v4336 = vrot.slane %v4184, 5
      %v4337 = vrot.slane %v4336, 4
      %v4338 = vrot.slane %v4185, 5
      %v4339 = vsel %vm2348, %v4337, %v4338
      %v4340 = vrot.slane %v4338, 4
      %v4341 = vrot.slane %v4186, 5
      %v4342 = vsel %vm2348, %v4340, %v4341
      %v4343 = vrot.slane %v4187, 5
      %v4344 = vrot.slane %v4343, 4
      %v4345 = vrot.slane %v4188, 5
      %v4346 = vsel %vm2348, %v4344, %v4345
      %v4347 = vrot.slane %v4345, 4
      %v4348 = vrot.slane %v4189, 5
      %v4349 = vsel %vm2348, %v4347, %v4348
      %v4350 = vunpack.c.l.b16 %v4241
      %v4351 = vunpack.c.l.b16 %v4244
      %v4352 = vunpack.c.l.b16 %v4248
      %v4353 = vunpack.c.l.b16 %v4251
      %v4354 = vunpack.c.l.b16 %v4255
      %v4355 = vunpack.c.l.b16 %v4258
      %v4356 = vunpack.c.l.b16 %v4262
      %v4357 = vunpack.c.l.b16 %v4265
      %v4358 = vunpack.c.l.b16 %v4269
      %v4359 = vunpack.c.l.b16 %v4272
      %v4360 = vunpack.c.l.b16 %v4276
      %v4361 = vunpack.c.l.b16 %v4279
      %v4362 = vunpack.c.l.b16 %v4283
      %v4363 = vunpack.c.l.b16 %v4286
      %v4364 = vunpack.c.l.b16 %v4290
      %v4365 = vunpack.c.l.b16 %v4293
      %v4366 = vunpack.c.l.b16 %v4297
      %v4367 = vunpack.c.l.b16 %v4300
      %v4368 = vunpack.c.l.b16 %v4304
      %v4369 = vunpack.c.l.b16 %v4307
      %v4370 = vunpack.c.l.b16 %v4311
      %v4371 = vunpack.c.l.b16 %v4314
      %v4372 = vunpack.c.l.b16 %v4318
      %v4373 = vunpack.c.l.b16 %v4321
      %v4374 = vunpack.c.l.b16 %v4325
      %v4375 = vunpack.c.l.b16 %v4328
      %v4376 = vunpack.c.l.b16 %v4332
      %v4377 = vunpack.c.l.b16 %v4335
      %v4378 = vunpack.c.l.b16 %v4339
      %v4379 = vunpack.c.l.b16 %v4342
      %v4380 = vunpack.c.l.b16 %v4346
      %v4381 = vunpack.c.l.b16 %v4349
      %v4382 = vpack.c.b16 %v4351, %v4350
      %v4383 = vpack.c.b16 %v4353, %v4352
      %v4384 = vpack.c.b16 %v4355, %v4354
      %v4385 = vpack.c.b16 %v4357, %v4356
      %v4386 = vpack.c.b16 %v4359, %v4358
      %v4387 = vpack.c.b16 %v4361, %v4360
      %v4388 = vpack.c.b16 %v4363, %v4362
      %v4389 = vpack.c.b16 %v4365, %v4364
      %v4390 = vpack.c.b16 %v4367, %v4366
      %v4391 = vpack.c.b16 %v4369, %v4368
      %v4392 = vpack.c.b16 %v4371, %v4370
      %v4393 = vpack.c.b16 %v4373, %v4372
      %v4394 = vpack.c.b16 %v4375, %v4374
      %v4395 = vpack.c.b16 %v4377, %v4376
      %v4396 = vpack.c.b16 %v4379, %v4378
      %v4397 = vpack.c.b16 %v4381, %v4380
      %4414 = vst [vmem:[#allocation3 + $0x40] sm:$0xff] %v4382
      %4415 = vst [vmem:[#allocation3 + $0x88] sm:$0xff] %v4383
      %4416 = vst [vmem:[#allocation3 + $0xd0] sm:$0xff] %v4384
      %4417 = vst [vmem:[#allocation3 + $0x118] sm:$0xff] %v4385
      %4418 = vst [vmem:[#allocation3 + $0x160] sm:$0xff] %v4386
      %4419 = vst [vmem:[#allocation3 + $0x1a8] sm:$0xff] %v4387
      %4420 = vst [vmem:[#allocation3 + $0x1f0] sm:$0xff] %v4388
      %4421 = vst [vmem:[#allocation3 + $0x238] sm:$0xff] %v4389
      %4422 = vst [vmem:[#allocation3 + $0x280] sm:$0xff] %v4390
      %4423 = vst [vmem:[#allocation3 + $0x2c8] sm:$0xff] %v4391
      %4424 = vst [vmem:[#allocation3 + $0x310] sm:$0xff] %v4392
      %4425 = vst [vmem:[#allocation3 + $0x358] sm:$0xff] %v4393
      %4426 = vst [vmem:[#allocation3 + $0x3a0] sm:$0xff] %v4394
      %4427 = vst [vmem:[#allocation3 + $0x3e8] sm:$0xff] %v4395
      %4428 = vst [vmem:[#allocation3 + $0x430] sm:$0xff] %v4396
      %4429 = vst [vmem:[#allocation3 + $0x478] sm:$0xff] %v4397
      %v4430 = vld [vmem:[%s4] sm:$0x1]
      %v4431 = vld [vmem:[#allocation3] sm:$0xff]
      %v4432 = vld [vmem:[#allocation3 + $0x8] sm:$0xff]
      %v4433 = vld [vmem:[#allocation3 + $0x10] sm:$0xff]
      %v4434 = vld [vmem:[#allocation3 + $0x18] sm:$0xff]
      %v4435 = vld [vmem:[#allocation3 + $0x20] sm:$0xff]
      %v4436 = vld [vmem:[#allocation3 + $0x28] sm:$0xff]
      %v4437 = vld [vmem:[#allocation3 + $0x30] sm:$0xff]
      %v4438 = vld [vmem:[#allocation3 + $0x38] sm:$0xff]
      %v4439 = vld [vmem:[#allocation3 + $0x40] sm:$0xff]
      %v4440 = vld [vmem:[#allocation3 + $0x48] sm:$0xff]
      %v4441 = vld [vmem:[#allocation3 + $0x50] sm:$0xff]
      %v4442 = vld [vmem:[#allocation3 + $0x58] sm:$0xff]
      %v4443 = vld [vmem:[#allocation3 + $0x60] sm:$0xff]
      %v4444 = vld [vmem:[#allocation3 + $0x68] sm:$0xff]
      %v4445 = vld [vmem:[#allocation3 + $0x70] sm:$0xff]
      %v4446 = vld [vmem:[#allocation3 + $0x78] sm:$0xff]
      %v4447 = vld [vmem:[#allocation3 + $0x80] sm:$0xff]
      %v4448 = vld [vmem:[#allocation3 + $0x88] sm:$0xff]
      %v4449 = vld [vmem:[#allocation3 + $0x90] sm:$0xff]
      %v4450 = vld [vmem:[#allocation3 + $0x98] sm:$0xff]
      %v4451 = vld [vmem:[#allocation3 + $0xa0] sm:$0xff]
      %v4452 = vld [vmem:[#allocation3 + $0xa8] sm:$0xff]
      %v4453 = vld [vmem:[#allocation3 + $0xb0] sm:$0xff]
      %v4454 = vld [vmem:[#allocation3 + $0xb8] sm:$0xff]
      %v4455 = vld [vmem:[#allocation3 + $0xc0] sm:$0xff]
      %v4456 = vld [vmem:[#allocation3 + $0xc8] sm:$0xff]
      %v4457 = vld [vmem:[#allocation3 + $0xd0] sm:$0xff]
      %v4458 = vld [vmem:[#allocation3 + $0xd8] sm:$0xff]
      %v4459 = vld [vmem:[#allocation3 + $0xe0] sm:$0xff]
      %v4460 = vld [vmem:[#allocation3 + $0xe8] sm:$0xff]
      %v4461 = vld [vmem:[#allocation3 + $0xf0] sm:$0xff]
      %v4462 = vld [vmem:[#allocation3 + $0xf8] sm:$0xff]
      %v4463 = vld [vmem:[#allocation3 + $0x100] sm:$0xff]
      %v4464 = vld [vmem:[#allocation3 + $0x108] sm:$0xff]
      %v4465 = vld [vmem:[#allocation3 + $0x110] sm:$0xff]
      %v4466 = vld [vmem:[#allocation3 + $0x118] sm:$0xff]
      %v4467 = vld [vmem:[#allocation3 + $0x120] sm:$0xff]
      %v4468 = vld [vmem:[#allocation3 + $0x128] sm:$0xff]
      %v4469 = vld [vmem:[#allocation3 + $0x130] sm:$0xff]
      %v4470 = vld [vmem:[#allocation3 + $0x138] sm:$0xff]
      %v4471 = vld [vmem:[#allocation3 + $0x140] sm:$0xff]
      %v4472 = vld [vmem:[#allocation3 + $0x148] sm:$0xff]
      %v4473 = vld [vmem:[#allocation3 + $0x150] sm:$0xff]
      %v4474 = vld [vmem:[#allocation3 + $0x158] sm:$0xff]
      %v4475 = vld [vmem:[#allocation3 + $0x160] sm:$0xff]
      %v4476 = vld [vmem:[#allocation3 + $0x168] sm:$0xff]
      %v4477 = vld [vmem:[#allocation3 + $0x170] sm:$0xff]
      %v4478 = vld [vmem:[#allocation3 + $0x178] sm:$0xff]
      %v4479 = vld [vmem:[#allocation3 + $0x180] sm:$0xff]
      %v4480 = vld [vmem:[#allocation3 + $0x188] sm:$0xff]
      %v4481 = vld [vmem:[#allocation3 + $0x190] sm:$0xff]
      %v4482 = vld [vmem:[#allocation3 + $0x198] sm:$0xff]
      %v4483 = vld [vmem:[#allocation3 + $0x1a0] sm:$0xff]
      %v4484 = vld [vmem:[#allocation3 + $0x1a8] sm:$0xff]
      %v4485 = vld [vmem:[#allocation3 + $0x1b0] sm:$0xff]
      %v4486 = vld [vmem:[#allocation3 + $0x1b8] sm:$0xff]
      %v4487 = vld [vmem:[#allocation3 + $0x1c0] sm:$0xff]
      %v4488 = vld [vmem:[#allocation3 + $0x1c8] sm:$0xff]
      %v4489 = vld [vmem:[#allocation3 + $0x1d0] sm:$0xff]
      %v4490 = vld [vmem:[#allocation3 + $0x1d8] sm:$0xff]
      %v4491 = vld [vmem:[#allocation3 + $0x1e0] sm:$0xff]
      %v4492 = vld [vmem:[#allocation3 + $0x1e8] sm:$0xff]
      %v4493 = vld [vmem:[#allocation3 + $0x1f0] sm:$0xff]
      %v4494 = vld [vmem:[#allocation3 + $0x1f8] sm:$0xff]
      %v4495 = vld [vmem:[#allocation3 + $0x200] sm:$0xff]
      %v4496 = vld [vmem:[#allocation3 + $0x208] sm:$0xff]
      %v4497 = vld [vmem:[#allocation3 + $0x210] sm:$0xff]
      %v4498 = vld [vmem:[#allocation3 + $0x218] sm:$0xff]
      %v4499 = vld [vmem:[#allocation3 + $0x220] sm:$0xff]
      %v4500 = vld [vmem:[#allocation3 + $0x228] sm:$0xff]
      %v4501 = vld [vmem:[#allocation3 + $0x230] sm:$0xff]
      %v4502 = vld [vmem:[#allocation3 + $0x238] sm:$0xff]
      %v4503 = vld [vmem:[%s3] sm:$0xf]
      %v4504 = vld [vmem:[%s3 + $0x4] sm:$0xf]
      %v4505 = vld [vmem:[%s3 + $0x8] sm:$0xf]
      %v4506 = vld [vmem:[%s3 + $0xc] sm:$0xf]
      %v4507 = vld [vmem:[%s3 + $0x10] sm:$0xf]
      %v4508 = vld [vmem:[%s3 + $0x14] sm:$0xf]
      %v4509 = vld [vmem:[%s3 + $0x18] sm:$0xf]
      %v4510 = vld [vmem:[%s3 + $0x1c] sm:$0xf]
      %v4511 = vld [vmem:[%s3 + $0x20] sm:$0xf]
      %v4512 = vld [vmem:[%s3 + $0x24] sm:$0xf]
      %v4513 = vld [vmem:[%s3 + $0x28] sm:$0xf]
      %v4514 = vld [vmem:[%s3 + $0x2c] sm:$0xf]
      %v4515 = vld [vmem:[%s3 + $0x30] sm:$0xf]
      %v4516 = vld [vmem:[%s3 + $0x34] sm:$0xf]
      %v4517 = vld [vmem:[%s3 + $0x38] sm:$0xf]
      %v4518 = vld [vmem:[%s3 + $0x3c] sm:$0xf]
      %v4519 = vld [vmem:[%s3 + $0x40] sm:$0xf]
      %v4520 = vld [vmem:[%s3 + $0x44] sm:$0xf]
      %v4521 = vld [vmem:[%s3 + $0x48] sm:$0xf]
      %v4522 = vld [vmem:[%s3 + $0x4c] sm:$0xf]
      %v4523 = vld [vmem:[%s3 + $0x50] sm:$0xf]
      %v4524 = vld [vmem:[%s3 + $0x54] sm:$0xf]
      %v4525 = vld [vmem:[%s3 + $0x58] sm:$0xf]
      %v4526 = vld [vmem:[%s3 + $0x5c] sm:$0xf]
      %v4527 = vld [vmem:[%s3 + $0x60] sm:$0xf]
      %v4528 = vld [vmem:[%s3 + $0x64] sm:$0xf]
      %v4529 = vld [vmem:[%s3 + $0x68] sm:$0xf]
      %v4530 = vld [vmem:[%s3 + $0x6c] sm:$0xf]
      %v4531 = vld [vmem:[%s3 + $0x70] sm:$0xf]
      %v4532 = vld [vmem:[%s3 + $0x74] sm:$0xf]
      %v4533 = vld [vmem:[%s3 + $0x78] sm:$0xf]
      %v4534 = vld [vmem:[%s3 + $0x7c] sm:$0xf]
      %v4535 = vld [vmem:[%s3 + $0x80] sm:$0xf]
      %v4536 = vld [vmem:[%s3 + $0x84] sm:$0xf]
      %v4537 = vld [vmem:[%s3 + $0x88] sm:$0xf]
      %v4538 = vld [vmem:[%s3 + $0x8c] sm:$0xf]
      %v4539 = vld [vmem:[%s3 + $0x90] sm:$0xf]
      %v4540 = vld [vmem:[%s3 + $0x94] sm:$0xf]
      %v4541 = vld [vmem:[%s3 + $0x98] sm:$0xf]
      %v4542 = vld [vmem:[%s3 + $0x9c] sm:$0xf]
      %v4543 = vld [vmem:[%s3 + $0xa0] sm:$0xf]
      %v4544 = vld [vmem:[%s3 + $0xa4] sm:$0xf]
      %v4545 = vld [vmem:[%s3 + $0xa8] sm:$0xf]
      %v4546 = vld [vmem:[%s3 + $0xac] sm:$0xf]
      %v4547 = vld [vmem:[%s3 + $0xb0] sm:$0xf]
      %v4548 = vld [vmem:[%s3 + $0xb4] sm:$0xf]
      %v4549 = vld [vmem:[%s3 + $0xb8] sm:$0xf]
      %v4550 = vld [vmem:[%s3 + $0xbc] sm:$0xf]
      %v4551 = vld [vmem:[%s3 + $0xc0] sm:$0xf]
      %v4552 = vld [vmem:[%s3 + $0xc4] sm:$0xf]
      %v4553 = vld [vmem:[%s3 + $0xc8] sm:$0xf]
      %v4554 = vld [vmem:[%s3 + $0xcc] sm:$0xf]
      %v4555 = vld [vmem:[%s3 + $0xd0] sm:$0xf]
      %v4556 = vld [vmem:[%s3 + $0xd4] sm:$0xf]
      %v4557 = vld [vmem:[%s3 + $0xd8] sm:$0xf]
      %v4558 = vld [vmem:[%s3 + $0xdc] sm:$0xf]
      %v4559 = vld [vmem:[%s3 + $0xe0] sm:$0xf]
      %v4560 = vld [vmem:[%s3 + $0xe4] sm:$0xf]
      %v4561 = vld [vmem:[%s3 + $0xe8] sm:$0xf]
      %v4562 = vld [vmem:[%s3 + $0xec] sm:$0xf]
      %v4563 = vld [vmem:[%s3 + $0xf0] sm:$0xf]
      %v4564 = vld [vmem:[%s3 + $0xf4] sm:$0xf]
      %v4565 = vld [vmem:[%s3 + $0xf8] sm:$0xf]
      %v4566 = vld [vmem:[%s3 + $0xfc] sm:$0xf]
      %v4567 = vld [vmem:[%s3 + $0x100] sm:$0xf]
      %v4568 = vld [vmem:[%s3 + $0x104] sm:$0xf]
      %v4569 = vld [vmem:[%s3 + $0x108] sm:$0xf]
      %v4570 = vld [vmem:[%s3 + $0x10c] sm:$0xf]
      %v4571 = vld [vmem:[%s3 + $0x110] sm:$0xf]
      %v4572 = vld [vmem:[%s3 + $0x114] sm:$0xf]
      %v4573 = vld [vmem:[%s3 + $0x118] sm:$0xf]
      %v4574 = vld [vmem:[%s3 + $0x11c] sm:$0xf]
      %v4575 = vld [vmem:[%s3 + $0x120] sm:$0xf]
      %v4576 = vld [vmem:[%s3 + $0x124] sm:$0xf]
      %v4577 = vld [vmem:[%s3 + $0x128] sm:$0xf]
      %v4578 = vld [vmem:[%s3 + $0x12c] sm:$0xf]
      %v4579 = vld [vmem:[%s3 + $0x130] sm:$0xf]
      %v4580 = vld [vmem:[%s3 + $0x134] sm:$0xf]
      %v4581 = vld [vmem:[%s3 + $0x138] sm:$0xf]
      %v4582 = vld [vmem:[%s3 + $0x13c] sm:$0xf]
      %v4583 = vld [vmem:[%s3 + $0x140] sm:$0xf]
      %v4584 = vld [vmem:[%s3 + $0x144] sm:$0xf]
      %v4585 = vld [vmem:[%s3 + $0x148] sm:$0xf]
      %v4586 = vld [vmem:[%s3 + $0x14c] sm:$0xf]
      %v4587 = vld [vmem:[%s3 + $0x150] sm:$0xf]
      %v4588 = vld [vmem:[%s3 + $0x154] sm:$0xf]
      %v4589 = vld [vmem:[%s3 + $0x158] sm:$0xf]
      %v4590 = vld [vmem:[%s3 + $0x15c] sm:$0xf]
      %v4591 = vld [vmem:[%s3 + $0x160] sm:$0xf]
      %v4592 = vld [vmem:[%s3 + $0x164] sm:$0xf]
      %v4593 = vld [vmem:[%s3 + $0x168] sm:$0xf]
      %v4594 = vld [vmem:[%s3 + $0x16c] sm:$0xf]
      %v4595 = vld [vmem:[%s3 + $0x170] sm:$0xf]
      %v4596 = vld [vmem:[%s3 + $0x174] sm:$0xf]
      %v4597 = vld [vmem:[%s3 + $0x178] sm:$0xf]
      %v4598 = vld [vmem:[%s3 + $0x17c] sm:$0xf]
      %v4599 = vld [vmem:[%s3 + $0x180] sm:$0xf]
      %v4600 = vld [vmem:[%s3 + $0x184] sm:$0xf]
      %v4601 = vld [vmem:[%s3 + $0x188] sm:$0xf]
      %v4602 = vld [vmem:[%s3 + $0x18c] sm:$0xf]
      %v4603 = vld [vmem:[%s3 + $0x190] sm:$0xf]
      %v4604 = vld [vmem:[%s3 + $0x194] sm:$0xf]
      %v4605 = vld [vmem:[%s3 + $0x198] sm:$0xf]
      %v4606 = vld [vmem:[%s3 + $0x19c] sm:$0xf]
      %v4607 = vld [vmem:[%s3 + $0x1a0] sm:$0xf]
      %v4608 = vld [vmem:[%s3 + $0x1a4] sm:$0xf]
      %v4609 = vld [vmem:[%s3 + $0x1a8] sm:$0xf]
      %v4610 = vld [vmem:[%s3 + $0x1ac] sm:$0xf]
      %v4611 = vld [vmem:[%s3 + $0x1b0] sm:$0xf]
      %v4612 = vld [vmem:[%s3 + $0x1b4] sm:$0xf]
      %v4613 = vld [vmem:[%s3 + $0x1b8] sm:$0xf]
      %v4614 = vld [vmem:[%s3 + $0x1bc] sm:$0xf]
      %v4615 = vld [vmem:[%s3 + $0x1c0] sm:$0xf]
      %v4616 = vld [vmem:[%s3 + $0x1c4] sm:$0xf]
      %v4617 = vld [vmem:[%s3 + $0x1c8] sm:$0xf]
      %v4618 = vld [vmem:[%s3 + $0x1cc] sm:$0xf]
      %v4619 = vld [vmem:[%s3 + $0x1d0] sm:$0xf]
      %v4620 = vld [vmem:[%s3 + $0x1d4] sm:$0xf]
      %v4621 = vld [vmem:[%s3 + $0x1d8] sm:$0xf]
      %v4622 = vld [vmem:[%s3 + $0x1dc] sm:$0xf]
      %v4623 = vld [vmem:[%s3 + $0x1e0] sm:$0xf]
      %v4624 = vld [vmem:[%s3 + $0x1e4] sm:$0xf]
      %v4625 = vld [vmem:[%s3 + $0x1e8] sm:$0xf]
      %v4626 = vld [vmem:[%s3 + $0x1ec] sm:$0xf]
      %v4627 = vld [vmem:[%s3 + $0x1f0] sm:$0xf]
      %v4628 = vld [vmem:[%s3 + $0x1f4] sm:$0xf]
      %v4629 = vld [vmem:[%s3 + $0x1f8] sm:$0xf]
      %v4630 = vld [vmem:[%s3 + $0x1fc] sm:$0xf]
      %v4631 = vld [vmem:[%s3 + $0x200] sm:$0xf]
      %v4632 = vld [vmem:[%s3 + $0x204] sm:$0xf]
      %v4633 = vld [vmem:[%s3 + $0x208] sm:$0xf]
      %v4634 = vld [vmem:[%s3 + $0x20c] sm:$0xf]
      %v4635 = vld [vmem:[%s3 + $0x210] sm:$0xf]
      %v4636 = vld [vmem:[%s3 + $0x214] sm:$0xf]
      %v4637 = vld [vmem:[%s3 + $0x218] sm:$0xf]
      %v4638 = vld [vmem:[%s3 + $0x21c] sm:$0xf]
      %v4639 = vld [vmem:[%s3 + $0x220] sm:$0xf]
      %v4640 = vld [vmem:[%s3 + $0x224] sm:$0xf]
      %v4641 = vld [vmem:[%s3 + $0x228] sm:$0xf]
      %v4642 = vld [vmem:[%s3 + $0x22c] sm:$0xf]
      %v4643 = vld [vmem:[%s3 + $0x230] sm:$0xf]
      %v4644 = vld [vmem:[%s3 + $0x234] sm:$0xf]
      %v4645 = vld [vmem:[%s3 + $0x238] sm:$0xf]
      %v4646 = vld [vmem:[%s3 + $0x23c] sm:$0xf]
      %v4648 = vlaneseq
      %v4649 = vshrl.u32 %v4648, 7
      %v4650 = vsub.s32 0, %v4649
      %v4651 = vrot.slane %v4430, %v4650
      %v4797 = vunpack.c.l.b16 %v4503
      %v4798 = vunpack.c.l.b16 %v4504
      %v4799 = vunpack.c.l.b16 %v4505
      %v4800 = vunpack.c.l.b16 %v4506
      %v4801 = vunpack.c.l.b16 %v4507
      %v4802 = vunpack.c.l.b16 %v4508
      %v4803 = vunpack.c.l.b16 %v4509
      %v4804 = vunpack.c.l.b16 %v4510
      %v4805 = vunpack.c.l.b16 %v4511
      %v4806 = vunpack.c.l.b16 %v4512
      %v4807 = vunpack.c.l.b16 %v4513
      %v4808 = vunpack.c.l.b16 %v4514
      %v4809 = vunpack.c.l.b16 %v4515
      %v4810 = vunpack.c.l.b16 %v4516
      %v4811 = vunpack.c.l.b16 %v4517
      %v4812 = vunpack.c.l.b16 %v4518
      %v4813 = vunpack.c.l.b16 %v4519
      %v4814 = vunpack.c.l.b16 %v4520
      %v4815 = vunpack.c.l.b16 %v4521
      %v4816 = vunpack.c.l.b16 %v4522
      %v4817 = vunpack.c.l.b16 %v4523
      %v4818 = vunpack.c.l.b16 %v4524
      %v4819 = vunpack.c.l.b16 %v4525
      %v4820 = vunpack.c.l.b16 %v4526
      %v4821 = vunpack.c.l.b16 %v4527
      %v4822 = vunpack.c.l.b16 %v4528
      %v4823 = vunpack.c.l.b16 %v4529
      %v4824 = vunpack.c.l.b16 %v4530
      %v4825 = vunpack.c.l.b16 %v4531
      %v4826 = vunpack.c.l.b16 %v4532
      %v4827 = vunpack.c.l.b16 %v4533
      %v4828 = vunpack.c.l.b16 %v4534
      %v4829 = vunpack.c.l.b16 %v4535
      %v4830 = vunpack.c.l.b16 %v4536
      %v4831 = vunpack.c.l.b16 %v4537
      %v4832 = vunpack.c.l.b16 %v4538
      %v4833 = vunpack.c.l.b16 %v4539
      %v4834 = vunpack.c.l.b16 %v4540
      %v4835 = vunpack.c.l.b16 %v4541
      %v4836 = vunpack.c.l.b16 %v4542
      %v4837 = vunpack.c.l.b16 %v4543
      %v4838 = vunpack.c.l.b16 %v4544
      %v4839 = vunpack.c.l.b16 %v4545
      %v4840 = vunpack.c.l.b16 %v4546
      %v4841 = vunpack.c.l.b16 %v4547
      %v4842 = vunpack.c.l.b16 %v4548
      %v4843 = vunpack.c.l.b16 %v4549
      %v4844 = vunpack.c.l.b16 %v4550
      %v4845 = vunpack.c.l.b16 %v4551
      %v4846 = vunpack.c.l.b16 %v4552
      %v4847 = vunpack.c.l.b16 %v4553
      %v4848 = vunpack.c.l.b16 %v4554
      %v4849 = vunpack.c.l.b16 %v4555
      %v4850 = vunpack.c.l.b16 %v4556
      %v4851 = vunpack.c.l.b16 %v4557
      %v4852 = vunpack.c.l.b16 %v4558
      %v4853 = vunpack.c.l.b16 %v4559
      %v4854 = vunpack.c.l.b16 %v4560
      %v4855 = vunpack.c.l.b16 %v4561
      %v4856 = vunpack.c.l.b16 %v4562
      %v4857 = vunpack.c.l.b16 %v4563
      %v4858 = vunpack.c.l.b16 %v4564
      %v4859 = vunpack.c.l.b16 %v4565
      %v4860 = vunpack.c.l.b16 %v4566
      %v4861 = vunpack.c.l.b16 %v4567
      %v4862 = vunpack.c.l.b16 %v4568
      %v4863 = vunpack.c.l.b16 %v4569
      %v4864 = vunpack.c.l.b16 %v4570
      %v4865 = vunpack.c.l.b16 %v4571
      %v4866 = vunpack.c.l.b16 %v4572
      %v4867 = vunpack.c.l.b16 %v4573
      %v4868 = vunpack.c.l.b16 %v4574
      %v4869 = vunpack.c.l.b16 %v4575
      %v4870 = vunpack.c.l.b16 %v4576
      %v4871 = vunpack.c.l.b16 %v4577
      %v4872 = vunpack.c.l.b16 %v4578
      %v4873 = vunpack.c.l.b16 %v4579
      %v4874 = vunpack.c.l.b16 %v4580
      %v4875 = vunpack.c.l.b16 %v4581
      %v4876 = vunpack.c.l.b16 %v4582
      %v4877 = vunpack.c.l.b16 %v4583
      %v4878 = vunpack.c.l.b16 %v4584
      %v4879 = vunpack.c.l.b16 %v4585
      %v4880 = vunpack.c.l.b16 %v4586
      %v4881 = vunpack.c.l.b16 %v4587
      %v4882 = vunpack.c.l.b16 %v4588
      %v4883 = vunpack.c.l.b16 %v4589
      %v4884 = vunpack.c.l.b16 %v4590
      %v4885 = vunpack.c.l.b16 %v4591
      %v4886 = vunpack.c.l.b16 %v4592
      %v4887 = vunpack.c.l.b16 %v4593
      %v4888 = vunpack.c.l.b16 %v4594
      %v4889 = vunpack.c.l.b16 %v4595
      %v4890 = vunpack.c.l.b16 %v4596
      %v4891 = vunpack.c.l.b16 %v4597
      %v4892 = vunpack.c.l.b16 %v4598
      %v4893 = vunpack.c.l.b16 %v4599
      %v4894 = vunpack.c.l.b16 %v4600
      %v4895 = vunpack.c.l.b16 %v4601
      %v4896 = vunpack.c.l.b16 %v4602
      %v4897 = vunpack.c.l.b16 %v4603
      %v4898 = vunpack.c.l.b16 %v4604
      %v4899 = vunpack.c.l.b16 %v4605
      %v4900 = vunpack.c.l.b16 %v4606
      %v4901 = vunpack.c.l.b16 %v4607
      %v4902 = vunpack.c.l.b16 %v4608
      %v4903 = vunpack.c.l.b16 %v4609
      %v4904 = vunpack.c.l.b16 %v4610
      %v4905 = vunpack.c.l.b16 %v4611
      %v4906 = vunpack.c.l.b16 %v4612
      %v4907 = vunpack.c.l.b16 %v4613
      %v4908 = vunpack.c.l.b16 %v4614
      %v4909 = vunpack.c.l.b16 %v4615
      %v4910 = vunpack.c.l.b16 %v4616
      %v4911 = vunpack.c.l.b16 %v4617
      %v4912 = vunpack.c.l.b16 %v4618
      %v4913 = vunpack.c.l.b16 %v4619
      %v4914 = vunpack.c.l.b16 %v4620
      %v4915 = vunpack.c.l.b16 %v4621
      %v4916 = vunpack.c.l.b16 %v4622
      %v4917 = vunpack.c.l.b16 %v4623
      %v4918 = vunpack.c.l.b16 %v4624
      %v4919 = vunpack.c.l.b16 %v4625
      %v4920 = vunpack.c.l.b16 %v4626
      %v4921 = vunpack.c.l.b16 %v4627
      %v4922 = vunpack.c.l.b16 %v4628
      %v4923 = vunpack.c.l.b16 %v4629
      %v4924 = vunpack.c.l.b16 %v4630
      %v4925 = vunpack.c.l.b16 %v4631
      %v4926 = vunpack.c.l.b16 %v4632
      %v4927 = vunpack.c.l.b16 %v4633
      %v4928 = vunpack.c.l.b16 %v4634
      %v4929 = vunpack.c.l.b16 %v4635
      %v4930 = vunpack.c.l.b16 %v4636
      %v4931 = vunpack.c.l.b16 %v4637
      %v4932 = vunpack.c.l.b16 %v4638
      %v4933 = vunpack.c.l.b16 %v4639
      %v4934 = vunpack.c.l.b16 %v4640
      %v4935 = vunpack.c.l.b16 %v4641
      %v4936 = vunpack.c.l.b16 %v4642
      %v4937 = vunpack.c.l.b16 %v4643
      %v4938 = vunpack.c.l.b16 %v4644
      %v4939 = vunpack.c.l.b16 %v4645
      %v4940 = vunpack.c.l.b16 %v4646
      %v4941 = vpack.c.b16 %v4798, %v4797
      %v4942 = vpack.c.b16 %v4800, %v4799
      %v4943 = vpack.c.b16 %v4802, %v4801
      %v4944 = vpack.c.b16 %v4804, %v4803
      %v4945 = vpack.c.b16 %v4806, %v4805
      %v4946 = vpack.c.b16 %v4808, %v4807
      %v4947 = vpack.c.b16 %v4810, %v4809
      %v4948 = vpack.c.b16 %v4812, %v4811
      %v4949 = vpack.c.b16 %v4814, %v4813
      %v4950 = vpack.c.b16 %v4816, %v4815
      %v4951 = vpack.c.b16 %v4818, %v4817
      %v4952 = vpack.c.b16 %v4820, %v4819
      %v4953 = vpack.c.b16 %v4822, %v4821
      %v4954 = vpack.c.b16 %v4824, %v4823
      %v4955 = vpack.c.b16 %v4826, %v4825
      %v4956 = vpack.c.b16 %v4828, %v4827
      %v4957 = vpack.c.b16 %v4830, %v4829
      %v4958 = vpack.c.b16 %v4832, %v4831
      %v4959 = vpack.c.b16 %v4834, %v4833
      %v4960 = vpack.c.b16 %v4836, %v4835
      %v4961 = vpack.c.b16 %v4838, %v4837
      %v4962 = vpack.c.b16 %v4840, %v4839
      %v4963 = vpack.c.b16 %v4842, %v4841
      %v4964 = vpack.c.b16 %v4844, %v4843
      %v4965 = vpack.c.b16 %v4846, %v4845
      %v4966 = vpack.c.b16 %v4848, %v4847
      %v4967 = vpack.c.b16 %v4850, %v4849
      %v4968 = vpack.c.b16 %v4852, %v4851
      %v4969 = vpack.c.b16 %v4854, %v4853
      %v4970 = vpack.c.b16 %v4856, %v4855
      %v4971 = vpack.c.b16 %v4858, %v4857
      %v4972 = vpack.c.b16 %v4860, %v4859
      %v4973 = vpack.c.b16 %v4862, %v4861
      %v4974 = vpack.c.b16 %v4864, %v4863
      %v4975 = vpack.c.b16 %v4866, %v4865
      %v4976 = vpack.c.b16 %v4868, %v4867
      %v4977 = vpack.c.b16 %v4870, %v4869
      %v4978 = vpack.c.b16 %v4872, %v4871
      %v4979 = vpack.c.b16 %v4874, %v4873
      %v4980 = vpack.c.b16 %v4876, %v4875
      %v4981 = vpack.c.b16 %v4878, %v4877
      %v4982 = vpack.c.b16 %v4880, %v4879
      %v4983 = vpack.c.b16 %v4882, %v4881
      %v4984 = vpack.c.b16 %v4884, %v4883
      %v4985 = vpack.c.b16 %v4886, %v4885
      %v4986 = vpack.c.b16 %v4888, %v4887
      %v4987 = vpack.c.b16 %v4890, %v4889
      %v4988 = vpack.c.b16 %v4892, %v4891
      %v4989 = vpack.c.b16 %v4894, %v4893
      %v4990 = vpack.c.b16 %v4896, %v4895
      %v4991 = vpack.c.b16 %v4898, %v4897
      %v4992 = vpack.c.b16 %v4900, %v4899
      %v4993 = vpack.c.b16 %v4902, %v4901
      %v4994 = vpack.c.b16 %v4904, %v4903
      %v4995 = vpack.c.b16 %v4906, %v4905
      %v4996 = vpack.c.b16 %v4908, %v4907
      %v4997 = vpack.c.b16 %v4910, %v4909
      %v4998 = vpack.c.b16 %v4912, %v4911
      %v4999 = vpack.c.b16 %v4914, %v4913
      %v5000 = vpack.c.b16 %v4916, %v4915
      %v5001 = vpack.c.b16 %v4918, %v4917
      %v5002 = vpack.c.b16 %v4920, %v4919
      %v5003 = vpack.c.b16 %v4922, %v4921
      %v5004 = vpack.c.b16 %v4924, %v4923
      %v5005 = vpack.c.b16 %v4926, %v4925
      %v5006 = vpack.c.b16 %v4928, %v4927
      %v5007 = vpack.c.b16 %v4930, %v4929
      %v5008 = vpack.c.b16 %v4932, %v4931
      %v5009 = vpack.c.b16 %v4934, %v4933
      %v5010 = vpack.c.b16 %v4936, %v4935
      %v5011 = vpack.c.b16 %v4938, %v4937
      %v5012 = vpack.c.b16 %v4940, %v4939
      %5085 = vmatprep.subr.bf16.mxu0 0
      %5086 = vmatpush1.bf16.msra.mxu0 %v4941
      %5087 = vmatprep.subr.bf16.mxu0 0
      %5088 = vmatpush1.bf16.msra.mxu0 %v4942
      %5089 = vmatprep.subr.bf16.mxu0 0
      %5090 = vmatpush1.bf16.msra.mxu0 %v4943
      %5091 = vmatprep.subr.bf16.mxu0 0
      %5092 = vmatpush1.bf16.msra.mxu0 %v4944
      %5093 = vmatprep.subr.bf16.mxu0 0
      %5094 = vmatpush1.bf16.msra.mxu0 %v4945
      %5095 = vmatprep.subr.bf16.mxu0 0
      %5096 = vmatpush1.bf16.msra.mxu0 %v4946
      %5097 = vmatprep.subr.bf16.mxu0 0
      %5098 = vmatpush1.bf16.msra.mxu0 %v4947
      %5099 = vmatprep.subr.bf16.mxu0 0
      %5100 = vmatpush1.bf16.msra.mxu0 %v4948
      %5101 = vmatprep.subr.bf16.mxu0 0
      %5102 = vmatpush1.bf16.msra.mxu0 %v4949
      %5103 = vmatprep.subr.bf16.mxu0 0
      %5104 = vmatpush1.bf16.msra.mxu0 %v4950
      %5105 = vmatprep.subr.bf16.mxu0 0
      %5106 = vmatpush1.bf16.msra.mxu0 %v4951
      %5107 = vmatprep.subr.bf16.mxu0 0
      %5108 = vmatpush1.bf16.msra.mxu0 %v4952
      %5109 = vmatprep.subr.bf16.mxu0 0
      %5110 = vmatpush1.bf16.msra.mxu0 %v4953
      %5111 = vmatprep.subr.bf16.mxu0 0
      %5112 = vmatpush1.bf16.msra.mxu0 %v4954
      %5113 = vmatprep.subr.bf16.mxu0 0
      %5114 = vmatpush1.bf16.msra.mxu0 %v4955
      %5115 = vmatprep.subr.bf16.mxu0 0
      %5116 = vmatpush1.bf16.msra.mxu0 %v4956
      %5117 = vmatprep.mubr.bf16.mxu0 %v4432
      %5118 = vmatmul.mubr.bf16.gmra.mrb[0].mxu0 %v4431
      %v5119 = vpop.f32.mrb[0].mxu0
      %v5120 = vadd.f32 %v4651, %v5119
      %v5121 = vpop.f32.mrb[0].mxu0
      %v5122 = vpop.f32.mrb[0].mxu0
      %v5123 = vadd.f32 %v4651, %v5122
      %v5124 = vpop.f32.mrb[0].mxu0
      %5125 = vmatprep.mubr.bf16.mxu0 %v4441
      %5126 = vmatmul.mubr.bf16.gmra.mrb[0].mxu0 %v4440
      %v5127 = vpop.f32.mrb[0].mxu0
      %v5128 = vadd.f32 %v4651, %v5127
      %v5129 = vpop.f32.mrb[0].mxu0
      %v5130 = vpop.f32.mrb[0].mxu0
      %v5131 = vadd.f32 %v4651, %v5130
      %v5132 = vpop.f32.mrb[0].mxu0
      %5133 = vmatprep.mubr.bf16.mxu0 %v4450
      %5134 = vmatmul.mubr.bf16.gmra.mrb[0].mxu0 %v4449
      %v5135 = vpop.f32.mrb[0].mxu0
      %v5136 = vadd.f32 %v4651, %v5135
      %v5137 = vpop.f32.mrb[0].mxu0
      %v5138 = vpop.f32.mrb[0].mxu0
      %v5139 = vadd.f32 %v4651, %v5138
      %v5140 = vpop.f32.mrb[0].mxu0
      %5141 = vmatprep.mubr.bf16.mxu0 %v4459
      %5142 = vmatmul.mubr.bf16.gmra.mrb[0].mxu0 %v4458
      %v5143 = vpop.f32.mrb[0].mxu0
      %v5144 = vadd.f32 %v4651, %v5143
      %v5145 = vpop.f32.mrb[0].mxu0
      %v5146 = vpop.f32.mrb[0].mxu0
      %v5147 = vadd.f32 %v4651, %v5146
      %v5148 = vpop.f32.mrb[0].mxu0
      %5149 = vmatprep.mubr.bf16.mxu0 %v4468
      %5150 = vmatmul.mubr.bf16.gmra.mrb[0].mxu0 %v4467
      %v5151 = vpop.f32.mrb[0].mxu0
      %v5152 = vadd.f32 %v4651, %v5151
      %v5153 = vpop.f32.mrb[0].mxu0
      %v5154 = vpop.f32.mrb[0].mxu0
      %v5155 = vadd.f32 %v4651, %v5154
      %v5156 = vpop.f32.mrb[0].mxu0
      %5157 = vmatprep.mubr.bf16.mxu0 %v4477
      %5158 = vmatmul.mubr.bf16.gmra.mrb[0].mxu0 %v4476
      %v5159 = vpop.f32.mrb[0].mxu0
      %v5160 = vadd.f32 %v4651, %v5159
      %v5161 = vpop.f32.mrb[0].mxu0
      %v5162 = vpop.f32.mrb[0].mxu0
      %v5163 = vadd.f32 %v4651, %v5162
      %v5164 = vpop.f32.mrb[0].mxu0
      %5165 = vmatprep.mubr.bf16.mxu0 %v4486
      %5166 = vmatmul.mubr.bf16.gmra.mrb[0].mxu0 %v4485
      %v5167 = vpop.f32.mrb[0].mxu0
      %v5168 = vadd.f32 %v4651, %v5167
      %v5169 = vpop.f32.mrb[0].mxu0
      %v5170 = vpop.f32.mrb[0].mxu0
      %v5171 = vadd.f32 %v4651, %v5170
      %v5172 = vpop.f32.mrb[0].mxu0
      %5173 = vmatprep.mubr.bf16.mxu0 %v4495
      %5174 = vmatmul.mubr.bf16.gmra.mrb[0].mxu0 %v4494
      %v5175 = vpop.f32.mrb[0].mxu0
      %v5176 = vadd.f32 %v4651, %v5175
      %v5177 = vpop.f32.mrb[0].mxu0
      %v5178 = vpop.f32.mrb[0].mxu0
      %v5179 = vadd.f32 %v4651, %v5178
      %v5180 = vpop.f32.mrb[0].mxu0
      %5181 = vdwg.mxu0
      %5182 = vmatprep.subr.bf16.mxu0 0
      %5183 = vmatpush1.bf16.msra.mxu0 %v4957
      %5184 = vmatprep.subr.bf16.mxu0 0
      %5185 = vmatpush1.bf16.msra.mxu0 %v4958
      %5186 = vmatprep.subr.bf16.mxu0 0
      %5187 = vmatpush1.bf16.msra.mxu0 %v4959
      %5188 = vmatprep.subr.bf16.mxu0 0
      %5189 = vmatpush1.bf16.msra.mxu0 %v4960
      %5190 = vmatprep.subr.bf16.mxu0 0
      %5191 = vmatpush1.bf16.msra.mxu0 %v4961
      %5192 = vmatprep.subr.bf16.mxu0 0
      %5193 = vmatpush1.bf16.msra.mxu0 %v4962
      %5194 = vmatprep.subr.bf16.mxu0 0
      %5195 = vmatpush1.bf16.msra.mxu0 %v4963
      %5196 = vmatprep.subr.bf16.mxu0 0
      %5197 = vmatpush1.bf16.msra.mxu0 %v4964
      %5198 = vmatprep.subr.bf16.mxu0 0
      %5199 = vmatpush1.bf16.msra.mxu0 %v4965
      %5200 = vmatprep.subr.bf16.mxu0 0
      %5201 = vmatpush1.bf16.msra.mxu0 %v4966
      %5202 = vmatprep.subr.bf16.mxu0 0
      %5203 = vmatpush1.bf16.msra.mxu0 %v4967
      %5204 = vmatprep.subr.bf16.mxu0 0
      %5205 = vmatpush1.bf16.msra.mxu0 %v4968
      %5206 = vmatprep.subr.bf16.mxu0 0
      %5207 = vmatpush1.bf16.msra.mxu0 %v4969
      %5208 = vmatprep.subr.bf16.mxu0 0
      %5209 = vmatpush1.bf16.msra.mxu0 %v4970
      %5210 = vmatprep.subr.bf16.mxu0 0
      %5211 = vmatpush1.bf16.msra.mxu0 %v4971
      %5212 = vmatprep.subr.bf16.mxu0 0
      %5213 = vmatpush1.bf16.msra.mxu0 %v4972
      %5214 = vmatprep.mubr.bf16.mxu0 %v4434
      %5215 = vmatmul.mubr.bf16.gmra.mrb[0].mxu0 %v4433
      %v5216 = vpop.f32.mrb[0].mxu0
      %v5217 = vadd.f32 %v5120, %v5216
      %v5218 = vpop.f32.mrb[0].mxu0
      %v5219 = vpop.f32.mrb[0].mxu0
      %v5220 = vadd.f32 %v5123, %v5219
      %v5221 = vpop.f32.mrb[0].mxu0
      %5222 = vmatprep.mubr.bf16.mxu0 %v4443
      %5223 = vmatmul.mubr.bf16.gmra.mrb[0].mxu0 %v4442
      %v5224 = vpop.f32.mrb[0].mxu0
      %v5225 = vadd.f32 %v5128, %v5224
      %v5226 = vpop.f32.mrb[0].mxu0
      %v5227 = vpop.f32.mrb[0].mxu0
      %v5228 = vadd.f32 %v5131, %v5227
      %v5229 = vpop.f32.mrb[0].mxu0
      %5230 = vmatprep.mubr.bf16.mxu0 %v4452
      %5231 = vmatmul.mubr.bf16.gmra.mrb[0].mxu0 %v4451
      %v5232 = vpop.f32.mrb[0].mxu0
      %v5233 = vadd.f32 %v5136, %v5232
      %v5234 = vpop.f32.mrb[0].mxu0
      %v5235 = vpop.f32.mrb[0].mxu0
      %v5236 = vadd.f32 %v5139, %v5235
      %v5237 = vpop.f32.mrb[0].mxu0
      %5238 = vmatprep.mubr.bf16.mxu0 %v4461
      %5239 = vmatmul.mubr.bf16.gmra.mrb[0].mxu0 %v4460
      %v5240 = vpop.f32.mrb[0].mxu0
      %v5241 = vadd.f32 %v5144, %v5240
      %v5242 = vpop.f32.mrb[0].mxu0
      %v5243 = vpop.f32.mrb[0].mxu0
      %v5244 = vadd.f32 %v5147, %v5243
      %v5245 = vpop.f32.mrb[0].mxu0
      %5246 = vmatprep.mubr.bf16.mxu0 %v4470
      %5247 = vmatmul.mubr.bf16.gmra.mrb[0].mxu0 %v4469
      %v5248 = vpop.f32.mrb[0].mxu0
      %v5249 = vadd.f32 %v5152, %v5248
      %v5250 = vpop.f32.mrb[0].mxu0
      %v5251 = vpop.f32.mrb[0].mxu0
      %v5252 = vadd.f32 %v5155, %v5251
      %v5253 = vpop.f32.mrb[0].mxu0
      %5254 = vmatprep.mubr.bf16.mxu0 %v4479
      %5255 = vmatmul.mubr.bf16.gmra.mrb[0].mxu0 %v4478
      %v5256 = vpop.f32.mrb[0].mxu0
      %v5257 = vadd.f32 %v5160, %v5256
      %v5258 = vpop.f32.mrb[0].mxu0
      %v5259 = vpop.f32.mrb[0].mxu0
      %v5260 = vadd.f32 %v5163, %v5259
      %v5261 = vpop.f32.mrb[0].mxu0
      %5262 = vmatprep.mubr.bf16.mxu0 %v4488
      %5263 = vmatmul.mubr.bf16.gmra.mrb[0].mxu0 %v4487
      %v5264 = vpop.f32.mrb[0].mxu0
      %v5265 = vadd.f32 %v5168, %v5264
      %v5266 = vpop.f32.mrb[0].mxu0
      %v5267 = vpop.f32.mrb[0].mxu0
      %v5268 = vadd.f32 %v5171, %v5267
      %v5269 = vpop.f32.mrb[0].mxu0
      %5270 = vmatprep.mubr.bf16.mxu0 %v4497
      %5271 = vmatmul.mubr.bf16.gmra.mrb[0].mxu0 %v4496
      %v5272 = vpop.f32.mrb[0].mxu0
      %v5273 = vadd.f32 %v5176, %v5272
      %v5274 = vpop.f32.mrb[0].mxu0
      %v5275 = vpop.f32.mrb[0].mxu0
      %v5276 = vadd.f32 %v5179, %v5275
      %v5277 = vpop.f32.mrb[0].mxu0
      %5278 = vdwg.mxu0
      %5279 = vmatprep.subr.bf16.mxu0 0
      %5280 = vmatpush1.bf16.msra.mxu0 %v4973
      %5281 = vmatprep.subr.bf16.mxu0 0
      %5282 = vmatpush1.bf16.msra.mxu0 %v4974
      %5283 = vmatprep.subr.bf16.mxu0 0
      %5284 = vmatpush1.bf16.msra.mxu0 %v4975
      %5285 = vmatprep.subr.bf16.mxu0 0
      %5286 = vmatpush1.bf16.msra.mxu0 %v4976
      %5287 = vmatprep.subr.bf16.mxu0 0
      %5288 = vmatpush1.bf16.msra.mxu0 %v4977
      %5289 = vmatprep.subr.bf16.mxu0 0
      %5290 = vmatpush1.bf16.msra.mxu0 %v4978
      %5291 = vmatprep.subr.bf16.mxu0 0
      %5292 = vmatpush1.bf16.msra.mxu0 %v4979
      %5293 = vmatprep.subr.bf16.mxu0 0
      %5294 = vmatpush1.bf16.msra.mxu0 %v4980
      %5295 = vmatprep.subr.bf16.mxu0 0
      %5296 = vmatpush1.bf16.msra.mxu0 %v4981
      %5297 = vmatprep.subr.bf16.mxu0 0
      %5298 = vmatpush1.bf16.msra.mxu0 %v4982
      %5299 = vmatprep.subr.bf16.mxu0 0
      %5300 = vmatpush1.bf16.msra.mxu0 %v4983
      %5301 = vmatprep.subr.bf16.mxu0 0
      %5302 = vmatpush1.bf16.msra.mxu0 %v4984
      %5303 = vmatprep.subr.bf16.mxu0 0
      %5304 = vmatpush1.bf16.msra.mxu0 %v4985
      %5305 = vmatprep.subr.bf16.mxu0 0
      %5306 = vmatpush1.bf16.msra.mxu0 %v4986
      %5307 = vmatprep.subr.bf16.mxu0 0
      %5308 = vmatpush1.bf16.msra.mxu0 %v4987
      %5309 = vmatprep.subr.bf16.mxu0 0
      %5310 = vmatpush1.bf16.msra.mxu0 %v4988
      %5311 = vmatprep.mubr.bf16.mxu0 %v4436
      %5312 = vmatmul.mubr.bf16.gmra.mrb[0].mxu0 %v4435
      %v5313 = vpop.f32.mrb[0].mxu0
      %v5314 = vadd.f32 %v5217, %v5313
      %v5315 = vpop.f32.mrb[0].mxu0
      %v5316 = vpop.f32.mrb[0].mxu0
      %v5317 = vadd.f32 %v5220, %v5316
      %v5318 = vpop.f32.mrb[0].mxu0
      %5319 = vmatprep.mubr.bf16.mxu0 %v4445
      %5320 = vmatmul.mubr.bf16.gmra.mrb[0].mxu0 %v4444
      %v5321 = vpop.f32.mrb[0].mxu0
      %v5322 = vadd.f32 %v5225, %v5321
      %v5323 = vpop.f32.mrb[0].mxu0
      %v5324 = vpop.f32.mrb[0].mxu0
      %v5325 = vadd.f32 %v5228, %v5324
      %v5326 = vpop.f32.mrb[0].mxu0
      %5327 = vmatprep.mubr.bf16.mxu0 %v4454
      %5328 = vmatmul.mubr.bf16.gmra.mrb[0].mxu0 %v4453
      %v5329 = vpop.f32.mrb[0].mxu0
      %v5330 = vadd.f32 %v5233, %v5329
      %v5331 = vpop.f32.mrb[0].mxu0
      %v5332 = vpop.f32.mrb[0].mxu0
      %v5333 = vadd.f32 %v5236, %v5332
      %v5334 = vpop.f32.mrb[0].mxu0
      %5335 = vmatprep.mubr.bf16.mxu0 %v4463
      %5336 = vmatmul.mubr.bf16.gmra.mrb[0].mxu0 %v4462
      %v5337 = vpop.f32.mrb[0].mxu0
      %v5338 = vadd.f32 %v5241, %v5337
      %v5339 = vpop.f32.mrb[0].mxu0
      %v5340 = vpop.f32.mrb[0].mxu0
      %v5341 = vadd.f32 %v5244, %v5340
      %v5342 = vpop.f32.mrb[0].mxu0
      %5343 = vmatprep.mubr.bf16.mxu0 %v4472
      %5344 = vmatmul.mubr.bf16.gmra.mrb[0].mxu0 %v4471
      %v5345 = vpop.f32.mrb[0].mxu0
      %v5346 = vadd.f32 %v5249, %v5345
      %v5347 = vpop.f32.mrb[0].mxu0
      %v5348 = vpop.f32.mrb[0].mxu0
      %v5349 = vadd.f32 %v5252, %v5348
      %v5350 = vpop.f32.mrb[0].mxu0
      %5351 = vmatprep.mubr.bf16.mxu0 %v4481
      %5352 = vmatmul.mubr.bf16.gmra.mrb[0].mxu0 %v4480
      %v5353 = vpop.f32.mrb[0].mxu0
      %v5354 = vadd.f32 %v5257, %v5353
      %v5355 = vpop.f32.mrb[0].mxu0
      %v5356 = vpop.f32.mrb[0].mxu0
      %v5357 = vadd.f32 %v5260, %v5356
      %v5358 = vpop.f32.mrb[0].mxu0
      %5359 = vmatprep.mubr.bf16.mxu0 %v4490
      %5360 = vmatmul.mubr.bf16.gmra.mrb[0].mxu0 %v4489
      %v5361 = vpop.f32.mrb[0].mxu0
      %v5362 = vadd.f32 %v5265, %v5361
      %v5363 = vpop.f32.mrb[0].mxu0
      %v5364 = vpop.f32.mrb[0].mxu0
      %v5365 = vadd.f32 %v5268, %v5364
      %v5366 = vpop.f32.mrb[0].mxu0
      %5367 = vmatprep.mubr.bf16.mxu0 %v4499
      %5368 = vmatmul.mubr.bf16.gmra.mrb[0].mxu0 %v4498
      %v5369 = vpop.f32.mrb[0].mxu0
      %v5370 = vadd.f32 %v5273, %v5369
      %v5371 = vpop.f32.mrb[0].mxu0
      %v5372 = vpop.f32.mrb[0].mxu0
      %v5373 = vadd.f32 %v5276, %v5372
      %v5374 = vpop.f32.mrb[0].mxu0
      %5375 = vdwg.mxu0
      %5376 = vmatprep.subr.bf16.mxu0 0
      %5377 = vmatpush1.bf16.msra.mxu0 %v4989
      %5378 = vmatprep.subr.bf16.mxu0 0
      %5379 = vmatpush1.bf16.msra.mxu0 %v4990
      %5380 = vmatprep.subr.bf16.mxu0 0
      %5381 = vmatpush1.bf16.msra.mxu0 %v4991
      %5382 = vmatprep.subr.bf16.mxu0 0
      %5383 = vmatpush1.bf16.msra.mxu0 %v4992
      %5384 = vmatprep.subr.bf16.mxu0 0
      %5385 = vmatpush1.bf16.msra.mxu0 %v4993
      %5386 = vmatprep.subr.bf16.mxu0 0
      %5387 = vmatpush1.bf16.msra.mxu0 %v4994
      %5388 = vmatprep.subr.bf16.mxu0 0
      %5389 = vmatpush1.bf16.msra.mxu0 %v4995
      %5390 = vmatprep.subr.bf16.mxu0 0
      %5391 = vmatpush1.bf16.msra.mxu0 %v4996
      %5392 = vmatprep.subr.bf16.mxu0 0
      %5393 = vmatpush1.bf16.msra.mxu0 %v4997
      %5394 = vmatprep.subr.bf16.mxu0 0
      %5395 = vmatpush1.bf16.msra.mxu0 %v4998
      %5396 = vmatprep.subr.bf16.mxu0 0
      %5397 = vmatpush1.bf16.msra.mxu0 %v4999
      %5398 = vmatprep.subr.bf16.mxu0 0
      %5399 = vmatpush1.bf16.msra.mxu0 %v5000
      %5400 = vmatprep.subr.bf16.mxu0 0
      %5401 = vmatpush1.bf16.msra.mxu0 %v5001
      %5402 = vmatprep.subr.bf16.mxu0 0
      %5403 = vmatpush1.bf16.msra.mxu0 %v5002
      %5404 = vmatprep.subr.bf16.mxu0 0
      %5405 = vmatpush1.bf16.msra.mxu0 %v5003
      %5406 = vmatprep.subr.bf16.mxu0 0
      %5407 = vmatpush1.bf16.msra.mxu0 %v5004
      %5408 = vmatprep.mubr.bf16.mxu0 %v4438
      %5409 = vmatmul.mubr.bf16.gmra.mrb[0].mxu0 %v4437
      %v5410 = vpop.f32.mrb[0].mxu0
      %v5411 = vadd.f32 %v5314, %v5410
      %v5412 = vpop.f32.mrb[0].mxu0
      %v5413 = vpop.f32.mrb[0].mxu0
      %v5414 = vadd.f32 %v5317, %v5413
      %v5415 = vpop.f32.mrb[0].mxu0
      %5416 = vmatprep.mubr.bf16.mxu0 %v4447
      %5417 = vmatmul.mubr.bf16.gmra.mrb[0].mxu0 %v4446
      %v5418 = vpop.f32.mrb[0].mxu0
      %v5419 = vadd.f32 %v5322, %v5418
      %v5420 = vpop.f32.mrb[0].mxu0
      %v5421 = vpop.f32.mrb[0].mxu0
      %v5422 = vadd.f32 %v5325, %v5421
      %v5423 = vpop.f32.mrb[0].mxu0
      %5424 = vmatprep.mubr.bf16.mxu0 %v4456
      %5425 = vmatmul.mubr.bf16.gmra.mrb[0].mxu0 %v4455
      %v5426 = vpop.f32.mrb[0].mxu0
      %v5427 = vadd.f32 %v5330, %v5426
      %v5428 = vpop.f32.mrb[0].mxu0
      %v5429 = vpop.f32.mrb[0].mxu0
      %v5430 = vadd.f32 %v5333, %v5429
      %v5431 = vpop.f32.mrb[0].mxu0
      %5432 = vmatprep.mubr.bf16.mxu0 %v4465
      %5433 = vmatmul.mubr.bf16.gmra.mrb[0].mxu0 %v4464
      %v5434 = vpop.f32.mrb[0].mxu0
      %v5435 = vadd.f32 %v5338, %v5434
      %v5436 = vpop.f32.mrb[0].mxu0
      %v5437 = vpop.f32.mrb[0].mxu0
      %v5438 = vadd.f32 %v5341, %v5437
      %v5439 = vpop.f32.mrb[0].mxu0
      %5440 = vmatprep.mubr.bf16.mxu0 %v4474
      %5441 = vmatmul.mubr.bf16.gmra.mrb[0].mxu0 %v4473
      %v5442 = vpop.f32.mrb[0].mxu0
      %v5443 = vadd.f32 %v5346, %v5442
      %v5444 = vpop.f32.mrb[0].mxu0
      %v5445 = vpop.f32.mrb[0].mxu0
      %v5446 = vadd.f32 %v5349, %v5445
      %v5447 = vpop.f32.mrb[0].mxu0
      %5448 = vmatprep.mubr.bf16.mxu0 %v4483
      %5449 = vmatmul.mubr.bf16.gmra.mrb[0].mxu0 %v4482
      %v5450 = vpop.f32.mrb[0].mxu0
      %v5451 = vadd.f32 %v5354, %v5450
      %v5452 = vpop.f32.mrb[0].mxu0
      %v5453 = vpop.f32.mrb[0].mxu0
      %v5454 = vadd.f32 %v5357, %v5453
      %v5455 = vpop.f32.mrb[0].mxu0
      %5456 = vmatprep.mubr.bf16.mxu0 %v4492
      %5457 = vmatmul.mubr.bf16.gmra.mrb[0].mxu0 %v4491
      %v5458 = vpop.f32.mrb[0].mxu0
      %v5459 = vadd.f32 %v5362, %v5458
      %v5460 = vpop.f32.mrb[0].mxu0
      %v5461 = vpop.f32.mrb[0].mxu0
      %v5462 = vadd.f32 %v5365, %v5461
      %v5463 = vpop.f32.mrb[0].mxu0
      %5464 = vmatprep.mubr.bf16.mxu0 %v4501
      %5465 = vmatmul.mubr.bf16.gmra.mrb[0].mxu0 %v4500
      %v5466 = vpop.f32.mrb[0].mxu0
      %v5467 = vadd.f32 %v5370, %v5466
      %v5468 = vpop.f32.mrb[0].mxu0
      %v5469 = vpop.f32.mrb[0].mxu0
      %v5470 = vadd.f32 %v5373, %v5469
      %v5471 = vpop.f32.mrb[0].mxu0
      %5472 = vdwg.mxu0
      %5473 = vmatprep.subr.bf16.mxu0 0
      %5474 = vmatpush1.bf16.msra.mxu0 %v5005
      %5475 = vmatprep.subr.bf16.mxu0 0
      %5476 = vmatpush1.bf16.msra.mxu0 %v5006
      %5477 = vmatprep.subr.bf16.mxu0 0
      %5478 = vmatpush1.bf16.msra.mxu0 %v5007
      %5479 = vmatprep.subr.bf16.mxu0 0
      %5480 = vmatpush1.bf16.msra.mxu0 %v5008
      %5481 = vmatprep.subr.bf16.mxu0 0
      %5482 = vmatpush1.bf16.msra.mxu0 %v5009
      %5483 = vmatprep.subr.bf16.mxu0 0
      %5484 = vmatpush1.bf16.msra.mxu0 %v5010
      %5485 = vmatprep.subr.bf16.mxu0 0
      %5486 = vmatpush1.bf16.msra.mxu0 %v5011
      %5487 = vmatprep.subr.bf16.mxu0 0
      %5488 = vmatpush1.bf16.msra.mxu0 %v5012
      %5489 = vmatprep.subr.bf16.mxu0 0
      %5490 = vmatpush1.bf16.msra.mxu0 0
      %5491 = vmatprep.subr.bf16.mxu0 0
      %5492 = vmatpush1.bf16.msra.mxu0 0
      %5493 = vmatprep.subr.bf16.mxu0 0
      %5494 = vmatpush1.bf16.msra.mxu0 0
      %5495 = vmatprep.subr.bf16.mxu0 0
      %5496 = vmatpush1.bf16.msra.mxu0 0
      %5497 = vmatprep.subr.bf16.mxu0 0
      %5498 = vmatpush1.bf16.msra.mxu0 0
      %5499 = vmatprep.subr.bf16.mxu0 0
      %5500 = vmatpush1.bf16.msra.mxu0 0
      %5501 = vmatprep.subr.bf16.mxu0 0
      %5502 = vmatpush1.bf16.msra.mxu0 0
      %5503 = vmatprep.subr.bf16.mxu0 0
      %5504 = vmatpush1.bf16.msra.mxu0 0
      %5505 = vmatprep.mubr.bf16.mxu0 0
      %5506 = vmatmul.mubr.bf16.gmra.mrb[0].mxu0 %v4439
      %v5507 = vpop.f32.mrb[0].mxu0
      %v5508 = vadd.f32 %v5411, %v5507
      %v5509 = vpop.f32.mrb[0].mxu0
      %v5510 = vpop.f32.mrb[0].mxu0
      %v5511 = vadd.f32 %v5414, %v5510
      %v5512 = vpop.f32.mrb[0].mxu0
      %5513 = vmatprep.mubr.bf16.mxu0 0
      %5514 = vmatmul.mubr.bf16.gmra.mrb[0].mxu0 %v4448
      %v5515 = vpop.f32.mrb[0].mxu0
      %v5516 = vadd.f32 %v5419, %v5515
      %v5517 = vpop.f32.mrb[0].mxu0
      %v5518 = vpop.f32.mrb[0].mxu0
      %v5519 = vadd.f32 %v5422, %v5518
      %v5520 = vpop.f32.mrb[0].mxu0
      %5521 = vmatprep.mubr.bf16.mxu0 0
      %5522 = vmatmul.mubr.bf16.gmra.mrb[0].mxu0 %v4457
      %v5523 = vpop.f32.mrb[0].mxu0
      %v5524 = vadd.f32 %v5427, %v5523
      %v5525 = vpop.f32.mrb[0].mxu0
      %v5526 = vpop.f32.mrb[0].mxu0
      %v5527 = vadd.f32 %v5430, %v5526
      %v5528 = vpop.f32.mrb[0].mxu0
      %5529 = vmatprep.mubr.bf16.mxu0 0
      %5530 = vmatmul.mubr.bf16.gmra.mrb[0].mxu0 %v4466
      %v5531 = vpop.f32.mrb[0].mxu0
      %v5532 = vadd.f32 %v5435, %v5531
      %v5533 = vpop.f32.mrb[0].mxu0
      %v5534 = vpop.f32.mrb[0].mxu0
      %v5535 = vadd.f32 %v5438, %v5534
      %v5536 = vpop.f32.mrb[0].mxu0
      %5537 = vmatprep.mubr.bf16.mxu0 0
      %5538 = vmatmul.mubr.bf16.gmra.mrb[0].mxu0 %v4475
      %v5539 = vpop.f32.mrb[0].mxu0
      %v5540 = vadd.f32 %v5443, %v5539
      %v5541 = vpop.f32.mrb[0].mxu0
      %v5542 = vpop.f32.mrb[0].mxu0
      %v5543 = vadd.f32 %v5446, %v5542
      %v5544 = vpop.f32.mrb[0].mxu0
      %5545 = vmatprep.mubr.bf16.mxu0 0
      %5546 = vmatmul.mubr.bf16.gmra.mrb[0].mxu0 %v4484
      %v5547 = vpop.f32.mrb[0].mxu0
      %v5548 = vadd.f32 %v5451, %v5547
      %v5549 = vpop.f32.mrb[0].mxu0
      %v5550 = vpop.f32.mrb[0].mxu0
      %v5551 = vadd.f32 %v5454, %v5550
      %v5552 = vpop.f32.mrb[0].mxu0
      %5553 = vmatprep.mubr.bf16.mxu0 0
      %5554 = vmatmul.mubr.bf16.gmra.mrb[0].mxu0 %v4493
      %v5555 = vpop.f32.mrb[0].mxu0
      %v5556 = vadd.f32 %v5459, %v5555
      %v5557 = vpop.f32.mrb[0].mxu0
      %v5558 = vpop.f32.mrb[0].mxu0
      %v5559 = vadd.f32 %v5462, %v5558
      %v5560 = vpop.f32.mrb[0].mxu0
      %5561 = vmatprep.mubr.bf16.mxu0 0
      %5562 = vmatmul.mubr.bf16.gmra.mrb[0].mxu0 %v4502
      %v5563 = vpop.f32.mrb[0].mxu0
      %v5564 = vadd.f32 %v5467, %v5563
      %v5565 = vpop.f32.mrb[0].mxu0
      %v5566 = vpop.f32.mrb[0].mxu0
      %v5567 = vadd.f32 %v5470, %v5566
      %v5568 = vpop.f32.mrb[0].mxu0
      %5569 = vdwg.mxu0
      %v5570 = vxor.u32 %v5508, 2147483648
      %v5571 = vxor.u32 %v5511, 2147483648
      %v5572 = vxor.u32 %v5516, 2147483648
      %v5573 = vxor.u32 %v5519, 2147483648
      %v5574 = vxor.u32 %v5524, 2147483648
      %v5575 = vxor.u32 %v5527, 2147483648
      %v5576 = vxor.u32 %v5532, 2147483648
      %v5577 = vxor.u32 %v5535, 2147483648
      %v5578 = vxor.u32 %v5540, 2147483648
      %v5579 = vxor.u32 %v5543, 2147483648
      %v5580 = vxor.u32 %v5548, 2147483648
      %v5581 = vxor.u32 %v5551, 2147483648
      %v5582 = vxor.u32 %v5556, 2147483648
      %v5583 = vxor.u32 %v5559, 2147483648
      %v5584 = vxor.u32 %v5564, 2147483648
      %v5585 = vxor.u32 %v5567, 2147483648
      %v5586 = vmul.f32 %v5570, 1.442695
      %v5587 = vpow.pop %v5586
      %v5588 = vmul.f32 %v5571, 1.442695
      %v5589 = vpow.pop %v5588
      %v5590 = vmul.f32 %v5572, 1.442695
      %v5591 = vpow.pop %v5590
      %v5592 = vmul.f32 %v5573, 1.442695
      %v5593 = vpow.pop %v5592
      %v5594 = vmul.f32 %v5574, 1.442695
      %v5595 = vpow.pop %v5594
      %v5596 = vmul.f32 %v5575, 1.442695
      %v5597 = vpow.pop %v5596
      %v5598 = vmul.f32 %v5576, 1.442695
      %v5599 = vpow.pop %v5598
      %v5600 = vmul.f32 %v5577, 1.442695
      %v5601 = vpow.pop %v5600
      %v5602 = vmul.f32 %v5578, 1.442695
      %v5603 = vpow.pop %v5602
      %v5604 = vmul.f32 %v5579, 1.442695
      %v5605 = vpow.pop %v5604
      %v5606 = vmul.f32 %v5580, 1.442695
      %v5607 = vpow.pop %v5606
      %v5608 = vmul.f32 %v5581, 1.442695
      %v5609 = vpow.pop %v5608
      %v5610 = vmul.f32 %v5582, 1.442695
      %v5611 = vpow.pop %v5610
      %v5612 = vmul.f32 %v5583, 1.442695
      %v5613 = vpow.pop %v5612
      %v5614 = vmul.f32 %v5584, 1.442695
      %v5615 = vpow.pop %v5614
      %v5616 = vmul.f32 %v5585, 1.442695
      %v5617 = vpow.pop %v5616
      %v5618 = vadd.f32 %v5587, 1.0
      %v5619 = vadd.f32 %v5589, 1.0
      %v5620 = vadd.f32 %v5591, 1.0
      %v5621 = vadd.f32 %v5593, 1.0
      %v5622 = vadd.f32 %v5595, 1.0
      %v5623 = vadd.f32 %v5597, 1.0
      %v5624 = vadd.f32 %v5599, 1.0
      %v5625 = vadd.f32 %v5601, 1.0
      %v5626 = vadd.f32 %v5603, 1.0
      %v5627 = vadd.f32 %v5605, 1.0
      %v5628 = vadd.f32 %v5607, 1.0
      %v5629 = vadd.f32 %v5609, 1.0
      %v5630 = vadd.f32 %v5611, 1.0
      %v5631 = vadd.f32 %v5613, 1.0
      %v5632 = vadd.f32 %v5615, 1.0
      %v5633 = vadd.f32 %v5617, 1.0
      %v5634 = vrcp.pop %v5618
      %v5635 = vmul.f32 1.0, %v5634
      %v5636 = vrcp.pop %v5619
      %v5637 = vmul.f32 1.0, %v5636
      %v5638 = vrcp.pop %v5620
      %v5639 = vmul.f32 1.0, %v5638
      %v5640 = vrcp.pop %v5621
      %v5641 = vmul.f32 1.0, %v5640
      %v5642 = vrcp.pop %v5622
      %v5643 = vmul.f32 1.0, %v5642
      %v5644 = vrcp.pop %v5623
      %v5645 = vmul.f32 1.0, %v5644
      %v5646 = vrcp.pop %v5624
      %v5647 = vmul.f32 1.0, %v5646
      %v5648 = vrcp.pop %v5625
      %v5649 = vmul.f32 1.0, %v5648
      %v5650 = vrcp.pop %v5626
      %v5651 = vmul.f32 1.0, %v5650
      %v5652 = vrcp.pop %v5627
      %v5653 = vmul.f32 1.0, %v5652
      %v5654 = vrcp.pop %v5628
      %v5655 = vmul.f32 1.0, %v5654
      %v5656 = vrcp.pop %v5629
      %v5657 = vmul.f32 1.0, %v5656
      %v5658 = vrcp.pop %v5630
      %v5659 = vmul.f32 1.0, %v5658
      %v5660 = vrcp.pop %v5631
      %v5661 = vmul.f32 1.0, %v5660
      %v5662 = vrcp.pop %v5632
      %v5663 = vmul.f32 1.0, %v5662
      %v5664 = vrcp.pop %v5633
      %v5665 = vmul.f32 1.0, %v5664
      %v5666 = vmul.f32 %v5635, 2.0
      %v5667 = vmul.f32 %v5637, 2.0
      %v5668 = vmul.f32 %v5639, 2.0
      %v5669 = vmul.f32 %v5641, 2.0
      %v5670 = vmul.f32 %v5643, 2.0
      %v5671 = vmul.f32 %v5645, 2.0
      %v5672 = vmul.f32 %v5647, 2.0
      %v5673 = vmul.f32 %v5649, 2.0
      %v5674 = vmul.f32 %v5651, 2.0
      %v5675 = vmul.f32 %v5653, 2.0
      %v5676 = vmul.f32 %v5655, 2.0
      %v5677 = vmul.f32 %v5657, 2.0
      %v5678 = vmul.f32 %v5659, 2.0
      %v5679 = vmul.f32 %v5661, 2.0
      %v5680 = vmul.f32 %v5663, 2.0
      %v5681 = vmul.f32 %v5665, 2.0
      %v5682 = vsub.f32 %v5666, 1.0
      %v5683 = vsub.f32 %v5667, 1.0
      %v5684 = vsub.f32 %v5668, 1.0
      %v5685 = vsub.f32 %v5669, 1.0
      %v5686 = vsub.f32 %v5670, 1.0
      %v5687 = vsub.f32 %v5671, 1.0
      %v5688 = vsub.f32 %v5672, 1.0
      %v5689 = vsub.f32 %v5673, 1.0
      %v5690 = vsub.f32 %v5674, 1.0
      %v5691 = vsub.f32 %v5675, 1.0
      %v5692 = vsub.f32 %v5676, 1.0
      %v5693 = vsub.f32 %v5677, 1.0
      %v5694 = vsub.f32 %v5678, 1.0
      %v5695 = vsub.f32 %v5679, 1.0
      %v5696 = vsub.f32 %v5680, 1.0
      %v5697 = vsub.f32 %v5681, 1.0
      %v5698 = vld [vmem:[%s294] sm:$0xff]
      %v5699 = vld [vmem:[%s294 + $0x8] sm:$0xff]
      %v5700 = vld [vmem:[%s294 + $0x10] sm:$0xff]
      %v5701 = vld [vmem:[%s294 + $0x18] sm:$0xff]
      %v5702 = vld [vmem:[%s294 + $0x20] sm:$0xff]
      %v5703 = vld [vmem:[%s294 + $0x28] sm:$0xff]
      %v5704 = vld [vmem:[%s294 + $0x30] sm:$0xff]
      %v5705 = vld [vmem:[%s294 + $0x38] sm:$0xff]
      %v5706 = vld [vmem:[%s294 + $0x40] sm:$0xff]
      %v5707 = vld [vmem:[%s294 + $0x48] sm:$0xff]
      %v5708 = vld [vmem:[%s294 + $0x50] sm:$0xff]
      %v5709 = vld [vmem:[%s294 + $0x58] sm:$0xff]
      %v5710 = vld [vmem:[%s294 + $0x60] sm:$0xff]
      %v5711 = vld [vmem:[%s294 + $0x68] sm:$0xff]
      %v5712 = vld [vmem:[%s294 + $0x70] sm:$0xff]
      %v5713 = vld [vmem:[%s294 + $0x78] sm:$0xff]
      %5730 = vrot.lane.b32.xlu0 %v5698, 32
      %v5731 = vpop.permute.xlu0 %5730
      %5732 = vrot.lane.b32.xlu0 %v5699, 32
      %v5733 = vpop.permute.xlu0 %5732
      %5734 = vrot.lane.b32.xlu0 %v5700, 32
      %v5735 = vpop.permute.xlu0 %5734
      %5736 = vrot.lane.b32.xlu0 %v5701, 32
      %v5737 = vpop.permute.xlu0 %5736
      %5738 = vrot.lane.b32.xlu0 %v5702, 32
      %v5739 = vpop.permute.xlu0 %5738
      %5740 = vrot.lane.b32.xlu0 %v5703, 32
      %v5741 = vpop.permute.xlu0 %5740
      %5742 = vrot.lane.b32.xlu0 %v5704, 32
      %v5743 = vpop.permute.xlu0 %5742
      %5744 = vrot.lane.b32.xlu0 %v5705, 32
      %v5745 = vpop.permute.xlu0 %5744
      %5746 = vrot.lane.b32.xlu0 %v5706, 32
      %v5747 = vpop.permute.xlu0 %5746
      %5748 = vrot.lane.b32.xlu0 %v5707, 32
      %v5749 = vpop.permute.xlu0 %5748
      %5750 = vrot.lane.b32.xlu0 %v5708, 32
      %v5751 = vpop.permute.xlu0 %5750
      %5752 = vrot.lane.b32.xlu0 %v5709, 32
      %v5753 = vpop.permute.xlu0 %5752
      %5754 = vrot.lane.b32.xlu0 %v5710, 32
      %v5755 = vpop.permute.xlu0 %5754
      %5756 = vrot.lane.b32.xlu0 %v5711, 32
      %v5757 = vpop.permute.xlu0 %5756
      %5758 = vrot.lane.b32.xlu0 %v5712, 32
      %v5759 = vpop.permute.xlu0 %5758
      %5760 = vrot.lane.b32.xlu0 %v5713, 32
      %v5761 = vpop.permute.xlu0 %5760
      %v5778 = vmul.f32 %v5635, %v5731
      %v5779 = vmul.f32 %v5637, %v5733
      %v5780 = vmul.f32 %v5639, %v5735
      %v5781 = vmul.f32 %v5641, %v5737
      %v5782 = vmul.f32 %v5643, %v5739
      %v5783 = vmul.f32 %v5645, %v5741
      %v5784 = vmul.f32 %v5647, %v5743
      %v5785 = vmul.f32 %v5649, %v5745
      %v5786 = vmul.f32 %v5651, %v5747
      %v5787 = vmul.f32 %v5653, %v5749
      %v5788 = vmul.f32 %v5655, %v5751
      %v5789 = vmul.f32 %v5657, %v5753
      %v5790 = vmul.f32 %v5659, %v5755
      %v5791 = vmul.f32 %v5661, %v5757
      %v5792 = vmul.f32 %v5663, %v5759
      %v5793 = vmul.f32 %v5665, %v5761
      %5810 = vrot.lane.b32.xlu0 %v5682, 32
      %v5811 = vpop.permute.xlu0 %5810
      %5812 = vrot.lane.b32.xlu0 %v5683, 32
      %v5813 = vpop.permute.xlu0 %5812
      %5814 = vrot.lane.b32.xlu0 %v5684, 32
      %v5815 = vpop.permute.xlu0 %5814
      %5816 = vrot.lane.b32.xlu0 %v5685, 32
      %v5817 = vpop.permute.xlu0 %5816
      %5818 = vrot.lane.b32.xlu0 %v5686, 32
      %v5819 = vpop.permute.xlu0 %5818
      %5820 = vrot.lane.b32.xlu0 %v5687, 32
      %v5821 = vpop.permute.xlu0 %5820
      %5822 = vrot.lane.b32.xlu0 %v5688, 32
      %v5823 = vpop.permute.xlu0 %5822
      %5824 = vrot.lane.b32.xlu0 %v5689, 32
      %v5825 = vpop.permute.xlu0 %5824
      %5826 = vrot.lane.b32.xlu0 %v5690, 32
      %v5827 = vpop.permute.xlu0 %5826
      %5828 = vrot.lane.b32.xlu0 %v5691, 32
      %v5829 = vpop.permute.xlu0 %5828
      %5830 = vrot.lane.b32.xlu0 %v5692, 32
      %v5831 = vpop.permute.xlu0 %5830
      %5832 = vrot.lane.b32.xlu0 %v5693, 32
      %v5833 = vpop.permute.xlu0 %5832
      %5834 = vrot.lane.b32.xlu0 %v5694, 32
      %v5835 = vpop.permute.xlu0 %5834
      %5836 = vrot.lane.b32.xlu0 %v5695, 32
      %v5837 = vpop.permute.xlu0 %5836
      %5838 = vrot.lane.b32.xlu0 %v5696, 32
      %v5839 = vpop.permute.xlu0 %5838
      %5840 = vrot.lane.b32.xlu0 %v5697, 32
      %v5841 = vpop.permute.xlu0 %5840
      %v5858 = vmul.f32 %v5635, %v5811
      %v5859 = vmul.f32 %v5637, %v5813
      %v5860 = vmul.f32 %v5639, %v5815
      %v5861 = vmul.f32 %v5641, %v5817
      %v5862 = vmul.f32 %v5643, %v5819
      %v5863 = vmul.f32 %v5645, %v5821
      %v5864 = vmul.f32 %v5647, %v5823
      %v5865 = vmul.f32 %v5649, %v5825
      %v5866 = vmul.f32 %v5651, %v5827
      %v5867 = vmul.f32 %v5653, %v5829
      %v5868 = vmul.f32 %v5655, %v5831
      %v5869 = vmul.f32 %v5657, %v5833
      %v5870 = vmul.f32 %v5659, %v5835
      %v5871 = vmul.f32 %v5661, %v5837
      %v5872 = vmul.f32 %v5663, %v5839
      %v5873 = vmul.f32 %v5665, %v5841
      %5890 = vrot.lane.b32.xlu0 %v5858, 32
      %v5891 = vpop.permute.xlu0 %5890
      %5892 = vrot.lane.b32.xlu0 %v5859, 32
      %v5893 = vpop.permute.xlu0 %5892
      %5894 = vrot.lane.b32.xlu0 %v5860, 32
      %v5895 = vpop.permute.xlu0 %5894
      %5896 = vrot.lane.b32.xlu0 %v5861, 32
      %v5897 = vpop.permute.xlu0 %5896
      %5898 = vrot.lane.b32.xlu0 %v5862, 32
      %v5899 = vpop.permute.xlu0 %5898
      %5900 = vrot.lane.b32.xlu0 %v5863, 32
      %v5901 = vpop.permute.xlu0 %5900
      %5902 = vrot.lane.b32.xlu0 %v5864, 32
      %v5903 = vpop.permute.xlu0 %5902
      %5904 = vrot.lane.b32.xlu0 %v5865, 32
      %v5905 = vpop.permute.xlu0 %5904
      %5906 = vrot.lane.b32.xlu0 %v5866, 32
      %v5907 = vpop.permute.xlu0 %5906
      %5908 = vrot.lane.b32.xlu0 %v5867, 32
      %v5909 = vpop.permute.xlu0 %5908
      %5910 = vrot.lane.b32.xlu0 %v5868, 32
      %v5911 = vpop.permute.xlu0 %5910
      %5912 = vrot.lane.b32.xlu0 %v5869, 32
      %v5913 = vpop.permute.xlu0 %5912
      %5914 = vrot.lane.b32.xlu0 %v5870, 32
      %v5915 = vpop.permute.xlu0 %5914
      %5916 = vrot.lane.b32.xlu0 %v5871, 32
      %v5917 = vpop.permute.xlu0 %5916
      %5918 = vrot.lane.b32.xlu0 %v5872, 32
      %v5919 = vpop.permute.xlu0 %5918
      %5920 = vrot.lane.b32.xlu0 %v5873, 32
      %v5921 = vpop.permute.xlu0 %5920
      %v5938 = vadd.f32 %v5778, %v5891
      %v5939 = vadd.f32 %v5779, %v5893
      %v5940 = vadd.f32 %v5780, %v5895
      %v5941 = vadd.f32 %v5781, %v5897
      %v5942 = vadd.f32 %v5782, %v5899
      %v5943 = vadd.f32 %v5783, %v5901
      %v5944 = vadd.f32 %v5784, %v5903
      %v5945 = vadd.f32 %v5785, %v5905
      %v5946 = vadd.f32 %v5786, %v5907
      %v5947 = vadd.f32 %v5787, %v5909
      %v5948 = vadd.f32 %v5788, %v5911
      %v5949 = vadd.f32 %v5789, %v5913
      %v5950 = vadd.f32 %v5790, %v5915
      %v5951 = vadd.f32 %v5791, %v5917
      %v5952 = vadd.f32 %v5792, %v5919
      %v5953 = vadd.f32 %v5793, %v5921
      %v5954 = vtanh.pop %v5938
      %v5955 = vtanh.pop %v5939
      %v5956 = vtanh.pop %v5940
      %v5957 = vtanh.pop %v5941
      %v5958 = vtanh.pop %v5942
      %v5959 = vtanh.pop %v5943
      %v5960 = vtanh.pop %v5944
      %v5961 = vtanh.pop %v5945
      %v5962 = vtanh.pop %v5946
      %v5963 = vtanh.pop %v5947
      %v5964 = vtanh.pop %v5948
      %v5965 = vtanh.pop %v5949
      %v5966 = vtanh.pop %v5950
      %v5967 = vtanh.pop %v5951
      %v5968 = vtanh.pop %v5952
      %v5969 = vtanh.pop %v5953
      %5986 = vrot.lane.b32.xlu0 %v5954, 32
      %v5987 = vpop.permute.xlu0 %5986
      %5988 = vrot.lane.b32.xlu0 %v5955, 32
      %v5989 = vpop.permute.xlu0 %5988
      %5990 = vrot.lane.b32.xlu0 %v5956, 32
      %v5991 = vpop.permute.xlu0 %5990
      %5992 = vrot.lane.b32.xlu0 %v5957, 32
      %v5993 = vpop.permute.xlu0 %5992
      %5994 = vrot.lane.b32.xlu0 %v5958, 32
      %v5995 = vpop.permute.xlu0 %5994
      %5996 = vrot.lane.b32.xlu0 %v5959, 32
      %v5997 = vpop.permute.xlu0 %5996
      %5998 = vrot.lane.b32.xlu0 %v5960, 32
      %v5999 = vpop.permute.xlu0 %5998
      %6000 = vrot.lane.b32.xlu0 %v5961, 32
      %v6001 = vpop.permute.xlu0 %6000
      %6002 = vrot.lane.b32.xlu0 %v5962, 32
      %v6003 = vpop.permute.xlu0 %6002
      %6004 = vrot.lane.b32.xlu0 %v5963, 32
      %v6005 = vpop.permute.xlu0 %6004
      %6006 = vrot.lane.b32.xlu0 %v5964, 32
      %v6007 = vpop.permute.xlu0 %6006
      %6008 = vrot.lane.b32.xlu0 %v5965, 32
      %v6009 = vpop.permute.xlu0 %6008
      %6010 = vrot.lane.b32.xlu0 %v5966, 32
      %v6011 = vpop.permute.xlu0 %6010
      %6012 = vrot.lane.b32.xlu0 %v5967, 32
      %v6013 = vpop.permute.xlu0 %6012
      %6014 = vrot.lane.b32.xlu0 %v5968, 32
      %v6015 = vpop.permute.xlu0 %6014
      %6016 = vrot.lane.b32.xlu0 %v5969, 32
      %v6017 = vpop.permute.xlu0 %6016
      %v6034 = vmul.f32 %v5635, %v5987
      %v6035 = vmul.f32 %v5637, %v5989
      %v6036 = vmul.f32 %v5639, %v5991
      %v6037 = vmul.f32 %v5641, %v5993
      %v6038 = vmul.f32 %v5643, %v5995
      %v6039 = vmul.f32 %v5645, %v5997
      %v6040 = vmul.f32 %v5647, %v5999
      %v6041 = vmul.f32 %v5649, %v6001
      %v6042 = vmul.f32 %v5651, %v6003
      %v6043 = vmul.f32 %v5653, %v6005
      %v6044 = vmul.f32 %v5655, %v6007
      %v6045 = vmul.f32 %v5657, %v6009
      %v6046 = vmul.f32 %v5659, %v6011
      %v6047 = vmul.f32 %v5661, %v6013
      %v6048 = vmul.f32 %v5663, %v6015
      %v6049 = vmul.f32 %v5665, %v6017
      %6066 = vrot.lane.b32.xlu0 %v5938, 96
      %v6067 = vpop.permute.xlu0 %6066
      %6068 = vrot.lane.b32.xlu0 %v5939, 96
      %v6069 = vpop.permute.xlu0 %6068
      %6070 = vrot.lane.b32.xlu0 %v5940, 96
      %v6071 = vpop.permute.xlu0 %6070
      %6072 = vrot.lane.b32.xlu0 %v5941, 96
      %v6073 = vpop.permute.xlu0 %6072
      %6074 = vrot.lane.b32.xlu0 %v5942, 96
      %v6075 = vpop.permute.xlu0 %6074
      %6076 = vrot.lane.b32.xlu0 %v5943, 96
      %v6077 = vpop.permute.xlu0 %6076
      %6078 = vrot.lane.b32.xlu0 %v5944, 96
      %v6079 = vpop.permute.xlu0 %6078
      %6080 = vrot.lane.b32.xlu0 %v5945, 96
      %v6081 = vpop.permute.xlu0 %6080
      %6082 = vrot.lane.b32.xlu0 %v5946, 96
      %v6083 = vpop.permute.xlu0 %6082
      %6084 = vrot.lane.b32.xlu0 %v5947, 96
      %v6085 = vpop.permute.xlu0 %6084
      %6086 = vrot.lane.b32.xlu0 %v5948, 96
      %v6087 = vpop.permute.xlu0 %6086
      %6088 = vrot.lane.b32.xlu0 %v5949, 96
      %v6089 = vpop.permute.xlu0 %6088
      %6090 = vrot.lane.b32.xlu0 %v5950, 96
      %v6091 = vpop.permute.xlu0 %6090
      %6092 = vrot.lane.b32.xlu0 %v5951, 96
      %v6093 = vpop.permute.xlu0 %6092
      %6094 = vrot.lane.b32.xlu0 %v5952, 96
      %v6095 = vpop.permute.xlu0 %6094
      %6096 = vrot.lane.b32.xlu0 %v5953, 96
      %v6097 = vpop.permute.xlu0 %6096
      %vm6114 = vcmask 261120
      %6115 = vst.msk [vmem:[%s304] sm:$0xff] %vm6114, %v6067
      %6116 = vst.msk [vmem:[%s304 + $0x8] sm:$0xff] %vm6114, %v6069
      %6117 = vst.msk [vmem:[%s304 + $0x10] sm:$0xff] %vm6114, %v6071
      %6118 = vst.msk [vmem:[%s304 + $0x18] sm:$0xff] %vm6114, %v6073
      %6119 = vst.msk [vmem:[%s304 + $0x20] sm:$0xff] %vm6114, %v6075
      %6120 = vst.msk [vmem:[%s304 + $0x28] sm:$0xff] %vm6114, %v6077
      %6121 = vst.msk [vmem:[%s304 + $0x30] sm:$0xff] %vm6114, %v6079
      %6122 = vst.msk [vmem:[%s304 + $0x38] sm:$0xff] %vm6114, %v6081
      %6123 = vst.msk [vmem:[%s304 + $0x40] sm:$0xff] %vm6114, %v6083
      %6124 = vst.msk [vmem:[%s304 + $0x48] sm:$0xff] %vm6114, %v6085
      %6125 = vst.msk [vmem:[%s304 + $0x50] sm:$0xff] %vm6114, %v6087
      %6126 = vst.msk [vmem:[%s304 + $0x58] sm:$0xff] %vm6114, %v6089
      %6127 = vst.msk [vmem:[%s304 + $0x60] sm:$0xff] %vm6114, %v6091
      %6128 = vst.msk [vmem:[%s304 + $0x68] sm:$0xff] %vm6114, %v6093
      %6129 = vst.msk [vmem:[%s304 + $0x70] sm:$0xff] %vm6114, %v6095
      %6130 = vst.msk [vmem:[%s304 + $0x78] sm:$0xff] %vm6114, %v6097
      %6147 = vrot.lane.b32.xlu0 %v6034, 64
      %v6148 = vpop.permute.xlu0 %6147
      %6149 = vrot.lane.b32.xlu0 %v6035, 64
      %v6150 = vpop.permute.xlu0 %6149
      %6151 = vrot.lane.b32.xlu0 %v6036, 64
      %v6152 = vpop.permute.xlu0 %6151
      %6153 = vrot.lane.b32.xlu0 %v6037, 64
      %v6154 = vpop.permute.xlu0 %6153
      %6155 = vrot.lane.b32.xlu0 %v6038, 64
      %v6156 = vpop.permute.xlu0 %6155
      %6157 = vrot.lane.b32.xlu0 %v6039, 64
      %v6158 = vpop.permute.xlu0 %6157
      %6159 = vrot.lane.b32.xlu0 %v6040, 64
      %v6160 = vpop.permute.xlu0 %6159
      %6161 = vrot.lane.b32.xlu0 %v6041, 64
      %v6162 = vpop.permute.xlu0 %6161
      %6163 = vrot.lane.b32.xlu0 %v6042, 64
      %v6164 = vpop.permute.xlu0 %6163
      %6165 = vrot.lane.b32.xlu0 %v6043, 64
      %v6166 = vpop.permute.xlu0 %6165
      %6167 = vrot.lane.b32.xlu0 %v6044, 64
      %v6168 = vpop.permute.xlu0 %6167
      %6169 = vrot.lane.b32.xlu0 %v6045, 64
      %v6170 = vpop.permute.xlu0 %6169
      %6171 = vrot.lane.b32.xlu0 %v6046, 64
      %v6172 = vpop.permute.xlu0 %6171
      %6173 = vrot.lane.b32.xlu0 %v6047, 64
      %v6174 = vpop.permute.xlu0 %6173
      %6175 = vrot.lane.b32.xlu0 %v6048, 64
      %v6176 = vpop.permute.xlu0 %6175
      %6177 = vrot.lane.b32.xlu0 %v6049, 64
      %v6178 = vpop.permute.xlu0 %6177
      %6195 = vst.msk [vmem:[%s299] sm:$0xff] %vm6114, %v6148
      %6196 = vst.msk [vmem:[%s299 + $0x8] sm:$0xff] %vm6114, %v6150
      %6197 = vst.msk [vmem:[%s299 + $0x10] sm:$0xff] %vm6114, %v6152
      %6198 = vst.msk [vmem:[%s299 + $0x18] sm:$0xff] %vm6114, %v6154
      %6199 = vst.msk [vmem:[%s299 + $0x20] sm:$0xff] %vm6114, %v6156
      %6200 = vst.msk [vmem:[%s299 + $0x28] sm:$0xff] %vm6114, %v6158
      %6201 = vst.msk [vmem:[%s299 + $0x30] sm:$0xff] %vm6114, %v6160
      %6202 = vst.msk [vmem:[%s299 + $0x38] sm:$0xff] %vm6114, %v6162
      %6203 = vst.msk [vmem:[%s299 + $0x40] sm:$0xff] %vm6114, %v6164
      %6204 = vst.msk [vmem:[%s299 + $0x48] sm:$0xff] %vm6114, %v6166
      %6205 = vst.msk [vmem:[%s299 + $0x50] sm:$0xff] %vm6114, %v6168
      %6206 = vst.msk [vmem:[%s299 + $0x58] sm:$0xff] %vm6114, %v6170
      %6207 = vst.msk [vmem:[%s299 + $0x60] sm:$0xff] %vm6114, %v6172
      %6208 = vst.msk [vmem:[%s299 + $0x68] sm:$0xff] %vm6114, %v6174
      %6209 = vst.msk [vmem:[%s299 + $0x70] sm:$0xff] %vm6114, %v6176
      %6210 = vst.msk [vmem:[%s299 + $0x78] sm:$0xff] %vm6114, %v6178
      %v6211 = vld [vmem:[#allocation3 + $0x240] sm:$0xff]
      %v6212 = vld [vmem:[#allocation3 + $0x248] sm:$0xff]
      %v6213 = vld [vmem:[#allocation3 + $0x250] sm:$0xff]
      %v6214 = vld [vmem:[#allocation3 + $0x258] sm:$0xff]
      %v6215 = vld [vmem:[#allocation3 + $0x260] sm:$0xff]
      %v6216 = vld [vmem:[#allocation3 + $0x268] sm:$0xff]
      %v6217 = vld [vmem:[#allocation3 + $0x270] sm:$0xff]
      %v6218 = vld [vmem:[#allocation3 + $0x278] sm:$0xff]
      %v6219 = vld [vmem:[#allocation3 + $0x280] sm:$0xff]
      %v6220 = vld [vmem:[#allocation3 + $0x288] sm:$0xff]
      %v6221 = vld [vmem:[#allocation3 + $0x290] sm:$0xff]
      %v6222 = vld [vmem:[#allocation3 + $0x298] sm:$0xff]
      %v6223 = vld [vmem:[#allocation3 + $0x2a0] sm:$0xff]
      %v6224 = vld [vmem:[#allocation3 + $0x2a8] sm:$0xff]
      %v6225 = vld [vmem:[#allocation3 + $0x2b0] sm:$0xff]
      %v6226 = vld [vmem:[#allocation3 + $0x2b8] sm:$0xff]
      %v6227 = vld [vmem:[#allocation3 + $0x2c0] sm:$0xff]
      %v6228 = vld [vmem:[#allocation3 + $0x2c8] sm:$0xff]
      %v6229 = vld [vmem:[#allocation3 + $0x2d0] sm:$0xff]
      %v6230 = vld [vmem:[#allocation3 + $0x2d8] sm:$0xff]
      %v6231 = vld [vmem:[#allocation3 + $0x2e0] sm:$0xff]
      %v6232 = vld [vmem:[#allocation3 + $0x2e8] sm:$0xff]
      %v6233 = vld [vmem:[#allocation3 + $0x2f0] sm:$0xff]
      %v6234 = vld [vmem:[#allocation3 + $0x2f8] sm:$0xff]
      %v6235 = vld [vmem:[#allocation3 + $0x300] sm:$0xff]
      %v6236 = vld [vmem:[#allocation3 + $0x308] sm:$0xff]
      %v6237 = vld [vmem:[#allocation3 + $0x310] sm:$0xff]
      %v6238 = vld [vmem:[#allocation3 + $0x318] sm:$0xff]
      %v6239 = vld [vmem:[#allocation3 + $0x320] sm:$0xff]
      %v6240 = vld [vmem:[#allocation3 + $0x328] sm:$0xff]
      %v6241 = vld [vmem:[#allocation3 + $0x330] sm:$0xff]
      %v6242 = vld [vmem:[#allocation3 + $0x338] sm:$0xff]
      %v6243 = vld [vmem:[#allocation3 + $0x340] sm:$0xff]
      %v6244 = vld [vmem:[#allocation3 + $0x348] sm:$0xff]
      %v6245 = vld [vmem:[#allocation3 + $0x350] sm:$0xff]
      %v6246 = vld [vmem:[#allocation3 + $0x358] sm:$0xff]
      %v6247 = vld [vmem:[#allocation3 + $0x360] sm:$0xff]
      %v6248 = vld [vmem:[#allocation3 + $0x368] sm:$0xff]
      %v6249 = vld [vmem:[#allocation3 + $0x370] sm:$0xff]
      %v6250 = vld [vmem:[#allocation3 + $0x378] sm:$0xff]
      %v6251 = vld [vmem:[#allocation3 + $0x380] sm:$0xff]
      %v6252 = vld [vmem:[#allocation3 + $0x388] sm:$0xff]
      %v6253 = vld [vmem:[#allocation3 + $0x390] sm:$0xff]
      %v6254 = vld [vmem:[#allocation3 + $0x398] sm:$0xff]
      %v6255 = vld [vmem:[#allocation3 + $0x3a0] sm:$0xff]
      %v6256 = vld [vmem:[#allocation3 + $0x3a8] sm:$0xff]
      %v6257 = vld [vmem:[#allocation3 + $0x3b0] sm:$0xff]
      %v6258 = vld [vmem:[#allocation3 + $0x3b8] sm:$0xff]
      %v6259 = vld [vmem:[#allocation3 + $0x3c0] sm:$0xff]
      %v6260 = vld [vmem:[#allocation3 + $0x3c8] sm:$0xff]
      %v6261 = vld [vmem:[#allocation3 + $0x3d0] sm:$0xff]
      %v6262 = vld [vmem:[#allocation3 + $0x3d8] sm:$0xff]
      %v6263 = vld [vmem:[#allocation3 + $0x3e0] sm:$0xff]
      %v6264 = vld [vmem:[#allocation3 + $0x3e8] sm:$0xff]
      %v6265 = vld [vmem:[#allocation3 + $0x3f0] sm:$0xff]
      %v6266 = vld [vmem:[#allocation3 + $0x3f8] sm:$0xff]
      %v6267 = vld [vmem:[#allocation3 + $0x400] sm:$0xff]
      %v6268 = vld [vmem:[#allocation3 + $0x408] sm:$0xff]
      %v6269 = vld [vmem:[#allocation3 + $0x410] sm:$0xff]
      %v6270 = vld [vmem:[#allocation3 + $0x418] sm:$0xff]
      %v6271 = vld [vmem:[#allocation3 + $0x420] sm:$0xff]
      %v6272 = vld [vmem:[#allocation3 + $0x428] sm:$0xff]
      %v6273 = vld [vmem:[#allocation3 + $0x430] sm:$0xff]
      %v6274 = vld [vmem:[#allocation3 + $0x438] sm:$0xff]
      %v6275 = vld [vmem:[#allocation3 + $0x440] sm:$0xff]
      %v6276 = vld [vmem:[#allocation3 + $0x448] sm:$0xff]
      %v6277 = vld [vmem:[#allocation3 + $0x450] sm:$0xff]
      %v6278 = vld [vmem:[#allocation3 + $0x458] sm:$0xff]
      %v6279 = vld [vmem:[#allocation3 + $0x460] sm:$0xff]
      %v6280 = vld [vmem:[#allocation3 + $0x468] sm:$0xff]
      %v6281 = vld [vmem:[#allocation3 + $0x470] sm:$0xff]
      %v6282 = vld [vmem:[#allocation3 + $0x478] sm:$0xff]
      %v6283 = vld [vmem:[%s3] sm:$0xf]
      %v6284 = vld [vmem:[%s3 + $0x4] sm:$0xf]
      %v6285 = vld [vmem:[%s3 + $0x8] sm:$0xf]
      %v6286 = vld [vmem:[%s3 + $0xc] sm:$0xf]
      %v6287 = vld [vmem:[%s3 + $0x10] sm:$0xf]
      %v6288 = vld [vmem:[%s3 + $0x14] sm:$0xf]
      %v6289 = vld [vmem:[%s3 + $0x18] sm:$0xf]
      %v6290 = vld [vmem:[%s3 + $0x1c] sm:$0xf]
      %v6291 = vld [vmem:[%s3 + $0x20] sm:$0xf]
      %v6292 = vld [vmem:[%s3 + $0x24] sm:$0xf]
      %v6293 = vld [vmem:[%s3 + $0x28] sm:$0xf]
      %v6294 = vld [vmem:[%s3 + $0x2c] sm:$0xf]
      %v6295 = vld [vmem:[%s3 + $0x30] sm:$0xf]
      %v6296 = vld [vmem:[%s3 + $0x34] sm:$0xf]
      %v6297 = vld [vmem:[%s3 + $0x38] sm:$0xf]
      %v6298 = vld [vmem:[%s3 + $0x3c] sm:$0xf]
      %v6299 = vld [vmem:[%s3 + $0x40] sm:$0xf]
      %v6300 = vld [vmem:[%s3 + $0x44] sm:$0xf]
      %v6301 = vld [vmem:[%s3 + $0x48] sm:$0xf]
      %v6302 = vld [vmem:[%s3 + $0x4c] sm:$0xf]
      %v6303 = vld [vmem:[%s3 + $0x50] sm:$0xf]
      %v6304 = vld [vmem:[%s3 + $0x54] sm:$0xf]
      %v6305 = vld [vmem:[%s3 + $0x58] sm:$0xf]
      %v6306 = vld [vmem:[%s3 + $0x5c] sm:$0xf]
      %v6307 = vld [vmem:[%s3 + $0x60] sm:$0xf]
      %v6308 = vld [vmem:[%s3 + $0x64] sm:$0xf]
      %v6309 = vld [vmem:[%s3 + $0x68] sm:$0xf]
      %v6310 = vld [vmem:[%s3 + $0x6c] sm:$0xf]
      %v6311 = vld [vmem:[%s3 + $0x70] sm:$0xf]
      %v6312 = vld [vmem:[%s3 + $0x74] sm:$0xf]
      %v6313 = vld [vmem:[%s3 + $0x78] sm:$0xf]
      %v6314 = vld [vmem:[%s3 + $0x7c] sm:$0xf]
      %v6315 = vld [vmem:[%s3 + $0x80] sm:$0xf]
      %v6316 = vld [vmem:[%s3 + $0x84] sm:$0xf]
      %v6317 = vld [vmem:[%s3 + $0x88] sm:$0xf]
      %v6318 = vld [vmem:[%s3 + $0x8c] sm:$0xf]
      %v6319 = vld [vmem:[%s3 + $0x90] sm:$0xf]
      %v6320 = vld [vmem:[%s3 + $0x94] sm:$0xf]
      %v6321 = vld [vmem:[%s3 + $0x98] sm:$0xf]
      %v6322 = vld [vmem:[%s3 + $0x9c] sm:$0xf]
      %v6323 = vld [vmem:[%s3 + $0xa0] sm:$0xf]
      %v6324 = vld [vmem:[%s3 + $0xa4] sm:$0xf]
      %v6325 = vld [vmem:[%s3 + $0xa8] sm:$0xf]
      %v6326 = vld [vmem:[%s3 + $0xac] sm:$0xf]
      %v6327 = vld [vmem:[%s3 + $0xb0] sm:$0xf]
      %v6328 = vld [vmem:[%s3 + $0xb4] sm:$0xf]
      %v6329 = vld [vmem:[%s3 + $0xb8] sm:$0xf]
      %v6330 = vld [vmem:[%s3 + $0xbc] sm:$0xf]
      %v6331 = vld [vmem:[%s3 + $0xc0] sm:$0xf]
      %v6332 = vld [vmem:[%s3 + $0xc4] sm:$0xf]
      %v6333 = vld [vmem:[%s3 + $0xc8] sm:$0xf]
      %v6334 = vld [vmem:[%s3 + $0xcc] sm:$0xf]
      %v6335 = vld [vmem:[%s3 + $0xd0] sm:$0xf]
      %v6336 = vld [vmem:[%s3 + $0xd4] sm:$0xf]
      %v6337 = vld [vmem:[%s3 + $0xd8] sm:$0xf]
      %v6338 = vld [vmem:[%s3 + $0xdc] sm:$0xf]
      %v6339 = vld [vmem:[%s3 + $0xe0] sm:$0xf]
      %v6340 = vld [vmem:[%s3 + $0xe4] sm:$0xf]
      %v6341 = vld [vmem:[%s3 + $0xe8] sm:$0xf]
      %v6342 = vld [vmem:[%s3 + $0xec] sm:$0xf]
      %v6343 = vld [vmem:[%s3 + $0xf0] sm:$0xf]
      %v6344 = vld [vmem:[%s3 + $0xf4] sm:$0xf]
      %v6345 = vld [vmem:[%s3 + $0xf8] sm:$0xf]
      %v6346 = vld [vmem:[%s3 + $0xfc] sm:$0xf]
      %v6347 = vld [vmem:[%s3 + $0x100] sm:$0xf]
      %v6348 = vld [vmem:[%s3 + $0x104] sm:$0xf]
      %v6349 = vld [vmem:[%s3 + $0x108] sm:$0xf]
      %v6350 = vld [vmem:[%s3 + $0x10c] sm:$0xf]
      %v6351 = vld [vmem:[%s3 + $0x110] sm:$0xf]
      %v6352 = vld [vmem:[%s3 + $0x114] sm:$0xf]
      %v6353 = vld [vmem:[%s3 + $0x118] sm:$0xf]
      %v6354 = vld [vmem:[%s3 + $0x11c] sm:$0xf]
      %v6355 = vld [vmem:[%s3 + $0x120] sm:$0xf]
      %v6356 = vld [vmem:[%s3 + $0x124] sm:$0xf]
      %v6357 = vld [vmem:[%s3 + $0x128] sm:$0xf]
      %v6358 = vld [vmem:[%s3 + $0x12c] sm:$0xf]
      %v6359 = vld [vmem:[%s3 + $0x130] sm:$0xf]
      %v6360 = vld [vmem:[%s3 + $0x134] sm:$0xf]
      %v6361 = vld [vmem:[%s3 + $0x138] sm:$0xf]
      %v6362 = vld [vmem:[%s3 + $0x13c] sm:$0xf]
      %v6363 = vld [vmem:[%s3 + $0x140] sm:$0xf]
      %v6364 = vld [vmem:[%s3 + $0x144] sm:$0xf]
      %v6365 = vld [vmem:[%s3 + $0x148] sm:$0xf]
      %v6366 = vld [vmem:[%s3 + $0x14c] sm:$0xf]
      %v6367 = vld [vmem:[%s3 + $0x150] sm:$0xf]
      %v6368 = vld [vmem:[%s3 + $0x154] sm:$0xf]
      %v6369 = vld [vmem:[%s3 + $0x158] sm:$0xf]
      %v6370 = vld [vmem:[%s3 + $0x15c] sm:$0xf]
      %v6371 = vld [vmem:[%s3 + $0x160] sm:$0xf]
      %v6372 = vld [vmem:[%s3 + $0x164] sm:$0xf]
      %v6373 = vld [vmem:[%s3 + $0x168] sm:$0xf]
      %v6374 = vld [vmem:[%s3 + $0x16c] sm:$0xf]
      %v6375 = vld [vmem:[%s3 + $0x170] sm:$0xf]
      %v6376 = vld [vmem:[%s3 + $0x174] sm:$0xf]
      %v6377 = vld [vmem:[%s3 + $0x178] sm:$0xf]
      %v6378 = vld [vmem:[%s3 + $0x17c] sm:$0xf]
      %v6379 = vld [vmem:[%s3 + $0x180] sm:$0xf]
      %v6380 = vld [vmem:[%s3 + $0x184] sm:$0xf]
      %v6381 = vld [vmem:[%s3 + $0x188] sm:$0xf]
      %v6382 = vld [vmem:[%s3 + $0x18c] sm:$0xf]
      %v6383 = vld [vmem:[%s3 + $0x190] sm:$0xf]
      %v6384 = vld [vmem:[%s3 + $0x194] sm:$0xf]
      %v6385 = vld [vmem:[%s3 + $0x198] sm:$0xf]
      %v6386 = vld [vmem:[%s3 + $0x19c] sm:$0xf]
      %v6387 = vld [vmem:[%s3 + $0x1a0] sm:$0xf]
      %v6388 = vld [vmem:[%s3 + $0x1a4] sm:$0xf]
      %v6389 = vld [vmem:[%s3 + $0x1a8] sm:$0xf]
      %v6390 = vld [vmem:[%s3 + $0x1ac] sm:$0xf]
      %v6391 = vld [vmem:[%s3 + $0x1b0] sm:$0xf]
      %v6392 = vld [vmem:[%s3 + $0x1b4] sm:$0xf]
      %v6393 = vld [vmem:[%s3 + $0x1b8] sm:$0xf]
      %v6394 = vld [vmem:[%s3 + $0x1bc] sm:$0xf]
      %v6395 = vld [vmem:[%s3 + $0x1c0] sm:$0xf]
      %v6396 = vld [vmem:[%s3 + $0x1c4] sm:$0xf]
      %v6397 = vld [vmem:[%s3 + $0x1c8] sm:$0xf]
      %v6398 = vld [vmem:[%s3 + $0x1cc] sm:$0xf]
      %v6399 = vld [vmem:[%s3 + $0x1d0] sm:$0xf]
      %v6400 = vld [vmem:[%s3 + $0x1d4] sm:$0xf]
      %v6401 = vld [vmem:[%s3 + $0x1d8] sm:$0xf]
      %v6402 = vld [vmem:[%s3 + $0x1dc] sm:$0xf]
      %v6403 = vld [vmem:[%s3 + $0x1e0] sm:$0xf]
      %v6404 = vld [vmem:[%s3 + $0x1e4] sm:$0xf]
      %v6405 = vld [vmem:[%s3 + $0x1e8] sm:$0xf]
      %v6406 = vld [vmem:[%s3 + $0x1ec] sm:$0xf]
      %v6407 = vld [vmem:[%s3 + $0x1f0] sm:$0xf]
      %v6408 = vld [vmem:[%s3 + $0x1f4] sm:$0xf]
      %v6409 = vld [vmem:[%s3 + $0x1f8] sm:$0xf]
      %v6410 = vld [vmem:[%s3 + $0x1fc] sm:$0xf]
      %v6411 = vld [vmem:[%s3 + $0x200] sm:$0xf]
      %v6412 = vld [vmem:[%s3 + $0x204] sm:$0xf]
      %v6413 = vld [vmem:[%s3 + $0x208] sm:$0xf]
      %v6414 = vld [vmem:[%s3 + $0x20c] sm:$0xf]
      %v6415 = vld [vmem:[%s3 + $0x210] sm:$0xf]
      %v6416 = vld [vmem:[%s3 + $0x214] sm:$0xf]
      %v6417 = vld [vmem:[%s3 + $0x218] sm:$0xf]
      %v6418 = vld [vmem:[%s3 + $0x21c] sm:$0xf]
      %v6419 = vld [vmem:[%s3 + $0x220] sm:$0xf]
      %v6420 = vld [vmem:[%s3 + $0x224] sm:$0xf]
      %v6421 = vld [vmem:[%s3 + $0x228] sm:$0xf]
      %v6422 = vld [vmem:[%s3 + $0x22c] sm:$0xf]
      %v6423 = vld [vmem:[%s3 + $0x230] sm:$0xf]
      %v6424 = vld [vmem:[%s3 + $0x234] sm:$0xf]
      %v6425 = vld [vmem:[%s3 + $0x238] sm:$0xf]
      %v6426 = vld [vmem:[%s3 + $0x23c] sm:$0xf]
      %v6571 = vunpack.c.l.b16 %v6283
      %v6572 = vunpack.c.l.b16 %v6284
      %v6573 = vunpack.c.l.b16 %v6285
      %v6574 = vunpack.c.l.b16 %v6286
      %v6575 = vunpack.c.l.b16 %v6287
      %v6576 = vunpack.c.l.b16 %v6288
      %v6577 = vunpack.c.l.b16 %v6289
      %v6578 = vunpack.c.l.b16 %v6290
      %v6579 = vunpack.c.l.b16 %v6291
      %v6580 = vunpack.c.l.b16 %v6292
      %v6581 = vunpack.c.l.b16 %v6293
      %v6582 = vunpack.c.l.b16 %v6294
      %v6583 = vunpack.c.l.b16 %v6295
      %v6584 = vunpack.c.l.b16 %v6296
      %v6585 = vunpack.c.l.b16 %v6297
      %v6586 = vunpack.c.l.b16 %v6298
      %v6587 = vunpack.c.l.b16 %v6299
      %v6588 = vunpack.c.l.b16 %v6300
      %v6589 = vunpack.c.l.b16 %v6301
      %v6590 = vunpack.c.l.b16 %v6302
      %v6591 = vunpack.c.l.b16 %v6303
      %v6592 = vunpack.c.l.b16 %v6304
      %v6593 = vunpack.c.l.b16 %v6305
      %v6594 = vunpack.c.l.b16 %v6306
      %v6595 = vunpack.c.l.b16 %v6307
      %v6596 = vunpack.c.l.b16 %v6308
      %v6597 = vunpack.c.l.b16 %v6309
      %v6598 = vunpack.c.l.b16 %v6310
      %v6599 = vunpack.c.l.b16 %v6311
      %v6600 = vunpack.c.l.b16 %v6312
      %v6601 = vunpack.c.l.b16 %v6313
      %v6602 = vunpack.c.l.b16 %v6314
      %v6603 = vunpack.c.l.b16 %v6315
      %v6604 = vunpack.c.l.b16 %v6316
      %v6605 = vunpack.c.l.b16 %v6317
      %v6606 = vunpack.c.l.b16 %v6318
      %v6607 = vunpack.c.l.b16 %v6319
      %v6608 = vunpack.c.l.b16 %v6320
      %v6609 = vunpack.c.l.b16 %v6321
      %v6610 = vunpack.c.l.b16 %v6322
      %v6611 = vunpack.c.l.b16 %v6323
      %v6612 = vunpack.c.l.b16 %v6324
      %v6613 = vunpack.c.l.b16 %v6325
      %v6614 = vunpack.c.l.b16 %v6326
      %v6615 = vunpack.c.l.b16 %v6327
      %v6616 = vunpack.c.l.b16 %v6328
      %v6617 = vunpack.c.l.b16 %v6329
      %v6618 = vunpack.c.l.b16 %v6330
      %v6619 = vunpack.c.l.b16 %v6331
      %v6620 = vunpack.c.l.b16 %v6332
      %v6621 = vunpack.c.l.b16 %v6333
      %v6622 = vunpack.c.l.b16 %v6334
      %v6623 = vunpack.c.l.b16 %v6335
      %v6624 = vunpack.c.l.b16 %v6336
      %v6625 = vunpack.c.l.b16 %v6337
      %v6626 = vunpack.c.l.b16 %v6338
      %v6627 = vunpack.c.l.b16 %v6339
      %v6628 = vunpack.c.l.b16 %v6340
      %v6629 = vunpack.c.l.b16 %v6341
      %v6630 = vunpack.c.l.b16 %v6342
      %v6631 = vunpack.c.l.b16 %v6343
      %v6632 = vunpack.c.l.b16 %v6344
      %v6633 = vunpack.c.l.b16 %v6345
      %v6634 = vunpack.c.l.b16 %v6346
      %v6635 = vunpack.c.l.b16 %v6347
      %v6636 = vunpack.c.l.b16 %v6348
      %v6637 = vunpack.c.l.b16 %v6349
      %v6638 = vunpack.c.l.b16 %v6350
      %v6639 = vunpack.c.l.b16 %v6351
      %v6640 = vunpack.c.l.b16 %v6352
      %v6641 = vunpack.c.l.b16 %v6353
      %v6642 = vunpack.c.l.b16 %v6354
      %v6643 = vunpack.c.l.b16 %v6355
      %v6644 = vunpack.c.l.b16 %v6356
      %v6645 = vunpack.c.l.b16 %v6357
      %v6646 = vunpack.c.l.b16 %v6358
      %v6647 = vunpack.c.l.b16 %v6359
      %v6648 = vunpack.c.l.b16 %v6360
      %v6649 = vunpack.c.l.b16 %v6361
      %v6650 = vunpack.c.l.b16 %v6362
      %v6651 = vunpack.c.l.b16 %v6363
      %v6652 = vunpack.c.l.b16 %v6364
      %v6653 = vunpack.c.l.b16 %v6365
      %v6654 = vunpack.c.l.b16 %v6366
      %v6655 = vunpack.c.l.b16 %v6367
      %v6656 = vunpack.c.l.b16 %v6368
      %v6657 = vunpack.c.l.b16 %v6369
      %v6658 = vunpack.c.l.b16 %v6370
      %v6659 = vunpack.c.l.b16 %v6371
      %v6660 = vunpack.c.l.b16 %v6372
      %v6661 = vunpack.c.l.b16 %v6373
      %v6662 = vunpack.c.l.b16 %v6374
      %v6663 = vunpack.c.l.b16 %v6375
      %v6664 = vunpack.c.l.b16 %v6376
      %v6665 = vunpack.c.l.b16 %v6377
      %v6666 = vunpack.c.l.b16 %v6378
      %v6667 = vunpack.c.l.b16 %v6379
      %v6668 = vunpack.c.l.b16 %v6380
      %v6669 = vunpack.c.l.b16 %v6381
      %v6670 = vunpack.c.l.b16 %v6382
      %v6671 = vunpack.c.l.b16 %v6383
      %v6672 = vunpack.c.l.b16 %v6384
      %v6673 = vunpack.c.l.b16 %v6385
      %v6674 = vunpack.c.l.b16 %v6386
      %v6675 = vunpack.c.l.b16 %v6387
      %v6676 = vunpack.c.l.b16 %v6388
      %v6677 = vunpack.c.l.b16 %v6389
      %v6678 = vunpack.c.l.b16 %v6390
      %v6679 = vunpack.c.l.b16 %v6391
      %v6680 = vunpack.c.l.b16 %v6392
      %v6681 = vunpack.c.l.b16 %v6393
      %v6682 = vunpack.c.l.b16 %v6394
      %v6683 = vunpack.c.l.b16 %v6395
      %v6684 = vunpack.c.l.b16 %v6396
      %v6685 = vunpack.c.l.b16 %v6397
      %v6686 = vunpack.c.l.b16 %v6398
      %v6687 = vunpack.c.l.b16 %v6399
      %v6688 = vunpack.c.l.b16 %v6400
      %v6689 = vunpack.c.l.b16 %v6401
      %v6690 = vunpack.c.l.b16 %v6402
      %v6691 = vunpack.c.l.b16 %v6403
      %v6692 = vunpack.c.l.b16 %v6404
      %v6693 = vunpack.c.l.b16 %v6405
      %v6694 = vunpack.c.l.b16 %v6406
      %v6695 = vunpack.c.l.b16 %v6407
      %v6696 = vunpack.c.l.b16 %v6408
      %v6697 = vunpack.c.l.b16 %v6409
      %v6698 = vunpack.c.l.b16 %v6410
      %v6699 = vunpack.c.l.b16 %v6411
      %v6700 = vunpack.c.l.b16 %v6412
      %v6701 = vunpack.c.l.b16 %v6413
      %v6702 = vunpack.c.l.b16 %v6414
      %v6703 = vunpack.c.l.b16 %v6415
      %v6704 = vunpack.c.l.b16 %v6416
      %v6705 = vunpack.c.l.b16 %v6417
      %v6706 = vunpack.c.l.b16 %v6418
      %v6707 = vunpack.c.l.b16 %v6419
      %v6708 = vunpack.c.l.b16 %v6420
      %v6709 = vunpack.c.l.b16 %v6421
      %v6710 = vunpack.c.l.b16 %v6422
      %v6711 = vunpack.c.l.b16 %v6423
      %v6712 = vunpack.c.l.b16 %v6424
      %v6713 = vunpack.c.l.b16 %v6425
      %v6714 = vunpack.c.l.b16 %v6426
      %v6715 = vpack.c.b16 %v6572, %v6571
      %v6716 = vpack.c.b16 %v6574, %v6573
      %v6717 = vpack.c.b16 %v6576, %v6575
      %v6718 = vpack.c.b16 %v6578, %v6577
      %v6719 = vpack.c.b16 %v6580, %v6579
      %v6720 = vpack.c.b16 %v6582, %v6581
      %v6721 = vpack.c.b16 %v6584, %v6583
      %v6722 = vpack.c.b16 %v6586, %v6585
      %v6723 = vpack.c.b16 %v6588, %v6587
      %v6724 = vpack.c.b16 %v6590, %v6589
      %v6725 = vpack.c.b16 %v6592, %v6591
      %v6726 = vpack.c.b16 %v6594, %v6593
      %v6727 = vpack.c.b16 %v6596, %v6595
      %v6728 = vpack.c.b16 %v6598, %v6597
      %v6729 = vpack.c.b16 %v6600, %v6599
      %v6730 = vpack.c.b16 %v6602, %v6601
      %v6731 = vpack.c.b16 %v6604, %v6603
      %v6732 = vpack.c.b16 %v6606, %v6605
      %v6733 = vpack.c.b16 %v6608, %v6607
      %v6734 = vpack.c.b16 %v6610, %v6609
      %v6735 = vpack.c.b16 %v6612, %v6611
      %v6736 = vpack.c.b16 %v6614, %v6613
      %v6737 = vpack.c.b16 %v6616, %v6615
      %v6738 = vpack.c.b16 %v6618, %v6617
      %v6739 = vpack.c.b16 %v6620, %v6619
      %v6740 = vpack.c.b16 %v6622, %v6621
      %v6741 = vpack.c.b16 %v6624, %v6623
      %v6742 = vpack.c.b16 %v6626, %v6625
      %v6743 = vpack.c.b16 %v6628, %v6627
      %v6744 = vpack.c.b16 %v6630, %v6629
      %v6745 = vpack.c.b16 %v6632, %v6631
      %v6746 = vpack.c.b16 %v6634, %v6633
      %v6747 = vpack.c.b16 %v6636, %v6635
      %v6748 = vpack.c.b16 %v6638, %v6637
      %v6749 = vpack.c.b16 %v6640, %v6639
      %v6750 = vpack.c.b16 %v6642, %v6641
      %v6751 = vpack.c.b16 %v6644, %v6643
      %v6752 = vpack.c.b16 %v6646, %v6645
      %v6753 = vpack.c.b16 %v6648, %v6647
      %v6754 = vpack.c.b16 %v6650, %v6649
      %v6755 = vpack.c.b16 %v6652, %v6651
      %v6756 = vpack.c.b16 %v6654, %v6653
      %v6757 = vpack.c.b16 %v6656, %v6655
      %v6758 = vpack.c.b16 %v6658, %v6657
      %v6759 = vpack.c.b16 %v6660, %v6659
      %v6760 = vpack.c.b16 %v6662, %v6661
      %v6761 = vpack.c.b16 %v6664, %v6663
      %v6762 = vpack.c.b16 %v6666, %v6665
      %v6763 = vpack.c.b16 %v6668, %v6667
      %v6764 = vpack.c.b16 %v6670, %v6669
      %v6765 = vpack.c.b16 %v6672, %v6671
      %v6766 = vpack.c.b16 %v6674, %v6673
      %v6767 = vpack.c.b16 %v6676, %v6675
      %v6768 = vpack.c.b16 %v6678, %v6677
      %v6769 = vpack.c.b16 %v6680, %v6679
      %v6770 = vpack.c.b16 %v6682, %v6681
      %v6771 = vpack.c.b16 %v6684, %v6683
      %v6772 = vpack.c.b16 %v6686, %v6685
      %v6773 = vpack.c.b16 %v6688, %v6687
      %v6774 = vpack.c.b16 %v6690, %v6689
      %v6775 = vpack.c.b16 %v6692, %v6691
      %v6776 = vpack.c.b16 %v6694, %v6693
      %v6777 = vpack.c.b16 %v6696, %v6695
      %v6778 = vpack.c.b16 %v6698, %v6697
      %v6779 = vpack.c.b16 %v6700, %v6699
      %v6780 = vpack.c.b16 %v6702, %v6701
      %v6781 = vpack.c.b16 %v6704, %v6703
      %v6782 = vpack.c.b16 %v6706, %v6705
      %v6783 = vpack.c.b16 %v6708, %v6707
      %v6784 = vpack.c.b16 %v6710, %v6709
      %v6785 = vpack.c.b16 %v6712, %v6711
      %v6786 = vpack.c.b16 %v6714, %v6713
      %6859 = vmatprep.subr.bf16.mxu0 0
      %6860 = vmatpush1.bf16.msra.mxu0 %v6715
      %6861 = vmatprep.subr.bf16.mxu0 0
      %6862 = vmatpush1.bf16.msra.mxu0 %v6716
      %6863 = vmatprep.subr.bf16.mxu0 0
      %6864 = vmatpush1.bf16.msra.mxu0 %v6717
      %6865 = vmatprep.subr.bf16.mxu0 0
      %6866 = vmatpush1.bf16.msra.mxu0 %v6718
      %6867 = vmatprep.subr.bf16.mxu0 0
      %6868 = vmatpush1.bf16.msra.mxu0 %v6719
      %6869 = vmatprep.subr.bf16.mxu0 0
      %6870 = vmatpush1.bf16.msra.mxu0 %v6720
      %6871 = vmatprep.subr.bf16.mxu0 0
      %6872 = vmatpush1.bf16.msra.mxu0 %v6721
      %6873 = vmatprep.subr.bf16.mxu0 0
      %6874 = vmatpush1.bf16.msra.mxu0 %v6722
      %6875 = vmatprep.subr.bf16.mxu0 0
      %6876 = vmatpush1.bf16.msra.mxu0 %v6723
      %6877 = vmatprep.subr.bf16.mxu0 0
      %6878 = vmatpush1.bf16.msra.mxu0 %v6724
      %6879 = vmatprep.subr.bf16.mxu0 0
      %6880 = vmatpush1.bf16.msra.mxu0 %v6725
      %6881 = vmatprep.subr.bf16.mxu0 0
      %6882 = vmatpush1.bf16.msra.mxu0 %v6726
      %6883 = vmatprep.subr.bf16.mxu0 0
      %6884 = vmatpush1.bf16.msra.mxu0 %v6727
      %6885 = vmatprep.subr.bf16.mxu0 0
      %6886 = vmatpush1.bf16.msra.mxu0 %v6728
      %6887 = vmatprep.subr.bf16.mxu0 0
      %6888 = vmatpush1.bf16.msra.mxu0 %v6729
      %6889 = vmatprep.subr.bf16.mxu0 0
      %6890 = vmatpush1.bf16.msra.mxu0 %v6730
      %6891 = vmatprep.mubr.bf16.mxu0 %v6212
      %6892 = vmatmul.mubr.bf16.gmra.mrb[0].mxu0 %v6211
      %v6893 = vpop.f32.mrb[0].mxu0
      %v6894 = vadd.f32 %v4651, %v6893
      %v6895 = vpop.f32.mrb[0].mxu0
      %v6896 = vpop.f32.mrb[0].mxu0
      %v6897 = vadd.f32 %v4651, %v6896
      %v6898 = vpop.f32.mrb[0].mxu0
      %6899 = vmatprep.mubr.bf16.mxu0 %v6221
      %6900 = vmatmul.mubr.bf16.gmra.mrb[0].mxu0 %v6220
      %v6901 = vpop.f32.mrb[0].mxu0
      %v6902 = vadd.f32 %v4651, %v6901
      %v6903 = vpop.f32.mrb[0].mxu0
      %v6904 = vpop.f32.mrb[0].mxu0
      %v6905 = vadd.f32 %v4651, %v6904
      %v6906 = vpop.f32.mrb[0].mxu0
      %6907 = vmatprep.mubr.bf16.mxu0 %v6230
      %6908 = vmatmul.mubr.bf16.gmra.mrb[0].mxu0 %v6229
      %v6909 = vpop.f32.mrb[0].mxu0
      %v6910 = vadd.f32 %v4651, %v6909
      %v6911 = vpop.f32.mrb[0].mxu0
      %v6912 = vpop.f32.mrb[0].mxu0
      %v6913 = vadd.f32 %v4651, %v6912
      %v6914 = vpop.f32.mrb[0].mxu0
      %6915 = vmatprep.mubr.bf16.mxu0 %v6239
      %6916 = vmatmul.mubr.bf16.gmra.mrb[0].mxu0 %v6238
      %v6917 = vpop.f32.mrb[0].mxu0
      %v6918 = vadd.f32 %v4651, %v6917
      %v6919 = vpop.f32.mrb[0].mxu0
      %v6920 = vpop.f32.mrb[0].mxu0
      %v6921 = vadd.f32 %v4651, %v6920
      %v6922 = vpop.f32.mrb[0].mxu0
      %6923 = vmatprep.mubr.bf16.mxu0 %v6248
      %6924 = vmatmul.mubr.bf16.gmra.mrb[0].mxu0 %v6247
      %v6925 = vpop.f32.mrb[0].mxu0
      %v6926 = vadd.f32 %v4651, %v6925
      %v6927 = vpop.f32.mrb[0].mxu0
      %v6928 = vpop.f32.mrb[0].mxu0
      %v6929 = vadd.f32 %v4651, %v6928
      %v6930 = vpop.f32.mrb[0].mxu0
      %6931 = vmatprep.mubr.bf16.mxu0 %v6257
      %6932 = vmatmul.mubr.bf16.gmra.mrb[0].mxu0 %v6256
      %v6933 = vpop.f32.mrb[0].mxu0
      %v6934 = vadd.f32 %v4651, %v6933
      %v6935 = vpop.f32.mrb[0].mxu0
      %v6936 = vpop.f32.mrb[0].mxu0
      %v6937 = vadd.f32 %v4651, %v6936
      %v6938 = vpop.f32.mrb[0].mxu0
      %6939 = vmatprep.mubr.bf16.mxu0 %v6266
      %6940 = vmatmul.mubr.bf16.gmra.mrb[0].mxu0 %v6265
      %v6941 = vpop.f32.mrb[0].mxu0
      %v6942 = vadd.f32 %v4651, %v6941
      %v6943 = vpop.f32.mrb[0].mxu0
      %v6944 = vpop.f32.mrb[0].mxu0
      %v6945 = vadd.f32 %v4651, %v6944
      %v6946 = vpop.f32.mrb[0].mxu0
      %6947 = vmatprep.mubr.bf16.mxu0 %v6275
      %6948 = vmatmul.mubr.bf16.gmra.mrb[0].mxu0 %v6274
      %v6949 = vpop.f32.mrb[0].mxu0
      %v6950 = vadd.f32 %v4651, %v6949
      %v6951 = vpop.f32.mrb[0].mxu0
      %v6952 = vpop.f32.mrb[0].mxu0
      %v6953 = vadd.f32 %v4651, %v6952
      %v6954 = vpop.f32.mrb[0].mxu0
      %6955 = vdwg.mxu0
      %6956 = vmatprep.subr.bf16.mxu0 0
      %6957 = vmatpush1.bf16.msra.mxu0 %v6731
      %6958 = vmatprep.subr.bf16.mxu0 0
      %6959 = vmatpush1.bf16.msra.mxu0 %v6732
      %6960 = vmatprep.subr.bf16.mxu0 0
      %6961 = vmatpush1.bf16.msra.mxu0 %v6733
      %6962 = vmatprep.subr.bf16.mxu0 0
      %6963 = vmatpush1.bf16.msra.mxu0 %v6734
      %6964 = vmatprep.subr.bf16.mxu0 0
      %6965 = vmatpush1.bf16.msra.mxu0 %v6735
      %6966 = vmatprep.subr.bf16.mxu0 0
      %6967 = vmatpush1.bf16.msra.mxu0 %v6736
      %6968 = vmatprep.subr.bf16.mxu0 0
      %6969 = vmatpush1.bf16.msra.mxu0 %v6737
      %6970 = vmatprep.subr.bf16.mxu0 0
      %6971 = vmatpush1.bf16.msra.mxu0 %v6738
      %6972 = vmatprep.subr.bf16.mxu0 0
      %6973 = vmatpush1.bf16.msra.mxu0 %v6739
      %6974 = vmatprep.subr.bf16.mxu0 0
      %6975 = vmatpush1.bf16.msra.mxu0 %v6740
      %6976 = vmatprep.subr.bf16.mxu0 0
      %6977 = vmatpush1.bf16.msra.mxu0 %v6741
      %6978 = vmatprep.subr.bf16.mxu0 0
      %6979 = vmatpush1.bf16.msra.mxu0 %v6742
      %6980 = vmatprep.subr.bf16.mxu0 0
      %6981 = vmatpush1.bf16.msra.mxu0 %v6743
      %6982 = vmatprep.subr.bf16.mxu0 0
      %6983 = vmatpush1.bf16.msra.mxu0 %v6744
      %6984 = vmatprep.subr.bf16.mxu0 0
      %6985 = vmatpush1.bf16.msra.mxu0 %v6745
      %6986 = vmatprep.subr.bf16.mxu0 0
      %6987 = vmatpush1.bf16.msra.mxu0 %v6746
      %6988 = vmatprep.mubr.bf16.mxu0 %v6214
      %6989 = vmatmul.mubr.bf16.gmra.mrb[0].mxu0 %v6213
      %v6990 = vpop.f32.mrb[0].mxu0
      %v6991 = vadd.f32 %v6894, %v6990
      %v6992 = vpop.f32.mrb[0].mxu0
      %v6993 = vpop.f32.mrb[0].mxu0
      %v6994 = vadd.f32 %v6897, %v6993
      %v6995 = vpop.f32.mrb[0].mxu0
      %6996 = vmatprep.mubr.bf16.mxu0 %v6223
      %6997 = vmatmul.mubr.bf16.gmra.mrb[0].mxu0 %v6222
      %v6998 = vpop.f32.mrb[0].mxu0
      %v6999 = vadd.f32 %v6902, %v6998
      %v7000 = vpop.f32.mrb[0].mxu0
      %v7001 = vpop.f32.mrb[0].mxu0
      %v7002 = vadd.f32 %v6905, %v7001
      %v7003 = vpop.f32.mrb[0].mxu0
      %7004 = vmatprep.mubr.bf16.mxu0 %v6232
      %7005 = vmatmul.mubr.bf16.gmra.mrb[0].mxu0 %v6231
      %v7006 = vpop.f32.mrb[0].mxu0
      %v7007 = vadd.f32 %v6910, %v7006
      %v7008 = vpop.f32.mrb[0].mxu0
      %v7009 = vpop.f32.mrb[0].mxu0
      %v7010 = vadd.f32 %v6913, %v7009
      %v7011 = vpop.f32.mrb[0].mxu0
      %7012 = vmatprep.mubr.bf16.mxu0 %v6241
      %7013 = vmatmul.mubr.bf16.gmra.mrb[0].mxu0 %v6240
      %v7014 = vpop.f32.mrb[0].mxu0
      %v7015 = vadd.f32 %v6918, %v7014
      %v7016 = vpop.f32.mrb[0].mxu0
      %v7017 = vpop.f32.mrb[0].mxu0
      %v7018 = vadd.f32 %v6921, %v7017
      %v7019 = vpop.f32.mrb[0].mxu0
      %7020 = vmatprep.mubr.bf16.mxu0 %v6250
      %7021 = vmatmul.mubr.bf16.gmra.mrb[0].mxu0 %v6249
      %v7022 = vpop.f32.mrb[0].mxu0
      %v7023 = vadd.f32 %v6926, %v7022
      %v7024 = vpop.f32.mrb[0].mxu0
      %v7025 = vpop.f32.mrb[0].mxu0
      %v7026 = vadd.f32 %v6929, %v7025
      %v7027 = vpop.f32.mrb[0].mxu0
      %7028 = vmatprep.mubr.bf16.mxu0 %v6259
      %7029 = vmatmul.mubr.bf16.gmra.mrb[0].mxu0 %v6258
      %v7030 = vpop.f32.mrb[0].mxu0
      %v7031 = vadd.f32 %v6934, %v7030
      %v7032 = vpop.f32.mrb[0].mxu0
      %v7033 = vpop.f32.mrb[0].mxu0
      %v7034 = vadd.f32 %v6937, %v7033
      %v7035 = vpop.f32.mrb[0].mxu0
      %7036 = vmatprep.mubr.bf16.mxu0 %v6268
      %7037 = vmatmul.mubr.bf16.gmra.mrb[0].mxu0 %v6267
      %v7038 = vpop.f32.mrb[0].mxu0
      %v7039 = vadd.f32 %v6942, %v7038
      %v7040 = vpop.f32.mrb[0].mxu0
      %v7041 = vpop.f32.mrb[0].mxu0
      %v7042 = vadd.f32 %v6945, %v7041
      %v7043 = vpop.f32.mrb[0].mxu0
      %7044 = vmatprep.mubr.bf16.mxu0 %v6277
      %7045 = vmatmul.mubr.bf16.gmra.mrb[0].mxu0 %v6276
      %v7046 = vpop.f32.mrb[0].mxu0
      %v7047 = vadd.f32 %v6950, %v7046
      %v7048 = vpop.f32.mrb[0].mxu0
      %v7049 = vpop.f32.mrb[0].mxu0
      %v7050 = vadd.f32 %v6953, %v7049
      %v7051 = vpop.f32.mrb[0].mxu0
      %7052 = vdwg.mxu0
      %7053 = vmatprep.subr.bf16.mxu0 0
      %7054 = vmatpush1.bf16.msra.mxu0 %v6747
      %7055 = vmatprep.subr.bf16.mxu0 0
      %7056 = vmatpush1.bf16.msra.mxu0 %v6748
      %7057 = vmatprep.subr.bf16.mxu0 0
      %7058 = vmatpush1.bf16.msra.mxu0 %v6749
      %7059 = vmatprep.subr.bf16.mxu0 0
      %7060 = vmatpush1.bf16.msra.mxu0 %v6750
      %7061 = vmatprep.subr.bf16.mxu0 0
      %7062 = vmatpush1.bf16.msra.mxu0 %v6751
      %7063 = vmatprep.subr.bf16.mxu0 0
      %7064 = vmatpush1.bf16.msra.mxu0 %v6752
      %7065 = vmatprep.subr.bf16.mxu0 0
      %7066 = vmatpush1.bf16.msra.mxu0 %v6753
      %7067 = vmatprep.subr.bf16.mxu0 0
      %7068 = vmatpush1.bf16.msra.mxu0 %v6754
      %7069 = vmatprep.subr.bf16.mxu0 0
      %7070 = vmatpush1.bf16.msra.mxu0 %v6755
      %7071 = vmatprep.subr.bf16.mxu0 0
      %7072 = vmatpush1.bf16.msra.mxu0 %v6756
      %7073 = vmatprep.subr.bf16.mxu0 0
      %7074 = vmatpush1.bf16.msra.mxu0 %v6757
      %7075 = vmatprep.subr.bf16.mxu0 0
      %7076 = vmatpush1.bf16.msra.mxu0 %v6758
      %7077 = vmatprep.subr.bf16.mxu0 0
      %7078 = vmatpush1.bf16.msra.mxu0 %v6759
      %7079 = vmatprep.subr.bf16.mxu0 0
      %7080 = vmatpush1.bf16.msra.mxu0 %v6760
      %7081 = vmatprep.subr.bf16.mxu0 0
      %7082 = vmatpush1.bf16.msra.mxu0 %v6761
      %7083 = vmatprep.subr.bf16.mxu0 0
      %7084 = vmatpush1.bf16.msra.mxu0 %v6762
      %7085 = vmatprep.mubr.bf16.mxu0 %v6216
      %7086 = vmatmul.mubr.bf16.gmra.mrb[0].mxu0 %v6215
      %v7087 = vpop.f32.mrb[0].mxu0
      %v7088 = vadd.f32 %v6991, %v7087
      %v7089 = vpop.f32.mrb[0].mxu0
      %v7090 = vpop.f32.mrb[0].mxu0
      %v7091 = vadd.f32 %v6994, %v7090
      %v7092 = vpop.f32.mrb[0].mxu0
      %7093 = vmatprep.mubr.bf16.mxu0 %v6225
      %7094 = vmatmul.mubr.bf16.gmra.mrb[0].mxu0 %v6224
      %v7095 = vpop.f32.mrb[0].mxu0
      %v7096 = vadd.f32 %v6999, %v7095
      %v7097 = vpop.f32.mrb[0].mxu0
      %v7098 = vpop.f32.mrb[0].mxu0
      %v7099 = vadd.f32 %v7002, %v7098
      %v7100 = vpop.f32.mrb[0].mxu0
      %7101 = vmatprep.mubr.bf16.mxu0 %v6234
      %7102 = vmatmul.mubr.bf16.gmra.mrb[0].mxu0 %v6233
      %v7103 = vpop.f32.mrb[0].mxu0
      %v7104 = vadd.f32 %v7007, %v7103
      %v7105 = vpop.f32.mrb[0].mxu0
      %v7106 = vpop.f32.mrb[0].mxu0
      %v7107 = vadd.f32 %v7010, %v7106
      %v7108 = vpop.f32.mrb[0].mxu0
      %7109 = vmatprep.mubr.bf16.mxu0 %v6243
      %7110 = vmatmul.mubr.bf16.gmra.mrb[0].mxu0 %v6242
      %v7111 = vpop.f32.mrb[0].mxu0
      %v7112 = vadd.f32 %v7015, %v7111
      %v7113 = vpop.f32.mrb[0].mxu0
      %v7114 = vpop.f32.mrb[0].mxu0
      %v7115 = vadd.f32 %v7018, %v7114
      %v7116 = vpop.f32.mrb[0].mxu0
      %7117 = vmatprep.mubr.bf16.mxu0 %v6252
      %7118 = vmatmul.mubr.bf16.gmra.mrb[0].mxu0 %v6251
      %v7119 = vpop.f32.mrb[0].mxu0
      %v7120 = vadd.f32 %v7023, %v7119
      %v7121 = vpop.f32.mrb[0].mxu0
      %v7122 = vpop.f32.mrb[0].mxu0
      %v7123 = vadd.f32 %v7026, %v7122
      %v7124 = vpop.f32.mrb[0].mxu0
      %7125 = vmatprep.mubr.bf16.mxu0 %v6261
      %7126 = vmatmul.mubr.bf16.gmra.mrb[0].mxu0 %v6260
      %v7127 = vpop.f32.mrb[0].mxu0
      %v7128 = vadd.f32 %v7031, %v7127
      %v7129 = vpop.f32.mrb[0].mxu0
      %v7130 = vpop.f32.mrb[0].mxu0
      %v7131 = vadd.f32 %v7034, %v7130
      %v7132 = vpop.f32.mrb[0].mxu0
      %7133 = vmatprep.mubr.bf16.mxu0 %v6270
      %7134 = vmatmul.mubr.bf16.gmra.mrb[0].mxu0 %v6269
      %v7135 = vpop.f32.mrb[0].mxu0
      %v7136 = vadd.f32 %v7039, %v7135
      %v7137 = vpop.f32.mrb[0].mxu0
      %v7138 = vpop.f32.mrb[0].mxu0
      %v7139 = vadd.f32 %v7042, %v7138
      %v7140 = vpop.f32.mrb[0].mxu0
      %7141 = vmatprep.mubr.bf16.mxu0 %v6279
      %7142 = vmatmul.mubr.bf16.gmra.mrb[0].mxu0 %v6278
      %v7143 = vpop.f32.mrb[0].mxu0
      %v7144 = vadd.f32 %v7047, %v7143
      %v7145 = vpop.f32.mrb[0].mxu0
      %v7146 = vpop.f32.mrb[0].mxu0
      %v7147 = vadd.f32 %v7050, %v7146
      %v7148 = vpop.f32.mrb[0].mxu0
      %7149 = vdwg.mxu0
      %7150 = vmatprep.subr.bf16.mxu0 0
      %7151 = vmatpush1.bf16.msra.mxu0 %v6763
      %7152 = vmatprep.subr.bf16.mxu0 0
      %7153 = vmatpush1.bf16.msra.mxu0 %v6764
      %7154 = vmatprep.subr.bf16.mxu0 0
      %7155 = vmatpush1.bf16.msra.mxu0 %v6765
      %7156 = vmatprep.subr.bf16.mxu0 0
      %7157 = vmatpush1.bf16.msra.mxu0 %v6766
      %7158 = vmatprep.subr.bf16.mxu0 0
      %7159 = vmatpush1.bf16.msra.mxu0 %v6767
      %7160 = vmatprep.subr.bf16.mxu0 0
      %7161 = vmatpush1.bf16.msra.mxu0 %v6768
      %7162 = vmatprep.subr.bf16.mxu0 0
      %7163 = vmatpush1.bf16.msra.mxu0 %v6769
      %7164 = vmatprep.subr.bf16.mxu0 0
      %7165 = vmatpush1.bf16.msra.mxu0 %v6770
      %7166 = vmatprep.subr.bf16.mxu0 0
      %7167 = vmatpush1.bf16.msra.mxu0 %v6771
      %7168 = vmatprep.subr.bf16.mxu0 0
      %7169 = vmatpush1.bf16.msra.mxu0 %v6772
      %7170 = vmatprep.subr.bf16.mxu0 0
      %7171 = vmatpush1.bf16.msra.mxu0 %v6773
      %7172 = vmatprep.subr.bf16.mxu0 0
      %7173 = vmatpush1.bf16.msra.mxu0 %v6774
      %7174 = vmatprep.subr.bf16.mxu0 0
      %7175 = vmatpush1.bf16.msra.mxu0 %v6775
      %7176 = vmatprep.subr.bf16.mxu0 0
      %7177 = vmatpush1.bf16.msra.mxu0 %v6776
      %7178 = vmatprep.subr.bf16.mxu0 0
      %7179 = vmatpush1.bf16.msra.mxu0 %v6777
      %7180 = vmatprep.subr.bf16.mxu0 0
      %7181 = vmatpush1.bf16.msra.mxu0 %v6778
      %7182 = vmatprep.mubr.bf16.mxu0 %v6218
      %7183 = vmatmul.mubr.bf16.gmra.mrb[0].mxu0 %v6217
      %v7184 = vpop.f32.mrb[0].mxu0
      %v7185 = vadd.f32 %v7088, %v7184
      %v7186 = vpop.f32.mrb[0].mxu0
      %v7187 = vpop.f32.mrb[0].mxu0
      %v7188 = vadd.f32 %v7091, %v7187
      %v7189 = vpop.f32.mrb[0].mxu0
      %7190 = vmatprep.mubr.bf16.mxu0 %v6227
      %7191 = vmatmul.mubr.bf16.gmra.mrb[0].mxu0 %v6226
      %v7192 = vpop.f32.mrb[0].mxu0
      %v7193 = vadd.f32 %v7096, %v7192
      %v7194 = vpop.f32.mrb[0].mxu0
      %v7195 = vpop.f32.mrb[0].mxu0
      %v7196 = vadd.f32 %v7099, %v7195
      %v7197 = vpop.f32.mrb[0].mxu0
      %7198 = vmatprep.mubr.bf16.mxu0 %v6236
      %7199 = vmatmul.mubr.bf16.gmra.mrb[0].mxu0 %v6235
      %v7200 = vpop.f32.mrb[0].mxu0
      %v7201 = vadd.f32 %v7104, %v7200
      %v7202 = vpop.f32.mrb[0].mxu0
      %v7203 = vpop.f32.mrb[0].mxu0
      %v7204 = vadd.f32 %v7107, %v7203
      %v7205 = vpop.f32.mrb[0].mxu0
      %7206 = vmatprep.mubr.bf16.mxu0 %v6245
      %7207 = vmatmul.mubr.bf16.gmra.mrb[0].mxu0 %v6244
      %v7208 = vpop.f32.mrb[0].mxu0
      %v7209 = vadd.f32 %v7112, %v7208
      %v7210 = vpop.f32.mrb[0].mxu0
      %v7211 = vpop.f32.mrb[0].mxu0
      %v7212 = vadd.f32 %v7115, %v7211
      %v7213 = vpop.f32.mrb[0].mxu0
      %7214 = vmatprep.mubr.bf16.mxu0 %v6254
      %7215 = vmatmul.mubr.bf16.gmra.mrb[0].mxu0 %v6253
      %v7216 = vpop.f32.mrb[0].mxu0
      %v7217 = vadd.f32 %v7120, %v7216
      %v7218 = vpop.f32.mrb[0].mxu0
      %v7219 = vpop.f32.mrb[0].mxu0
      %v7220 = vadd.f32 %v7123, %v7219
      %v7221 = vpop.f32.mrb[0].mxu0
      %7222 = vmatprep.mubr.bf16.mxu0 %v6263
      %7223 = vmatmul.mubr.bf16.gmra.mrb[0].mxu0 %v6262
      %v7224 = vpop.f32.mrb[0].mxu0
      %v7225 = vadd.f32 %v7128, %v7224
      %v7226 = vpop.f32.mrb[0].mxu0
      %v7227 = vpop.f32.mrb[0].mxu0
      %v7228 = vadd.f32 %v7131, %v7227
      %v7229 = vpop.f32.mrb[0].mxu0
      %7230 = vmatprep.mubr.bf16.mxu0 %v6272
      %7231 = vmatmul.mubr.bf16.gmra.mrb[0].mxu0 %v6271
      %v7232 = vpop.f32.mrb[0].mxu0
      %v7233 = vadd.f32 %v7136, %v7232
      %v7234 = vpop.f32.mrb[0].mxu0
      %v7235 = vpop.f32.mrb[0].mxu0
      %v7236 = vadd.f32 %v7139, %v7235
      %v7237 = vpop.f32.mrb[0].mxu0
      %7238 = vmatprep.mubr.bf16.mxu0 %v6281
      %7239 = vmatmul.mubr.bf16.gmra.mrb[0].mxu0 %v6280
      %v7240 = vpop.f32.mrb[0].mxu0
      %v7241 = vadd.f32 %v7144, %v7240
      %v7242 = vpop.f32.mrb[0].mxu0
      %v7243 = vpop.f32.mrb[0].mxu0
      %v7244 = vadd.f32 %v7147, %v7243
      %v7245 = vpop.f32.mrb[0].mxu0
      %7246 = vdwg.mxu0
      %7247 = vmatprep.subr.bf16.mxu0 0
      %7248 = vmatpush1.bf16.msra.mxu0 %v6779
      %7249 = vmatprep.subr.bf16.mxu0 0
      %7250 = vmatpush1.bf16.msra.mxu0 %v6780
      %7251 = vmatprep.subr.bf16.mxu0 0
      %7252 = vmatpush1.bf16.msra.mxu0 %v6781
      %7253 = vmatprep.subr.bf16.mxu0 0
      %7254 = vmatpush1.bf16.msra.mxu0 %v6782
      %7255 = vmatprep.subr.bf16.mxu0 0
      %7256 = vmatpush1.bf16.msra.mxu0 %v6783
      %7257 = vmatprep.subr.bf16.mxu0 0
      %7258 = vmatpush1.bf16.msra.mxu0 %v6784
      %7259 = vmatprep.subr.bf16.mxu0 0
      %7260 = vmatpush1.bf16.msra.mxu0 %v6785
      %7261 = vmatprep.subr.bf16.mxu0 0
      %7262 = vmatpush1.bf16.msra.mxu0 %v6786
      %7263 = vmatprep.subr.bf16.mxu0 0
      %7264 = vmatpush1.bf16.msra.mxu0 0
      %7265 = vmatprep.subr.bf16.mxu0 0
      %7266 = vmatpush1.bf16.msra.mxu0 0
      %7267 = vmatprep.subr.bf16.mxu0 0
      %7268 = vmatpush1.bf16.msra.mxu0 0
      %7269 = vmatprep.subr.bf16.mxu0 0
      %7270 = vmatpush1.bf16.msra.mxu0 0
      %7271 = vmatprep.subr.bf16.mxu0 0
      %7272 = vmatpush1.bf16.msra.mxu0 0
      %7273 = vmatprep.subr.bf16.mxu0 0
      %7274 = vmatpush1.bf16.msra.mxu0 0
      %7275 = vmatprep.subr.bf16.mxu0 0
      %7276 = vmatpush1.bf16.msra.mxu0 0
      %7277 = vmatprep.subr.bf16.mxu0 0
      %7278 = vmatpush1.bf16.msra.mxu0 0
      %7279 = vmatprep.mubr.bf16.mxu0 0
      %7280 = vmatmul.mubr.bf16.gmra.mrb[0].mxu0 %v6219
      %v7281 = vpop.f32.mrb[0].mxu0
      %v7282 = vadd.f32 %v7185, %v7281
      %v7283 = vpop.f32.mrb[0].mxu0
      %v7284 = vpop.f32.mrb[0].mxu0
      %v7285 = vadd.f32 %v7188, %v7284
      %v7286 = vpop.f32.mrb[0].mxu0
      %7287 = vmatprep.mubr.bf16.mxu0 0
      %7288 = vmatmul.mubr.bf16.gmra.mrb[0].mxu0 %v6228
      %v7289 = vpop.f32.mrb[0].mxu0
      %v7290 = vadd.f32 %v7193, %v7289
      %v7291 = vpop.f32.mrb[0].mxu0
      %v7292 = vpop.f32.mrb[0].mxu0
      %v7293 = vadd.f32 %v7196, %v7292
      %v7294 = vpop.f32.mrb[0].mxu0
      %7295 = vmatprep.mubr.bf16.mxu0 0
      %7296 = vmatmul.mubr.bf16.gmra.mrb[0].mxu0 %v6237
      %v7297 = vpop.f32.mrb[0].mxu0
      %v7298 = vadd.f32 %v7201, %v7297
      %v7299 = vpop.f32.mrb[0].mxu0
      %v7300 = vpop.f32.mrb[0].mxu0
      %v7301 = vadd.f32 %v7204, %v7300
      %v7302 = vpop.f32.mrb[0].mxu0
      %7303 = vmatprep.mubr.bf16.mxu0 0
      %7304 = vmatmul.mubr.bf16.gmra.mrb[0].mxu0 %v6246
      %v7305 = vpop.f32.mrb[0].mxu0
      %v7306 = vadd.f32 %v7209, %v7305
      %v7307 = vpop.f32.mrb[0].mxu0
      %v7308 = vpop.f32.mrb[0].mxu0
      %v7309 = vadd.f32 %v7212, %v7308
      %v7310 = vpop.f32.mrb[0].mxu0
      %7311 = vmatprep.mubr.bf16.mxu0 0
      %7312 = vmatmul.mubr.bf16.gmra.mrb[0].mxu0 %v6255
      %v7313 = vpop.f32.mrb[0].mxu0
      %v7314 = vadd.f32 %v7217, %v7313
      %v7315 = vpop.f32.mrb[0].mxu0
      %v7316 = vpop.f32.mrb[0].mxu0
      %v7317 = vadd.f32 %v7220, %v7316
      %v7318 = vpop.f32.mrb[0].mxu0
      %7319 = vmatprep.mubr.bf16.mxu0 0
      %7320 = vmatmul.mubr.bf16.gmra.mrb[0].mxu0 %v6264
      %v7321 = vpop.f32.mrb[0].mxu0
      %v7322 = vadd.f32 %v7225, %v7321
      %v7323 = vpop.f32.mrb[0].mxu0
      %v7324 = vpop.f32.mrb[0].mxu0
      %v7325 = vadd.f32 %v7228, %v7324
      %v7326 = vpop.f32.mrb[0].mxu0
      %7327 = vmatprep.mubr.bf16.mxu0 0
      %7328 = vmatmul.mubr.bf16.gmra.mrb[0].mxu0 %v6273
      %v7329 = vpop.f32.mrb[0].mxu0
      %v7330 = vadd.f32 %v7233, %v7329
      %v7331 = vpop.f32.mrb[0].mxu0
      %v7332 = vpop.f32.mrb[0].mxu0
      %v7333 = vadd.f32 %v7236, %v7332
      %v7334 = vpop.f32.mrb[0].mxu0
      %7335 = vmatprep.mubr.bf16.mxu0 0
      %7336 = vmatmul.mubr.bf16.gmra.mrb[0].mxu0 %v6282
      %v7337 = vpop.f32.mrb[0].mxu0
      %v7338 = vadd.f32 %v7241, %v7337
      %v7339 = vpop.f32.mrb[0].mxu0
      %v7340 = vpop.f32.mrb[0].mxu0
      %v7341 = vadd.f32 %v7244, %v7340
      %v7342 = vpop.f32.mrb[0].mxu0
      %7343 = vdwg.mxu0
      %v7344 = vxor.u32 %v7282, 2147483648
      %v7345 = vxor.u32 %v7285, 2147483648
      %v7346 = vxor.u32 %v7290, 2147483648
      %v7347 = vxor.u32 %v7293, 2147483648
      %v7348 = vxor.u32 %v7298, 2147483648
      %v7349 = vxor.u32 %v7301, 2147483648
      %v7350 = vxor.u32 %v7306, 2147483648
      %v7351 = vxor.u32 %v7309, 2147483648
      %v7352 = vxor.u32 %v7314, 2147483648
      %v7353 = vxor.u32 %v7317, 2147483648
      %v7354 = vxor.u32 %v7322, 2147483648
      %v7355 = vxor.u32 %v7325, 2147483648
      %v7356 = vxor.u32 %v7330, 2147483648
      %v7357 = vxor.u32 %v7333, 2147483648
      %v7358 = vxor.u32 %v7338, 2147483648
      %v7359 = vxor.u32 %v7341, 2147483648
      %v7360 = vmul.f32 %v7344, 1.442695
      %v7361 = vpow.pop %v7360
      %v7362 = vmul.f32 %v7345, 1.442695
      %v7363 = vpow.pop %v7362
      %v7364 = vmul.f32 %v7346, 1.442695
      %v7365 = vpow.pop %v7364
      %v7366 = vmul.f32 %v7347, 1.442695
      %v7367 = vpow.pop %v7366
      %v7368 = vmul.f32 %v7348, 1.442695
      %v7369 = vpow.pop %v7368
      %v7370 = vmul.f32 %v7349, 1.442695
      %v7371 = vpow.pop %v7370
      %v7372 = vmul.f32 %v7350, 1.442695
      %v7373 = vpow.pop %v7372
      %v7374 = vmul.f32 %v7351, 1.442695
      %v7375 = vpow.pop %v7374
      %v7376 = vmul.f32 %v7352, 1.442695
      %v7377 = vpow.pop %v7376
      %v7378 = vmul.f32 %v7353, 1.442695
      %v7379 = vpow.pop %v7378
      %v7380 = vmul.f32 %v7354, 1.442695
      %v7381 = vpow.pop %v7380
      %v7382 = vmul.f32 %v7355, 1.442695
      %v7383 = vpow.pop %v7382
      %v7384 = vmul.f32 %v7356, 1.442695
      %v7385 = vpow.pop %v7384
      %v7386 = vmul.f32 %v7357, 1.442695
      %v7387 = vpow.pop %v7386
      %v7388 = vmul.f32 %v7358, 1.442695
      %v7389 = vpow.pop %v7388
      %v7390 = vmul.f32 %v7359, 1.442695
      %v7391 = vpow.pop %v7390
      %v7392 = vadd.f32 %v7361, 1.0
      %v7393 = vadd.f32 %v7363, 1.0
      %v7394 = vadd.f32 %v7365, 1.0
      %v7395 = vadd.f32 %v7367, 1.0
      %v7396 = vadd.f32 %v7369, 1.0
      %v7397 = vadd.f32 %v7371, 1.0
      %v7398 = vadd.f32 %v7373, 1.0
      %v7399 = vadd.f32 %v7375, 1.0
      %v7400 = vadd.f32 %v7377, 1.0
      %v7401 = vadd.f32 %v7379, 1.0
      %v7402 = vadd.f32 %v7381, 1.0
      %v7403 = vadd.f32 %v7383, 1.0
      %v7404 = vadd.f32 %v7385, 1.0
      %v7405 = vadd.f32 %v7387, 1.0
      %v7406 = vadd.f32 %v7389, 1.0
      %v7407 = vadd.f32 %v7391, 1.0
      %v7408 = vrcp.pop %v7392
      %v7409 = vmul.f32 1.0, %v7408
      %v7410 = vrcp.pop %v7393
      %v7411 = vmul.f32 1.0, %v7410
      %v7412 = vrcp.pop %v7394
      %v7413 = vmul.f32 1.0, %v7412
      %v7414 = vrcp.pop %v7395
      %v7415 = vmul.f32 1.0, %v7414
      %v7416 = vrcp.pop %v7396
      %v7417 = vmul.f32 1.0, %v7416
      %v7418 = vrcp.pop %v7397
      %v7419 = vmul.f32 1.0, %v7418
      %v7420 = vrcp.pop %v7398
      %v7421 = vmul.f32 1.0, %v7420
      %v7422 = vrcp.pop %v7399
      %v7423 = vmul.f32 1.0, %v7422
      %v7424 = vrcp.pop %v7400
      %v7425 = vmul.f32 1.0, %v7424
      %v7426 = vrcp.pop %v7401
      %v7427 = vmul.f32 1.0, %v7426
      %v7428 = vrcp.pop %v7402
      %v7429 = vmul.f32 1.0, %v7428
      %v7430 = vrcp.pop %v7403
      %v7431 = vmul.f32 1.0, %v7430
      %v7432 = vrcp.pop %v7404
      %v7433 = vmul.f32 1.0, %v7432
      %v7434 = vrcp.pop %v7405
      %v7435 = vmul.f32 1.0, %v7434
      %v7436 = vrcp.pop %v7406
      %v7437 = vmul.f32 1.0, %v7436
      %v7438 = vrcp.pop %v7407
      %v7439 = vmul.f32 1.0, %v7438
      %v7440 = vmul.f32 %v7409, 2.0
      %v7441 = vmul.f32 %v7411, 2.0
      %v7442 = vmul.f32 %v7413, 2.0
      %v7443 = vmul.f32 %v7415, 2.0
      %v7444 = vmul.f32 %v7417, 2.0
      %v7445 = vmul.f32 %v7419, 2.0
      %v7446 = vmul.f32 %v7421, 2.0
      %v7447 = vmul.f32 %v7423, 2.0
      %v7448 = vmul.f32 %v7425, 2.0
      %v7449 = vmul.f32 %v7427, 2.0
      %v7450 = vmul.f32 %v7429, 2.0
      %v7451 = vmul.f32 %v7431, 2.0
      %v7452 = vmul.f32 %v7433, 2.0
      %v7453 = vmul.f32 %v7435, 2.0
      %v7454 = vmul.f32 %v7437, 2.0
      %v7455 = vmul.f32 %v7439, 2.0
      %v7456 = vsub.f32 %v7440, 1.0
      %v7457 = vsub.f32 %v7441, 1.0
      %v7458 = vsub.f32 %v7442, 1.0
      %v7459 = vsub.f32 %v7443, 1.0
      %v7460 = vsub.f32 %v7444, 1.0
      %v7461 = vsub.f32 %v7445, 1.0
      %v7462 = vsub.f32 %v7446, 1.0
      %v7463 = vsub.f32 %v7447, 1.0
      %v7464 = vsub.f32 %v7448, 1.0
      %v7465 = vsub.f32 %v7449, 1.0
      %v7466 = vsub.f32 %v7450, 1.0
      %v7467 = vsub.f32 %v7451, 1.0
      %v7468 = vsub.f32 %v7452, 1.0
      %v7469 = vsub.f32 %v7453, 1.0
      %v7470 = vsub.f32 %v7454, 1.0
      %v7471 = vsub.f32 %v7455, 1.0
      %v7472 = vld [vmem:[%s294 + $0x80] sm:$0xff]
      %v7473 = vld [vmem:[%s294 + $0x88] sm:$0xff]
      %v7474 = vld [vmem:[%s294 + $0x90] sm:$0xff]
      %v7475 = vld [vmem:[%s294 + $0x98] sm:$0xff]
      %v7476 = vld [vmem:[%s294 + $0xa0] sm:$0xff]
      %v7477 = vld [vmem:[%s294 + $0xa8] sm:$0xff]
      %v7478 = vld [vmem:[%s294 + $0xb0] sm:$0xff]
      %v7479 = vld [vmem:[%s294 + $0xb8] sm:$0xff]
      %v7480 = vld [vmem:[%s294 + $0xc0] sm:$0xff]
      %v7481 = vld [vmem:[%s294 + $0xc8] sm:$0xff]
      %v7482 = vld [vmem:[%s294 + $0xd0] sm:$0xff]
      %v7483 = vld [vmem:[%s294 + $0xd8] sm:$0xff]
      %v7484 = vld [vmem:[%s294 + $0xe0] sm:$0xff]
      %v7485 = vld [vmem:[%s294 + $0xe8] sm:$0xff]
      %v7486 = vld [vmem:[%s294 + $0xf0] sm:$0xff]
      %v7487 = vld [vmem:[%s294 + $0xf8] sm:$0xff]
      %7504 = vrot.lane.b32.xlu0 %v7472, 32
      %v7505 = vpop.permute.xlu0 %7504
      %7506 = vrot.lane.b32.xlu0 %v7473, 32
      %v7507 = vpop.permute.xlu0 %7506
      %7508 = vrot.lane.b32.xlu0 %v7474, 32
      %v7509 = vpop.permute.xlu0 %7508
      %7510 = vrot.lane.b32.xlu0 %v7475, 32
      %v7511 = vpop.permute.xlu0 %7510
      %7512 = vrot.lane.b32.xlu0 %v7476, 32
      %v7513 = vpop.permute.xlu0 %7512
      %7514 = vrot.lane.b32.xlu0 %v7477, 32
      %v7515 = vpop.permute.xlu0 %7514
      %7516 = vrot.lane.b32.xlu0 %v7478, 32
      %v7517 = vpop.permute.xlu0 %7516
      %7518 = vrot.lane.b32.xlu0 %v7479, 32
      %v7519 = vpop.permute.xlu0 %7518
      %7520 = vrot.lane.b32.xlu0 %v7480, 32
      %v7521 = vpop.permute.xlu0 %7520
      %7522 = vrot.lane.b32.xlu0 %v7481, 32
      %v7523 = vpop.permute.xlu0 %7522
      %7524 = vrot.lane.b32.xlu0 %v7482, 32
      %v7525 = vpop.permute.xlu0 %7524
      %7526 = vrot.lane.b32.xlu0 %v7483, 32
      %v7527 = vpop.permute.xlu0 %7526
      %7528 = vrot.lane.b32.xlu0 %v7484, 32
      %v7529 = vpop.permute.xlu0 %7528
      %7530 = vrot.lane.b32.xlu0 %v7485, 32
      %v7531 = vpop.permute.xlu0 %7530
      %7532 = vrot.lane.b32.xlu0 %v7486, 32
      %v7533 = vpop.permute.xlu0 %7532
      %7534 = vrot.lane.b32.xlu0 %v7487, 32
      %v7535 = vpop.permute.xlu0 %7534
      %v7552 = vmul.f32 %v7409, %v7505
      %v7553 = vmul.f32 %v7411, %v7507
      %v7554 = vmul.f32 %v7413, %v7509
      %v7555 = vmul.f32 %v7415, %v7511
      %v7556 = vmul.f32 %v7417, %v7513
      %v7557 = vmul.f32 %v7419, %v7515
      %v7558 = vmul.f32 %v7421, %v7517
      %v7559 = vmul.f32 %v7423, %v7519
      %v7560 = vmul.f32 %v7425, %v7521
      %v7561 = vmul.f32 %v7427, %v7523
      %v7562 = vmul.f32 %v7429, %v7525
      %v7563 = vmul.f32 %v7431, %v7527
      %v7564 = vmul.f32 %v7433, %v7529
      %v7565 = vmul.f32 %v7435, %v7531
      %v7566 = vmul.f32 %v7437, %v7533
      %v7567 = vmul.f32 %v7439, %v7535
      %7584 = vrot.lane.b32.xlu0 %v7456, 32
      %v7585 = vpop.permute.xlu0 %7584
      %7586 = vrot.lane.b32.xlu0 %v7457, 32
      %v7587 = vpop.permute.xlu0 %7586
      %7588 = vrot.lane.b32.xlu0 %v7458, 32
      %v7589 = vpop.permute.xlu0 %7588
      %7590 = vrot.lane.b32.xlu0 %v7459, 32
      %v7591 = vpop.permute.xlu0 %7590
      %7592 = vrot.lane.b32.xlu0 %v7460, 32
      %v7593 = vpop.permute.xlu0 %7592
      %7594 = vrot.lane.b32.xlu0 %v7461, 32
      %v7595 = vpop.permute.xlu0 %7594
      %7596 = vrot.lane.b32.xlu0 %v7462, 32
      %v7597 = vpop.permute.xlu0 %7596
      %7598 = vrot.lane.b32.xlu0 %v7463, 32
      %v7599 = vpop.permute.xlu0 %7598
      %7600 = vrot.lane.b32.xlu0 %v7464, 32
      %v7601 = vpop.permute.xlu0 %7600
      %7602 = vrot.lane.b32.xlu0 %v7465, 32
      %v7603 = vpop.permute.xlu0 %7602
      %7604 = vrot.lane.b32.xlu0 %v7466, 32
      %v7605 = vpop.permute.xlu0 %7604
      %7606 = vrot.lane.b32.xlu0 %v7467, 32
      %v7607 = vpop.permute.xlu0 %7606
      %7608 = vrot.lane.b32.xlu0 %v7468, 32
      %v7609 = vpop.permute.xlu0 %7608
      %7610 = vrot.lane.b32.xlu0 %v7469, 32
      %v7611 = vpop.permute.xlu0 %7610
      %7612 = vrot.lane.b32.xlu0 %v7470, 32
      %v7613 = vpop.permute.xlu0 %7612
      %7614 = vrot.lane.b32.xlu0 %v7471, 32
      %v7615 = vpop.permute.xlu0 %7614
      %v7632 = vmul.f32 %v7409, %v7585
      %v7633 = vmul.f32 %v7411, %v7587
      %v7634 = vmul.f32 %v7413, %v7589
      %v7635 = vmul.f32 %v7415, %v7591
      %v7636 = vmul.f32 %v7417, %v7593
      %v7637 = vmul.f32 %v7419, %v7595
      %v7638 = vmul.f32 %v7421, %v7597
      %v7639 = vmul.f32 %v7423, %v7599
      %v7640 = vmul.f32 %v7425, %v7601
      %v7641 = vmul.f32 %v7427, %v7603
      %v7642 = vmul.f32 %v7429, %v7605
      %v7643 = vmul.f32 %v7431, %v7607
      %v7644 = vmul.f32 %v7433, %v7609
      %v7645 = vmul.f32 %v7435, %v7611
      %v7646 = vmul.f32 %v7437, %v7613
      %v7647 = vmul.f32 %v7439, %v7615
      %7664 = vrot.lane.b32.xlu0 %v7632, 32
      %v7665 = vpop.permute.xlu0 %7664
      %7666 = vrot.lane.b32.xlu0 %v7633, 32
      %v7667 = vpop.permute.xlu0 %7666
      %7668 = vrot.lane.b32.xlu0 %v7634, 32
      %v7669 = vpop.permute.xlu0 %7668
      %7670 = vrot.lane.b32.xlu0 %v7635, 32
      %v7671 = vpop.permute.xlu0 %7670
      %7672 = vrot.lane.b32.xlu0 %v7636, 32
      %v7673 = vpop.permute.xlu0 %7672
      %7674 = vrot.lane.b32.xlu0 %v7637, 32
      %v7675 = vpop.permute.xlu0 %7674
      %7676 = vrot.lane.b32.xlu0 %v7638, 32
      %v7677 = vpop.permute.xlu0 %7676
      %7678 = vrot.lane.b32.xlu0 %v7639, 32
      %v7679 = vpop.permute.xlu0 %7678
      %7680 = vrot.lane.b32.xlu0 %v7640, 32
      %v7681 = vpop.permute.xlu0 %7680
      %7682 = vrot.lane.b32.xlu0 %v7641, 32
      %v7683 = vpop.permute.xlu0 %7682
      %7684 = vrot.lane.b32.xlu0 %v7642, 32
      %v7685 = vpop.permute.xlu0 %7684
      %7686 = vrot.lane.b32.xlu0 %v7643, 32
      %v7687 = vpop.permute.xlu0 %7686
      %7688 = vrot.lane.b32.xlu0 %v7644, 32
      %v7689 = vpop.permute.xlu0 %7688
      %7690 = vrot.lane.b32.xlu0 %v7645, 32
      %v7691 = vpop.permute.xlu0 %7690
      %7692 = vrot.lane.b32.xlu0 %v7646, 32
      %v7693 = vpop.permute.xlu0 %7692
      %7694 = vrot.lane.b32.xlu0 %v7647, 32
      %v7695 = vpop.permute.xlu0 %7694
      %v7712 = vadd.f32 %v7552, %v7665
      %v7713 = vadd.f32 %v7553, %v7667
      %v7714 = vadd.f32 %v7554, %v7669
      %v7715 = vadd.f32 %v7555, %v7671
      %v7716 = vadd.f32 %v7556, %v7673
      %v7717 = vadd.f32 %v7557, %v7675
      %v7718 = vadd.f32 %v7558, %v7677
      %v7719 = vadd.f32 %v7559, %v7679
      %v7720 = vadd.f32 %v7560, %v7681
      %v7721 = vadd.f32 %v7561, %v7683
      %v7722 = vadd.f32 %v7562, %v7685
      %v7723 = vadd.f32 %v7563, %v7687
      %v7724 = vadd.f32 %v7564, %v7689
      %v7725 = vadd.f32 %v7565, %v7691
      %v7726 = vadd.f32 %v7566, %v7693
      %v7727 = vadd.f32 %v7567, %v7695
      %v7728 = vtanh.pop %v7712
      %v7729 = vtanh.pop %v7713
      %v7730 = vtanh.pop %v7714
      %v7731 = vtanh.pop %v7715
      %v7732 = vtanh.pop %v7716
      %v7733 = vtanh.pop %v7717
      %v7734 = vtanh.pop %v7718
      %v7735 = vtanh.pop %v7719
      %v7736 = vtanh.pop %v7720
      %v7737 = vtanh.pop %v7721
      %v7738 = vtanh.pop %v7722
      %v7739 = vtanh.pop %v7723
      %v7740 = vtanh.pop %v7724
      %v7741 = vtanh.pop %v7725
      %v7742 = vtanh.pop %v7726
      %v7743 = vtanh.pop %v7727
      %7760 = vrot.lane.b32.xlu0 %v7728, 32
      %v7761 = vpop.permute.xlu0 %7760
      %7762 = vrot.lane.b32.xlu0 %v7729, 32
      %v7763 = vpop.permute.xlu0 %7762
      %7764 = vrot.lane.b32.xlu0 %v7730, 32
      %v7765 = vpop.permute.xlu0 %7764
      %7766 = vrot.lane.b32.xlu0 %v7731, 32
      %v7767 = vpop.permute.xlu0 %7766
      %7768 = vrot.lane.b32.xlu0 %v7732, 32
      %v7769 = vpop.permute.xlu0 %7768
      %7770 = vrot.lane.b32.xlu0 %v7733, 32
      %v7771 = vpop.permute.xlu0 %7770
      %7772 = vrot.lane.b32.xlu0 %v7734, 32
      %v7773 = vpop.permute.xlu0 %7772
      %7774 = vrot.lane.b32.xlu0 %v7735, 32
      %v7775 = vpop.permute.xlu0 %7774
      %7776 = vrot.lane.b32.xlu0 %v7736, 32
      %v7777 = vpop.permute.xlu0 %7776
      %7778 = vrot.lane.b32.xlu0 %v7737, 32
      %v7779 = vpop.permute.xlu0 %7778
      %7780 = vrot.lane.b32.xlu0 %v7738, 32
      %v7781 = vpop.permute.xlu0 %7780
      %7782 = vrot.lane.b32.xlu0 %v7739, 32
      %v7783 = vpop.permute.xlu0 %7782
      %7784 = vrot.lane.b32.xlu0 %v7740, 32
      %v7785 = vpop.permute.xlu0 %7784
      %7786 = vrot.lane.b32.xlu0 %v7741, 32
      %v7787 = vpop.permute.xlu0 %7786
      %7788 = vrot.lane.b32.xlu0 %v7742, 32
      %v7789 = vpop.permute.xlu0 %7788
      %7790 = vrot.lane.b32.xlu0 %v7743, 32
      %v7791 = vpop.permute.xlu0 %7790
      %v7808 = vmul.f32 %v7409, %v7761
      %v7809 = vmul.f32 %v7411, %v7763
      %v7810 = vmul.f32 %v7413, %v7765
      %v7811 = vmul.f32 %v7415, %v7767
      %v7812 = vmul.f32 %v7417, %v7769
      %v7813 = vmul.f32 %v7419, %v7771
      %v7814 = vmul.f32 %v7421, %v7773
      %v7815 = vmul.f32 %v7423, %v7775
      %v7816 = vmul.f32 %v7425, %v7777
      %v7817 = vmul.f32 %v7427, %v7779
      %v7818 = vmul.f32 %v7429, %v7781
      %v7819 = vmul.f32 %v7431, %v7783
      %v7820 = vmul.f32 %v7433, %v7785
      %v7821 = vmul.f32 %v7435, %v7787
      %v7822 = vmul.f32 %v7437, %v7789
      %v7823 = vmul.f32 %v7439, %v7791
      %7840 = vrot.lane.b32.xlu0 %v7712, 96
      %v7841 = vpop.permute.xlu0 %7840
      %7842 = vrot.lane.b32.xlu0 %v7713, 96
      %v7843 = vpop.permute.xlu0 %7842
      %7844 = vrot.lane.b32.xlu0 %v7714, 96
      %v7845 = vpop.permute.xlu0 %7844
      %7846 = vrot.lane.b32.xlu0 %v7715, 96
      %v7847 = vpop.permute.xlu0 %7846
      %7848 = vrot.lane.b32.xlu0 %v7716, 96
      %v7849 = vpop.permute.xlu0 %7848
      %7850 = vrot.lane.b32.xlu0 %v7717, 96
      %v7851 = vpop.permute.xlu0 %7850
      %7852 = vrot.lane.b32.xlu0 %v7718, 96
      %v7853 = vpop.permute.xlu0 %7852
      %7854 = vrot.lane.b32.xlu0 %v7719, 96
      %v7855 = vpop.permute.xlu0 %7854
      %7856 = vrot.lane.b32.xlu0 %v7720, 96
      %v7857 = vpop.permute.xlu0 %7856
      %7858 = vrot.lane.b32.xlu0 %v7721, 96
      %v7859 = vpop.permute.xlu0 %7858
      %7860 = vrot.lane.b32.xlu0 %v7722, 96
      %v7861 = vpop.permute.xlu0 %7860
      %7862 = vrot.lane.b32.xlu0 %v7723, 96
      %v7863 = vpop.permute.xlu0 %7862
      %7864 = vrot.lane.b32.xlu0 %v7724, 96
      %v7865 = vpop.permute.xlu0 %7864
      %7866 = vrot.lane.b32.xlu0 %v7725, 96
      %v7867 = vpop.permute.xlu0 %7866
      %7868 = vrot.lane.b32.xlu0 %v7726, 96
      %v7869 = vpop.permute.xlu0 %7868
      %7870 = vrot.lane.b32.xlu0 %v7727, 96
      %v7871 = vpop.permute.xlu0 %7870
      %7888 = vst.msk [vmem:[%s304 + $0x80] sm:$0xff] %vm6114, %v7841
      %7889 = vst.msk [vmem:[%s304 + $0x88] sm:$0xff] %vm6114, %v7843
      %7890 = vst.msk [vmem:[%s304 + $0x90] sm:$0xff] %vm6114, %v7845
      %7891 = vst.msk [vmem:[%s304 + $0x98] sm:$0xff] %vm6114, %v7847
      %7892 = vst.msk [vmem:[%s304 + $0xa0] sm:$0xff] %vm6114, %v7849
      %7893 = vst.msk [vmem:[%s304 + $0xa8] sm:$0xff] %vm6114, %v7851
      %7894 = vst.msk [vmem:[%s304 + $0xb0] sm:$0xff] %vm6114, %v7853
      %7895 = vst.msk [vmem:[%s304 + $0xb8] sm:$0xff] %vm6114, %v7855
      %7896 = vst.msk [vmem:[%s304 + $0xc0] sm:$0xff] %vm6114, %v7857
      %7897 = vst.msk [vmem:[%s304 + $0xc8] sm:$0xff] %vm6114, %v7859
      %7898 = vst.msk [vmem:[%s304 + $0xd0] sm:$0xff] %vm6114, %v7861
      %7899 = vst.msk [vmem:[%s304 + $0xd8] sm:$0xff] %vm6114, %v7863
      %7900 = vst.msk [vmem:[%s304 + $0xe0] sm:$0xff] %vm6114, %v7865
      %7901 = vst.msk [vmem:[%s304 + $0xe8] sm:$0xff] %vm6114, %v7867
      %7902 = vst.msk [vmem:[%s304 + $0xf0] sm:$0xff] %vm6114, %v7869
      %7903 = vst.msk [vmem:[%s304 + $0xf8] sm:$0xff] %vm6114, %v7871
      %7920 = vrot.lane.b32.xlu0 %v7808, 64
      %v7921 = vpop.permute.xlu0 %7920
      %7922 = vrot.lane.b32.xlu0 %v7809, 64
      %v7923 = vpop.permute.xlu0 %7922
      %7924 = vrot.lane.b32.xlu0 %v7810, 64
      %v7925 = vpop.permute.xlu0 %7924
      %7926 = vrot.lane.b32.xlu0 %v7811, 64
      %v7927 = vpop.permute.xlu0 %7926
      %7928 = vrot.lane.b32.xlu0 %v7812, 64
      %v7929 = vpop.permute.xlu0 %7928
      %7930 = vrot.lane.b32.xlu0 %v7813, 64
      %v7931 = vpop.permute.xlu0 %7930
      %7932 = vrot.lane.b32.xlu0 %v7814, 64
      %v7933 = vpop.permute.xlu0 %7932
      %7934 = vrot.lane.b32.xlu0 %v7815, 64
      %v7935 = vpop.permute.xlu0 %7934
      %7936 = vrot.lane.b32.xlu0 %v7816, 64
      %v7937 = vpop.permute.xlu0 %7936
      %7938 = vrot.lane.b32.xlu0 %v7817, 64
      %v7939 = vpop.permute.xlu0 %7938
      %7940 = vrot.lane.b32.xlu0 %v7818, 64
      %v7941 = vpop.permute.xlu0 %7940
      %7942 = vrot.lane.b32.xlu0 %v7819, 64
      %v7943 = vpop.permute.xlu0 %7942
      %7944 = vrot.lane.b32.xlu0 %v7820, 64
      %v7945 = vpop.permute.xlu0 %7944
      %7946 = vrot.lane.b32.xlu0 %v7821, 64
      %v7947 = vpop.permute.xlu0 %7946
      %7948 = vrot.lane.b32.xlu0 %v7822, 64
      %v7949 = vpop.permute.xlu0 %7948
      %7950 = vrot.lane.b32.xlu0 %v7823, 64
      %v7951 = vpop.permute.xlu0 %7950
      %7968 = vst.msk [vmem:[%s299 + $0x80] sm:$0xff] %vm6114, %v7921
      %7969 = vst.msk [vmem:[%s299 + $0x88] sm:$0xff] %vm6114, %v7923
      %7970 = vst.msk [vmem:[%s299 + $0x90] sm:$0xff] %vm6114, %v7925
      %7971 = vst.msk [vmem:[%s299 + $0x98] sm:$0xff] %vm6114, %v7927
      %7972 = vst.msk [vmem:[%s299 + $0xa0] sm:$0xff] %vm6114, %v7929
      %7973 = vst.msk [vmem:[%s299 + $0xa8] sm:$0xff] %vm6114, %v7931
      %7974 = vst.msk [vmem:[%s299 + $0xb0] sm:$0xff] %vm6114, %v7933
      %7975 = vst.msk [vmem:[%s299 + $0xb8] sm:$0xff] %vm6114, %v7935
      %7976 = vst.msk [vmem:[%s299 + $0xc0] sm:$0xff] %vm6114, %v7937
      %7977 = vst.msk [vmem:[%s299 + $0xc8] sm:$0xff] %vm6114, %v7939
      %7978 = vst.msk [vmem:[%s299 + $0xd0] sm:$0xff] %vm6114, %v7941
      %7979 = vst.msk [vmem:[%s299 + $0xd8] sm:$0xff] %vm6114, %v7943
      %7980 = vst.msk [vmem:[%s299 + $0xe0] sm:$0xff] %vm6114, %v7945
      %7981 = vst.msk [vmem:[%s299 + $0xe8] sm:$0xff] %vm6114, %v7947
      %7982 = vst.msk [vmem:[%s299 + $0xf0] sm:$0xff] %vm6114, %v7949
      %7983 = vst.msk [vmem:[%s299 + $0xf8] sm:$0xff] %vm6114, %v7951
      %p7984 = scmp.lt.s32.totalorder %s18, 1
      %s7985 = scalar_select %p7984, %s18, 1
      %s7986 = smul.addr %s7985, 32
      %s7987 = smul.addr %s7986, 8
      %s7988 = scalar_lea.vmem %s5, %s7987
      %p7989 = scmp.lt.s32.totalorder %s18, 1
      %s7990 = scalar_select %p7989, %s18, 1
      %s7991 = smul.addr %s7990, 32
      %s7992 = smul.addr %s7991, 8
      %s7993 = scalar_lea.vmem %s6, %s7992
      // Predicated region
      $region41: #{tpu_custom_call.1} parent=39 // pred_check
        %p7994 = pneg %p156
      $region42: #{tpu_custom_call.1} parent=39 // pred_check_branch
        %7996 = sbr.rel (%p7994) target = $region44
      $region43: #{tpu_custom_call.1} parent=39 // pred_region
        _
      $region44: #{tpu_custom_call.1} parent=39 // pred_fallthru
        _
      // Predicated region
      $region45: #{tpu_custom_call.1} parent=39 // pred_check
        %p7997 = pneg %p182
      $region46: #{tpu_custom_call.1} parent=39 // pred_check_branch
        %7999 = sbr.rel (%p7997) target = $region48
      $region47: #{tpu_custom_call.1} parent=39 // pred_region
        _
      $region48: #{tpu_custom_call.1} parent=39 // pred_fallthru
        _
    $region40: #{tpu_custom_call.1} parent=5 // pred_fallthru
      _
    %p8000 = scmp.le.s32.totalorder 2, %s13
    // Predicated region
    $region49: #{tpu_custom_call.1} parent=5 // pred_check
      %p8001 = pneg %p8000
    $region50: #{tpu_custom_call.1} parent=5 // pred_check_branch
      %8003 = sbr.rel (%p8001) target = $region52
    $region51: #{tpu_custom_call.1} parent=5 // pred_region
      %s8004 = ssub.s32 %s13, 2
      // Predicated region
      $region53: #{tpu_custom_call.1} parent=51 // pred_check
        %p8005 = pneg %p162
      $region54: #{tpu_custom_call.1} parent=51 // pred_check_branch
        %8007 = sbr.rel (%p8005) target = $region56
      $region55: #{tpu_custom_call.1} parent=51 // pred_region
        %p8008 = scmp.lt.s32.totalorder %s19, 1
        %s8009 = scalar_select %p8008, %s19, 1
        %s8010 = smul.addr %s8009, 32
        %s8011 = smul.addr %s8010, 8
        %s8012 = scalar_lea.vmem %s5, %s8011
      $region56: #{tpu_custom_call.1} parent=51 // pred_fallthru
        _
      // Predicated region
      $region57: #{tpu_custom_call.1} parent=51 // pred_check
        %p8013 = pneg %p188
      $region58: #{tpu_custom_call.1} parent=51 // pred_check_branch
        %8015 = sbr.rel (%p8013) target = $region60
      $region59: #{tpu_custom_call.1} parent=51 // pred_region
        %p8016 = scmp.lt.s32.totalorder %s19, 1
        %s8017 = scalar_select %p8016, %s19, 1
        %s8018 = smul.addr %s8017, 32
        %s8019 = smul.addr %s8018, 8
        %s8020 = scalar_lea.vmem %s6, %s8019
      $region60: #{tpu_custom_call.1} parent=51 // pred_fallthru
        _
    $region52: #{tpu_custom_call.1} parent=5 // pred_fallthru
      _
  $region6: #{tpu_custom_call.1} parent=0 // loop_footer
    %s17 = sadd.s32 1, %s13
  $region7: #{tpu_custom_call.1} parent=0 // loop_footer_branch
    %12 = sbr.rel target = $region3
  $region8: #{tpu_custom_call.1} parent=0 // loop_exit
    _

</llo_original>
